<compile_context>
chip_gen: v7x
topology: tpu7x:2x2x1
jax: 0.10.0
libtpu: 0.0.40
codegen_flags: <defaults>
</compile_context>

<pallas_src>
import math

import jax
import jax.numpy as jnp
from jax.experimental import pallas as pl
from jax.experimental.pallas import tpu as pltpu

N_GROUPS = 32          # nn.GroupNorm(32, channels, 1e-6)
GN_EPS = 1e-6
LN_EPS = 1e-5          # PyTorch nn.LayerNorm default eps

PARAM_ORDER = [
    "gmask", "gmask_t", "gn_g", "gn_b",
    "wci", "bci",
    "ln1_g", "ln1_b", "wq1h", "wk1h", "wv1h", "wo1h", "bo1",
    "ln2_g", "ln2_b", "wq2h", "wk2h", "wv2h", "wo2h", "bo2",
    "ln3_g", "ln3_b", "wg1v", "bg1v", "wg1g", "bg1g", "wg2", "bg2",
    "wco", "bco",
]


def _make_kernel(n_head: int, tq: int):
    bf16 = jnp.bfloat16
    f32 = jnp.float32
    n_params = len(PARAM_ORDER)

    def layer_norm(h, g, b):
        mu = jnp.mean(h, axis=-1, keepdims=True)
        var = jnp.mean(jnp.square(h - mu), axis=-1, keepdims=True)
        return (h - mu) * jax.lax.rsqrt(var + LN_EPS) * g + b

    def gelu_exact(x):
        # F.gelu default ('none') is the erf-based exact gelu.
        return 0.5 * x * (1.0 + jax.lax.erf(x * (1.0 / math.sqrt(2.0))))

    def proj_q_heads(t_b16, w_ref):
        # (TQ, C) x (H, C, dh) -> (H, TQ, dh): one batched MXU contraction; heads live
        # on the leading axis so there is no lane slicing / concatenation.
        w = w_ref[...]
        t3 = jnp.broadcast_to(t_b16[None], (w.shape[0],) + t_b16.shape)
        return jnp.einsum("hqc,hcd->hqd", t3, w, preferred_element_type=f32)

    def attend(q_heads, k_b16, v_b16):
        # q: (H, TQ, dh) f32 (1/sqrt(dh) already folded into Wq); k/v: (H, S, dh) bf16.
        s = jnp.einsum("hqd,hkd->hqk", q_heads.astype(bf16), k_b16,
                       preferred_element_type=f32)
        s = s - jnp.max(s, axis=-1, keepdims=True)
        p = jnp.exp(s)
        p = p * pl.reciprocal(jnp.sum(p, axis=-1, keepdims=True), approx=True)
        return jnp.einsum("hqk,hkd->hqd", p.astype(bf16), v_b16,
                          preferred_element_type=f32)

    def out_proj(o_heads, wo_ref, b_ref):
        # (H, TQ, dh) x (H, dh, C) summed over heads == concat(heads) @ Wo.
        y = jnp.einsum("hqd,hdc->hqc", o_heads.astype(bf16), wo_ref[...],
                       preferred_element_type=f32)
        return jnp.sum(y, axis=0) + b_ref[...]

    def kernel(x_ref, ctx_ref, *rest):
        p = dict(zip(PARAM_ORDER, rest[:n_params]))
        out_ref = rest[n_params]
        xt_s, h1_s, t1_s, k1_s, v1_s, k2_s, v2_s = rest[n_params + 1:]

        qt = pl.program_id(1)

        # ------- once per image (first token tile): full-sequence prep into scratch -------
        @pl.when(qt == 0)
        def _prep():
            xt = x_ref[0].T                      # (HW, C) token-major, in-VMEM transpose
            xt_s[...] = xt
            hw, c = xt.shape
            cnt = float(hw * (c // N_GROUPS))

            # GroupNorm(32, C, eps=1e-6): centered two-pass stats; channel<->group
            # reductions ride the MXU via the one-hot group-membership matrix.
            gmask = p["gmask"][...]              # (C, G)
            gmask_t = p["gmask_t"][...]          # (G, C)
            s1 = jnp.sum(xt, axis=0, keepdims=True)
            mean_c = jnp.dot(jnp.dot(s1, gmask, preferred_element_type=f32) / cnt,
                             gmask_t, preferred_element_type=f32)
            xc = xt - mean_c
            s2 = jnp.sum(xc * xc, axis=0, keepdims=True)
            var_c = jnp.dot(jnp.dot(s2, gmask, preferred_element_type=f32) / cnt,
                            gmask_t, preferred_element_type=f32)
            hn = xc * jax.lax.rsqrt(var_c + GN_EPS) * p["gn_g"][...] + p["gn_b"][...]

            # conv_input: 1x1 conv == per-token matmul (bf16 x bf16 -> f32 accum)
            h1 = jnp.dot(hn.astype(bf16), p["wci"][...],
                         preferred_element_type=f32) + p["bci"][...]
            h1_s[...] = h1

            # LN1 over the full sequence, cached (reused per tile for the Q projection
            # and fed straight into the self-attention K/V projections below).
            t1 = layer_norm(h1, p["ln1_g"][...], p["ln1_b"][...]).astype(bf16)
            t1_s[...] = t1

            # Full-sequence self-attention K/V and context cross-attention K/V, stored
            # head-major in bf16.  Static per-head loop writes straight into the
            # head-leading scratch (avoids materializing an (H, S, C) broadcast of the
            # full sequence); the per-tile hot path below is fully batched over heads.
            ctx_b = ctx_ref[0].astype(bf16)
            wk1 = p["wk1h"][...]; wv1 = p["wv1h"][...]
            wk2 = p["wk2h"][...]; wv2 = p["wv2h"][...]
            for h in range(n_head):
                k1_s[h] = jnp.dot(t1, wk1[h], preferred_element_type=f32).astype(bf16)
                v1_s[h] = jnp.dot(t1, wv1[h], preferred_element_type=f32).astype(bf16)
                k2_s[h] = jnp.dot(ctx_b, wk2[h], preferred_element_type=f32).astype(bf16)
                v2_s[h] = jnp.dot(ctx_b, wv2[h], preferred_element_type=f32).astype(bf16)

        # ------- per token-tile work -------
        row0 = pl.multiple_of(qt * tq, tq)
        res1 = h1_s[pl.ds(row0, tq), :]          # (TQ, C) f32

        # block 1: self-attention + residual (LN1 tile read from the prep cache)
        t = t1_s[pl.ds(row0, tq), :]             # (TQ, C) bf16
        o1 = attend(proj_q_heads(t, p["wq1h"]), k1_s[...], v1_s[...])
        h2 = res1 + out_proj(o1, p["wo1h"], p["bo1"])

        # block 2: LayerNorm + cross-attention (context) + residual
        t = layer_norm(h2, p["ln2_g"][...], p["ln2_b"][...]).astype(bf16)
        o2 = attend(proj_q_heads(t, p["wq2h"]), k2_s[...], v2_s[...])
        h3 = h2 + out_proj(o2, p["wo2h"], p["bo2"])

        # block 3: LayerNorm + GEGLU (value/gate halves kept separate) + residual
        t = layer_norm(h3, p["ln3_g"][...], p["ln3_b"][...]).astype(bf16)
        val = jnp.dot(t, p["wg1v"][...], preferred_element_type=f32) + p["bg1v"][...]
        gate = jnp.dot(t, p["wg1g"][...], preferred_element_type=f32) + p["bg1g"][...]
        a = (val * gelu_exact(gate)).astype(bf16)
        h4 = h3 + jnp.dot(a, p["wg2"][...], preferred_element_type=f32) + p["bg2"][...]

        # conv_output (1x1) + long residual (original input x, token-major)
        y = jnp.dot(h4.astype(bf16), p["wco"][...],
                    preferred_element_type=f32) + p["bco"][...]
        out_ref[0] = y + xt_s[pl.ds(row0, tq), :]

    return kernel


def prepare_params(params, n_head):
    """Cast / reshape PyTorch-layout params for the kernel.

    - matmul weights -> bf16 (MXU); norm params & biases stay f32 (VPU).
    - q/k/v/out projections -> head-major (n_head, ..., d_head); 1/sqrt(d_head)
      folded into Wq so the kernel has no per-score scale multiply.
    - GEGLU weight/bias split into value and gate halves (matches .chunk(2, -1)).
    """
    bf16 = jnp.bfloat16
    C = params["w_ci"].shape[0]
    d_head = C // n_head
    d_ff = 4 * C
    scale = 1.0 / math.sqrt(d_head)

    def heads_in(w):      # (D_in, n_head*d_head) -> (n_head, D_in, d_head)
        return jnp.transpose(jnp.reshape(w, (w.shape[0], n_head, d_head)), (1, 0, 2))

    def heads_out(w):     # (n_head*d_head, C) -> (n_head, d_head, C)
        return jnp.reshape(w, (n_head, d_head, w.shape[1]))

    out = {
        "gmask": params["gmask"],
        "gmask_t": jnp.transpose(params["gmask"]),
        "gn_g": params["gn_g"], "gn_b": params["gn_b"],
        "wci": params["w_ci"].astype(bf16), "bci": params["b_ci"],
        "ln1_g": params["ln1_g"], "ln1_b": params["ln1_b"],
        "wq1h": (heads_in(params["wq1"]) * scale).astype(bf16),
        "wk1h": heads_in(params["wk1"]).astype(bf16),
        "wv1h": heads_in(params["wv1"]).astype(bf16),
        "wo1h": heads_out(params["wo1"]).astype(bf16),
        "bo1": params["bo1"],
        "ln2_g": params["ln2_g"], "ln2_b": params["ln2_b"],
        "wq2h": (heads_in(params["wq2"]) * scale).astype(bf16),
        "wk2h": heads_in(params["wk2"]).astype(bf16),
        "wv2h": heads_in(params["wv2"]).astype(bf16),
        "wo2h": heads_out(params["wo2"]).astype(bf16),
        "bo2": params["bo2"],
        "ln3_g": params["ln3_g"], "ln3_b": params["ln3_b"],
        "wg1v": params["wg1"][:, :d_ff].astype(bf16), "bg1v": params["bg1"][:, :d_ff],
        "wg1g": params["wg1"][:, d_ff:].astype(bf16), "bg1g": params["bg1"][:, d_ff:],
        "wg2": params["wg2"].astype(bf16), "bg2": params["bg2"],
        "wco": params["w_co"].astype(bf16), "bco": params["b_co"],
    }
    return [out[k] for k in PARAM_ORDER]


def unet_attention_block(x_nchw, context, params, n_head, tq=None):
    """x_nchw: (B, C, H, W); context: (B, Lc, Dc).  Returns (B, C, H, W) f32."""
    B, C, H, W = x_nchw.shape
    HW = H * W
    Lc, Dc = context.shape[1], context.shape[2]
    assert C % N_GROUPS == 0, "GroupNorm(32, C) requires C % 32 == 0"
    assert C % n_head == 0
    d_head = C // n_head

    if tq is None:
        tq = HW if HW <= 512 else 512
    assert HW % tq == 0 and tq % 8 == 0

    x_chw = jnp.reshape(x_nchw, (B, C, HW))   # no HBM transpose on the input side
    weights = prepare_params(params, n_head)

    in_specs = [
        pl.BlockSpec((1, C, HW), lambda b, q: (b, 0, 0)),
        pl.BlockSpec((1, Lc, Dc), lambda b, q: (b, 0, 0)),
    ] + [pl.BlockSpec(w.shape, lambda b, q, nd=w.ndim: (0,) * nd) for w in weights]

    d_ff = 4 * C
    mm = (8 * 2 * HW * C * C + 4 * HW * HW * C + 4 * Lc * Dc * C
          + 4 * HW * Lc * C + 3 * 2 * HW * C * d_ff)
    cost = pl.CostEstimate(
        flops=int(B * mm),
        transcendentals=int(B * HW * (n_head * (HW + Lc) + d_ff)),
        bytes_accessed=int(4 * (x_chw.size + context.size + B * HW * C)
                           + sum(int(w.size) * w.dtype.itemsize for w in weights)),
    )

    out_tok = pl.pallas_call(
        _make_kernel(n_head, tq),
        out_shape=jax.ShapeDtypeStruct((B, HW, C), jnp.float32),
        grid=(B, HW // tq),
        in_specs=in_specs,
        out_specs=pl.BlockSpec((1, tq, C), lambda b, q: (b, q, 0)),
        scratch_shapes=[
            pltpu.VMEM((HW, C), jnp.float32),                   # x, token-major
            pltpu.VMEM((HW, C), jnp.float32),                   # post conv_input acts
            pltpu.VMEM((HW, C), jnp.bfloat16),                  # cached LN1 output
            pltpu.VMEM((n_head, HW, d_head), jnp.bfloat16),     # self-attn K
            pltpu.VMEM((n_head, HW, d_head), jnp.bfloat16),     # self-attn V
            pltpu.VMEM((n_head, Lc, d_head), jnp.bfloat16),     # cross-attn K
            pltpu.VMEM((n_head, Lc, d_head), jnp.bfloat16),     # cross-attn V
        ],
        compiler_params=pltpu.CompilerParams(
            dimension_semantics=("parallel", "arbitrary"),
            vmem_limit_bytes=48 * 1024 * 1024),
        cost_estimate=cost,
    )(x_chw, context, *weights)

    # tokens -> NCHW (single wrapper-side transpose, output only)
    return jnp.reshape(jnp.transpose(out_tok, (0, 2, 1)), (B, C, H, W))


def init_params(key, n_head, n_embed, d_context):
    """Deterministic synthetic parameters in the PyTorch module's layout.

    Linear / 1x1-conv weights are stored as (in_features, out_features) so the
    kernel computes y = x @ W + b.
    """
    C = n_head * n_embed
    ks = jax.random.split(key, 32)
    ki = iter(range(32))

    def w(shape, scale=0.05):
        return scale * jax.random.normal(ks[next(ki)], shape, dtype=jnp.float32)

    g_size = C // N_GROUPS
    gmask = (jnp.arange(C)[:, None] // g_size ==
             jnp.arange(N_GROUPS)[None, :]).astype(jnp.float32)   # (C, 32) one-hot

    return {
        "gmask": gmask,
        "gn_g": 1.0 + w((1, C), 0.1), "gn_b": w((1, C), 0.1),
        "w_ci": w((C, C)), "b_ci": w((1, C), 0.02),
        "ln1_g": 1.0 + w((1, C), 0.1), "ln1_b": w((1, C), 0.1),
        "wq1": w((C, C)), "wk1": w((C, C)), "wv1": w((C, C)),     # in_proj_bias=False
        "wo1": w((C, C)), "bo1": w((1, C), 0.02),
        "ln2_g": 1.0 + w((1, C), 0.1), "ln2_b": w((1, C), 0.1),
        "wq2": w((C, C)),
        "wk2": w((d_context, C)), "wv2": w((d_context, C)),       # in_proj_bias=False
        "wo2": w((C, C)), "bo2": w((1, C), 0.02),
        "ln3_g": 1.0 + w((1, C), 0.1), "ln3_b": w((1, C), 0.1),
        "wg1": w((C, 8 * C)), "bg1": w((1, 8 * C), 0.02),
        "wg2": w((4 * C, C)), "bg2": w((1, C), 0.02),
        "w_co": w((C, C)), "b_co": w((1, C), 0.02),
    }


if __name__ == "__main__":
    key = jax.random.PRNGKey(0)
    kx, kc, kp = jax.random.split(key, 3)

    # Channels = n_head * n_embed must be divisible by 32 (GroupNorm(32, ...)).
    n_head, n_embed, d_context = 4, 8, 64
    C = n_head * n_embed            # 32
    B, H, W, Lc = 2, 8, 8, 8        # 64 tokens per image, two 32-token tiles

    x = jax.random.normal(kx, (B, C, H, W), dtype=jnp.float32)
    context = jax.random.normal(kc, (B, Lc, d_context), dtype=jnp.float32)
    params = init_params(kp, n_head, n_embed, d_context)

    out = unet_attention_block(x, context, params, n_head, tq=32)
    out = jax.block_until_ready(out)
    assert out.shape == x.shape and out.dtype == jnp.float32
    assert bool(jnp.all(jnp.isfinite(out)))
    print("KERNEL_OK")
</pallas_src>

<mosaic_0001>
module attributes {stable_mosaic.version = 11 : i64} {
  func.func @kernel(%arg0: i32, %arg1: i32, %arg2: memref<1x32x64xf32, #tpu.memory_space<vmem>>, %arg3: memref<1x8x64xf32, #tpu.memory_space<vmem>>, %arg4: memref<32x32xf32, #tpu.memory_space<vmem>>, %arg5: memref<32x32xf32, #tpu.memory_space<vmem>>, %arg6: memref<1x32xf32, #tpu.memory_space<vmem>>, %arg7: memref<1x32xf32, #tpu.memory_space<vmem>>, %arg8: memref<32x32xbf16, #tpu.memory_space<vmem>>, %arg9: memref<1x32xf32, #tpu.memory_space<vmem>>, %arg10: memref<1x32xf32, #tpu.memory_space<vmem>>, %arg11: memref<1x32xf32, #tpu.memory_space<vmem>>, %arg12: memref<4x32x8xbf16, #tpu.memory_space<vmem>>, %arg13: memref<4x32x8xbf16, #tpu.memory_space<vmem>>, %arg14: memref<4x32x8xbf16, #tpu.memory_space<vmem>>, %arg15: memref<4x8x32xbf16, #tpu.memory_space<vmem>>, %arg16: memref<1x32xf32, #tpu.memory_space<vmem>>, %arg17: memref<1x32xf32, #tpu.memory_space<vmem>>, %arg18: memref<1x32xf32, #tpu.memory_space<vmem>>, %arg19: memref<4x32x8xbf16, #tpu.memory_space<vmem>>, %arg20: memref<4x64x8xbf16, #tpu.memory_space<vmem>>, %arg21: memref<4x64x8xbf16, #tpu.memory_space<vmem>>, %arg22: memref<4x8x32xbf16, #tpu.memory_space<vmem>>, %arg23: memref<1x32xf32, #tpu.memory_space<vmem>>, %arg24: memref<1x32xf32, #tpu.memory_space<vmem>>, %arg25: memref<1x32xf32, #tpu.memory_space<vmem>>, %arg26: memref<32x128xbf16, #tpu.memory_space<vmem>>, %arg27: memref<1x128xf32, #tpu.memory_space<vmem>>, %arg28: memref<32x128xbf16, #tpu.memory_space<vmem>>, %arg29: memref<1x128xf32, #tpu.memory_space<vmem>>, %arg30: memref<128x32xbf16, #tpu.memory_space<vmem>>, %arg31: memref<1x32xf32, #tpu.memory_space<vmem>>, %arg32: memref<32x32xbf16, #tpu.memory_space<vmem>>, %arg33: memref<1x32xf32, #tpu.memory_space<vmem>>, %arg34: memref<1x32x32xf32, #tpu.memory_space<vmem>>, %arg35: memref<64x32xf32, #tpu.memory_space<vmem>>, %arg36: memref<64x32xf32, #tpu.memory_space<vmem>>, %arg37: memref<64x32xbf16, #tpu.memory_space<vmem>>, %arg38: memref<4x64x8xbf16, #tpu.memory_space<vmem>>, %arg39: memref<4x64x8xbf16, #tpu.memory_space<vmem>>, %arg40: memref<4x8x8xbf16, #tpu.memory_space<vmem>>, %arg41: memref<4x8x8xbf16, #tpu.memory_space<vmem>>) attributes {dimension_semantics = [#tpu.dimension_semantics<parallel>, #tpu.dimension_semantics<arbitrary>], iteration_bounds = array<i64: 2, 2>, scalar_prefetch = 0 : i64, scratch_operands = 7 : i64, tpu.core_type = #tpu.core_type<tc>, window_params = [{transform_indices = @transform_0, window_bounds = array<i64: 1, 32, 64>}, {transform_indices = @transform_1, window_bounds = array<i64: 1, 8, 64>}, {pipeline_mode = #tpu.pipeline_mode<synchronous>, transform_indices = @transform_2, window_bounds = array<i64: 32, 32>}, {pipeline_mode = #tpu.pipeline_mode<synchronous>, transform_indices = @transform_3, window_bounds = array<i64: 32, 32>}, {pipeline_mode = #tpu.pipeline_mode<synchronous>, transform_indices = @transform_4, window_bounds = array<i64: 1, 32>}, {pipeline_mode = #tpu.pipeline_mode<synchronous>, transform_indices = @transform_5, window_bounds = array<i64: 1, 32>}, {pipeline_mode = #tpu.pipeline_mode<synchronous>, transform_indices = @transform_6, window_bounds = array<i64: 32, 32>}, {pipeline_mode = #tpu.pipeline_mode<synchronous>, transform_indices = @transform_7, window_bounds = array<i64: 1, 32>}, {pipeline_mode = #tpu.pipeline_mode<synchronous>, transform_indices = @transform_8, window_bounds = array<i64: 1, 32>}, {pipeline_mode = #tpu.pipeline_mode<synchronous>, transform_indices = @transform_9, window_bounds = array<i64: 1, 32>}, {pipeline_mode = #tpu.pipeline_mode<synchronous>, transform_indices = @transform_10, window_bounds = array<i64: 4, 32, 8>}, {pipeline_mode = #tpu.pipeline_mode<synchronous>, transform_indices = @transform_11, window_bounds = array<i64: 4, 32, 8>}, {pipeline_mode = #tpu.pipeline_mode<synchronous>, transform_indices = @transform_12, window_bounds = array<i64: 4, 32, 8>}, {pipeline_mode = #tpu.pipeline_mode<synchronous>, transform_indices = @transform_13, window_bounds = array<i64: 4, 8, 32>}, {pipeline_mode = #tpu.pipeline_mode<synchronous>, transform_indices = @transform_14, window_bounds = array<i64: 1, 32>}, {pipeline_mode = #tpu.pipeline_mode<synchronous>, transform_indices = @transform_15, window_bounds = array<i64: 1, 32>}, {pipeline_mode = #tpu.pipeline_mode<synchronous>, transform_indices = @transform_16, window_bounds = array<i64: 1, 32>}, {pipeline_mode = #tpu.pipeline_mode<synchronous>, transform_indices = @transform_17, window_bounds = array<i64: 4, 32, 8>}, {pipeline_mode = #tpu.pipeline_mode<synchronous>, transform_indices = @transform_18, window_bounds = array<i64: 4, 64, 8>}, {pipeline_mode = #tpu.pipeline_mode<synchronous>, transform_indices = @transform_19, window_bounds = array<i64: 4, 64, 8>}, {pipeline_mode = #tpu.pipeline_mode<synchronous>, transform_indices = @transform_20, window_bounds = array<i64: 4, 8, 32>}, {pipeline_mode = #tpu.pipeline_mode<synchronous>, transform_indices = @transform_21, window_bounds = array<i64: 1, 32>}, {pipeline_mode = #tpu.pipeline_mode<synchronous>, transform_indices = @transform_22, window_bounds = array<i64: 1, 32>}, {pipeline_mode = #tpu.pipeline_mode<synchronous>, transform_indices = @transform_23, window_bounds = array<i64: 1, 32>}, {pipeline_mode = #tpu.pipeline_mode<synchronous>, transform_indices = @transform_24, window_bounds = array<i64: 32, 128>}, {pipeline_mode = #tpu.pipeline_mode<synchronous>, transform_indices = @transform_25, window_bounds = array<i64: 1, 128>}, {pipeline_mode = #tpu.pipeline_mode<synchronous>, transform_indices = @transform_26, window_bounds = array<i64: 32, 128>}, {pipeline_mode = #tpu.pipeline_mode<synchronous>, transform_indices = @transform_27, window_bounds = array<i64: 1, 128>}, {pipeline_mode = #tpu.pipeline_mode<synchronous>, transform_indices = @transform_28, window_bounds = array<i64: 128, 32>}, {pipeline_mode = #tpu.pipeline_mode<synchronous>, transform_indices = @transform_29, window_bounds = array<i64: 1, 32>}, {pipeline_mode = #tpu.pipeline_mode<synchronous>, transform_indices = @transform_30, window_bounds = array<i64: 32, 32>}, {pipeline_mode = #tpu.pipeline_mode<synchronous>, transform_indices = @transform_31, window_bounds = array<i64: 1, 32>}, {transform_indices = @transform_32, window_bounds = array<i64: 1, 32, 32>}]} {
    %c0_i32 = arith.constant 0 : i32
    %0 = arith.cmpi eq, %arg1, %c0_i32 : i32
    %1 = arith.extui %0 : i1 to i32
    %c0_i32_0 = arith.constant 0 : i32
    %2 = arith.cmpi ne, %1, %c0_i32_0 : i32
    scf.if %2 {
      %c0_88 = arith.constant 0 : index
      %c0_89 = arith.constant 0 : index
      %c0_90 = arith.constant 0 : index
      %155 = vector.load %arg2[%c0_88, %c0_89, %c0_90] : memref<1x32x64xf32, #tpu.memory_space<vmem>>, vector<1x32x64xf32>
      %156 = vector.shape_cast %155 : vector<1x32x64xf32> to vector<32x64xf32>
      %157 = tpu.transpose %156, [1, 0] : vector<32x64xf32> -> vector<64x32xf32>
      %c0_91 = arith.constant 0 : index
      %c0_92 = arith.constant 0 : index
      %158 = vector.load %arg35[%c0_91, %c0_92] : memref<64x32xf32, #tpu.memory_space<vmem>>, vector<64x32xf32>
      tpu.vector_store %arg35[%c0_91, %c0_92], %157 {strides = array<i32>} : memref<64x32xf32, #tpu.memory_space<vmem>>, vector<64x32xf32>,
      %c0_93 = arith.constant 0 : index
      %c0_94 = arith.constant 0 : index
      %159 = vector.load %arg4[%c0_93, %c0_94] : memref<32x32xf32, #tpu.memory_space<vmem>>, vector<32x32xf32>
      %c0_95 = arith.constant 0 : index
      %c0_96 = arith.constant 0 : index
      %160 = vector.load %arg5[%c0_95, %c0_96] : memref<32x32xf32, #tpu.memory_space<vmem>>, vector<32x32xf32>
      %cst_97 = arith.constant dense<0.000000e+00> : vector<32xf32>
      %161 = vector.multi_reduction <add>, %157, %cst_97 [0] : vector<64x32xf32> to vector<32xf32>
      %162 = vector.shape_cast %161 : vector<32xf32> to vector<1x32xf32>
      %cst_98 = arith.constant dense<0.000000e+00> : vector<1x32xf32>
      %163 = tpu.matmul %162, %159, %cst_98 {dimension_numbers = #tpu.dot_dimension_numbers<[1], [0], [0], [1], [0, 0, 1, 1], [], []>} : vector<1x32xf32>, vector<32x32xf32>, vector<1x32xf32> -> vector<1x32xf32>
      %cst_99 = arith.constant 6.400000e+01 : f32
      %164 = vector.broadcast %cst_99 : f32 to vector<1x32xf32>
      %165 = arith.divf %163, %164 : vector<1x32xf32>
      %cst_100 = arith.constant dense<0.000000e+00> : vector<1x32xf32>
      %166 = tpu.matmul %165, %160, %cst_100 {dimension_numbers = #tpu.dot_dimension_numbers<[1], [0], [0], [1], [0, 0, 1, 1], [], []>} : vector<1x32xf32>, vector<32x32xf32>, vector<1x32xf32> -> vector<1x32xf32>
      %167 = vector.broadcast %166 : vector<1x32xf32> to vector<64x32xf32>
      %168 = arith.subf %157, %167 : vector<64x32xf32>
      %169 = arith.mulf %168, %168 : vector<64x32xf32>
      %cst_101 = arith.constant dense<0.000000e+00> : vector<32xf32>
      %170 = vector.multi_reduction <add>, %169, %cst_101 [0] : vector<64x32xf32> to vector<32xf32>
      %171 = vector.shape_cast %170 : vector<32xf32> to vector<1x32xf32>
      %cst_102 = arith.constant dense<0.000000e+00> : vector<1x32xf32>
      %172 = tpu.matmul %171, %159, %cst_102 {dimension_numbers = #tpu.dot_dimension_numbers<[1], [0], [0], [1], [0, 0, 1, 1], [], []>} : vector<1x32xf32>, vector<32x32xf32>, vector<1x32xf32> -> vector<1x32xf32>
      %cst_103 = arith.constant 6.400000e+01 : f32
      %173 = vector.broadcast %cst_103 : f32 to vector<1x32xf32>
      %174 = arith.divf %172, %173 : vector<1x32xf32>
      %cst_104 = arith.constant dense<0.000000e+00> : vector<1x32xf32>
      %175 = tpu.matmul %174, %160, %cst_104 {dimension_numbers = #tpu.dot_dimension_numbers<[1], [0], [0], [1], [0, 0, 1, 1], [], []>} : vector<1x32xf32>, vector<32x32xf32>, vector<1x32xf32> -> vector<1x32xf32>
      %cst_105 = arith.constant 9.99999997E-7 : f32
      %176 = vector.broadcast %cst_105 : f32 to vector<1x32xf32>
      %177 = arith.addf %175, %176 : vector<1x32xf32>
      %178 = math.rsqrt %177 : vector<1x32xf32>
      %179 = vector.broadcast %178 : vector<1x32xf32> to vector<64x32xf32>
      %180 = arith.mulf %168, %179 : vector<64x32xf32>
      %c0_106 = arith.constant 0 : index
      %c0_107 = arith.constant 0 : index
      %181 = vector.load %arg6[%c0_106, %c0_107] : memref<1x32xf32, #tpu.memory_space<vmem>>, vector<1x32xf32>
      %182 = vector.broadcast %181 : vector<1x32xf32> to vector<64x32xf32>
      %183 = arith.mulf %180, %182 : vector<64x32xf32>
      %c0_108 = arith.constant 0 : index
      %c0_109 = arith.constant 0 : index
      %184 = vector.load %arg7[%c0_108, %c0_109] : memref<1x32xf32, #tpu.memory_space<vmem>>, vector<1x32xf32>
      %185 = vector.broadcast %184 : vector<1x32xf32> to vector<64x32xf32>
      %186 = arith.addf %183, %185 : vector<64x32xf32>
      %187 = arith.truncf %186 : vector<64x32xf32> to vector<64x32xbf16>
      %c0_110 = arith.constant 0 : index
      %c0_111 = arith.constant 0 : index
      %188 = vector.load %arg8[%c0_110, %c0_111] : memref<32x32xbf16, #tpu.memory_space<vmem>>, vector<32x32xbf16>
      %cst_112 = arith.constant dense<0.000000e+00> : vector<64x32xf32>
      %189 = tpu.matmul %187, %188, %cst_112 {dimension_numbers = #tpu.dot_dimension_numbers<[1], [0], [0], [1], [0, 0, 1, 1], [], []>} : vector<64x32xbf16>, vector<32x32xbf16>, vector<64x32xf32> -> vector<64x32xf32>
      %c0_113 = arith.constant 0 : index
      %c0_114 = arith.constant 0 : index
      %190 = vector.load %arg9[%c0_113, %c0_114] : memref<1x32xf32, #tpu.memory_space<vmem>>, vector<1x32xf32>
      %191 = vector.broadcast %190 : vector<1x32xf32> to vector<64x32xf32>
      %192 = arith.addf %189, %191 : vector<64x32xf32>
      %c0_115 = arith.constant 0 : index
      %c0_116 = arith.constant 0 : index
      %193 = vector.load %arg36[%c0_115, %c0_116] : memref<64x32xf32, #tpu.memory_space<vmem>>, vector<64x32xf32>
      tpu.vector_store %arg36[%c0_115, %c0_116], %192 {strides = array<i32>} : memref<64x32xf32, #tpu.memory_space<vmem>>, vector<64x32xf32>,
      %c0_117 = arith.constant 0 : index
      %c0_118 = arith.constant 0 : index
      %194 = vector.load %arg10[%c0_117, %c0_118] : memref<1x32xf32, #tpu.memory_space<vmem>>, vector<1x32xf32>
      %c0_119 = arith.constant 0 : index
      %c0_120 = arith.constant 0 : index
      %195 = vector.load %arg11[%c0_119, %c0_120] : memref<1x32xf32, #tpu.memory_space<vmem>>, vector<1x32xf32>
      %cst_121 = arith.constant dense<0.000000e+00> : vector<64xf32>
      %196 = vector.multi_reduction <add>, %192, %cst_121 [1] : vector<64x32xf32> to vector<64xf32>
      %197 = vector.shape_cast %196 : vector<64xf32> to vector<64x1xf32>
      %cst_122 = arith.constant 3.200000e+01 : f32
      %198 = vector.broadcast %cst_122 : f32 to vector<64x1xf32>
      %199 = arith.divf %197, %198 : vector<64x1xf32>
      %200 = vector.broadcast %199 : vector<64x1xf32> to vector<64x32xf32>
      %201 = arith.subf %192, %200 : vector<64x32xf32>
      %202 = arith.mulf %201, %201 : vector<64x32xf32>
      %cst_123 = arith.constant dense<0.000000e+00> : vector<64xf32>
      %203 = vector.multi_reduction <add>, %202, %cst_123 [1] : vector<64x32xf32> to vector<64xf32>
      %204 = vector.shape_cast %203 : vector<64xf32> to vector<64x1xf32>
      %cst_124 = arith.constant 3.200000e+01 : f32
      %205 = vector.broadcast %cst_124 : f32 to vector<64x1xf32>
      %206 = arith.divf %204, %205 : vector<64x1xf32>
      %207 = vector.broadcast %199 : vector<64x1xf32> to vector<64x32xf32>
      %208 = arith.subf %192, %207 : vector<64x32xf32>
      %cst_125 = arith.constant 9.99999974E-6 : f32
      %209 = vector.broadcast %cst_125 : f32 to vector<64x1xf32>
      %210 = arith.addf %206, %209 : vector<64x1xf32>
      %211 = math.rsqrt %210 : vector<64x1xf32>
      %212 = vector.broadcast %211 : vector<64x1xf32> to vector<64x32xf32>
      %213 = arith.mulf %208, %212 : vector<64x32xf32>
      %214 = vector.broadcast %194 : vector<1x32xf32> to vector<64x32xf32>
      %215 = arith.mulf %213, %214 : vector<64x32xf32>
      %216 = vector.broadcast %195 : vector<1x32xf32> to vector<64x32xf32>
      %217 = arith.addf %215, %216 : vector<64x32xf32>
      %218 = arith.truncf %217 : vector<64x32xf32> to vector<64x32xbf16>
      %c0_126 = arith.constant 0 : index
      %c0_127 = arith.constant 0 : index
      %219 = vector.load %arg37[%c0_126, %c0_127] : memref<64x32xbf16, #tpu.memory_space<vmem>>, vector<64x32xbf16>
      tpu.vector_store %arg37[%c0_126, %c0_127], %218 {strides = array<i32>} : memref<64x32xbf16, #tpu.memory_space<vmem>>, vector<64x32xbf16>,
      %c0_128 = arith.constant 0 : index
      %c0_129 = arith.constant 0 : index
      %c0_130 = arith.constant 0 : index
      %220 = vector.load %arg3[%c0_128, %c0_129, %c0_130] : memref<1x8x64xf32, #tpu.memory_space<vmem>>, vector<1x8x64xf32>
      %221 = vector.shape_cast %220 : vector<1x8x64xf32> to vector<8x64xf32>
      %222 = arith.truncf %221 : vector<8x64xf32> to vector<8x64xbf16>
      %c0_131 = arith.constant 0 : index
      %c0_132 = arith.constant 0 : index
      %c0_133 = arith.constant 0 : index
      %223 = vector.load %arg13[%c0_131, %c0_132, %c0_133] : memref<4x32x8xbf16, #tpu.memory_space<vmem>>, vector<4x32x8xbf16>
      %c0_134 = arith.constant 0 : index
      %c0_135 = arith.constant 0 : index
      %c0_136 = arith.constant 0 : index
      %224 = vector.load %arg14[%c0_134, %c0_135, %c0_136] : memref<4x32x8xbf16, #tpu.memory_space<vmem>>, vector<4x32x8xbf16>
      %c0_137 = arith.constant 0 : index
      %c0_138 = arith.constant 0 : index
      %c0_139 = arith.constant 0 : index
      %225 = vector.load %arg20[%c0_137, %c0_138, %c0_139] : memref<4x64x8xbf16, #tpu.memory_space<vmem>>, vector<4x64x8xbf16>
      %c0_140 = arith.constant 0 : index
      %c0_141 = arith.constant 0 : index
      %c0_142 = arith.constant 0 : index
      %226 = vector.load %arg21[%c0_140, %c0_141, %c0_142] : memref<4x64x8xbf16, #tpu.memory_space<vmem>>, vector<4x64x8xbf16>
      %227 = vector.extract_strided_slice %223 {offsets = [0, 0, 0], sizes = [1, 32, 8], strides = [1, 1, 1]} : vector<4x32x8xbf16> to vector<1x32x8xbf16>
      %228 = vector.shape_cast %227 : vector<1x32x8xbf16> to vector<32x8xbf16>
      %cst_143 = arith.constant dense<0.000000e+00> : vector<64x8xf32>
      %229 = tpu.matmul %218, %228, %cst_143 {dimension_numbers = #tpu.dot_dimension_numbers<[1], [0], [0], [1], [0, 0, 1, 1], [], []>} : vector<64x32xbf16>, vector<32x8xbf16>, vector<64x8xf32> -> vector<64x8xf32>
      %230 = arith.truncf %229 : vector<64x8xf32> to vector<64x8xbf16>
      %c0_144 = arith.constant 0 : index
      %c0_145 = arith.constant 0 : index
      %c0_146 = arith.constant 0 : index
      %231 = vector.load %arg38[%c0_144, %c0_145, %c0_146] : memref<4x64x8xbf16, #tpu.memory_space<vmem>>, vector<1x64x8xbf16>
      %232 = vector.shape_cast %231 : vector<1x64x8xbf16> to vector<64x8xbf16>
      %233 = vector.shape_cast %230 : vector<64x8xbf16> to vector<1x64x8xbf16>
      tpu.vector_store %arg38[%c0_144, %c0_145, %c0_146], %233 {strides = array<i32>} : memref<4x64x8xbf16, #tpu.memory_space<vmem>>, vector<1x64x8xbf16>,
      %234 = vector.extract_strided_slice %224 {offsets = [0, 0, 0], sizes = [1, 32, 8], strides = [1, 1, 1]} : vector<4x32x8xbf16> to vector<1x32x8xbf16>
      %235 = vector.shape_cast %234 : vector<1x32x8xbf16> to vector<32x8xbf16>
      %cst_147 = arith.constant dense<0.000000e+00> : vector<64x8xf32>
      %236 = tpu.matmul %218, %235, %cst_147 {dimension_numbers = #tpu.dot_dimension_numbers<[1], [0], [0], [1], [0, 0, 1, 1], [], []>} : vector<64x32xbf16>, vector<32x8xbf16>, vector<64x8xf32> -> vector<64x8xf32>
      %237 = arith.truncf %236 : vector<64x8xf32> to vector<64x8xbf16>
      %c0_148 = arith.constant 0 : index
      %c0_149 = arith.constant 0 : index
      %c0_150 = arith.constant 0 : index
      %238 = vector.load %arg39[%c0_148, %c0_149, %c0_150] : memref<4x64x8xbf16, #tpu.memory_space<vmem>>, vector<1x64x8xbf16>
      %239 = vector.shape_cast %238 : vector<1x64x8xbf16> to vector<64x8xbf16>
      %240 = vector.shape_cast %237 : vector<64x8xbf16> to vector<1x64x8xbf16>
      tpu.vector_store %arg39[%c0_148, %c0_149, %c0_150], %240 {strides = array<i32>} : memref<4x64x8xbf16, #tpu.memory_space<vmem>>, vector<1x64x8xbf16>,
      %241 = vector.extract_strided_slice %225 {offsets = [0, 0, 0], sizes = [1, 64, 8], strides = [1, 1, 1]} : vector<4x64x8xbf16> to vector<1x64x8xbf16>
      %242 = vector.shape_cast %241 : vector<1x64x8xbf16> to vector<64x8xbf16>
      %cst_151 = arith.constant dense<0.000000e+00> : vector<8x8xf32>
      %243 = tpu.matmul %222, %242, %cst_151 {dimension_numbers = #tpu.dot_dimension_numbers<[1], [0], [0], [1], [0, 0, 1, 1], [], []>} : vector<8x64xbf16>, vector<64x8xbf16>, vector<8x8xf32> -> vector<8x8xf32>
      %244 = arith.truncf %243 : vector<8x8xf32> to vector<8x8xbf16>
      %c0_152 = arith.constant 0 : index
      %c0_153 = arith.constant 0 : index
      %c0_154 = arith.constant 0 : index
      %245 = vector.load %arg40[%c0_152, %c0_153, %c0_154] : memref<4x8x8xbf16, #tpu.memory_space<vmem>>, vector<1x8x8xbf16>
      %246 = vector.shape_cast %245 : vector<1x8x8xbf16> to vector<8x8xbf16>
      %247 = vector.shape_cast %244 : vector<8x8xbf16> to vector<1x8x8xbf16>
      tpu.vector_store %arg40[%c0_152, %c0_153, %c0_154], %247 {strides = array<i32>} : memref<4x8x8xbf16, #tpu.memory_space<vmem>>, vector<1x8x8xbf16>,
      %248 = vector.extract_strided_slice %226 {offsets = [0, 0, 0], sizes = [1, 64, 8], strides = [1, 1, 1]} : vector<4x64x8xbf16> to vector<1x64x8xbf16>
      %249 = vector.shape_cast %248 : vector<1x64x8xbf16> to vector<64x8xbf16>
      %cst_155 = arith.constant dense<0.000000e+00> : vector<8x8xf32>
      %250 = tpu.matmul %222, %249, %cst_155 {dimension_numbers = #tpu.dot_dimension_numbers<[1], [0], [0], [1], [0, 0, 1, 1], [], []>} : vector<8x64xbf16>, vector<64x8xbf16>, vector<8x8xf32> -> vector<8x8xf32>
      %251 = arith.truncf %250 : vector<8x8xf32> to vector<8x8xbf16>
      %c0_156 = arith.constant 0 : index
      %c0_157 = arith.constant 0 : index
      %c0_158 = arith.constant 0 : index
      %252 = vector.load %arg41[%c0_156, %c0_157, %c0_158] : memref<4x8x8xbf16, #tpu.memory_space<vmem>>, vector<1x8x8xbf16>
      %253 = vector.shape_cast %252 : vector<1x8x8xbf16> to vector<8x8xbf16>
      %254 = vector.shape_cast %251 : vector<8x8xbf16> to vector<1x8x8xbf16>
      tpu.vector_store %arg41[%c0_156, %c0_157, %c0_158], %254 {strides = array<i32>} : memref<4x8x8xbf16, #tpu.memory_space<vmem>>, vector<1x8x8xbf16>,
      %255 = vector.extract_strided_slice %223 {offsets = [1, 0, 0], sizes = [1, 32, 8], strides = [1, 1, 1]} : vector<4x32x8xbf16> to vector<1x32x8xbf16>
      %256 = vector.shape_cast %255 : vector<1x32x8xbf16> to vector<32x8xbf16>
      %cst_159 = arith.constant dense<0.000000e+00> : vector<64x8xf32>
      %257 = tpu.matmul %218, %256, %cst_159 {dimension_numbers = #tpu.dot_dimension_numbers<[1], [0], [0], [1], [0, 0, 1, 1], [], []>} : vector<64x32xbf16>, vector<32x8xbf16>, vector<64x8xf32> -> vector<64x8xf32>
      %258 = arith.truncf %257 : vector<64x8xf32> to vector<64x8xbf16>
      %c1 = arith.constant 1 : index
      %c0_160 = arith.constant 0 : index
      %c0_161 = arith.constant 0 : index
      %259 = vector.load %arg38[%c1, %c0_160, %c0_161] : memref<4x64x8xbf16, #tpu.memory_space<vmem>>, vector<1x64x8xbf16>
      %260 = vector.shape_cast %259 : vector<1x64x8xbf16> to vector<64x8xbf16>
      %261 = vector.shape_cast %258 : vector<64x8xbf16> to vector<1x64x8xbf16>
      tpu.vector_store %arg38[%c1, %c0_160, %c0_161], %261 {strides = array<i32>} : memref<4x64x8xbf16, #tpu.memory_space<vmem>>, vector<1x64x8xbf16>,
      %262 = vector.extract_strided_slice %224 {offsets = [1, 0, 0], sizes = [1, 32, 8], strides = [1, 1, 1]} : vector<4x32x8xbf16> to vector<1x32x8xbf16>
      %263 = vector.shape_cast %262 : vector<1x32x8xbf16> to vector<32x8xbf16>
      %cst_162 = arith.constant dense<0.000000e+00> : vector<64x8xf32>
      %264 = tpu.matmul %218, %263, %cst_162 {dimension_numbers = #tpu.dot_dimension_numbers<[1], [0], [0], [1], [0, 0, 1, 1], [], []>} : vector<64x32xbf16>, vector<32x8xbf16>, vector<64x8xf32> -> vector<64x8xf32>
      %265 = arith.truncf %264 : vector<64x8xf32> to vector<64x8xbf16>
      %c1_163 = arith.constant 1 : index
      %c0_164 = arith.constant 0 : index
      %c0_165 = arith.constant 0 : index
      %266 = vector.load %arg39[%c1_163, %c0_164, %c0_165] : memref<4x64x8xbf16, #tpu.memory_space<vmem>>, vector<1x64x8xbf16>
      %267 = vector.shape_cast %266 : vector<1x64x8xbf16> to vector<64x8xbf16>
      %268 = vector.shape_cast %265 : vector<64x8xbf16> to vector<1x64x8xbf16>
      tpu.vector_store %arg39[%c1_163, %c0_164, %c0_165], %268 {strides = array<i32>} : memref<4x64x8xbf16, #tpu.memory_space<vmem>>, vector<1x64x8xbf16>,
      %269 = vector.extract_strided_slice %225 {offsets = [1, 0, 0], sizes = [1, 64, 8], strides = [1, 1, 1]} : vector<4x64x8xbf16> to vector<1x64x8xbf16>
      %270 = vector.shape_cast %269 : vector<1x64x8xbf16> to vector<64x8xbf16>
      %cst_166 = arith.constant dense<0.000000e+00> : vector<8x8xf32>
      %271 = tpu.matmul %222, %270, %cst_166 {dimension_numbers = #tpu.dot_dimension_numbers<[1], [0], [0], [1], [0, 0, 1, 1], [], []>} : vector<8x64xbf16>, vector<64x8xbf16>, vector<8x8xf32> -> vector<8x8xf32>
      %272 = arith.truncf %271 : vector<8x8xf32> to vector<8x8xbf16>
      %c1_167 = arith.constant 1 : index
      %c0_168 = arith.constant 0 : index
      %c0_169 = arith.constant 0 : index
      %273 = vector.load %arg40[%c1_167, %c0_168, %c0_169] : memref<4x8x8xbf16, #tpu.memory_space<vmem>>, vector<1x8x8xbf16>
      %274 = vector.shape_cast %273 : vector<1x8x8xbf16> to vector<8x8xbf16>
      %275 = vector.shape_cast %272 : vector<8x8xbf16> to vector<1x8x8xbf16>
      tpu.vector_store %arg40[%c1_167, %c0_168, %c0_169], %275 {strides = array<i32>} : memref<4x8x8xbf16, #tpu.memory_space<vmem>>, vector<1x8x8xbf16>,
      %276 = vector.extract_strided_slice %226 {offsets = [1, 0, 0], sizes = [1, 64, 8], strides = [1, 1, 1]} : vector<4x64x8xbf16> to vector<1x64x8xbf16>
      %277 = vector.shape_cast %276 : vector<1x64x8xbf16> to vector<64x8xbf16>
      %cst_170 = arith.constant dense<0.000000e+00> : vector<8x8xf32>
      %278 = tpu.matmul %222, %277, %cst_170 {dimension_numbers = #tpu.dot_dimension_numbers<[1], [0], [0], [1], [0, 0, 1, 1], [], []>} : vector<8x64xbf16>, vector<64x8xbf16>, vector<8x8xf32> -> vector<8x8xf32>
      %279 = arith.truncf %278 : vector<8x8xf32> to vector<8x8xbf16>
      %c1_171 = arith.constant 1 : index
      %c0_172 = arith.constant 0 : index
      %c0_173 = arith.constant 0 : index
      %280 = vector.load %arg41[%c1_171, %c0_172, %c0_173] : memref<4x8x8xbf16, #tpu.memory_space<vmem>>, vector<1x8x8xbf16>
      %281 = vector.shape_cast %280 : vector<1x8x8xbf16> to vector<8x8xbf16>
      %282 = vector.shape_cast %279 : vector<8x8xbf16> to vector<1x8x8xbf16>
      tpu.vector_store %arg41[%c1_171, %c0_172, %c0_173], %282 {strides = array<i32>} : memref<4x8x8xbf16, #tpu.memory_space<vmem>>, vector<1x8x8xbf16>,
      %283 = vector.extract_strided_slice %223 {offsets = [2, 0, 0], sizes = [1, 32, 8], strides = [1, 1, 1]} : vector<4x32x8xbf16> to vector<1x32x8xbf16>
      %284 = vector.shape_cast %283 : vector<1x32x8xbf16> to vector<32x8xbf16>
      %cst_174 = arith.constant dense<0.000000e+00> : vector<64x8xf32>
      %285 = tpu.matmul %218, %284, %cst_174 {dimension_numbers = #tpu.dot_dimension_numbers<[1], [0], [0], [1], [0, 0, 1, 1], [], []>} : vector<64x32xbf16>, vector<32x8xbf16>, vector<64x8xf32> -> vector<64x8xf32>
      %286 = arith.truncf %285 : vector<64x8xf32> to vector<64x8xbf16>
      %c2 = arith.constant 2 : index
      %c0_175 = arith.constant 0 : index
      %c0_176 = arith.constant 0 : index
      %287 = vector.load %arg38[%c2, %c0_175, %c0_176] : memref<4x64x8xbf16, #tpu.memory_space<vmem>>, vector<1x64x8xbf16>
      %288 = vector.shape_cast %287 : vector<1x64x8xbf16> to vector<64x8xbf16>
      %289 = vector.shape_cast %286 : vector<64x8xbf16> to vector<1x64x8xbf16>
      tpu.vector_store %arg38[%c2, %c0_175, %c0_176], %289 {strides = array<i32>} : memref<4x64x8xbf16, #tpu.memory_space<vmem>>, vector<1x64x8xbf16>,
      %290 = vector.extract_strided_slice %224 {offsets = [2, 0, 0], sizes = [1, 32, 8], strides = [1, 1, 1]} : vector<4x32x8xbf16> to vector<1x32x8xbf16>
      %291 = vector.shape_cast %290 : vector<1x32x8xbf16> to vector<32x8xbf16>
      %cst_177 = arith.constant dense<0.000000e+00> : vector<64x8xf32>
      %292 = tpu.matmul %218, %291, %cst_177 {dimension_numbers = #tpu.dot_dimension_numbers<[1], [0], [0], [1], [0, 0, 1, 1], [], []>} : vector<64x32xbf16>, vector<32x8xbf16>, vector<64x8xf32> -> vector<64x8xf32>
      %293 = arith.truncf %292 : vector<64x8xf32> to vector<64x8xbf16>
      %c2_178 = arith.constant 2 : index
      %c0_179 = arith.constant 0 : index
      %c0_180 = arith.constant 0 : index
      %294 = vector.load %arg39[%c2_178, %c0_179, %c0_180] : memref<4x64x8xbf16, #tpu.memory_space<vmem>>, vector<1x64x8xbf16>
      %295 = vector.shape_cast %294 : vector<1x64x8xbf16> to vector<64x8xbf16>
      %296 = vector.shape_cast %293 : vector<64x8xbf16> to vector<1x64x8xbf16>
      tpu.vector_store %arg39[%c2_178, %c0_179, %c0_180], %296 {strides = array<i32>} : memref<4x64x8xbf16, #tpu.memory_space<vmem>>, vector<1x64x8xbf16>,
      %297 = vector.extract_strided_slice %225 {offsets = [2, 0, 0], sizes = [1, 64, 8], strides = [1, 1, 1]} : vector<4x64x8xbf16> to vector<1x64x8xbf16>
      %298 = vector.shape_cast %297 : vector<1x64x8xbf16> to vector<64x8xbf16>
      %cst_181 = arith.constant dense<0.000000e+00> : vector<8x8xf32>
      %299 = tpu.matmul %222, %298, %cst_181 {dimension_numbers = #tpu.dot_dimension_numbers<[1], [0], [0], [1], [0, 0, 1, 1], [], []>} : vector<8x64xbf16>, vector<64x8xbf16>, vector<8x8xf32> -> vector<8x8xf32>
      %300 = arith.truncf %299 : vector<8x8xf32> to vector<8x8xbf16>
      %c2_182 = arith.constant 2 : index
      %c0_183 = arith.constant 0 : index
      %c0_184 = arith.constant 0 : index
      %301 = vector.load %arg40[%c2_182, %c0_183, %c0_184] : memref<4x8x8xbf16, #tpu.memory_space<vmem>>, vector<1x8x8xbf16>
      %302 = vector.shape_cast %301 : vector<1x8x8xbf16> to vector<8x8xbf16>
      %303 = vector.shape_cast %300 : vector<8x8xbf16> to vector<1x8x8xbf16>
      tpu.vector_store %arg40[%c2_182, %c0_183, %c0_184], %303 {strides = array<i32>} : memref<4x8x8xbf16, #tpu.memory_space<vmem>>, vector<1x8x8xbf16>,
      %304 = vector.extract_strided_slice %226 {offsets = [2, 0, 0], sizes = [1, 64, 8], strides = [1, 1, 1]} : vector<4x64x8xbf16> to vector<1x64x8xbf16>
      %305 = vector.shape_cast %304 : vector<1x64x8xbf16> to vector<64x8xbf16>
      %cst_185 = arith.constant dense<0.000000e+00> : vector<8x8xf32>
      %306 = tpu.matmul %222, %305, %cst_185 {dimension_numbers = #tpu.dot_dimension_numbers<[1], [0], [0], [1], [0, 0, 1, 1], [], []>} : vector<8x64xbf16>, vector<64x8xbf16>, vector<8x8xf32> -> vector<8x8xf32>
      %307 = arith.truncf %306 : vector<8x8xf32> to vector<8x8xbf16>
      %c2_186 = arith.constant 2 : index
      %c0_187 = arith.constant 0 : index
      %c0_188 = arith.constant 0 : index
      %308 = vector.load %arg41[%c2_186, %c0_187, %c0_188] : memref<4x8x8xbf16, #tpu.memory_space<vmem>>, vector<1x8x8xbf16>
      %309 = vector.shape_cast %308 : vector<1x8x8xbf16> to vector<8x8xbf16>
      %310 = vector.shape_cast %307 : vector<8x8xbf16> to vector<1x8x8xbf16>
      tpu.vector_store %arg41[%c2_186, %c0_187, %c0_188], %310 {strides = array<i32>} : memref<4x8x8xbf16, #tpu.memory_space<vmem>>, vector<1x8x8xbf16>,
      %311 = vector.extract_strided_slice %223 {offsets = [3, 0, 0], sizes = [1, 32, 8], strides = [1, 1, 1]} : vector<4x32x8xbf16> to vector<1x32x8xbf16>
      %312 = vector.shape_cast %311 : vector<1x32x8xbf16> to vector<32x8xbf16>
      %cst_189 = arith.constant dense<0.000000e+00> : vector<64x8xf32>
      %313 = tpu.matmul %218, %312, %cst_189 {dimension_numbers = #tpu.dot_dimension_numbers<[1], [0], [0], [1], [0, 0, 1, 1], [], []>} : vector<64x32xbf16>, vector<32x8xbf16>, vector<64x8xf32> -> vector<64x8xf32>
      %314 = arith.truncf %313 : vector<64x8xf32> to vector<64x8xbf16>
      %c3 = arith.constant 3 : index
      %c0_190 = arith.constant 0 : index
      %c0_191 = arith.constant 0 : index
      %315 = vector.load %arg38[%c3, %c0_190, %c0_191] : memref<4x64x8xbf16, #tpu.memory_space<vmem>>, vector<1x64x8xbf16>
      %316 = vector.shape_cast %315 : vector<1x64x8xbf16> to vector<64x8xbf16>
      %317 = vector.shape_cast %314 : vector<64x8xbf16> to vector<1x64x8xbf16>
      tpu.vector_store %arg38[%c3, %c0_190, %c0_191], %317 {strides = array<i32>} : memref<4x64x8xbf16, #tpu.memory_space<vmem>>, vector<1x64x8xbf16>,
      %318 = vector.extract_strided_slice %224 {offsets = [3, 0, 0], sizes = [1, 32, 8], strides = [1, 1, 1]} : vector<4x32x8xbf16> to vector<1x32x8xbf16>
      %319 = vector.shape_cast %318 : vector<1x32x8xbf16> to vector<32x8xbf16>
      %cst_192 = arith.constant dense<0.000000e+00> : vector<64x8xf32>
      %320 = tpu.matmul %218, %319, %cst_192 {dimension_numbers = #tpu.dot_dimension_numbers<[1], [0], [0], [1], [0, 0, 1, 1], [], []>} : vector<64x32xbf16>, vector<32x8xbf16>, vector<64x8xf32> -> vector<64x8xf32>
      %321 = arith.truncf %320 : vector<64x8xf32> to vector<64x8xbf16>
      %c3_193 = arith.constant 3 : index
      %c0_194 = arith.constant 0 : index
      %c0_195 = arith.constant 0 : index
      %322 = vector.load %arg39[%c3_193, %c0_194, %c0_195] : memref<4x64x8xbf16, #tpu.memory_space<vmem>>, vector<1x64x8xbf16>
      %323 = vector.shape_cast %322 : vector<1x64x8xbf16> to vector<64x8xbf16>
      %324 = vector.shape_cast %321 : vector<64x8xbf16> to vector<1x64x8xbf16>
      tpu.vector_store %arg39[%c3_193, %c0_194, %c0_195], %324 {strides = array<i32>} : memref<4x64x8xbf16, #tpu.memory_space<vmem>>, vector<1x64x8xbf16>,
      %325 = vector.extract_strided_slice %225 {offsets = [3, 0, 0], sizes = [1, 64, 8], strides = [1, 1, 1]} : vector<4x64x8xbf16> to vector<1x64x8xbf16>
      %326 = vector.shape_cast %325 : vector<1x64x8xbf16> to vector<64x8xbf16>
      %cst_196 = arith.constant dense<0.000000e+00> : vector<8x8xf32>
      %327 = tpu.matmul %222, %326, %cst_196 {dimension_numbers = #tpu.dot_dimension_numbers<[1], [0], [0], [1], [0, 0, 1, 1], [], []>} : vector<8x64xbf16>, vector<64x8xbf16>, vector<8x8xf32> -> vector<8x8xf32>
      %328 = arith.truncf %327 : vector<8x8xf32> to vector<8x8xbf16>
      %c3_197 = arith.constant 3 : index
      %c0_198 = arith.constant 0 : index
      %c0_199 = arith.constant 0 : index
      %329 = vector.load %arg40[%c3_197, %c0_198, %c0_199] : memref<4x8x8xbf16, #tpu.memory_space<vmem>>, vector<1x8x8xbf16>
      %330 = vector.shape_cast %329 : vector<1x8x8xbf16> to vector<8x8xbf16>
      %331 = vector.shape_cast %328 : vector<8x8xbf16> to vector<1x8x8xbf16>
      tpu.vector_store %arg40[%c3_197, %c0_198, %c0_199], %331 {strides = array<i32>} : memref<4x8x8xbf16, #tpu.memory_space<vmem>>, vector<1x8x8xbf16>,
      %332 = vector.extract_strided_slice %226 {offsets = [3, 0, 0], sizes = [1, 64, 8], strides = [1, 1, 1]} : vector<4x64x8xbf16> to vector<1x64x8xbf16>
      %333 = vector.shape_cast %332 : vector<1x64x8xbf16> to vector<64x8xbf16>
      %cst_200 = arith.constant dense<0.000000e+00> : vector<8x8xf32>
      %334 = tpu.matmul %222, %333, %cst_200 {dimension_numbers = #tpu.dot_dimension_numbers<[1], [0], [0], [1], [0, 0, 1, 1], [], []>} : vector<8x64xbf16>, vector<64x8xbf16>, vector<8x8xf32> -> vector<8x8xf32>
      %335 = arith.truncf %334 : vector<8x8xf32> to vector<8x8xbf16>
      %c3_201 = arith.constant 3 : index
      %c0_202 = arith.constant 0 : index
      %c0_203 = arith.constant 0 : index
      %336 = vector.load %arg41[%c3_201, %c0_202, %c0_203] : memref<4x8x8xbf16, #tpu.memory_space<vmem>>, vector<1x8x8xbf16>
      %337 = vector.shape_cast %336 : vector<1x8x8xbf16> to vector<8x8xbf16>
      %338 = vector.shape_cast %335 : vector<8x8xbf16> to vector<1x8x8xbf16>
      tpu.vector_store %arg41[%c3_201, %c0_202, %c0_203], %338 {strides = array<i32>} : memref<4x8x8xbf16, #tpu.memory_space<vmem>>, vector<1x8x8xbf16>,
    } else {
    }
    %c32_i32 = arith.constant 32 : i32
    %3 = arith.muli %arg1, %c32_i32 : i32
    %4 = tpu.assume_multiple %3, 32 : i32
    %5 = arith.index_cast %4 : i32 to index
    %c0 = arith.constant 0 : index
    %6 = vector.load %arg36[%5, %c0] : memref<64x32xf32, #tpu.memory_space<vmem>>, vector<32x32xf32>
    %7 = arith.index_cast %4 : i32 to index
    %c0_1 = arith.constant 0 : index
    %8 = vector.load %arg37[%7, %c0_1] : memref<64x32xbf16, #tpu.memory_space<vmem>>, vector<32x32xbf16>
    %c0_2 = arith.constant 0 : index
    %c0_3 = arith.constant 0 : index
    %c0_4 = arith.constant 0 : index
    %9 = vector.load %arg12[%c0_2, %c0_3, %c0_4] : memref<4x32x8xbf16, #tpu.memory_space<vmem>>, vector<4x32x8xbf16>
    %10 = vector.shape_cast %8 : vector<32x32xbf16> to vector<1x32x32xbf16>
    %11 = vector.shape_cast %10 : vector<1x32x32xbf16> to vector<1x32x32xbf16>
    %12 = vector.broadcast %11 : vector<1x32x32xbf16> to vector<4x32x32xbf16>
    "tpu.trace_start"() <{level = 10 : i32, message = "hqc,hcd->hqd"}> : () -> ()
    %cst = arith.constant dense<0.000000e+00> : vector<4x32x8xf32>
    %13 = tpu.matmul %12, %9, %cst {dimension_numbers = #tpu.dot_dimension_numbers<[2], [1], [1], [2], [0, 0, 0, 1, 1, 2], [0], [0]>} : vector<4x32x32xbf16>, vector<4x32x8xbf16>, vector<4x32x8xf32> -> vector<4x32x8xf32>
    "tpu.trace_stop"() : () -> ()
    %c0_5 = arith.constant 0 : index
    %c0_6 = arith.constant 0 : index
    %c0_7 = arith.constant 0 : index
    %14 = vector.load %arg38[%c0_5, %c0_6, %c0_7] : memref<4x64x8xbf16, #tpu.memory_space<vmem>>, vector<4x64x8xbf16>
    %c0_8 = arith.constant 0 : index
    %c0_9 = arith.constant 0 : index
    %c0_10 = arith.constant 0 : index
    %15 = vector.load %arg39[%c0_8, %c0_9, %c0_10] : memref<4x64x8xbf16, #tpu.memory_space<vmem>>, vector<4x64x8xbf16>
    %16 = arith.truncf %13 : vector<4x32x8xf32> to vector<4x32x8xbf16>
    "tpu.trace_start"() <{level = 10 : i32, message = "hqd,hkd->hqk"}> : () -> ()
    %cst_11 = arith.constant dense<0.000000e+00> : vector<4x32x64xf32>
    %17 = tpu.matmul %16, %14, %cst_11 {dimension_numbers = #tpu.dot_dimension_numbers<[2], [2], [1], [1], [0, 0, 0, 1, 1, 1], [0], [0]>} : vector<4x32x8xbf16>, vector<4x64x8xbf16>, vector<4x32x64xf32> -> vector<4x32x64xf32>
    "tpu.trace_stop"() : () -> ()
    %cst_12 = arith.constant dense<0xFF800000> : vector<4x32xf32>
    %18 = vector.multi_reduction <maximumf>, %17, %cst_12 [2] : vector<4x32x64xf32> to vector<4x32xf32>
    %19 = vector.shape_cast %18 : vector<4x32xf32> to vector<4x32x1xf32>
    %20 = vector.broadcast %19 : vector<4x32x1xf32> to vector<4x32x64xf32>
    %21 = arith.subf %17, %20 : vector<4x32x64xf32>
    %22 = math.exp %21 : vector<4x32x64xf32>
    %cst_13 = arith.constant dense<0.000000e+00> : vector<4x32xf32>
    %23 = vector.multi_reduction <add>, %22, %cst_13 [2] : vector<4x32x64xf32> to vector<4x32xf32>
    %24 = vector.shape_cast %23 : vector<4x32xf32> to vector<4x32x1xf32>
    %25 = tpu.reciprocal %24 {approx = true} : vector<4x32x1xf32> -> vector<4x32x1xf32>
    %26 = vector.broadcast %25 : vector<4x32x1xf32> to vector<4x32x64xf32>
    %27 = arith.mulf %22, %26 : vector<4x32x64xf32>
    %28 = arith.truncf %27 : vector<4x32x64xf32> to vector<4x32x64xbf16>
    "tpu.trace_start"() <{level = 10 : i32, message = "hqk,hkd->hqd"}> : () -> ()
    %cst_14 = arith.constant dense<0.000000e+00> : vector<4x32x8xf32>
    %29 = tpu.matmul %28, %15, %cst_14 {dimension_numbers = #tpu.dot_dimension_numbers<[2], [1], [1], [2], [0, 0, 0, 1, 1, 2], [0], [0]>} : vector<4x32x64xbf16>, vector<4x64x8xbf16>, vector<4x32x8xf32> -> vector<4x32x8xf32>
    "tpu.trace_stop"() : () -> ()
    %30 = arith.truncf %29 : vector<4x32x8xf32> to vector<4x32x8xbf16>
    %c0_15 = arith.constant 0 : index
    %c0_16 = arith.constant 0 : index
    %c0_17 = arith.constant 0 : index
    %31 = vector.load %arg15[%c0_15, %c0_16, %c0_17] : memref<4x8x32xbf16, #tpu.memory_space<vmem>>, vector<4x8x32xbf16>
    "tpu.trace_start"() <{level = 10 : i32, message = "hqd,hdc->hqc"}> : () -> ()
    %cst_18 = arith.constant dense<0.000000e+00> : vector<4x32x32xf32>
    %32 = tpu.matmul %30, %31, %cst_18 {dimension_numbers = #tpu.dot_dimension_numbers<[2], [1], [1], [2], [0, 0, 0, 1, 1, 2], [0], [0]>} : vector<4x32x8xbf16>, vector<4x8x32xbf16>, vector<4x32x32xf32> -> vector<4x32x32xf32>
    "tpu.trace_stop"() : () -> ()
    %cst_19 = arith.constant dense<0.000000e+00> : vector<32x32xf32>
    %33 = vector.multi_reduction <add>, %32, %cst_19 [0] : vector<4x32x32xf32> to vector<32x32xf32>
    %c0_20 = arith.constant 0 : index
    %c0_21 = arith.constant 0 : index
    %34 = vector.load %arg16[%c0_20, %c0_21] : memref<1x32xf32, #tpu.memory_space<vmem>>, vector<1x32xf32>
    %35 = vector.broadcast %34 : vector<1x32xf32> to vector<32x32xf32>
    %36 = arith.addf %33, %35 : vector<32x32xf32>
    %37 = arith.addf %6, %36 : vector<32x32xf32>
    %c0_22 = arith.constant 0 : index
    %c0_23 = arith.constant 0 : index
    %38 = vector.load %arg17[%c0_22, %c0_23] : memref<1x32xf32, #tpu.memory_space<vmem>>, vector<1x32xf32>
    %c0_24 = arith.constant 0 : index
    %c0_25 = arith.constant 0 : index
    %39 = vector.load %arg18[%c0_24, %c0_25] : memref<1x32xf32, #tpu.memory_space<vmem>>, vector<1x32xf32>
    %cst_26 = arith.constant dense<0.000000e+00> : vector<32xf32>
    %40 = vector.multi_reduction <add>, %37, %cst_26 [1] : vector<32x32xf32> to vector<32xf32>
    %41 = vector.shape_cast %40 : vector<32xf32> to vector<32x1xf32>
    %cst_27 = arith.constant 3.200000e+01 : f32
    %42 = vector.broadcast %cst_27 : f32 to vector<32x1xf32>
    %43 = arith.divf %41, %42 : vector<32x1xf32>
    %44 = vector.broadcast %43 : vector<32x1xf32> to vector<32x32xf32>
    %45 = arith.subf %37, %44 : vector<32x32xf32>
    %46 = arith.mulf %45, %45 : vector<32x32xf32>
    %cst_28 = arith.constant dense<0.000000e+00> : vector<32xf32>
    %47 = vector.multi_reduction <add>, %46, %cst_28 [1] : vector<32x32xf32> to vector<32xf32>
    %48 = vector.shape_cast %47 : vector<32xf32> to vector<32x1xf32>
    %cst_29 = arith.constant 3.200000e+01 : f32
    %49 = vector.broadcast %cst_29 : f32 to vector<32x1xf32>
    %50 = arith.divf %48, %49 : vector<32x1xf32>
    %51 = vector.broadcast %43 : vector<32x1xf32> to vector<32x32xf32>
    %52 = arith.subf %37, %51 : vector<32x32xf32>
    %cst_30 = arith.constant 9.99999974E-6 : f32
    %53 = vector.broadcast %cst_30 : f32 to vector<32x1xf32>
    %54 = arith.addf %50, %53 : vector<32x1xf32>
    %55 = math.rsqrt %54 : vector<32x1xf32>
    %56 = vector.broadcast %55 : vector<32x1xf32> to vector<32x32xf32>
    %57 = arith.mulf %52, %56 : vector<32x32xf32>
    %58 = vector.broadcast %38 : vector<1x32xf32> to vector<32x32xf32>
    %59 = arith.mulf %57, %58 : vector<32x32xf32>
    %60 = vector.broadcast %39 : vector<1x32xf32> to vector<32x32xf32>
    %61 = arith.addf %59, %60 : vector<32x32xf32>
    %62 = arith.truncf %61 : vector<32x32xf32> to vector<32x32xbf16>
    %c0_31 = arith.constant 0 : index
    %c0_32 = arith.constant 0 : index
    %c0_33 = arith.constant 0 : index
    %63 = vector.load %arg19[%c0_31, %c0_32, %c0_33] : memref<4x32x8xbf16, #tpu.memory_space<vmem>>, vector<4x32x8xbf16>
    %64 = vector.shape_cast %62 : vector<32x32xbf16> to vector<1x32x32xbf16>
    %65 = vector.shape_cast %64 : vector<1x32x32xbf16> to vector<1x32x32xbf16>
    %66 = vector.broadcast %65 : vector<1x32x32xbf16> to vector<4x32x32xbf16>
    "tpu.trace_start"() <{level = 10 : i32, message = "hqc,hcd->hqd"}> : () -> ()
    %cst_34 = arith.constant dense<0.000000e+00> : vector<4x32x8xf32>
    %67 = tpu.matmul %66, %63, %cst_34 {dimension_numbers = #tpu.dot_dimension_numbers<[2], [1], [1], [2], [0, 0, 0, 1, 1, 2], [0], [0]>} : vector<4x32x32xbf16>, vector<4x32x8xbf16>, vector<4x32x8xf32> -> vector<4x32x8xf32>
    "tpu.trace_stop"() : () -> ()
    %c0_35 = arith.constant 0 : index
    %c0_36 = arith.constant 0 : index
    %c0_37 = arith.constant 0 : index
    %68 = vector.load %arg40[%c0_35, %c0_36, %c0_37] : memref<4x8x8xbf16, #tpu.memory_space<vmem>>, vector<4x8x8xbf16>
    %c0_38 = arith.constant 0 : index
    %c0_39 = arith.constant 0 : index
    %c0_40 = arith.constant 0 : index
    %69 = vector.load %arg41[%c0_38, %c0_39, %c0_40] : memref<4x8x8xbf16, #tpu.memory_space<vmem>>, vector<4x8x8xbf16>
    %70 = arith.truncf %67 : vector<4x32x8xf32> to vector<4x32x8xbf16>
    "tpu.trace_start"() <{level = 10 : i32, message = "hqd,hkd->hqk"}> : () -> ()
    %cst_41 = arith.constant dense<0.000000e+00> : vector<4x32x8xf32>
    %71 = tpu.matmul %70, %68, %cst_41 {dimension_numbers = #tpu.dot_dimension_numbers<[2], [2], [1], [1], [0, 0, 0, 1, 1, 1], [0], [0]>} : vector<4x32x8xbf16>, vector<4x8x8xbf16>, vector<4x32x8xf32> -> vector<4x32x8xf32>
    "tpu.trace_stop"() : () -> ()
    %cst_42 = arith.constant dense<0xFF800000> : vector<4x32xf32>
    %72 = vector.multi_reduction <maximumf>, %71, %cst_42 [2] : vector<4x32x8xf32> to vector<4x32xf32>
    %73 = vector.shape_cast %72 : vector<4x32xf32> to vector<4x32x1xf32>
    %74 = vector.broadcast %73 : vector<4x32x1xf32> to vector<4x32x8xf32>
    %75 = arith.subf %71, %74 : vector<4x32x8xf32>
    %76 = math.exp %75 : vector<4x32x8xf32>
    %cst_43 = arith.constant dense<0.000000e+00> : vector<4x32xf32>
    %77 = vector.multi_reduction <add>, %76, %cst_43 [2] : vector<4x32x8xf32> to vector<4x32xf32>
    %78 = vector.shape_cast %77 : vector<4x32xf32> to vector<4x32x1xf32>
    %79 = tpu.reciprocal %78 {approx = true} : vector<4x32x1xf32> -> vector<4x32x1xf32>
    %80 = vector.broadcast %79 : vector<4x32x1xf32> to vector<4x32x8xf32>
    %81 = arith.mulf %76, %80 : vector<4x32x8xf32>
    %82 = arith.truncf %81 : vector<4x32x8xf32> to vector<4x32x8xbf16>
    "tpu.trace_start"() <{level = 10 : i32, message = "hqk,hkd->hqd"}> : () -> ()
    %cst_44 = arith.constant dense<0.000000e+00> : vector<4x32x8xf32>
    %83 = tpu.matmul %82, %69, %cst_44 {dimension_numbers = #tpu.dot_dimension_numbers<[2], [1], [1], [2], [0, 0, 0, 1, 1, 2], [0], [0]>} : vector<4x32x8xbf16>, vector<4x8x8xbf16>, vector<4x32x8xf32> -> vector<4x32x8xf32>
    "tpu.trace_stop"() : () -> ()
    %84 = arith.truncf %83 : vector<4x32x8xf32> to vector<4x32x8xbf16>
    %c0_45 = arith.constant 0 : index
    %c0_46 = arith.constant 0 : index
    %c0_47 = arith.constant 0 : index
    %85 = vector.load %arg22[%c0_45, %c0_46, %c0_47] : memref<4x8x32xbf16, #tpu.memory_space<vmem>>, vector<4x8x32xbf16>
    "tpu.trace_start"() <{level = 10 : i32, message = "hqd,hdc->hqc"}> : () -> ()
    %cst_48 = arith.constant dense<0.000000e+00> : vector<4x32x32xf32>
    %86 = tpu.matmul %84, %85, %cst_48 {dimension_numbers = #tpu.dot_dimension_numbers<[2], [1], [1], [2], [0, 0, 0, 1, 1, 2], [0], [0]>} : vector<4x32x8xbf16>, vector<4x8x32xbf16>, vector<4x32x32xf32> -> vector<4x32x32xf32>
    "tpu.trace_stop"() : () -> ()
    %cst_49 = arith.constant dense<0.000000e+00> : vector<32x32xf32>
    %87 = vector.multi_reduction <add>, %86, %cst_49 [0] : vector<4x32x32xf32> to vector<32x32xf32>
    %c0_50 = arith.constant 0 : index
    %c0_51 = arith.constant 0 : index
    %88 = vector.load %arg23[%c0_50, %c0_51] : memref<1x32xf32, #tpu.memory_space<vmem>>, vector<1x32xf32>
    %89 = vector.broadcast %88 : vector<1x32xf32> to vector<32x32xf32>
    %90 = arith.addf %87, %89 : vector<32x32xf32>
    %91 = arith.addf %37, %90 : vector<32x32xf32>
    %c0_52 = arith.constant 0 : index
    %c0_53 = arith.constant 0 : index
    %92 = vector.load %arg24[%c0_52, %c0_53] : memref<1x32xf32, #tpu.memory_space<vmem>>, vector<1x32xf32>
    %c0_54 = arith.constant 0 : index
    %c0_55 = arith.constant 0 : index
    %93 = vector.load %arg25[%c0_54, %c0_55] : memref<1x32xf32, #tpu.memory_space<vmem>>, vector<1x32xf32>
    %cst_56 = arith.constant dense<0.000000e+00> : vector<32xf32>
    %94 = vector.multi_reduction <add>, %91, %cst_56 [1] : vector<32x32xf32> to vector<32xf32>
    %95 = vector.shape_cast %94 : vector<32xf32> to vector<32x1xf32>
    %cst_57 = arith.constant 3.200000e+01 : f32
    %96 = vector.broadcast %cst_57 : f32 to vector<32x1xf32>
    %97 = arith.divf %95, %96 : vector<32x1xf32>
    %98 = vector.broadcast %97 : vector<32x1xf32> to vector<32x32xf32>
    %99 = arith.subf %91, %98 : vector<32x32xf32>
    %100 = arith.mulf %99, %99 : vector<32x32xf32>
    %cst_58 = arith.constant dense<0.000000e+00> : vector<32xf32>
    %101 = vector.multi_reduction <add>, %100, %cst_58 [1] : vector<32x32xf32> to vector<32xf32>
    %102 = vector.shape_cast %101 : vector<32xf32> to vector<32x1xf32>
    %cst_59 = arith.constant 3.200000e+01 : f32
    %103 = vector.broadcast %cst_59 : f32 to vector<32x1xf32>
    %104 = arith.divf %102, %103 : vector<32x1xf32>
    %105 = vector.broadcast %97 : vector<32x1xf32> to vector<32x32xf32>
    %106 = arith.subf %91, %105 : vector<32x32xf32>
    %cst_60 = arith.constant 9.99999974E-6 : f32
    %107 = vector.broadcast %cst_60 : f32 to vector<32x1xf32>
    %108 = arith.addf %104, %107 : vector<32x1xf32>
    %109 = math.rsqrt %108 : vector<32x1xf32>
    %110 = vector.broadcast %109 : vector<32x1xf32> to vector<32x32xf32>
    %111 = arith.mulf %106, %110 : vector<32x32xf32>
    %112 = vector.broadcast %92 : vector<1x32xf32> to vector<32x32xf32>
    %113 = arith.mulf %111, %112 : vector<32x32xf32>
    %114 = vector.broadcast %93 : vector<1x32xf32> to vector<32x32xf32>
    %115 = arith.addf %113, %114 : vector<32x32xf32>
    %116 = arith.truncf %115 : vector<32x32xf32> to vector<32x32xbf16>
    %c0_61 = arith.constant 0 : index
    %c0_62 = arith.constant 0 : index
    %117 = vector.load %arg26[%c0_61, %c0_62] : memref<32x128xbf16, #tpu.memory_space<vmem>>, vector<32x128xbf16>
    %cst_63 = arith.constant dense<0.000000e+00> : vector<32x128xf32>
    %118 = tpu.matmul %116, %117, %cst_63 {dimension_numbers = #tpu.dot_dimension_numbers<[1], [0], [0], [1], [0, 0, 1, 1], [], []>} : vector<32x32xbf16>, vector<32x128xbf16>, vector<32x128xf32> -> vector<32x128xf32>
    %c0_64 = arith.constant 0 : index
    %c0_65 = arith.constant 0 : index
    %119 = vector.load %arg27[%c0_64, %c0_65] : memref<1x128xf32, #tpu.memory_space<vmem>>, vector<1x128xf32>
    %120 = vector.broadcast %119 : vector<1x128xf32> to vector<32x128xf32>
    %121 = arith.addf %118, %120 : vector<32x128xf32>
    %c0_66 = arith.constant 0 : index
    %c0_67 = arith.constant 0 : index
    %122 = vector.load %arg28[%c0_66, %c0_67] : memref<32x128xbf16, #tpu.memory_space<vmem>>, vector<32x128xbf16>
    %cst_68 = arith.constant dense<0.000000e+00> : vector<32x128xf32>
    %123 = tpu.matmul %116, %122, %cst_68 {dimension_numbers = #tpu.dot_dimension_numbers<[1], [0], [0], [1], [0, 0, 1, 1], [], []>} : vector<32x32xbf16>, vector<32x128xbf16>, vector<32x128xf32> -> vector<32x128xf32>
    %c0_69 = arith.constant 0 : index
    %c0_70 = arith.constant 0 : index
    %124 = vector.load %arg29[%c0_69, %c0_70] : memref<1x128xf32, #tpu.memory_space<vmem>>, vector<1x128xf32>
    %125 = vector.broadcast %124 : vector<1x128xf32> to vector<32x128xf32>
    %126 = arith.addf %123, %125 : vector<32x128xf32>
    %cst_71 = arith.constant 5.000000e-01 : f32
    %127 = vector.broadcast %cst_71 : f32 to vector<32x128xf32>
    %128 = arith.mulf %127, %126 : vector<32x128xf32>
    %cst_72 = arith.constant 0.707106769 : f32
    %129 = vector.broadcast %cst_72 : f32 to vector<32x128xf32>
    %130 = arith.mulf %126, %129 : vector<32x128xf32>
    %131 = math.erf %130 : vector<32x128xf32>
    %cst_73 = arith.constant 1.000000e+00 : f32
    %132 = vector.broadcast %cst_73 : f32 to vector<32x128xf32>
    %133 = arith.addf %132, %131 : vector<32x128xf32>
    %134 = arith.mulf %128, %133 : vector<32x128xf32>
    %135 = arith.mulf %121, %134 : vector<32x128xf32>
    %136 = arith.truncf %135 : vector<32x128xf32> to vector<32x128xbf16>
    %c0_74 = arith.constant 0 : index
    %c0_75 = arith.constant 0 : index
    %137 = vector.load %arg30[%c0_74, %c0_75] : memref<128x32xbf16, #tpu.memory_space<vmem>>, vector<128x32xbf16>
    %cst_76 = arith.constant dense<0.000000e+00> : vector<32x32xf32>
    %138 = tpu.matmul %136, %137, %cst_76 {dimension_numbers = #tpu.dot_dimension_numbers<[1], [0], [0], [1], [0, 0, 1, 1], [], []>} : vector<32x128xbf16>, vector<128x32xbf16>, vector<32x32xf32> -> vector<32x32xf32>
    %139 = arith.addf %91, %138 : vector<32x32xf32>
    %c0_77 = arith.constant 0 : index
    %c0_78 = arith.constant 0 : index
    %140 = vector.load %arg31[%c0_77, %c0_78] : memref<1x32xf32, #tpu.memory_space<vmem>>, vector<1x32xf32>
    %141 = vector.broadcast %140 : vector<1x32xf32> to vector<32x32xf32>
    %142 = arith.addf %139, %141 : vector<32x32xf32>
    %143 = arith.truncf %142 : vector<32x32xf32> to vector<32x32xbf16>
    %c0_79 = arith.constant 0 : index
    %c0_80 = arith.constant 0 : index
    %144 = vector.load %arg32[%c0_79, %c0_80] : memref<32x32xbf16, #tpu.memory_space<vmem>>, vector<32x32xbf16>
    %cst_81 = arith.constant dense<0.000000e+00> : vector<32x32xf32>
    %145 = tpu.matmul %143, %144, %cst_81 {dimension_numbers = #tpu.dot_dimension_numbers<[1], [0], [0], [1], [0, 0, 1, 1], [], []>} : vector<32x32xbf16>, vector<32x32xbf16>, vector<32x32xf32> -> vector<32x32xf32>
    %c0_82 = arith.constant 0 : index
    %c0_83 = arith.constant 0 : index
    %146 = vector.load %arg33[%c0_82, %c0_83] : memref<1x32xf32, #tpu.memory_space<vmem>>, vector<1x32xf32>
    %147 = vector.broadcast %146 : vector<1x32xf32> to vector<32x32xf32>
    %148 = arith.addf %145, %147 : vector<32x32xf32>
    %149 = arith.index_cast %4 : i32 to index
    %c0_84 = arith.constant 0 : index
    %150 = vector.load %arg35[%149, %c0_84] : memref<64x32xf32, #tpu.memory_space<vmem>>, vector<32x32xf32>
    %151 = arith.addf %148, %150 : vector<32x32xf32>
    %c0_85 = arith.constant 0 : index
    %c0_86 = arith.constant 0 : index
    %c0_87 = arith.constant 0 : index
    %152 = vector.load %arg34[%c0_85, %c0_86, %c0_87] : memref<1x32x32xf32, #tpu.memory_space<vmem>>, vector<1x32x32xf32>
    %153 = vector.shape_cast %152 : vector<1x32x32xf32> to vector<32x32xf32>
    %154 = vector.shape_cast %151 : vector<32x32xf32> to vector<1x32x32xf32>
    tpu.vector_store %arg34[%c0_85, %c0_86, %c0_87], %154 {strides = array<i32>} : memref<1x32x32xf32, #tpu.memory_space<vmem>>, vector<1x32x32xf32>,
    return
  }
  func.func @transform_0(%arg0: i32, %arg1: i32) -> (i32, i32, i32) {
    %c0_i32 = arith.constant 0 : i32
    %c0_i32_0 = arith.constant 0 : i32
    %c0_i32_1 = arith.constant 0 : i32
    return %arg0, %c0_i32, %c0_i32_0 : i32, i32, i32
  }
  func.func @transform_1(%arg0: i32, %arg1: i32) -> (i32, i32, i32) {
    %c0_i32 = arith.constant 0 : i32
    %c0_i32_0 = arith.constant 0 : i32
    %c0_i32_1 = arith.constant 0 : i32
    return %arg0, %c0_i32, %c0_i32_0 : i32, i32, i32
  }
  func.func @transform_2(%arg0: i32, %arg1: i32) -> (i32, i32) {
    %c0_i32 = arith.constant 0 : i32
    %c0_i32_0 = arith.constant 0 : i32
    %c0_i32_1 = arith.constant 0 : i32
    return %c0_i32, %c0_i32_0 : i32, i32
  }
  func.func @transform_3(%arg0: i32, %arg1: i32) -> (i32, i32) {
    %c0_i32 = arith.constant 0 : i32
    %c0_i32_0 = arith.constant 0 : i32
    %c0_i32_1 = arith.constant 0 : i32
    return %c0_i32, %c0_i32_0 : i32, i32
  }
  func.func @transform_4(%arg0: i32, %arg1: i32) -> (i32, i32) {
    %c0_i32 = arith.constant 0 : i32
    %c0_i32_0 = arith.constant 0 : i32
    %c0_i32_1 = arith.constant 0 : i32
    return %c0_i32, %c0_i32_0 : i32, i32
  }
  func.func @transform_5(%arg0: i32, %arg1: i32) -> (i32, i32) {
    %c0_i32 = arith.constant 0 : i32
    %c0_i32_0 = arith.constant 0 : i32
    %c0_i32_1 = arith.constant 0 : i32
    return %c0_i32, %c0_i32_0 : i32, i32
  }
  func.func @transform_6(%arg0: i32, %arg1: i32) -> (i32, i32) {
    %c0_i32 = arith.constant 0 : i32
    %c0_i32_0 = arith.constant 0 : i32
    %c0_i32_1 = arith.constant 0 : i32
    return %c0_i32, %c0_i32_0 : i32, i32
  }
  func.func @transform_7(%arg0: i32, %arg1: i32) -> (i32, i32) {
    %c0_i32 = arith.constant 0 : i32
    %c0_i32_0 = arith.constant 0 : i32
    %c0_i32_1 = arith.constant 0 : i32
    return %c0_i32, %c0_i32_0 : i32, i32
  }
  func.func @transform_8(%arg0: i32, %arg1: i32) -> (i32, i32) {
    %c0_i32 = arith.constant 0 : i32
    %c0_i32_0 = arith.constant 0 : i32
    %c0_i32_1 = arith.constant 0 : i32
    return %c0_i32, %c0_i32_0 : i32, i32
  }
  func.func @transform_9(%arg0: i32, %arg1: i32) -> (i32, i32) {
    %c0_i32 = arith.constant 0 : i32
    %c0_i32_0 = arith.constant 0 : i32
    %c0_i32_1 = arith.constant 0 : i32
    return %c0_i32, %c0_i32_0 : i32, i32
  }
  func.func @transform_10(%arg0: i32, %arg1: i32) -> (i32, i32, i32) {
    %c0_i32 = arith.constant 0 : i32
    %c0_i32_0 = arith.constant 0 : i32
    %c0_i32_1 = arith.constant 0 : i32
    %c0_i32_2 = arith.constant 0 : i32
    return %c0_i32, %c0_i32_0, %c0_i32_1 : i32, i32, i32
  }
  func.func @transform_11(%arg0: i32, %arg1: i32) -> (i32, i32, i32) {
    %c0_i32 = arith.constant 0 : i32
    %c0_i32_0 = arith.constant 0 : i32
    %c0_i32_1 = arith.constant 0 : i32
    %c0_i32_2 = arith.constant 0 : i32
    return %c0_i32, %c0_i32_0, %c0_i32_1 : i32, i32, i32
  }
  func.func @transform_12(%arg0: i32, %arg1: i32) -> (i32, i32, i32) {
    %c0_i32 = arith.constant 0 : i32
    %c0_i32_0 = arith.constant 0 : i32
    %c0_i32_1 = arith.constant 0 : i32
    %c0_i32_2 = arith.constant 0 : i32
    return %c0_i32, %c0_i32_0, %c0_i32_1 : i32, i32, i32
  }
  func.func @transform_13(%arg0: i32, %arg1: i32) -> (i32, i32, i32) {
    %c0_i32 = arith.constant 0 : i32
    %c0_i32_0 = arith.constant 0 : i32
    %c0_i32_1 = arith.constant 0 : i32
    %c0_i32_2 = arith.constant 0 : i32
    return %c0_i32, %c0_i32_0, %c0_i32_1 : i32, i32, i32
  }
  func.func @transform_14(%arg0: i32, %arg1: i32) -> (i32, i32) {
    %c0_i32 = arith.constant 0 : i32
    %c0_i32_0 = arith.constant 0 : i32
    %c0_i32_1 = arith.constant 0 : i32
    return %c0_i32, %c0_i32_0 : i32, i32
  }
  func.func @transform_15(%arg0: i32, %arg1: i32) -> (i32, i32) {
    %c0_i32 = arith.constant 0 : i32
    %c0_i32_0 = arith.constant 0 : i32
    %c0_i32_1 = arith.constant 0 : i32
    return %c0_i32, %c0_i32_0 : i32, i32
  }
  func.func @transform_16(%arg0: i32, %arg1: i32) -> (i32, i32) {
    %c0_i32 = arith.constant 0 : i32
    %c0_i32_0 = arith.constant 0 : i32
    %c0_i32_1 = arith.constant 0 : i32
    return %c0_i32, %c0_i32_0 : i32, i32
  }
  func.func @transform_17(%arg0: i32, %arg1: i32) -> (i32, i32, i32) {
    %c0_i32 = arith.constant 0 : i32
    %c0_i32_0 = arith.constant 0 : i32
    %c0_i32_1 = arith.constant 0 : i32
    %c0_i32_2 = arith.constant 0 : i32
    return %c0_i32, %c0_i32_0, %c0_i32_1 : i32, i32, i32
  }
  func.func @transform_18(%arg0: i32, %arg1: i32) -> (i32, i32, i32) {
    %c0_i32 = arith.constant 0 : i32
    %c0_i32_0 = arith.constant 0 : i32
    %c0_i32_1 = arith.constant 0 : i32
    %c0_i32_2 = arith.constant 0 : i32
    return %c0_i32, %c0_i32_0, %c0_i32_1 : i32, i32, i32
  }
  func.func @transform_19(%arg0: i32, %arg1: i32) -> (i32, i32, i32) {
    %c0_i32 = arith.constant 0 : i32
    %c0_i32_0 = arith.constant 0 : i32
    %c0_i32_1 = arith.constant 0 : i32
    %c0_i32_2 = arith.constant 0 : i32
    return %c0_i32, %c0_i32_0, %c0_i32_1 : i32, i32, i32
  }
  func.func @transform_20(%arg0: i32, %arg1: i32) -> (i32, i32, i32) {
    %c0_i32 = arith.constant 0 : i32
    %c0_i32_0 = arith.constant 0 : i32
    %c0_i32_1 = arith.constant 0 : i32
    %c0_i32_2 = arith.constant 0 : i32
    return %c0_i32, %c0_i32_0, %c0_i32_1 : i32, i32, i32
  }
  func.func @transform_21(%arg0: i32, %arg1: i32) -> (i32, i32) {
    %c0_i32 = arith.constant 0 : i32
    %c0_i32_0 = arith.constant 0 : i32
    %c0_i32_1 = arith.constant 0 : i32
    return %c0_i32, %c0_i32_0 : i32, i32
  }
  func.func @transform_22(%arg0: i32, %arg1: i32) -> (i32, i32) {
    %c0_i32 = arith.constant 0 : i32
    %c0_i32_0 = arith.constant 0 : i32
    %c0_i32_1 = arith.constant 0 : i32
    return %c0_i32, %c0_i32_0 : i32, i32
  }
  func.func @transform_23(%arg0: i32, %arg1: i32) -> (i32, i32) {
    %c0_i32 = arith.constant 0 : i32
    %c0_i32_0 = arith.constant 0 : i32
    %c0_i32_1 = arith.constant 0 : i32
    return %c0_i32, %c0_i32_0 : i32, i32
  }
  func.func @transform_24(%arg0: i32, %arg1: i32) -> (i32, i32) {
    %c0_i32 = arith.constant 0 : i32
    %c0_i32_0 = arith.constant 0 : i32
    %c0_i32_1 = arith.constant 0 : i32
    return %c0_i32, %c0_i32_0 : i32, i32
  }
  func.func @transform_25(%arg0: i32, %arg1: i32) -> (i32, i32) {
    %c0_i32 = arith.constant 0 : i32
    %c0_i32_0 = arith.constant 0 : i32
    %c0_i32_1 = arith.constant 0 : i32
    return %c0_i32, %c0_i32_0 : i32, i32
  }
  func.func @transform_26(%arg0: i32, %arg1: i32) -> (i32, i32) {
    %c0_i32 = arith.constant 0 : i32
    %c0_i32_0 = arith.constant 0 : i32
    %c0_i32_1 = arith.constant 0 : i32
    return %c0_i32, %c0_i32_0 : i32, i32
  }
  func.func @transform_27(%arg0: i32, %arg1: i32) -> (i32, i32) {
    %c0_i32 = arith.constant 0 : i32
    %c0_i32_0 = arith.constant 0 : i32
    %c0_i32_1 = arith.constant 0 : i32
    return %c0_i32, %c0_i32_0 : i32, i32
  }
  func.func @transform_28(%arg0: i32, %arg1: i32) -> (i32, i32) {
    %c0_i32 = arith.constant 0 : i32
    %c0_i32_0 = arith.constant 0 : i32
    %c0_i32_1 = arith.constant 0 : i32
    return %c0_i32, %c0_i32_0 : i32, i32
  }
  func.func @transform_29(%arg0: i32, %arg1: i32) -> (i32, i32) {
    %c0_i32 = arith.constant 0 : i32
    %c0_i32_0 = arith.constant 0 : i32
    %c0_i32_1 = arith.constant 0 : i32
    return %c0_i32, %c0_i32_0 : i32, i32
  }
  func.func @transform_30(%arg0: i32, %arg1: i32) -> (i32, i32) {
    %c0_i32 = arith.constant 0 : i32
    %c0_i32_0 = arith.constant 0 : i32
    %c0_i32_1 = arith.constant 0 : i32
    return %c0_i32, %c0_i32_0 : i32, i32
  }
  func.func @transform_31(%arg0: i32, %arg1: i32) -> (i32, i32) {
    %c0_i32 = arith.constant 0 : i32
    %c0_i32_0 = arith.constant 0 : i32
    %c0_i32_1 = arith.constant 0 : i32
    return %c0_i32, %c0_i32_0 : i32, i32
  }
  func.func @transform_32(%arg0: i32, %arg1: i32) -> (i32, i32, i32) {
    %c0_i32 = arith.constant 0 : i32
    %c0_i32_0 = arith.constant 0 : i32
    return %arg0, %arg1, %c0_i32 : i32, i32, i32
  }
}

</mosaic_0001>

<llo_original>
// kernel: tpu_custom_call.1
$region0: #{tpu_custom_call.1}
  #allocation0 [shape = 'u32[]', space=smem, size = 0x4, offset = 0x4, fixed_abs, tag = 'smem constant byte address 0x4 - core index']
  #allocation1 [shape = 'u32[144,128]{1,0:T(1,128)}', space=vmem, size = 0x12000, scoped, tag = 'internal scratch']
  #allocation2 [shape = 'f32[64,32]{1,0:T(8,128)}', space=vmem, size = 0x8000, scoped, tag = 'scratch operand']
  #allocation3 [shape = 'f32[64,32]{1,0:T(8,128)}', space=vmem, size = 0x8000, scoped, tag = 'scratch operand']
  #allocation4 [shape = 'bf16[64,32]{1,0:T(16,128)(2,1)}', space=vmem, size = 0x4000, scoped, tag = 'scratch operand']
  #allocation5 [shape = 'bf16[4,64,8]{2,1,0:T(16,128)(2,1)}', space=vmem, size = 0x10000, scoped, tag = 'scratch operand']
  #allocation6 [shape = 'bf16[4,64,8]{2,1,0:T(16,128)(2,1)}', space=vmem, size = 0x10000, scoped, tag = 'scratch operand']
  #allocation7 [shape = 'bf16[4,8,8]{2,1,0:T(8,128)(2,1)}', space=vmem, size = 0x2000, scoped, tag = 'scratch operand']
  #allocation8 [shape = 'bf16[4,8,8]{2,1,0:T(8,128)(2,1)}', space=vmem, size = 0x2000, scoped, tag = 'scratch operand']
  %s0 = inlined_call_operand.smem [shape: u32[33], index: -1, kind: input, shape index: {}]
  %s1 = sld [smem:[%s0]]
  %s2 = scalar_lea.smem %s0, 1
  %s3 = sld [smem:[%s2]]
  %s4 = scalar_lea.smem %s0, 2
  %s5 = sld [smem:[%s4]]
  %s6 = scalar_lea.smem %s0, 3
  %s7 = sld [smem:[%s6]]
  %s8 = scalar_lea.smem %s0, 4
  %s9 = sld [smem:[%s8]]
  %s10 = scalar_lea.smem %s0, 5
  %s11 = sld [smem:[%s10]]
  %s12 = scalar_lea.smem %s0, 6
  %s13 = sld [smem:[%s12]]
  %s14 = scalar_lea.smem %s0, 7
  %s15 = sld [smem:[%s14]]
  %s16 = scalar_lea.smem %s0, 8
  %s17 = sld [smem:[%s16]]
  %s18 = scalar_lea.smem %s0, 9
  %s19 = sld [smem:[%s18]]
  %s20 = scalar_lea.smem %s0, 10
  %s21 = sld [smem:[%s20]]
  %s22 = scalar_lea.smem %s0, 11
  %s23 = sld [smem:[%s22]]
  %s24 = scalar_lea.smem %s0, 12
  %s25 = sld [smem:[%s24]]
  %s26 = scalar_lea.smem %s0, 13
  %s27 = sld [smem:[%s26]]
  %s28 = scalar_lea.smem %s0, 14
  %s29 = sld [smem:[%s28]]
  %s30 = scalar_lea.smem %s0, 15
  %s31 = sld [smem:[%s30]]
  %s32 = scalar_lea.smem %s0, 16
  %s33 = sld [smem:[%s32]]
  %s34 = scalar_lea.smem %s0, 17
  %s35 = sld [smem:[%s34]]
  %s36 = scalar_lea.smem %s0, 18
  %s37 = sld [smem:[%s36]]
  %s38 = scalar_lea.smem %s0, 19
  %s39 = sld [smem:[%s38]]
  %s40 = scalar_lea.smem %s0, 20
  %s41 = sld [smem:[%s40]]
  %s42 = scalar_lea.smem %s0, 21
  %s43 = sld [smem:[%s42]]
  %s44 = scalar_lea.smem %s0, 22
  %s45 = sld [smem:[%s44]]
  %s46 = scalar_lea.smem %s0, 23
  %s47 = sld [smem:[%s46]]
  %s48 = scalar_lea.smem %s0, 24
  %s49 = sld [smem:[%s48]]
  %s50 = scalar_lea.smem %s0, 25
  %s51 = sld [smem:[%s50]]
  %s52 = scalar_lea.smem %s0, 26
  %s53 = sld [smem:[%s52]]
  %s54 = scalar_lea.smem %s0, 27
  %s55 = sld [smem:[%s54]]
  %s56 = scalar_lea.smem %s0, 28
  %s57 = sld [smem:[%s56]]
  %s58 = scalar_lea.smem %s0, 29
  %s59 = sld [smem:[%s58]]
  %s60 = scalar_lea.smem %s0, 30
  %s61 = sld [smem:[%s60]]
  %s62 = scalar_lea.smem %s0, 31
  %s63 = sld [smem:[%s62]]
  %s64 = scalar_lea.smem %s0, 32
  %s65 = sld [smem:[%s64]]
  %s66 = sld [smem:[#allocation0]]
  $region165: #{tpu_custom_call.1} parent=0
    _
  %s68 = ssub.s32 1, %s66
  %s69 = scalar_select 0, %s68, %s66
  loop: start=0, step=1, limit=6
  $region2: #{tpu_custom_call.1} parent=0 // loop_pre_header
    _
  $region3: #{tpu_custom_call.1} parent=0 // loop_header
    %s71 = sphi 0, %s75
    %p72 = scmp.ge.s32.totalorder %s71, 6
    %s78 = sphi 0, %s90
    %s79 = sphi 0, %s86
    %s80 = sphi 0, %s78
    %s81 = sphi 0, %s79
    %s82 = sphi 0, %s80
    %s83 = sphi 0, %s81
    %s93 = sphi 0, %s95
    %s96 = sphi 0, %s93
    %s97 = sphi 0, %s96
    %s113 = sphi 0, %s97
    %s119 = sphi 0, %s121
    %s122 = sphi 0, %s119
    %s123 = sphi 0, %s122
    %s139 = sphi 0, %s123
    %s143 = sphi 0, %s143
    %s145 = sphi 0, %s143
    %s146 = sphi 0, %s145
    %s160 = sphi 0, %s146
    %s164 = sphi 0, %s164
    %s166 = sphi 0, %s164
    %s167 = sphi 0, %s166
    %s181 = sphi 0, %s167
    %s185 = sphi 0, %s185
    %s187 = sphi 0, %s185
    %s188 = sphi 0, %s187
    %s202 = sphi 0, %s188
    %s206 = sphi 0, %s206
    %s208 = sphi 0, %s206
    %s209 = sphi 0, %s208
    %s223 = sphi 0, %s209
    %s227 = sphi 0, %s227
    %s229 = sphi 0, %s227
    %s230 = sphi 0, %s229
    %s244 = sphi 0, %s230
    %s248 = sphi 0, %s248
    %s250 = sphi 0, %s248
    %s251 = sphi 0, %s250
    %s265 = sphi 0, %s251
    %s269 = sphi 0, %s269
    %s271 = sphi 0, %s269
    %s272 = sphi 0, %s271
    %s286 = sphi 0, %s272
    %s290 = sphi 0, %s290
    %s292 = sphi 0, %s290
    %s293 = sphi 0, %s292
    %s307 = sphi 0, %s293
    %s311 = sphi 0, %s311
    %s313 = sphi 0, %s311
    %s314 = sphi 0, %s313
    %s328 = sphi 0, %s314
    %s332 = sphi 0, %s332
    %s334 = sphi 0, %s332
    %s335 = sphi 0, %s334
    %s349 = sphi 0, %s335
    %s353 = sphi 0, %s353
    %s355 = sphi 0, %s353
    %s356 = sphi 0, %s355
    %s370 = sphi 0, %s356
    %s374 = sphi 0, %s374
    %s376 = sphi 0, %s374
    %s377 = sphi 0, %s376
    %s391 = sphi 0, %s377
    %s395 = sphi 0, %s395
    %s397 = sphi 0, %s395
    %s398 = sphi 0, %s397
    %s412 = sphi 0, %s398
    %s416 = sphi 0, %s416
    %s418 = sphi 0, %s416
    %s419 = sphi 0, %s418
    %s433 = sphi 0, %s419
    %s437 = sphi 0, %s437
    %s439 = sphi 0, %s437
    %s440 = sphi 0, %s439
    %s454 = sphi 0, %s440
    %s458 = sphi 0, %s458
    %s460 = sphi 0, %s458
    %s461 = sphi 0, %s460
    %s475 = sphi 0, %s461
    %s479 = sphi 0, %s479
    %s481 = sphi 0, %s479
    %s482 = sphi 0, %s481
    %s496 = sphi 0, %s482
    %s500 = sphi 0, %s500
    %s502 = sphi 0, %s500
    %s503 = sphi 0, %s502
    %s517 = sphi 0, %s503
    %s521 = sphi 0, %s521
    %s523 = sphi 0, %s521
    %s524 = sphi 0, %s523
    %s538 = sphi 0, %s524
    %s542 = sphi 0, %s542
    %s544 = sphi 0, %s542
    %s545 = sphi 0, %s544
    %s559 = sphi 0, %s545
    %s563 = sphi 0, %s563
    %s565 = sphi 0, %s563
    %s566 = sphi 0, %s565
    %s580 = sphi 0, %s566
    %s584 = sphi 0, %s584
    %s586 = sphi 0, %s584
    %s587 = sphi 0, %s586
    %s601 = sphi 0, %s587
    %s605 = sphi 0, %s605
    %s607 = sphi 0, %s605
    %s608 = sphi 0, %s607
    %s622 = sphi 0, %s608
    %s626 = sphi 0, %s626
    %s628 = sphi 0, %s626
    %s629 = sphi 0, %s628
    %s643 = sphi 0, %s629
    %s647 = sphi 0, %s647
    %s649 = sphi 0, %s647
    %s650 = sphi 0, %s649
    %s664 = sphi 0, %s650
    %s668 = sphi 0, %s668
    %s670 = sphi 0, %s668
    %s671 = sphi 0, %s670
    %s685 = sphi 0, %s671
    %s689 = sphi 0, %s689
    %s691 = sphi 0, %s689
    %s692 = sphi 0, %s691
    %s706 = sphi 0, %s692
    %s710 = sphi 0, %s710
    %s712 = sphi 0, %s710
    %s713 = sphi 0, %s712
    %s727 = sphi 0, %s713
    %s731 = sphi 0, %s731
    %s733 = sphi 0, %s731
    %s734 = sphi 0, %s733
    %s748 = sphi 0, %s734
    %s752 = sphi 0, %s752
    %s754 = sphi 0, %s752
    %s755 = sphi 0, %s754
    %s769 = sphi 0, %s755
    %s777 = sphi 0, %s779
    %s780 = sphi 0, %s777
    %s781 = sphi 0, %s780
    %s797 = sphi 0, %s781
  $region4: #{tpu_custom_call.1} parent=0 // loop_header_branch
    %74 = sbr.rel (%p72) target = $region8
  $region5: #{tpu_custom_call.1} parent=0 // loop_body
    %s76 = ssub.s32 %s71, 1
    %s77 = ssub.s32 %s71, 2
    %s84 = sadd.s32 1, %s79
    %p85 = scmp.ge.s32.totalorder %s84, 2
    %s86 = scalar_select %p85, 0, %s84
    %s87 = sadd.s32 1, %s78
    %s88 = scalar_select %p85, %s87, %s78
    %p89 = scmp.ge.s32.totalorder %s88, 2
    %s90 = scalar_select %p89, 0, %s88
    %s91 = ssub.s32 %s78, %s90
    %p92 = scmp.eq.s32.totalorder %s91, 0
    %s94 = sadd.s32 %s93, 1
    %s95 = scalar_select %p92, %s93, %s94
    %p98 = pneg %p92
    %p99 = scmp.eq.s32.totalorder %s71, 3
    %p100 = por %p98, %p99
    %p101 = scmp.ne.s32.totalorder %s93, %s96
    %p102 = scmp.eq.s32.totalorder %s71, 0
    %p103 = por %p101, %p102
    %p104 = scmp.ne.s32.totalorder %s93, %s96
    %p105 = scmp.eq.s32.totalorder %s76, 3
    %p106 = por %p104, %p105
    %p107 = scmp.ne.s32.totalorder %s96, %s97
    %p108 = scmp.eq.s32.totalorder %s76, 0
    %p109 = por %p107, %p108
    %p110 = scmp.ne.s32.totalorder %s96, %s97
    %p111 = scmp.eq.s32.totalorder %s77, 3
    %p112 = por %p110, %p111
    %p114 = scmp.ne.s32.totalorder %s97, %s113
    %p115 = scmp.eq.s32.totalorder %s77, 0
    %p116 = por %p114, %p115
    %s117 = ssub.s32 %s78, %s90
    %p118 = scmp.eq.s32.totalorder %s117, 0
    %s120 = sadd.s32 %s119, 1
    %s121 = scalar_select %p118, %s119, %s120
    %p124 = pneg %p118
    %p125 = scmp.eq.s32.totalorder %s71, 3
    %p126 = por %p124, %p125
    %p127 = scmp.ne.s32.totalorder %s119, %s122
    %p128 = scmp.eq.s32.totalorder %s71, 0
    %p129 = por %p127, %p128
    %p130 = scmp.ne.s32.totalorder %s119, %s122
    %p131 = scmp.eq.s32.totalorder %s76, 3
    %p132 = por %p130, %p131
    %p133 = scmp.ne.s32.totalorder %s122, %s123
    %p134 = scmp.eq.s32.totalorder %s76, 0
    %p135 = por %p133, %p134
    %p136 = scmp.ne.s32.totalorder %s122, %s123
    %p137 = scmp.eq.s32.totalorder %s77, 3
    %p138 = por %p136, %p137
    %p140 = scmp.ne.s32.totalorder %s123, %s139
    %p141 = scmp.eq.s32.totalorder %s77, 0
    %p142 = por %p140, %p141
    %s144 = sadd.s32 %s143, 1
    %p147 = scmp.eq.s32.totalorder %s71, 3
    %p148 = scmp.ne.s32.totalorder %s143, %s145
    %p149 = scmp.eq.s32.totalorder %s71, 0
    %p150 = por %p148, %p149
    %p151 = scmp.ne.s32.totalorder %s143, %s145
    %p152 = scmp.eq.s32.totalorder %s76, 3
    %p153 = por %p151, %p152
    %p154 = scmp.ne.s32.totalorder %s145, %s146
    %p155 = scmp.eq.s32.totalorder %s76, 0
    %p156 = por %p154, %p155
    %p157 = scmp.ne.s32.totalorder %s145, %s146
    %p158 = scmp.eq.s32.totalorder %s77, 3
    %p159 = por %p157, %p158
    %p161 = scmp.ne.s32.totalorder %s146, %s160
    %p162 = scmp.eq.s32.totalorder %s77, 0
    %p163 = por %p161, %p162
    %s165 = sadd.s32 %s164, 1
    %p168 = scmp.eq.s32.totalorder %s71, 3
    %p169 = scmp.ne.s32.totalorder %s164, %s166
    %p170 = scmp.eq.s32.totalorder %s71, 0
    %p171 = por %p169, %p170
    %p172 = scmp.ne.s32.totalorder %s164, %s166
    %p173 = scmp.eq.s32.totalorder %s76, 3
    %p174 = por %p172, %p173
    %p175 = scmp.ne.s32.totalorder %s166, %s167
    %p176 = scmp.eq.s32.totalorder %s76, 0
    %p177 = por %p175, %p176
    %p178 = scmp.ne.s32.totalorder %s166, %s167
    %p179 = scmp.eq.s32.totalorder %s77, 3
    %p180 = por %p178, %p179
    %p182 = scmp.ne.s32.totalorder %s167, %s181
    %p183 = scmp.eq.s32.totalorder %s77, 0
    %p184 = por %p182, %p183
    %s186 = sadd.s32 %s185, 1
    %p189 = scmp.eq.s32.totalorder %s71, 3
    %p190 = scmp.ne.s32.totalorder %s185, %s187
    %p191 = scmp.eq.s32.totalorder %s71, 0
    %p192 = por %p190, %p191
    %p193 = scmp.ne.s32.totalorder %s185, %s187
    %p194 = scmp.eq.s32.totalorder %s76, 3
    %p195 = por %p193, %p194
    %p196 = scmp.ne.s32.totalorder %s187, %s188
    %p197 = scmp.eq.s32.totalorder %s76, 0
    %p198 = por %p196, %p197
    %p199 = scmp.ne.s32.totalorder %s187, %s188
    %p200 = scmp.eq.s32.totalorder %s77, 3
    %p201 = por %p199, %p200
    %p203 = scmp.ne.s32.totalorder %s188, %s202
    %p204 = scmp.eq.s32.totalorder %s77, 0
    %p205 = por %p203, %p204
    %s207 = sadd.s32 %s206, 1
    %p210 = scmp.eq.s32.totalorder %s71, 3
    %p211 = scmp.ne.s32.totalorder %s206, %s208
    %p212 = scmp.eq.s32.totalorder %s71, 0
    %p213 = por %p211, %p212
    %p214 = scmp.ne.s32.totalorder %s206, %s208
    %p215 = scmp.eq.s32.totalorder %s76, 3
    %p216 = por %p214, %p215
    %p217 = scmp.ne.s32.totalorder %s208, %s209
    %p218 = scmp.eq.s32.totalorder %s76, 0
    %p219 = por %p217, %p218
    %p220 = scmp.ne.s32.totalorder %s208, %s209
    %p221 = scmp.eq.s32.totalorder %s77, 3
    %p222 = por %p220, %p221
    %p224 = scmp.ne.s32.totalorder %s209, %s223
    %p225 = scmp.eq.s32.totalorder %s77, 0
    %p226 = por %p224, %p225
    %s228 = sadd.s32 %s227, 1
    %p231 = scmp.eq.s32.totalorder %s71, 3
    %p232 = scmp.ne.s32.totalorder %s227, %s229
    %p233 = scmp.eq.s32.totalorder %s71, 0
    %p234 = por %p232, %p233
    %p235 = scmp.ne.s32.totalorder %s227, %s229
    %p236 = scmp.eq.s32.totalorder %s76, 3
    %p237 = por %p235, %p236
    %p238 = scmp.ne.s32.totalorder %s229, %s230
    %p239 = scmp.eq.s32.totalorder %s76, 0
    %p240 = por %p238, %p239
    %p241 = scmp.ne.s32.totalorder %s229, %s230
    %p242 = scmp.eq.s32.totalorder %s77, 3
    %p243 = por %p241, %p242
    %p245 = scmp.ne.s32.totalorder %s230, %s244
    %p246 = scmp.eq.s32.totalorder %s77, 0
    %p247 = por %p245, %p246
    %s249 = sadd.s32 %s248, 1
    %p252 = scmp.eq.s32.totalorder %s71, 3
    %p253 = scmp.ne.s32.totalorder %s248, %s250
    %p254 = scmp.eq.s32.totalorder %s71, 0
    %p255 = por %p253, %p254
    %p256 = scmp.ne.s32.totalorder %s248, %s250
    %p257 = scmp.eq.s32.totalorder %s76, 3
    %p258 = por %p256, %p257
    %p259 = scmp.ne.s32.totalorder %s250, %s251
    %p260 = scmp.eq.s32.totalorder %s76, 0
    %p261 = por %p259, %p260
    %p262 = scmp.ne.s32.totalorder %s250, %s251
    %p263 = scmp.eq.s32.totalorder %s77, 3
    %p264 = por %p262, %p263
    %p266 = scmp.ne.s32.totalorder %s251, %s265
    %p267 = scmp.eq.s32.totalorder %s77, 0
    %p268 = por %p266, %p267
    %s270 = sadd.s32 %s269, 1
    %p273 = scmp.eq.s32.totalorder %s71, 3
    %p274 = scmp.ne.s32.totalorder %s269, %s271
    %p275 = scmp.eq.s32.totalorder %s71, 0
    %p276 = por %p274, %p275
    %p277 = scmp.ne.s32.totalorder %s269, %s271
    %p278 = scmp.eq.s32.totalorder %s76, 3
    %p279 = por %p277, %p278
    %p280 = scmp.ne.s32.totalorder %s271, %s272
    %p281 = scmp.eq.s32.totalorder %s76, 0
    %p282 = por %p280, %p281
    %p283 = scmp.ne.s32.totalorder %s271, %s272
    %p284 = scmp.eq.s32.totalorder %s77, 3
    %p285 = por %p283, %p284
    %p287 = scmp.ne.s32.totalorder %s272, %s286
    %p288 = scmp.eq.s32.totalorder %s77, 0
    %p289 = por %p287, %p288
    %s291 = sadd.s32 %s290, 1
    %p294 = scmp.eq.s32.totalorder %s71, 3
    %p295 = scmp.ne.s32.totalorder %s290, %s292
    %p296 = scmp.eq.s32.totalorder %s71, 0
    %p297 = por %p295, %p296
    %p298 = scmp.ne.s32.totalorder %s290, %s292
    %p299 = scmp.eq.s32.totalorder %s76, 3
    %p300 = por %p298, %p299
    %p301 = scmp.ne.s32.totalorder %s292, %s293
    %p302 = scmp.eq.s32.totalorder %s76, 0
    %p303 = por %p301, %p302
    %p304 = scmp.ne.s32.totalorder %s292, %s293
    %p305 = scmp.eq.s32.totalorder %s77, 3
    %p306 = por %p304, %p305
    %p308 = scmp.ne.s32.totalorder %s293, %s307
    %p309 = scmp.eq.s32.totalorder %s77, 0
    %p310 = por %p308, %p309
    %s312 = sadd.s32 %s311, 1
    %p315 = scmp.eq.s32.totalorder %s71, 3
    %p316 = scmp.ne.s32.totalorder %s311, %s313
    %p317 = scmp.eq.s32.totalorder %s71, 0
    %p318 = por %p316, %p317
    %p319 = scmp.ne.s32.totalorder %s311, %s313
    %p320 = scmp.eq.s32.totalorder %s76, 3
    %p321 = por %p319, %p320
    %p322 = scmp.ne.s32.totalorder %s313, %s314
    %p323 = scmp.eq.s32.totalorder %s76, 0
    %p324 = por %p322, %p323
    %p325 = scmp.ne.s32.totalorder %s313, %s314
    %p326 = scmp.eq.s32.totalorder %s77, 3
    %p327 = por %p325, %p326
    %p329 = scmp.ne.s32.totalorder %s314, %s328
    %p330 = scmp.eq.s32.totalorder %s77, 0
    %p331 = por %p329, %p330
    %s333 = sadd.s32 %s332, 1
    %p336 = scmp.eq.s32.totalorder %s71, 3
    %p337 = scmp.ne.s32.totalorder %s332, %s334
    %p338 = scmp.eq.s32.totalorder %s71, 0
    %p339 = por %p337, %p338
    %p340 = scmp.ne.s32.totalorder %s332, %s334
    %p341 = scmp.eq.s32.totalorder %s76, 3
    %p342 = por %p340, %p341
    %p343 = scmp.ne.s32.totalorder %s334, %s335
    %p344 = scmp.eq.s32.totalorder %s76, 0
    %p345 = por %p343, %p344
    %p346 = scmp.ne.s32.totalorder %s334, %s335
    %p347 = scmp.eq.s32.totalorder %s77, 3
    %p348 = por %p346, %p347
    %p350 = scmp.ne.s32.totalorder %s335, %s349
    %p351 = scmp.eq.s32.totalorder %s77, 0
    %p352 = por %p350, %p351
    %s354 = sadd.s32 %s353, 1
    %p357 = scmp.eq.s32.totalorder %s71, 3
    %p358 = scmp.ne.s32.totalorder %s353, %s355
    %p359 = scmp.eq.s32.totalorder %s71, 0
    %p360 = por %p358, %p359
    %p361 = scmp.ne.s32.totalorder %s353, %s355
    %p362 = scmp.eq.s32.totalorder %s76, 3
    %p363 = por %p361, %p362
    %p364 = scmp.ne.s32.totalorder %s355, %s356
    %p365 = scmp.eq.s32.totalorder %s76, 0
    %p366 = por %p364, %p365
    %p367 = scmp.ne.s32.totalorder %s355, %s356
    %p368 = scmp.eq.s32.totalorder %s77, 3
    %p369 = por %p367, %p368
    %p371 = scmp.ne.s32.totalorder %s356, %s370
    %p372 = scmp.eq.s32.totalorder %s77, 0
    %p373 = por %p371, %p372
    %s375 = sadd.s32 %s374, 1
    %p378 = scmp.eq.s32.totalorder %s71, 3
    %p379 = scmp.ne.s32.totalorder %s374, %s376
    %p380 = scmp.eq.s32.totalorder %s71, 0
    %p381 = por %p379, %p380
    %p382 = scmp.ne.s32.totalorder %s374, %s376
    %p383 = scmp.eq.s32.totalorder %s76, 3
    %p384 = por %p382, %p383
    %p385 = scmp.ne.s32.totalorder %s376, %s377
    %p386 = scmp.eq.s32.totalorder %s76, 0
    %p387 = por %p385, %p386
    %p388 = scmp.ne.s32.totalorder %s376, %s377
    %p389 = scmp.eq.s32.totalorder %s77, 3
    %p390 = por %p388, %p389
    %p392 = scmp.ne.s32.totalorder %s377, %s391
    %p393 = scmp.eq.s32.totalorder %s77, 0
    %p394 = por %p392, %p393
    %s396 = sadd.s32 %s395, 1
    %p399 = scmp.eq.s32.totalorder %s71, 3
    %p400 = scmp.ne.s32.totalorder %s395, %s397
    %p401 = scmp.eq.s32.totalorder %s71, 0
    %p402 = por %p400, %p401
    %p403 = scmp.ne.s32.totalorder %s395, %s397
    %p404 = scmp.eq.s32.totalorder %s76, 3
    %p405 = por %p403, %p404
    %p406 = scmp.ne.s32.totalorder %s397, %s398
    %p407 = scmp.eq.s32.totalorder %s76, 0
    %p408 = por %p406, %p407
    %p409 = scmp.ne.s32.totalorder %s397, %s398
    %p410 = scmp.eq.s32.totalorder %s77, 3
    %p411 = por %p409, %p410
    %p413 = scmp.ne.s32.totalorder %s398, %s412
    %p414 = scmp.eq.s32.totalorder %s77, 0
    %p415 = por %p413, %p414
    %s417 = sadd.s32 %s416, 1
    %p420 = scmp.eq.s32.totalorder %s71, 3
    %p421 = scmp.ne.s32.totalorder %s416, %s418
    %p422 = scmp.eq.s32.totalorder %s71, 0
    %p423 = por %p421, %p422
    %p424 = scmp.ne.s32.totalorder %s416, %s418
    %p425 = scmp.eq.s32.totalorder %s76, 3
    %p426 = por %p424, %p425
    %p427 = scmp.ne.s32.totalorder %s418, %s419
    %p428 = scmp.eq.s32.totalorder %s76, 0
    %p429 = por %p427, %p428
    %p430 = scmp.ne.s32.totalorder %s418, %s419
    %p431 = scmp.eq.s32.totalorder %s77, 3
    %p432 = por %p430, %p431
    %p434 = scmp.ne.s32.totalorder %s419, %s433
    %p435 = scmp.eq.s32.totalorder %s77, 0
    %p436 = por %p434, %p435
    %s438 = sadd.s32 %s437, 1
    %p441 = scmp.eq.s32.totalorder %s71, 3
    %p442 = scmp.ne.s32.totalorder %s437, %s439
    %p443 = scmp.eq.s32.totalorder %s71, 0
    %p444 = por %p442, %p443
    %p445 = scmp.ne.s32.totalorder %s437, %s439
    %p446 = scmp.eq.s32.totalorder %s76, 3
    %p447 = por %p445, %p446
    %p448 = scmp.ne.s32.totalorder %s439, %s440
    %p449 = scmp.eq.s32.totalorder %s76, 0
    %p450 = por %p448, %p449
    %p451 = scmp.ne.s32.totalorder %s439, %s440
    %p452 = scmp.eq.s32.totalorder %s77, 3
    %p453 = por %p451, %p452
    %p455 = scmp.ne.s32.totalorder %s440, %s454
    %p456 = scmp.eq.s32.totalorder %s77, 0
    %p457 = por %p455, %p456
    %s459 = sadd.s32 %s458, 1
    %p462 = scmp.eq.s32.totalorder %s71, 3
    %p463 = scmp.ne.s32.totalorder %s458, %s460
    %p464 = scmp.eq.s32.totalorder %s71, 0
    %p465 = por %p463, %p464
    %p466 = scmp.ne.s32.totalorder %s458, %s460
    %p467 = scmp.eq.s32.totalorder %s76, 3
    %p468 = por %p466, %p467
    %p469 = scmp.ne.s32.totalorder %s460, %s461
    %p470 = scmp.eq.s32.totalorder %s76, 0
    %p471 = por %p469, %p470
    %p472 = scmp.ne.s32.totalorder %s460, %s461
    %p473 = scmp.eq.s32.totalorder %s77, 3
    %p474 = por %p472, %p473
    %p476 = scmp.ne.s32.totalorder %s461, %s475
    %p477 = scmp.eq.s32.totalorder %s77, 0
    %p478 = por %p476, %p477
    %s480 = sadd.s32 %s479, 1
    %p483 = scmp.eq.s32.totalorder %s71, 3
    %p484 = scmp.ne.s32.totalorder %s479, %s481
    %p485 = scmp.eq.s32.totalorder %s71, 0
    %p486 = por %p484, %p485
    %p487 = scmp.ne.s32.totalorder %s479, %s481
    %p488 = scmp.eq.s32.totalorder %s76, 3
    %p489 = por %p487, %p488
    %p490 = scmp.ne.s32.totalorder %s481, %s482
    %p491 = scmp.eq.s32.totalorder %s76, 0
    %p492 = por %p490, %p491
    %p493 = scmp.ne.s32.totalorder %s481, %s482
    %p494 = scmp.eq.s32.totalorder %s77, 3
    %p495 = por %p493, %p494
    %p497 = scmp.ne.s32.totalorder %s482, %s496
    %p498 = scmp.eq.s32.totalorder %s77, 0
    %p499 = por %p497, %p498
    %s501 = sadd.s32 %s500, 1
    %p504 = scmp.eq.s32.totalorder %s71, 3
    %p505 = scmp.ne.s32.totalorder %s500, %s502
    %p506 = scmp.eq.s32.totalorder %s71, 0
    %p507 = por %p505, %p506
    %p508 = scmp.ne.s32.totalorder %s500, %s502
    %p509 = scmp.eq.s32.totalorder %s76, 3
    %p510 = por %p508, %p509
    %p511 = scmp.ne.s32.totalorder %s502, %s503
    %p512 = scmp.eq.s32.totalorder %s76, 0
    %p513 = por %p511, %p512
    %p514 = scmp.ne.s32.totalorder %s502, %s503
    %p515 = scmp.eq.s32.totalorder %s77, 3
    %p516 = por %p514, %p515
    %p518 = scmp.ne.s32.totalorder %s503, %s517
    %p519 = scmp.eq.s32.totalorder %s77, 0
    %p520 = por %p518, %p519
    %s522 = sadd.s32 %s521, 1
    %p525 = scmp.eq.s32.totalorder %s71, 3
    %p526 = scmp.ne.s32.totalorder %s521, %s523
    %p527 = scmp.eq.s32.totalorder %s71, 0
    %p528 = por %p526, %p527
    %p529 = scmp.ne.s32.totalorder %s521, %s523
    %p530 = scmp.eq.s32.totalorder %s76, 3
    %p531 = por %p529, %p530
    %p532 = scmp.ne.s32.totalorder %s523, %s524
    %p533 = scmp.eq.s32.totalorder %s76, 0
    %p534 = por %p532, %p533
    %p535 = scmp.ne.s32.totalorder %s523, %s524
    %p536 = scmp.eq.s32.totalorder %s77, 3
    %p537 = por %p535, %p536
    %p539 = scmp.ne.s32.totalorder %s524, %s538
    %p540 = scmp.eq.s32.totalorder %s77, 0
    %p541 = por %p539, %p540
    %s543 = sadd.s32 %s542, 1
    %p546 = scmp.eq.s32.totalorder %s71, 3
    %p547 = scmp.ne.s32.totalorder %s542, %s544
    %p548 = scmp.eq.s32.totalorder %s71, 0
    %p549 = por %p547, %p548
    %p550 = scmp.ne.s32.totalorder %s542, %s544
    %p551 = scmp.eq.s32.totalorder %s76, 3
    %p552 = por %p550, %p551
    %p553 = scmp.ne.s32.totalorder %s544, %s545
    %p554 = scmp.eq.s32.totalorder %s76, 0
    %p555 = por %p553, %p554
    %p556 = scmp.ne.s32.totalorder %s544, %s545
    %p557 = scmp.eq.s32.totalorder %s77, 3
    %p558 = por %p556, %p557
    %p560 = scmp.ne.s32.totalorder %s545, %s559
    %p561 = scmp.eq.s32.totalorder %s77, 0
    %p562 = por %p560, %p561
    %s564 = sadd.s32 %s563, 1
    %p567 = scmp.eq.s32.totalorder %s71, 3
    %p568 = scmp.ne.s32.totalorder %s563, %s565
    %p569 = scmp.eq.s32.totalorder %s71, 0
    %p570 = por %p568, %p569
    %p571 = scmp.ne.s32.totalorder %s563, %s565
    %p572 = scmp.eq.s32.totalorder %s76, 3
    %p573 = por %p571, %p572
    %p574 = scmp.ne.s32.totalorder %s565, %s566
    %p575 = scmp.eq.s32.totalorder %s76, 0
    %p576 = por %p574, %p575
    %p577 = scmp.ne.s32.totalorder %s565, %s566
    %p578 = scmp.eq.s32.totalorder %s77, 3
    %p579 = por %p577, %p578
    %p581 = scmp.ne.s32.totalorder %s566, %s580
    %p582 = scmp.eq.s32.totalorder %s77, 0
    %p583 = por %p581, %p582
    %s585 = sadd.s32 %s584, 1
    %p588 = scmp.eq.s32.totalorder %s71, 3
    %p589 = scmp.ne.s32.totalorder %s584, %s586
    %p590 = scmp.eq.s32.totalorder %s71, 0
    %p591 = por %p589, %p590
    %p592 = scmp.ne.s32.totalorder %s584, %s586
    %p593 = scmp.eq.s32.totalorder %s76, 3
    %p594 = por %p592, %p593
    %p595 = scmp.ne.s32.totalorder %s586, %s587
    %p596 = scmp.eq.s32.totalorder %s76, 0
    %p597 = por %p595, %p596
    %p598 = scmp.ne.s32.totalorder %s586, %s587
    %p599 = scmp.eq.s32.totalorder %s77, 3
    %p600 = por %p598, %p599
    %p602 = scmp.ne.s32.totalorder %s587, %s601
    %p603 = scmp.eq.s32.totalorder %s77, 0
    %p604 = por %p602, %p603
    %s606 = sadd.s32 %s605, 1
    %p609 = scmp.eq.s32.totalorder %s71, 3
    %p610 = scmp.ne.s32.totalorder %s605, %s607
    %p611 = scmp.eq.s32.totalorder %s71, 0
    %p612 = por %p610, %p611
    %p613 = scmp.ne.s32.totalorder %s605, %s607
    %p614 = scmp.eq.s32.totalorder %s76, 3
    %p615 = por %p613, %p614
    %p616 = scmp.ne.s32.totalorder %s607, %s608
    %p617 = scmp.eq.s32.totalorder %s76, 0
    %p618 = por %p616, %p617
    %p619 = scmp.ne.s32.totalorder %s607, %s608
    %p620 = scmp.eq.s32.totalorder %s77, 3
    %p621 = por %p619, %p620
    %p623 = scmp.ne.s32.totalorder %s608, %s622
    %p624 = scmp.eq.s32.totalorder %s77, 0
    %p625 = por %p623, %p624
    %s627 = sadd.s32 %s626, 1
    %p630 = scmp.eq.s32.totalorder %s71, 3
    %p631 = scmp.ne.s32.totalorder %s626, %s628
    %p632 = scmp.eq.s32.totalorder %s71, 0
    %p633 = por %p631, %p632
    %p634 = scmp.ne.s32.totalorder %s626, %s628
    %p635 = scmp.eq.s32.totalorder %s76, 3
    %p636 = por %p634, %p635
    %p637 = scmp.ne.s32.totalorder %s628, %s629
    %p638 = scmp.eq.s32.totalorder %s76, 0
    %p639 = por %p637, %p638
    %p640 = scmp.ne.s32.totalorder %s628, %s629
    %p641 = scmp.eq.s32.totalorder %s77, 3
    %p642 = por %p640, %p641
    %p644 = scmp.ne.s32.totalorder %s629, %s643
    %p645 = scmp.eq.s32.totalorder %s77, 0
    %p646 = por %p644, %p645
    %s648 = sadd.s32 %s647, 1
    %p651 = scmp.eq.s32.totalorder %s71, 3
    %p652 = scmp.ne.s32.totalorder %s647, %s649
    %p653 = scmp.eq.s32.totalorder %s71, 0
    %p654 = por %p652, %p653
    %p655 = scmp.ne.s32.totalorder %s647, %s649
    %p656 = scmp.eq.s32.totalorder %s76, 3
    %p657 = por %p655, %p656
    %p658 = scmp.ne.s32.totalorder %s649, %s650
    %p659 = scmp.eq.s32.totalorder %s76, 0
    %p660 = por %p658, %p659
    %p661 = scmp.ne.s32.totalorder %s649, %s650
    %p662 = scmp.eq.s32.totalorder %s77, 3
    %p663 = por %p661, %p662
    %p665 = scmp.ne.s32.totalorder %s650, %s664
    %p666 = scmp.eq.s32.totalorder %s77, 0
    %p667 = por %p665, %p666
    %s669 = sadd.s32 %s668, 1
    %p672 = scmp.eq.s32.totalorder %s71, 3
    %p673 = scmp.ne.s32.totalorder %s668, %s670
    %p674 = scmp.eq.s32.totalorder %s71, 0
    %p675 = por %p673, %p674
    %p676 = scmp.ne.s32.totalorder %s668, %s670
    %p677 = scmp.eq.s32.totalorder %s76, 3
    %p678 = por %p676, %p677
    %p679 = scmp.ne.s32.totalorder %s670, %s671
    %p680 = scmp.eq.s32.totalorder %s76, 0
    %p681 = por %p679, %p680
    %p682 = scmp.ne.s32.totalorder %s670, %s671
    %p683 = scmp.eq.s32.totalorder %s77, 3
    %p684 = por %p682, %p683
    %p686 = scmp.ne.s32.totalorder %s671, %s685
    %p687 = scmp.eq.s32.totalorder %s77, 0
    %p688 = por %p686, %p687
    %s690 = sadd.s32 %s689, 1
    %p693 = scmp.eq.s32.totalorder %s71, 3
    %p694 = scmp.ne.s32.totalorder %s689, %s691
    %p695 = scmp.eq.s32.totalorder %s71, 0
    %p696 = por %p694, %p695
    %p697 = scmp.ne.s32.totalorder %s689, %s691
    %p698 = scmp.eq.s32.totalorder %s76, 3
    %p699 = por %p697, %p698
    %p700 = scmp.ne.s32.totalorder %s691, %s692
    %p701 = scmp.eq.s32.totalorder %s76, 0
    %p702 = por %p700, %p701
    %p703 = scmp.ne.s32.totalorder %s691, %s692
    %p704 = scmp.eq.s32.totalorder %s77, 3
    %p705 = por %p703, %p704
    %p707 = scmp.ne.s32.totalorder %s692, %s706
    %p708 = scmp.eq.s32.totalorder %s77, 0
    %p709 = por %p707, %p708
    %s711 = sadd.s32 %s710, 1
    %p714 = scmp.eq.s32.totalorder %s71, 3
    %p715 = scmp.ne.s32.totalorder %s710, %s712
    %p716 = scmp.eq.s32.totalorder %s71, 0
    %p717 = por %p715, %p716
    %p718 = scmp.ne.s32.totalorder %s710, %s712
    %p719 = scmp.eq.s32.totalorder %s76, 3
    %p720 = por %p718, %p719
    %p721 = scmp.ne.s32.totalorder %s712, %s713
    %p722 = scmp.eq.s32.totalorder %s76, 0
    %p723 = por %p721, %p722
    %p724 = scmp.ne.s32.totalorder %s712, %s713
    %p725 = scmp.eq.s32.totalorder %s77, 3
    %p726 = por %p724, %p725
    %p728 = scmp.ne.s32.totalorder %s713, %s727
    %p729 = scmp.eq.s32.totalorder %s77, 0
    %p730 = por %p728, %p729
    %s732 = sadd.s32 %s731, 1
    %p735 = scmp.eq.s32.totalorder %s71, 3
    %p736 = scmp.ne.s32.totalorder %s731, %s733
    %p737 = scmp.eq.s32.totalorder %s71, 0
    %p738 = por %p736, %p737
    %p739 = scmp.ne.s32.totalorder %s731, %s733
    %p740 = scmp.eq.s32.totalorder %s76, 3
    %p741 = por %p739, %p740
    %p742 = scmp.ne.s32.totalorder %s733, %s734
    %p743 = scmp.eq.s32.totalorder %s76, 0
    %p744 = por %p742, %p743
    %p745 = scmp.ne.s32.totalorder %s733, %s734
    %p746 = scmp.eq.s32.totalorder %s77, 3
    %p747 = por %p745, %p746
    %p749 = scmp.ne.s32.totalorder %s734, %s748
    %p750 = scmp.eq.s32.totalorder %s77, 0
    %p751 = por %p749, %p750
    %s753 = sadd.s32 %s752, 1
    %p756 = scmp.eq.s32.totalorder %s71, 3
    %p757 = scmp.ne.s32.totalorder %s752, %s754
    %p758 = scmp.eq.s32.totalorder %s71, 0
    %p759 = por %p757, %p758
    %p760 = scmp.ne.s32.totalorder %s752, %s754
    %p761 = scmp.eq.s32.totalorder %s76, 3
    %p762 = por %p760, %p761
    %p763 = scmp.ne.s32.totalorder %s754, %s755
    %p764 = scmp.eq.s32.totalorder %s76, 0
    %p765 = por %p763, %p764
    %p766 = scmp.ne.s32.totalorder %s754, %s755
    %p767 = scmp.eq.s32.totalorder %s77, 3
    %p768 = por %p766, %p767
    %p770 = scmp.ne.s32.totalorder %s755, %s769
    %p771 = scmp.eq.s32.totalorder %s77, 0
    %p772 = por %p770, %p771
    %s773 = ssub.s32 %s78, %s90
    %s774 = ssub.s32 %s79, %s86
    %s775 = sor.u32 %s773, %s774
    %p776 = scmp.eq.s32.totalorder %s775, 0
    %s778 = sadd.s32 %s777, 1
    %s779 = scalar_select %p776, %s777, %s778
    %p782 = pneg %p776
    %p783 = scmp.eq.s32.totalorder %s71, 3
    %p784 = por %p782, %p783
    %p785 = scmp.ne.s32.totalorder %s777, %s780
    %p786 = scmp.eq.s32.totalorder %s71, 0
    %p787 = por %p785, %p786
    %p788 = scmp.ne.s32.totalorder %s777, %s780
    %p789 = scmp.eq.s32.totalorder %s76, 3
    %p790 = por %p788, %p789
    %p791 = scmp.ne.s32.totalorder %s780, %s781
    %p792 = scmp.eq.s32.totalorder %s76, 0
    %p793 = por %p791, %p792
    %p794 = scmp.ne.s32.totalorder %s780, %s781
    %p795 = scmp.eq.s32.totalorder %s77, 3
    %p796 = por %p794, %p795
    %p798 = scmp.ne.s32.totalorder %s781, %s797
    %p799 = scmp.eq.s32.totalorder %s77, 0
    %p800 = por %p798, %p799
    %p801 = scmp.le.s32.totalorder 1, %s71
    %p802 = scmp.lt.s32.totalorder %s71, 5
    %p803 = pnand %p801, %p802
    %p804 = pneg %p803
    // Predicated region
    $region9: #{tpu_custom_call.1} parent=5 // pred_check
      _
    $region10: #{tpu_custom_call.1} parent=5 // pred_check_branch
      %806 = sbr.rel (%p803) target = $region12
    $region11: #{tpu_custom_call.1} parent=5 // pred_region
      %s807 = ssub.s32 %s71, 1
      // Predicated region
      $region13: #{tpu_custom_call.1} parent=11 // pred_check
        %p808 = pneg %p156
      $region14: #{tpu_custom_call.1} parent=11 // pred_check_branch
        %810 = sbr.rel (%p808) target = $region16
      $region15: #{tpu_custom_call.1} parent=11 // pred_region
        _
      $region16: #{tpu_custom_call.1} parent=11 // pred_fallthru
        _
      // Predicated region
      $region17: #{tpu_custom_call.1} parent=11 // pred_check
        %p811 = pneg %p177
      $region18: #{tpu_custom_call.1} parent=11 // pred_check_branch
        %813 = sbr.rel (%p811) target = $region20
      $region19: #{tpu_custom_call.1} parent=11 // pred_region
        _
      $region20: #{tpu_custom_call.1} parent=11 // pred_fallthru
        _
      // Predicated region
      $region21: #{tpu_custom_call.1} parent=11 // pred_check
        %p814 = pneg %p198
      $region22: #{tpu_custom_call.1} parent=11 // pred_check_branch
        %816 = sbr.rel (%p814) target = $region24
      $region23: #{tpu_custom_call.1} parent=11 // pred_region
        _
      $region24: #{tpu_custom_call.1} parent=11 // pred_fallthru
        _
      // Predicated region
      $region25: #{tpu_custom_call.1} parent=11 // pred_check
        %p817 = pneg %p219
      $region26: #{tpu_custom_call.1} parent=11 // pred_check_branch
        %819 = sbr.rel (%p817) target = $region28
      $region27: #{tpu_custom_call.1} parent=11 // pred_region
        _
      $region28: #{tpu_custom_call.1} parent=11 // pred_fallthru
        _
      // Predicated region
      $region29: #{tpu_custom_call.1} parent=11 // pred_check
        %p820 = pneg %p240
      $region30: #{tpu_custom_call.1} parent=11 // pred_check_branch
        %822 = sbr.rel (%p820) target = $region32
      $region31: #{tpu_custom_call.1} parent=11 // pred_region
        _
      $region32: #{tpu_custom_call.1} parent=11 // pred_fallthru
        _
      // Predicated region
      $region33: #{tpu_custom_call.1} parent=11 // pred_check
        %p823 = pneg %p261
      $region34: #{tpu_custom_call.1} parent=11 // pred_check_branch
        %825 = sbr.rel (%p823) target = $region36
      $region35: #{tpu_custom_call.1} parent=11 // pred_region
        _
      $region36: #{tpu_custom_call.1} parent=11 // pred_fallthru
        _
      // Predicated region
      $region37: #{tpu_custom_call.1} parent=11 // pred_check
        %p826 = pneg %p282
      $region38: #{tpu_custom_call.1} parent=11 // pred_check_branch
        %828 = sbr.rel (%p826) target = $region40
      $region39: #{tpu_custom_call.1} parent=11 // pred_region
        _
      $region40: #{tpu_custom_call.1} parent=11 // pred_fallthru
        _
      // Predicated region
      $region41: #{tpu_custom_call.1} parent=11 // pred_check
        %p829 = pneg %p303
      $region42: #{tpu_custom_call.1} parent=11 // pred_check_branch
        %831 = sbr.rel (%p829) target = $region44
      $region43: #{tpu_custom_call.1} parent=11 // pred_region
        _
      $region44: #{tpu_custom_call.1} parent=11 // pred_fallthru
        _
      // Predicated region
      $region45: #{tpu_custom_call.1} parent=11 // pred_check
        %p832 = pneg %p324
      $region46: #{tpu_custom_call.1} parent=11 // pred_check_branch
        %834 = sbr.rel (%p832) target = $region48
      $region47: #{tpu_custom_call.1} parent=11 // pred_region
        _
      $region48: #{tpu_custom_call.1} parent=11 // pred_fallthru
        _
      // Predicated region
      $region49: #{tpu_custom_call.1} parent=11 // pred_check
        %p835 = pneg %p345
      $region50: #{tpu_custom_call.1} parent=11 // pred_check_branch
        %837 = sbr.rel (%p835) target = $region52
      $region51: #{tpu_custom_call.1} parent=11 // pred_region
        _
      $region52: #{tpu_custom_call.1} parent=11 // pred_fallthru
        _
      // Predicated region
      $region53: #{tpu_custom_call.1} parent=11 // pred_check
        %p838 = pneg %p366
      $region54: #{tpu_custom_call.1} parent=11 // pred_check_branch
        %840 = sbr.rel (%p838) target = $region56
      $region55: #{tpu_custom_call.1} parent=11 // pred_region
        _
      $region56: #{tpu_custom_call.1} parent=11 // pred_fallthru
        _
      // Predicated region
      $region57: #{tpu_custom_call.1} parent=11 // pred_check
        %p841 = pneg %p387
      $region58: #{tpu_custom_call.1} parent=11 // pred_check_branch
        %843 = sbr.rel (%p841) target = $region60
      $region59: #{tpu_custom_call.1} parent=11 // pred_region
        _
      $region60: #{tpu_custom_call.1} parent=11 // pred_fallthru
        _
      // Predicated region
      $region61: #{tpu_custom_call.1} parent=11 // pred_check
        %p844 = pneg %p408
      $region62: #{tpu_custom_call.1} parent=11 // pred_check_branch
        %846 = sbr.rel (%p844) target = $region64
      $region63: #{tpu_custom_call.1} parent=11 // pred_region
        _
      $region64: #{tpu_custom_call.1} parent=11 // pred_fallthru
        _
      // Predicated region
      $region65: #{tpu_custom_call.1} parent=11 // pred_check
        %p847 = pneg %p429
      $region66: #{tpu_custom_call.1} parent=11 // pred_check_branch
        %849 = sbr.rel (%p847) target = $region68
      $region67: #{tpu_custom_call.1} parent=11 // pred_region
        _
      $region68: #{tpu_custom_call.1} parent=11 // pred_fallthru
        _
      // Predicated region
      $region69: #{tpu_custom_call.1} parent=11 // pred_check
        %p850 = pneg %p450
      $region70: #{tpu_custom_call.1} parent=11 // pred_check_branch
        %852 = sbr.rel (%p850) target = $region72
      $region71: #{tpu_custom_call.1} parent=11 // pred_region
        _
      $region72: #{tpu_custom_call.1} parent=11 // pred_fallthru
        _
      // Predicated region
      $region73: #{tpu_custom_call.1} parent=11 // pred_check
        %p853 = pneg %p471
      $region74: #{tpu_custom_call.1} parent=11 // pred_check_branch
        %855 = sbr.rel (%p853) target = $region76
      $region75: #{tpu_custom_call.1} parent=11 // pred_region
        _
      $region76: #{tpu_custom_call.1} parent=11 // pred_fallthru
        _
      // Predicated region
      $region77: #{tpu_custom_call.1} parent=11 // pred_check
        %p856 = pneg %p492
      $region78: #{tpu_custom_call.1} parent=11 // pred_check_branch
        %858 = sbr.rel (%p856) target = $region80
      $region79: #{tpu_custom_call.1} parent=11 // pred_region
        _
      $region80: #{tpu_custom_call.1} parent=11 // pred_fallthru
        _
      // Predicated region
      $region81: #{tpu_custom_call.1} parent=11 // pred_check
        %p859 = pneg %p513
      $region82: #{tpu_custom_call.1} parent=11 // pred_check_branch
        %861 = sbr.rel (%p859) target = $region84
      $region83: #{tpu_custom_call.1} parent=11 // pred_region
        _
      $region84: #{tpu_custom_call.1} parent=11 // pred_fallthru
        _
      // Predicated region
      $region85: #{tpu_custom_call.1} parent=11 // pred_check
        %p862 = pneg %p534
      $region86: #{tpu_custom_call.1} parent=11 // pred_check_branch
        %864 = sbr.rel (%p862) target = $region88
      $region87: #{tpu_custom_call.1} parent=11 // pred_region
        _
      $region88: #{tpu_custom_call.1} parent=11 // pred_fallthru
        _
      // Predicated region
      $region89: #{tpu_custom_call.1} parent=11 // pred_check
        %p865 = pneg %p555
      $region90: #{tpu_custom_call.1} parent=11 // pred_check_branch
        %867 = sbr.rel (%p865) target = $region92
      $region91: #{tpu_custom_call.1} parent=11 // pred_region
        _
      $region92: #{tpu_custom_call.1} parent=11 // pred_fallthru
        _
      // Predicated region
      $region93: #{tpu_custom_call.1} parent=11 // pred_check
        %p868 = pneg %p576
      $region94: #{tpu_custom_call.1} parent=11 // pred_check_branch
        %870 = sbr.rel (%p868) target = $region96
      $region95: #{tpu_custom_call.1} parent=11 // pred_region
        _
      $region96: #{tpu_custom_call.1} parent=11 // pred_fallthru
        _
      // Predicated region
      $region97: #{tpu_custom_call.1} parent=11 // pred_check
        %p871 = pneg %p597
      $region98: #{tpu_custom_call.1} parent=11 // pred_check_branch
        %873 = sbr.rel (%p871) target = $region100
      $region99: #{tpu_custom_call.1} parent=11 // pred_region
        _
      $region100: #{tpu_custom_call.1} parent=11 // pred_fallthru
        _
      // Predicated region
      $region101: #{tpu_custom_call.1} parent=11 // pred_check
        %p874 = pneg %p618
      $region102: #{tpu_custom_call.1} parent=11 // pred_check_branch
        %876 = sbr.rel (%p874) target = $region104
      $region103: #{tpu_custom_call.1} parent=11 // pred_region
        _
      $region104: #{tpu_custom_call.1} parent=11 // pred_fallthru
        _
      // Predicated region
      $region105: #{tpu_custom_call.1} parent=11 // pred_check
        %p877 = pneg %p639
      $region106: #{tpu_custom_call.1} parent=11 // pred_check_branch
        %879 = sbr.rel (%p877) target = $region108
      $region107: #{tpu_custom_call.1} parent=11 // pred_region
        _
      $region108: #{tpu_custom_call.1} parent=11 // pred_fallthru
        _
      // Predicated region
      $region109: #{tpu_custom_call.1} parent=11 // pred_check
        %p880 = pneg %p660
      $region110: #{tpu_custom_call.1} parent=11 // pred_check_branch
        %882 = sbr.rel (%p880) target = $region112
      $region111: #{tpu_custom_call.1} parent=11 // pred_region
        _
      $region112: #{tpu_custom_call.1} parent=11 // pred_fallthru
        _
      // Predicated region
      $region113: #{tpu_custom_call.1} parent=11 // pred_check
        %p883 = pneg %p681
      $region114: #{tpu_custom_call.1} parent=11 // pred_check_branch
        %885 = sbr.rel (%p883) target = $region116
      $region115: #{tpu_custom_call.1} parent=11 // pred_region
        _
      $region116: #{tpu_custom_call.1} parent=11 // pred_fallthru
        _
      // Predicated region
      $region117: #{tpu_custom_call.1} parent=11 // pred_check
        %p886 = pneg %p702
      $region118: #{tpu_custom_call.1} parent=11 // pred_check_branch
        %888 = sbr.rel (%p886) target = $region120
      $region119: #{tpu_custom_call.1} parent=11 // pred_region
        _
      $region120: #{tpu_custom_call.1} parent=11 // pred_fallthru
        _
      // Predicated region
      $region121: #{tpu_custom_call.1} parent=11 // pred_check
        %p889 = pneg %p723
      $region122: #{tpu_custom_call.1} parent=11 // pred_check_branch
        %891 = sbr.rel (%p889) target = $region124
      $region123: #{tpu_custom_call.1} parent=11 // pred_region
        _
      $region124: #{tpu_custom_call.1} parent=11 // pred_fallthru
        _
      // Predicated region
      $region125: #{tpu_custom_call.1} parent=11 // pred_check
        %p892 = pneg %p744
      $region126: #{tpu_custom_call.1} parent=11 // pred_check_branch
        %894 = sbr.rel (%p892) target = $region128
      $region127: #{tpu_custom_call.1} parent=11 // pred_region
        _
      $region128: #{tpu_custom_call.1} parent=11 // pred_fallthru
        _
      // Predicated region
      $region129: #{tpu_custom_call.1} parent=11 // pred_check
        %p895 = pneg %p765
      $region130: #{tpu_custom_call.1} parent=11 // pred_check_branch
        %897 = sbr.rel (%p895) target = $region132
      $region131: #{tpu_custom_call.1} parent=11 // pred_region
        _
      $region132: #{tpu_custom_call.1} parent=11 // pred_fallthru
        _
    $region12: #{tpu_custom_call.1} parent=5 // pred_fallthru
      _
    %p898 = scmp.lt.s32.totalorder %s71, 4
    // Predicated region
    $region133: #{tpu_custom_call.1} parent=5 // pred_check
      %p899 = pneg %p898
    $region134: #{tpu_custom_call.1} parent=5 // pred_check_branch
      %901 = sbr.rel (%p899) target = $region136
    $region135: #{tpu_custom_call.1} parent=5 // pred_region
      // Predicated region
      $region137: #{tpu_custom_call.1} parent=135 // pred_check
        %p902 = pneg %p103
      $region138: #{tpu_custom_call.1} parent=135 // pred_check_branch
        %904 = sbr.rel (%p902) target = $region140
      $region139: #{tpu_custom_call.1} parent=135 // pred_region
        %p905 = scmp.lt.s32.totalorder %s78, 1
        %s906 = scalar_select %p905, %s78, 1
        %s907 = smul.addr %s906, 4
        %s908 = smul.addr %s907, 8
        %s909 = scalar_lea.vmem %s1, %s908
      $region140: #{tpu_custom_call.1} parent=135 // pred_fallthru
        _
      // Predicated region
      $region141: #{tpu_custom_call.1} parent=135 // pred_check
        %p910 = pneg %p129
      $region142: #{tpu_custom_call.1} parent=135 // pred_check_branch
        %912 = sbr.rel (%p910) target = $region144
      $region143: #{tpu_custom_call.1} parent=135 // pred_region
        %p913 = scmp.lt.s32.totalorder %s78, 1
        %s914 = scalar_select %p913, %s78, 1
        %s915 = smul.addr %s914, 8
        %s916 = scalar_lea.vmem %s3, %s915
      $region144: #{tpu_custom_call.1} parent=135 // pred_fallthru
        _
    $region136: #{tpu_custom_call.1} parent=5 // pred_fallthru
      _
    %p917 = scmp.le.s32.totalorder 1, %s71
    %p918 = scmp.lt.s32.totalorder %s71, 5
    %p919 = pnand %p917, %p918
    %p920 = pneg %p919
    // Predicated region
    $region145: #{tpu_custom_call.1} parent=5 // pred_check
      _
    $region146: #{tpu_custom_call.1} parent=5 // pred_check_branch
      %922 = sbr.rel (%p919) target = $region148
    $region147: #{tpu_custom_call.1} parent=5 // pred_region
      %s923 = ssub.s32 %s71, 1
      %p924 = scmp.lt.s32.totalorder %s80, 1
      %s925 = scalar_select %p924, %s80, 1
      %s926 = smul.addr %s925, 4
      %s927 = smul.addr %s926, 8
      %s928 = scalar_lea.vmem %s1, %s927
      %p929 = pneg %p109
      %p930 = pneg %p106
      %p931 = scmp.lt.s32.totalorder %s80, 1
      %s932 = scalar_select %p931, %s80, 1
      %s933 = smul.addr %s932, 8
      %s934 = scalar_lea.vmem %s3, %s933
      %p935 = pneg %p135
      %p936 = pneg %p132
      %p937 = pneg %p156
      %p938 = pneg %p153
      %p939 = pneg %p177
      %p940 = pneg %p174
      %p941 = pneg %p198
      %p942 = pneg %p195
      %p943 = pneg %p219
      %p944 = pneg %p216
      %p945 = pneg %p240
      %p946 = pneg %p237
      %p947 = pneg %p261
      %p948 = pneg %p258
      %p949 = pneg %p282
      %p950 = pneg %p279
      %p951 = pneg %p303
      %p952 = pneg %p300
      %p953 = pneg %p324
      %p954 = pneg %p321
      %p955 = pneg %p345
      %p956 = pneg %p342
      %p957 = pneg %p366
      %p958 = pneg %p363
      %p959 = pneg %p387
      %p960 = pneg %p384
      %p961 = pneg %p408
      %p962 = pneg %p405
      %p963 = pneg %p429
      %p964 = pneg %p426
      %p965 = pneg %p450
      %p966 = pneg %p447
      %p967 = pneg %p471
      %p968 = pneg %p468
      %p969 = pneg %p492
      %p970 = pneg %p489
      %p971 = pneg %p513
      %p972 = pneg %p510
      %p973 = pneg %p534
      %p974 = pneg %p531
      %p975 = pneg %p555
      %p976 = pneg %p552
      %p977 = pneg %p576
      %p978 = pneg %p573
      %p979 = pneg %p597
      %p980 = pneg %p594
      %p981 = pneg %p618
      %p982 = pneg %p615
      %p983 = pneg %p639
      %p984 = pneg %p636
      %p985 = pneg %p660
      %p986 = pneg %p657
      %p987 = pneg %p681
      %p988 = pneg %p678
      %p989 = pneg %p702
      %p990 = pneg %p699
      %p991 = pneg %p723
      %p992 = pneg %p720
      %p993 = pneg %p744
      %p994 = pneg %p741
      %p995 = pneg %p765
      %p996 = pneg %p762
      %p997 = pneg %p793
      %p998 = pneg %p790
      %s999 = smul.u32 4, %s81
      %p1000 = scmp.lt.s32.totalorder %s80, 1
      %s1001 = scalar_select %p1000, %s80, 1
      %p1002 = scmp.lt.s32.totalorder %s999, 7
      %s1003 = scalar_select %p1002, %s999, 7
      %s1004 = smul.addr %s1001, 8
      %s1005 = sadd.s32 %s1003, %s1004
      %s1006 = smul.addr %s1005, 8
      %s1007 = scalar_lea.vmem %s65, %s1006
      %p1008 = scmp.lt.s32.totalorder %s80, 1
      %s1009 = scalar_select %p1008, %s80, 1
      %s1010 = smul.addr %s1009, 4
      %s1011 = smul.addr %s1010, 8
      %s1012 = scalar_lea.vmem %s1, %s1011
      %p1013 = scmp.lt.s32.totalorder %s80, 1
      %s1014 = scalar_select %p1013, %s80, 1
      %s1015 = smul.addr %s1014, 8
      %s1016 = scalar_lea.vmem %s3, %s1015
      %s1017 = smul.u32 4, %s81
      %p1018 = scmp.lt.s32.totalorder %s80, 1
      %s1019 = scalar_select %p1018, %s80, 1
      %p1020 = scmp.lt.s32.totalorder %s1017, 7
      %s1021 = scalar_select %p1020, %s1017, 7
      %s1022 = smul.addr %s1019, 8
      %s1023 = sadd.s32 %s1021, %s1022
      %s1024 = smul.addr %s1023, 8
      %s1025 = scalar_lea.vmem %s65, %s1024
      %s1026 = smul.u32 4, %s81
      %p1028 = scmp.eq.s32.totalorder %s81, 0
      // Predicated region
      $region149: #{tpu_custom_call.1} parent=147 // pred_check
        %p1029 = pneg %p1028
      $region150: #{tpu_custom_call.1} parent=147 // pred_check_branch
        %1031 = sbr.rel (%p1029) target = $region152
      $region151: #{tpu_custom_call.1} parent=147 // pred_region
        %v1032 = vld [vmem:[%s1012] sm:$0xff]
        %v1033 = vld [vmem:[%s1012 + $0x8] sm:$0xff]
        %v1034 = vld [vmem:[%s1012 + $0x10] sm:$0xff]
        %v1035 = vld [vmem:[%s1012 + $0x18] sm:$0xff]
        %1036 = vxpose.xlu0.b32.start [1/16] %v1032, 128
        %1037 = vxpose.xlu0.b32.cont [2/16] %v1033, 128
        %1038 = vxpose.xlu0.b32.cont [3/16] %v1034, 128
        %1039 = vxpose.xlu0.b32.cont [4/16] %v1035, 128
        %1040 = vxpose.xlu0.b32.cont [5/16] 0.0, 128
        %1041 = vxpose.xlu0.b32.cont [6/16] 0.0, 128
        %1042 = vxpose.xlu0.b32.cont [7/16] 0.0, 128
        %1043 = vxpose.xlu0.b32.cont [8/16] 0.0, 128
        %1044 = vxpose.xlu0.b32.cont [9/16] 0.0, 128
        %1045 = vxpose.xlu0.b32.cont [10/16] 0.0, 128
        %1046 = vxpose.xlu0.b32.cont [11/16] 0.0, 128
        %1047 = vxpose.xlu0.b32.cont [12/16] 0.0, 128
        %1048 = vxpose.xlu0.b32.cont [13/16] 0.0, 128
        %1049 = vxpose.xlu0.b32.cont [14/16] 0.0, 128
        %1050 = vxpose.xlu0.b32.cont [15/16] 0.0, 128
        %1051 = vxpose.xlu0.b32.end [16/16] 0.0, 128
        %v1052 = vpop.trf.xlu0
        %v1053 = vpop.trf.xlu0
        %v1054 = vpop.trf.xlu0
        %v1055 = vpop.trf.xlu0
        %v1056 = vpop.trf.xlu0
        %v1057 = vpop.trf.xlu0
        %v1058 = vpop.trf.xlu0
        %v1059 = vpop.trf.xlu0
        %v1060 = vpop.trf.xlu0
        %v1061 = vpop.trf.xlu0
        %v1062 = vpop.trf.xlu0
        %v1063 = vpop.trf.xlu0
        %v1064 = vpop.trf.xlu0
        %v1065 = vpop.trf.xlu0
        %v1066 = vpop.trf.xlu0
        %v1067 = vpop.trf.xlu0
        %vm1068 = vcmask 261120
        %1069 = vst.msk [vmem:[#allocation2] sm:$0xff] %vm1068, %v1052
        %1070 = vst.msk [vmem:[#allocation2 + $0x8] sm:$0xff] %vm1068, %v1053
        %1071 = vst.msk [vmem:[#allocation2 + $0x10] sm:$0xff] %vm1068, %v1054
        %1072 = vst.msk [vmem:[#allocation2 + $0x18] sm:$0xff] %vm1068, %v1055
        %1073 = vst.msk [vmem:[#allocation2 + $0x20] sm:$0xff] %vm1068, %v1056
        %1074 = vst.msk [vmem:[#allocation2 + $0x28] sm:$0xff] %vm1068, %v1057
        %1075 = vst.msk [vmem:[#allocation2 + $0x30] sm:$0xff] %vm1068, %v1058
        %1076 = vst.msk [vmem:[#allocation2 + $0x38] sm:$0xff] %vm1068, %v1059
        %v1077 = vld [vmem:[%s5] sm:$0xff]
        %v1078 = vld [vmem:[%s5 + $0x8] sm:$0xff]
        %v1079 = vld [vmem:[%s5 + $0x10] sm:$0xff]
        %v1080 = vld [vmem:[%s5 + $0x18] sm:$0xff]
        %v1081 = vld [vmem:[%s7] sm:$0xff]
        %v1082 = vld [vmem:[%s7 + $0x8] sm:$0xff]
        %v1083 = vld [vmem:[%s7 + $0x10] sm:$0xff]
        %v1084 = vld [vmem:[%s7 + $0x18] sm:$0xff]
        %v1085 = vsel %vm1068, %v1052, 0.0
        %v1086 = vsel %vm1068, %v1053, 0.0
        %v1087 = vadd.f32 %v1085, %v1086
        %v1088 = vsel %vm1068, %v1054, 0.0
        %v1089 = vadd.f32 %v1087, %v1088
        %v1090 = vsel %vm1068, %v1055, 0.0
        %v1091 = vadd.f32 %v1089, %v1090
        %v1092 = vsel %vm1068, %v1056, 0.0
        %v1093 = vadd.f32 %v1091, %v1092
        %v1094 = vsel %vm1068, %v1057, 0.0
        %v1095 = vadd.f32 %v1093, %v1094
        %v1096 = vsel %vm1068, %v1058, 0.0
        %v1097 = vadd.f32 %v1095, %v1096
        %v1098 = vsel %vm1068, %v1059, 0.0
        %v1099 = vadd.f32 %v1097, %v1098
        %v1100 = vrot.slane %v1099, 4
        %v1101 = vadd.f32 %v1099, %v1100
        %v1102 = vrot.slane %v1101, 2
        %v1103 = vadd.f32 %v1101, %v1102
        %v1104 = vrot.slane %v1103, 1
        %v1105 = vadd.f32 %v1103, %v1104
        %v1107 = vsel %vm1068, %v1105, 0
        %1109 = vmatprep.subr.mxu0 0.0
        %1110 = vmatpush1.msra.mxu0 %v1077
        %1111 = vmatprep.subr.mxu0 0.0
        %1112 = vmatpush1.msra.mxu0 %v1078
        %1113 = vmatprep.subr.mxu0 0.0
        %1114 = vmatpush1.msra.mxu0 %v1079
        %1115 = vmatprep.subr.mxu0 0.0
        %1116 = vmatpush1.msra.mxu0 %v1080
        %1117 = vmatprep.subr.mxu0 0.0
        %1118 = vmatpush1.msra.mxu0 0.0
        %1119 = vmatprep.subr.mxu0 0.0
        %1120 = vmatpush1.msra.mxu0 0.0
        %1121 = vmatprep.subr.mxu0 0.0
        %1122 = vmatpush1.msra.mxu0 0.0
        %1123 = vmatprep.subr.mxu0 0.0
        %1124 = vmatpush1.msra.mxu0 0.0
        %1125 = vmatprep.subr.mxu0 0.0
        %1126 = vmatpush1.msra.mxu0 0.0
        %1127 = vmatprep.subr.mxu0 0.0
        %1128 = vmatpush1.msra.mxu0 0.0
        %1129 = vmatprep.subr.mxu0 0.0
        %1130 = vmatpush1.msra.mxu0 0.0
        %1131 = vmatprep.subr.mxu0 0.0
        %1132 = vmatpush1.msra.mxu0 0.0
        %1133 = vmatprep.subr.mxu0 0.0
        %1134 = vmatpush1.msra.mxu0 0.0
        %1135 = vmatprep.subr.mxu0 0.0
        %1136 = vmatpush1.msra.mxu0 0.0
        %1137 = vmatprep.subr.mxu0 0.0
        %1138 = vmatpush1.msra.mxu0 0.0
        %1139 = vmatprep.subr.mxu0 0.0
        %1140 = vmatpush1.msra.mxu0 0.0
        %1141 = vmatprep.subr.mxu0 0.0
        %1142 = vmatpush1.msra.mxu0 0.0
        %1143 = vmatprep.subr.mxu0 0.0
        %1144 = vmatpush1.msra.mxu0 0.0
        %1145 = vmatprep.subr.mxu0 0.0
        %1146 = vmatpush1.msra.mxu0 0.0
        %1147 = vmatprep.subr.mxu0 0.0
        %1148 = vmatpush1.msra.mxu0 0.0
        %1149 = vmatprep.subr.mxu0 0.0
        %1150 = vmatpush1.msra.mxu0 0.0
        %1151 = vmatprep.subr.mxu0 0.0
        %1152 = vmatpush1.msra.mxu0 0.0
        %1153 = vmatprep.subr.mxu0 0.0
        %1154 = vmatpush1.msra.mxu0 0.0
        %1155 = vmatprep.subr.mxu0 0.0
        %1156 = vmatpush1.msra.mxu0 0.0
        %1157 = vmatprep.subr.mxu0 0.0
        %1158 = vmatpush1.msra.mxu0 0.0
        %1159 = vmatprep.subr.mxu0 0.0
        %1160 = vmatpush1.msra.mxu0 0.0
        %1161 = vmatprep.subr.mxu0 0.0
        %1162 = vmatpush1.msra.mxu0 0.0
        %1163 = vmatprep.subr.mxu0 0.0
        %1164 = vmatpush1.msra.mxu0 0.0
        %1165 = vmatprep.subr.mxu0 0.0
        %1166 = vmatpush1.msra.mxu0 0.0
        %1167 = vmatprep.subr.mxu0 0.0
        %1168 = vmatpush1.msra.mxu0 0.0
        %1169 = vmatprep.subr.mxu0 0.0
        %1170 = vmatpush1.msra.mxu0 0.0
        %1171 = vmatprep.subr.mxu0 0.0
        %1172 = vmatpush1.msra.mxu0 0.0
        %1173 = vmatprep.mubr.f32.mxu0 0.0
        %1174 = vmatmul.mubr.f32.gmra.mrb[0].mxu0 %v1107
        %v1175 = vpop.f32.mrb[0].mxu0
        %v1176 = vadd.f32 0.0, %v1175
        %v1177 = vpop.f32.mrb[0].mxu0
        %1178 = vdwg.mxu0
        %v1179 = vrcp.pop 64.0
        %v1180 = vmul.f32 %v1176, %v1179
        %v1182 = vsel %vm1068, %v1180, 0
        %1184 = vmatprep.subr.mxu0 0.0
        %1185 = vmatpush1.msra.mxu0 %v1081
        %1186 = vmatprep.subr.mxu0 0.0
        %1187 = vmatpush1.msra.mxu0 %v1082
        %1188 = vmatprep.subr.mxu0 0.0
        %1189 = vmatpush1.msra.mxu0 %v1083
        %1190 = vmatprep.subr.mxu0 0.0
        %1191 = vmatpush1.msra.mxu0 %v1084
        %1192 = vmatprep.subr.mxu0 0.0
        %1193 = vmatpush1.msra.mxu0 0.0
        %1194 = vmatprep.subr.mxu0 0.0
        %1195 = vmatpush1.msra.mxu0 0.0
        %1196 = vmatprep.subr.mxu0 0.0
        %1197 = vmatpush1.msra.mxu0 0.0
        %1198 = vmatprep.subr.mxu0 0.0
        %1199 = vmatpush1.msra.mxu0 0.0
        %1200 = vmatprep.subr.mxu0 0.0
        %1201 = vmatpush1.msra.mxu0 0.0
        %1202 = vmatprep.subr.mxu0 0.0
        %1203 = vmatpush1.msra.mxu0 0.0
        %1204 = vmatprep.subr.mxu0 0.0
        %1205 = vmatpush1.msra.mxu0 0.0
        %1206 = vmatprep.subr.mxu0 0.0
        %1207 = vmatpush1.msra.mxu0 0.0
        %1208 = vmatprep.subr.mxu0 0.0
        %1209 = vmatpush1.msra.mxu0 0.0
        %1210 = vmatprep.subr.mxu0 0.0
        %1211 = vmatpush1.msra.mxu0 0.0
        %1212 = vmatprep.subr.mxu0 0.0
        %1213 = vmatpush1.msra.mxu0 0.0
        %1214 = vmatprep.subr.mxu0 0.0
        %1215 = vmatpush1.msra.mxu0 0.0
        %1216 = vmatprep.subr.mxu0 0.0
        %1217 = vmatpush1.msra.mxu0 0.0
        %1218 = vmatprep.subr.mxu0 0.0
        %1219 = vmatpush1.msra.mxu0 0.0
        %1220 = vmatprep.subr.mxu0 0.0
        %1221 = vmatpush1.msra.mxu0 0.0
        %1222 = vmatprep.subr.mxu0 0.0
        %1223 = vmatpush1.msra.mxu0 0.0
        %1224 = vmatprep.subr.mxu0 0.0
        %1225 = vmatpush1.msra.mxu0 0.0
        %1226 = vmatprep.subr.mxu0 0.0
        %1227 = vmatpush1.msra.mxu0 0.0
        %1228 = vmatprep.subr.mxu0 0.0
        %1229 = vmatpush1.msra.mxu0 0.0
        %1230 = vmatprep.subr.mxu0 0.0
        %1231 = vmatpush1.msra.mxu0 0.0
        %1232 = vmatprep.subr.mxu0 0.0
        %1233 = vmatpush1.msra.mxu0 0.0
        %1234 = vmatprep.subr.mxu0 0.0
        %1235 = vmatpush1.msra.mxu0 0.0
        %1236 = vmatprep.subr.mxu0 0.0
        %1237 = vmatpush1.msra.mxu0 0.0
        %1238 = vmatprep.subr.mxu0 0.0
        %1239 = vmatpush1.msra.mxu0 0.0
        %1240 = vmatprep.subr.mxu0 0.0
        %1241 = vmatpush1.msra.mxu0 0.0
        %1242 = vmatprep.subr.mxu0 0.0
        %1243 = vmatpush1.msra.mxu0 0.0
        %1244 = vmatprep.subr.mxu0 0.0
        %1245 = vmatpush1.msra.mxu0 0.0
        %1246 = vmatprep.subr.mxu0 0.0
        %1247 = vmatpush1.msra.mxu0 0.0
        %1248 = vmatprep.mubr.f32.mxu0 0.0
        %1249 = vmatmul.mubr.f32.gmra.mrb[0].mxu0 %v1182
        %v1250 = vpop.f32.mrb[0].mxu0
        %v1251 = vadd.f32 0.0, %v1250
        %v1252 = vpop.f32.mrb[0].mxu0
        %1253 = vdwg.mxu0
        %v1254 = vlaneseq
        %v1255 = vshrl.u32 %v1254, 7
        %v1256 = vsub.s32 0, %v1255
        %v1257 = vrot.slane %v1251, %v1256
        %v1258 = vsub.f32 %v1052, %v1257
        %v1259 = vsub.f32 %v1053, %v1257
        %v1260 = vsub.f32 %v1054, %v1257
        %v1261 = vsub.f32 %v1055, %v1257
        %v1262 = vsub.f32 %v1056, %v1257
        %v1263 = vsub.f32 %v1057, %v1257
        %v1264 = vsub.f32 %v1058, %v1257
        %v1265 = vsub.f32 %v1059, %v1257
        %v1266 = vmul.f32 %v1258, %v1258
        %v1267 = vmul.f32 %v1259, %v1259
        %v1268 = vmul.f32 %v1260, %v1260
        %v1269 = vmul.f32 %v1261, %v1261
        %v1270 = vmul.f32 %v1262, %v1262
        %v1271 = vmul.f32 %v1263, %v1263
        %v1272 = vmul.f32 %v1264, %v1264
        %v1273 = vmul.f32 %v1265, %v1265
        %v1274 = vsel %vm1068, %v1266, 0.0
        %v1275 = vsel %vm1068, %v1267, 0.0
        %v1276 = vadd.f32 %v1274, %v1275
        %v1277 = vsel %vm1068, %v1268, 0.0
        %v1278 = vadd.f32 %v1276, %v1277
        %v1279 = vsel %vm1068, %v1269, 0.0
        %v1280 = vadd.f32 %v1278, %v1279
        %v1281 = vsel %vm1068, %v1270, 0.0
        %v1282 = vadd.f32 %v1280, %v1281
        %v1283 = vsel %vm1068, %v1271, 0.0
        %v1284 = vadd.f32 %v1282, %v1283
        %v1285 = vsel %vm1068, %v1272, 0.0
        %v1286 = vadd.f32 %v1284, %v1285
        %v1287 = vsel %vm1068, %v1273, 0.0
        %v1288 = vadd.f32 %v1286, %v1287
        %v1289 = vrot.slane %v1288, 4
        %v1290 = vadd.f32 %v1288, %v1289
        %v1291 = vrot.slane %v1290, 2
        %v1292 = vadd.f32 %v1290, %v1291
        %v1293 = vrot.slane %v1292, 1
        %v1294 = vadd.f32 %v1292, %v1293
        %v1296 = vsel %vm1068, %v1294, 0
        %1298 = vmatprep.subr.mxu0 0.0
        %1299 = vmatpush1.msra.mxu0 %v1077
        %1300 = vmatprep.subr.mxu0 0.0
        %1301 = vmatpush1.msra.mxu0 %v1078
        %1302 = vmatprep.subr.mxu0 0.0
        %1303 = vmatpush1.msra.mxu0 %v1079
        %1304 = vmatprep.subr.mxu0 0.0
        %1305 = vmatpush1.msra.mxu0 %v1080
        %1306 = vmatprep.subr.mxu0 0.0
        %1307 = vmatpush1.msra.mxu0 0.0
        %1308 = vmatprep.subr.mxu0 0.0
        %1309 = vmatpush1.msra.mxu0 0.0
        %1310 = vmatprep.subr.mxu0 0.0
        %1311 = vmatpush1.msra.mxu0 0.0
        %1312 = vmatprep.subr.mxu0 0.0
        %1313 = vmatpush1.msra.mxu0 0.0
        %1314 = vmatprep.subr.mxu0 0.0
        %1315 = vmatpush1.msra.mxu0 0.0
        %1316 = vmatprep.subr.mxu0 0.0
        %1317 = vmatpush1.msra.mxu0 0.0
        %1318 = vmatprep.subr.mxu0 0.0
        %1319 = vmatpush1.msra.mxu0 0.0
        %1320 = vmatprep.subr.mxu0 0.0
        %1321 = vmatpush1.msra.mxu0 0.0
        %1322 = vmatprep.subr.mxu0 0.0
        %1323 = vmatpush1.msra.mxu0 0.0
        %1324 = vmatprep.subr.mxu0 0.0
        %1325 = vmatpush1.msra.mxu0 0.0
        %1326 = vmatprep.subr.mxu0 0.0
        %1327 = vmatpush1.msra.mxu0 0.0
        %1328 = vmatprep.subr.mxu0 0.0
        %1329 = vmatpush1.msra.mxu0 0.0
        %1330 = vmatprep.subr.mxu0 0.0
        %1331 = vmatpush1.msra.mxu0 0.0
        %1332 = vmatprep.subr.mxu0 0.0
        %1333 = vmatpush1.msra.mxu0 0.0
        %1334 = vmatprep.subr.mxu0 0.0
        %1335 = vmatpush1.msra.mxu0 0.0
        %1336 = vmatprep.subr.mxu0 0.0
        %1337 = vmatpush1.msra.mxu0 0.0
        %1338 = vmatprep.subr.mxu0 0.0
        %1339 = vmatpush1.msra.mxu0 0.0
        %1340 = vmatprep.subr.mxu0 0.0
        %1341 = vmatpush1.msra.mxu0 0.0
        %1342 = vmatprep.subr.mxu0 0.0
        %1343 = vmatpush1.msra.mxu0 0.0
        %1344 = vmatprep.subr.mxu0 0.0
        %1345 = vmatpush1.msra.mxu0 0.0
        %1346 = vmatprep.subr.mxu0 0.0
        %1347 = vmatpush1.msra.mxu0 0.0
        %1348 = vmatprep.subr.mxu0 0.0
        %1349 = vmatpush1.msra.mxu0 0.0
        %1350 = vmatprep.subr.mxu0 0.0
        %1351 = vmatpush1.msra.mxu0 0.0
        %1352 = vmatprep.subr.mxu0 0.0
        %1353 = vmatpush1.msra.mxu0 0.0
        %1354 = vmatprep.subr.mxu0 0.0
        %1355 = vmatpush1.msra.mxu0 0.0
        %1356 = vmatprep.subr.mxu0 0.0
        %1357 = vmatpush1.msra.mxu0 0.0
        %1358 = vmatprep.subr.mxu0 0.0
        %1359 = vmatpush1.msra.mxu0 0.0
        %1360 = vmatprep.subr.mxu0 0.0
        %1361 = vmatpush1.msra.mxu0 0.0
        %1362 = vmatprep.mubr.f32.mxu0 0.0
        %1363 = vmatmul.mubr.f32.gmra.mrb[0].mxu0 %v1296
        %v1364 = vpop.f32.mrb[0].mxu0
        %v1365 = vadd.f32 0.0, %v1364
        %v1366 = vpop.f32.mrb[0].mxu0
        %1367 = vdwg.mxu0
        %v1368 = vmul.f32 %v1365, %v1179
        %v1370 = vsel %vm1068, %v1368, 0
        %1372 = vmatprep.subr.mxu0 0.0
        %1373 = vmatpush1.msra.mxu0 %v1081
        %1374 = vmatprep.subr.mxu0 0.0
        %1375 = vmatpush1.msra.mxu0 %v1082
        %1376 = vmatprep.subr.mxu0 0.0
        %1377 = vmatpush1.msra.mxu0 %v1083
        %1378 = vmatprep.subr.mxu0 0.0
        %1379 = vmatpush1.msra.mxu0 %v1084
        %1380 = vmatprep.subr.mxu0 0.0
        %1381 = vmatpush1.msra.mxu0 0.0
        %1382 = vmatprep.subr.mxu0 0.0
        %1383 = vmatpush1.msra.mxu0 0.0
        %1384 = vmatprep.subr.mxu0 0.0
        %1385 = vmatpush1.msra.mxu0 0.0
        %1386 = vmatprep.subr.mxu0 0.0
        %1387 = vmatpush1.msra.mxu0 0.0
        %1388 = vmatprep.subr.mxu0 0.0
        %1389 = vmatpush1.msra.mxu0 0.0
        %1390 = vmatprep.subr.mxu0 0.0
        %1391 = vmatpush1.msra.mxu0 0.0
        %1392 = vmatprep.subr.mxu0 0.0
        %1393 = vmatpush1.msra.mxu0 0.0
        %1394 = vmatprep.subr.mxu0 0.0
        %1395 = vmatpush1.msra.mxu0 0.0
        %1396 = vmatprep.subr.mxu0 0.0
        %1397 = vmatpush1.msra.mxu0 0.0
        %1398 = vmatprep.subr.mxu0 0.0
        %1399 = vmatpush1.msra.mxu0 0.0
        %1400 = vmatprep.subr.mxu0 0.0
        %1401 = vmatpush1.msra.mxu0 0.0
        %1402 = vmatprep.subr.mxu0 0.0
        %1403 = vmatpush1.msra.mxu0 0.0
        %1404 = vmatprep.subr.mxu0 0.0
        %1405 = vmatpush1.msra.mxu0 0.0
        %1406 = vmatprep.subr.mxu0 0.0
        %1407 = vmatpush1.msra.mxu0 0.0
        %1408 = vmatprep.subr.mxu0 0.0
        %1409 = vmatpush1.msra.mxu0 0.0
        %1410 = vmatprep.subr.mxu0 0.0
        %1411 = vmatpush1.msra.mxu0 0.0
        %1412 = vmatprep.subr.mxu0 0.0
        %1413 = vmatpush1.msra.mxu0 0.0
        %1414 = vmatprep.subr.mxu0 0.0
        %1415 = vmatpush1.msra.mxu0 0.0
        %1416 = vmatprep.subr.mxu0 0.0
        %1417 = vmatpush1.msra.mxu0 0.0
        %1418 = vmatprep.subr.mxu0 0.0
        %1419 = vmatpush1.msra.mxu0 0.0
        %1420 = vmatprep.subr.mxu0 0.0
        %1421 = vmatpush1.msra.mxu0 0.0
        %1422 = vmatprep.subr.mxu0 0.0
        %1423 = vmatpush1.msra.mxu0 0.0
        %1424 = vmatprep.subr.mxu0 0.0
        %1425 = vmatpush1.msra.mxu0 0.0
        %1426 = vmatprep.subr.mxu0 0.0
        %1427 = vmatpush1.msra.mxu0 0.0
        %1428 = vmatprep.subr.mxu0 0.0
        %1429 = vmatpush1.msra.mxu0 0.0
        %1430 = vmatprep.subr.mxu0 0.0
        %1431 = vmatpush1.msra.mxu0 0.0
        %1432 = vmatprep.subr.mxu0 0.0
        %1433 = vmatpush1.msra.mxu0 0.0
        %1434 = vmatprep.subr.mxu0 0.0
        %1435 = vmatpush1.msra.mxu0 0.0
        %1436 = vmatprep.mubr.f32.mxu0 0.0
        %1437 = vmatmul.mubr.f32.gmra.mrb[0].mxu0 %v1370
        %v1438 = vpop.f32.mrb[0].mxu0
        %v1439 = vadd.f32 1e-06, %v1438
        %v1440 = vpop.f32.mrb[0].mxu0
        %1441 = vdwg.mxu0
        %v1442 = vrsqrt.pop %v1439
        %v1443 = vlaneseq
        %v1444 = vshrl.u32 %v1443, 7
        %v1445 = vsub.s32 0, %v1444
        %v1446 = vrot.slane %v1442, %v1445
        %v1447 = vmul.f32 %v1258, %v1446
        %v1448 = vmul.f32 %v1259, %v1446
        %v1449 = vmul.f32 %v1260, %v1446
        %v1450 = vmul.f32 %v1261, %v1446
        %v1451 = vmul.f32 %v1262, %v1446
        %v1452 = vmul.f32 %v1263, %v1446
        %v1453 = vmul.f32 %v1264, %v1446
        %v1454 = vmul.f32 %v1265, %v1446
        %v1455 = vld [vmem:[%s9] sm:$0x1]
        %v1457 = vlaneseq
        %v1458 = vshrl.u32 %v1457, 7
        %v1459 = vsub.s32 0, %v1458
        %v1460 = vrot.slane %v1455, %v1459
        %v1462 = vmul.f32 %v1447, %v1460
        %v1463 = vmul.f32 %v1448, %v1460
        %v1464 = vmul.f32 %v1449, %v1460
        %v1465 = vmul.f32 %v1450, %v1460
        %v1466 = vmul.f32 %v1451, %v1460
        %v1467 = vmul.f32 %v1452, %v1460
        %v1468 = vmul.f32 %v1453, %v1460
        %v1469 = vmul.f32 %v1454, %v1460
        %v1470 = vld [vmem:[%s11] sm:$0x1]
        %v1472 = vlaneseq
        %v1473 = vshrl.u32 %v1472, 7
        %v1474 = vsub.s32 0, %v1473
        %v1475 = vrot.slane %v1470, %v1474
        %v1477 = vadd.f32 %v1462, %v1475
        %v1478 = vadd.f32 %v1463, %v1475
        %v1479 = vadd.f32 %v1464, %v1475
        %v1480 = vadd.f32 %v1465, %v1475
        %v1481 = vadd.f32 %v1466, %v1475
        %v1482 = vadd.f32 %v1467, %v1475
        %v1483 = vadd.f32 %v1468, %v1475
        %v1484 = vadd.f32 %v1469, %v1475
        %v1485 = vpack.c.bf16 %v1478, %v1477
        %v1486 = vpack.c.bf16 %v1480, %v1479
        %v1487 = vpack.c.bf16 %v1482, %v1481
        %v1488 = vpack.c.bf16 %v1484, %v1483
        %v1489 = vld [vmem:[%s13] sm:$0xf]
        %v1490 = vld [vmem:[%s13 + $0x4] sm:$0xf]
        %v1491 = vld [vmem:[%s13 + $0x8] sm:$0xf]
        %v1492 = vld [vmem:[%s13 + $0xc] sm:$0xf]
        %v1493 = vld [vmem:[%s15] sm:$0x1]
        %v1495 = vlaneseq
        %v1496 = vshrl.u32 %v1495, 7
        %v1497 = vsub.s32 0, %v1496
        %v1498 = vrot.slane %v1493, %v1497
        %v1504 = vunpack.c.l.b16 %v1489
        %v1505 = vunpack.c.l.b16 %v1490
        %v1506 = vunpack.c.l.b16 %v1491
        %v1507 = vunpack.c.l.b16 %v1492
        %v1508 = vpack.c.b16 %v1505, %v1504
        %v1509 = vpack.c.b16 %v1507, %v1506
        %v1513 = vsel %vm1068, %v1485, 0
        %v1516 = vsel %vm1068, %v1486, 0
        %v1519 = vsel %vm1068, %v1487, 0
        %v1522 = vsel %vm1068, %v1488, 0
        %1524 = vmatprep.subr.bf16.mxu0 0
        %1525 = vmatpush1.bf16.msra.mxu0 %v1508
        %1526 = vmatprep.subr.bf16.mxu0 0
        %1527 = vmatpush1.bf16.msra.mxu0 %v1509
        %1528 = vmatprep.subr.bf16.mxu0 0
        %1529 = vmatpush1.bf16.msra.mxu0 0
        %1530 = vmatprep.subr.bf16.mxu0 0
        %1531 = vmatpush1.bf16.msra.mxu0 0
        %1532 = vmatprep.subr.bf16.mxu0 0
        %1533 = vmatpush1.bf16.msra.mxu0 0
        %1534 = vmatprep.subr.bf16.mxu0 0
        %1535 = vmatpush1.bf16.msra.mxu0 0
        %1536 = vmatprep.subr.bf16.mxu0 0
        %1537 = vmatpush1.bf16.msra.mxu0 0
        %1538 = vmatprep.subr.bf16.mxu0 0
        %1539 = vmatpush1.bf16.msra.mxu0 0
        %1540 = vmatprep.subr.bf16.mxu0 0
        %1541 = vmatpush1.bf16.msra.mxu0 0
        %1542 = vmatprep.subr.bf16.mxu0 0
        %1543 = vmatpush1.bf16.msra.mxu0 0
        %1544 = vmatprep.subr.bf16.mxu0 0
        %1545 = vmatpush1.bf16.msra.mxu0 0
        %1546 = vmatprep.subr.bf16.mxu0 0
        %1547 = vmatpush1.bf16.msra.mxu0 0
        %1548 = vmatprep.subr.bf16.mxu0 0
        %1549 = vmatpush1.bf16.msra.mxu0 0
        %1550 = vmatprep.subr.bf16.mxu0 0
        %1551 = vmatpush1.bf16.msra.mxu0 0
        %1552 = vmatprep.subr.bf16.mxu0 0
        %1553 = vmatpush1.bf16.msra.mxu0 0
        %1554 = vmatprep.subr.bf16.mxu0 0
        %1555 = vmatpush1.bf16.msra.mxu0 0
        %1556 = vmatprep.mubr.bf16.mxu0 0
        %1557 = vmatmul.mubr.bf16.gmra.mrb[0].mxu0 %v1513
        %v1558 = vpop.f32.mrb[0].mxu0
        %v1559 = vadd.f32 %v1498, %v1558
        %v1560 = vpop.f32.mrb[0].mxu0
        %v1561 = vpop.f32.mrb[0].mxu0
        %v1562 = vadd.f32 %v1498, %v1561
        %v1563 = vpop.f32.mrb[0].mxu0
        %1564 = vmatprep.mubr.bf16.mxu0 0
        %1565 = vmatmul.mubr.bf16.gmra.mrb[0].mxu0 %v1516
        %v1566 = vpop.f32.mrb[0].mxu0
        %v1567 = vadd.f32 %v1498, %v1566
        %v1568 = vpop.f32.mrb[0].mxu0
        %v1569 = vpop.f32.mrb[0].mxu0
        %v1570 = vadd.f32 %v1498, %v1569
        %v1571 = vpop.f32.mrb[0].mxu0
        %1572 = vmatprep.mubr.bf16.mxu0 0
        %1573 = vmatmul.mubr.bf16.gmra.mrb[0].mxu0 %v1519
        %v1574 = vpop.f32.mrb[0].mxu0
        %v1575 = vadd.f32 %v1498, %v1574
        %v1576 = vpop.f32.mrb[0].mxu0
        %v1577 = vpop.f32.mrb[0].mxu0
        %v1578 = vadd.f32 %v1498, %v1577
        %v1579 = vpop.f32.mrb[0].mxu0
        %1580 = vmatprep.mubr.bf16.mxu0 0
        %1581 = vmatmul.mubr.bf16.gmra.mrb[0].mxu0 %v1522
        %v1582 = vpop.f32.mrb[0].mxu0
        %v1583 = vadd.f32 %v1498, %v1582
        %v1584 = vpop.f32.mrb[0].mxu0
        %v1585 = vpop.f32.mrb[0].mxu0
        %v1586 = vadd.f32 %v1498, %v1585
        %v1587 = vpop.f32.mrb[0].mxu0
        %1588 = vdwg.mxu0
        %1589 = vst.msk [vmem:[#allocation3] sm:$0xff] %vm1068, %v1559
        %1590 = vst.msk [vmem:[#allocation3 + $0x8] sm:$0xff] %vm1068, %v1562
        %1591 = vst.msk [vmem:[#allocation3 + $0x10] sm:$0xff] %vm1068, %v1567
        %1592 = vst.msk [vmem:[#allocation3 + $0x18] sm:$0xff] %vm1068, %v1570
        %1593 = vst.msk [vmem:[#allocation3 + $0x20] sm:$0xff] %vm1068, %v1575
        %1594 = vst.msk [vmem:[#allocation3 + $0x28] sm:$0xff] %vm1068, %v1578
        %1595 = vst.msk [vmem:[#allocation3 + $0x30] sm:$0xff] %vm1068, %v1583
        %1596 = vst.msk [vmem:[#allocation3 + $0x38] sm:$0xff] %vm1068, %v1586
        %v1597 = vld [vmem:[%s17] sm:$0x1]
        %v1598 = vld [vmem:[%s19] sm:$0x1]
        %v1599 = vsel %vm1068, %v1559, 0.0
        %1600 = vadd.xlane.f32.xlu0 %v1599
        %v1601 = vpop.xlane.xlu0 %1600
        %v1602 = vsel %vm1068, %v1562, 0.0
        %1603 = vadd.xlane.f32.xlu0 %v1602
        %v1604 = vpop.xlane.xlu0 %1603
        %v1605 = vsel %vm1068, %v1567, 0.0
        %1606 = vadd.xlane.f32.xlu0 %v1605
        %v1607 = vpop.xlane.xlu0 %1606
        %v1608 = vsel %vm1068, %v1570, 0.0
        %1609 = vadd.xlane.f32.xlu0 %v1608
        %v1610 = vpop.xlane.xlu0 %1609
        %v1611 = vsel %vm1068, %v1575, 0.0
        %1612 = vadd.xlane.f32.xlu0 %v1611
        %v1613 = vpop.xlane.xlu0 %1612
        %v1614 = vsel %vm1068, %v1578, 0.0
        %1615 = vadd.xlane.f32.xlu0 %v1614
        %v1616 = vpop.xlane.xlu0 %1615
        %v1617 = vsel %vm1068, %v1583, 0.0
        %1618 = vadd.xlane.f32.xlu0 %v1617
        %v1619 = vpop.xlane.xlu0 %1618
        %v1620 = vsel %vm1068, %v1586, 0.0
        %1621 = vadd.xlane.f32.xlu0 %v1620
        %v1622 = vpop.xlane.xlu0 %1621
        %v1623 = vrcp.pop 32.0
        %v1624 = vmul.f32 %v1601, %v1623
        %v1625 = vmul.f32 %v1604, %v1623
        %v1626 = vmul.f32 %v1607, %v1623
        %v1627 = vmul.f32 %v1610, %v1623
        %v1628 = vmul.f32 %v1613, %v1623
        %v1629 = vmul.f32 %v1616, %v1623
        %v1630 = vmul.f32 %v1619, %v1623
        %v1631 = vmul.f32 %v1622, %v1623
        %v1632 = vsub.f32 %v1559, %v1624
        %v1633 = vsub.f32 %v1562, %v1625
        %v1634 = vsub.f32 %v1567, %v1626
        %v1635 = vsub.f32 %v1570, %v1627
        %v1636 = vsub.f32 %v1575, %v1628
        %v1637 = vsub.f32 %v1578, %v1629
        %v1638 = vsub.f32 %v1583, %v1630
        %v1639 = vsub.f32 %v1586, %v1631
        %v1640 = vmul.f32 %v1632, %v1632
        %v1641 = vmul.f32 %v1633, %v1633
        %v1642 = vmul.f32 %v1634, %v1634
        %v1643 = vmul.f32 %v1635, %v1635
        %v1644 = vmul.f32 %v1636, %v1636
        %v1645 = vmul.f32 %v1637, %v1637
        %v1646 = vmul.f32 %v1638, %v1638
        %v1647 = vmul.f32 %v1639, %v1639
        %v1648 = vsel %vm1068, %v1640, 0.0
        %1649 = vadd.xlane.f32.xlu0 %v1648
        %v1650 = vpop.xlane.xlu0 %1649
        %v1651 = vsel %vm1068, %v1641, 0.0
        %1652 = vadd.xlane.f32.xlu0 %v1651
        %v1653 = vpop.xlane.xlu0 %1652
        %v1654 = vsel %vm1068, %v1642, 0.0
        %1655 = vadd.xlane.f32.xlu0 %v1654
        %v1656 = vpop.xlane.xlu0 %1655
        %v1657 = vsel %vm1068, %v1643, 0.0
        %1658 = vadd.xlane.f32.xlu0 %v1657
        %v1659 = vpop.xlane.xlu0 %1658
        %v1660 = vsel %vm1068, %v1644, 0.0
        %1661 = vadd.xlane.f32.xlu0 %v1660
        %v1662 = vpop.xlane.xlu0 %1661
        %v1663 = vsel %vm1068, %v1645, 0.0
        %1664 = vadd.xlane.f32.xlu0 %v1663
        %v1665 = vpop.xlane.xlu0 %1664
        %v1666 = vsel %vm1068, %v1646, 0.0
        %1667 = vadd.xlane.f32.xlu0 %v1666
        %v1668 = vpop.xlane.xlu0 %1667
        %v1669 = vsel %vm1068, %v1647, 0.0
        %1670 = vadd.xlane.f32.xlu0 %v1669
        %v1671 = vpop.xlane.xlu0 %1670
        %v1672 = vmul.f32 %v1650, %v1623
        %v1673 = vmul.f32 %v1653, %v1623
        %v1674 = vmul.f32 %v1656, %v1623
        %v1675 = vmul.f32 %v1659, %v1623
        %v1676 = vmul.f32 %v1662, %v1623
        %v1677 = vmul.f32 %v1665, %v1623
        %v1678 = vmul.f32 %v1668, %v1623
        %v1679 = vmul.f32 %v1671, %v1623
        %v1680 = vadd.f32 %v1672, 1e-05
        %v1681 = vadd.f32 %v1673, 1e-05
        %v1682 = vadd.f32 %v1674, 1e-05
        %v1683 = vadd.f32 %v1675, 1e-05
        %v1684 = vadd.f32 %v1676, 1e-05
        %v1685 = vadd.f32 %v1677, 1e-05
        %v1686 = vadd.f32 %v1678, 1e-05
        %v1687 = vadd.f32 %v1679, 1e-05
        %v1688 = vrsqrt.pop %v1680
        %v1689 = vrsqrt.pop %v1681
        %v1690 = vrsqrt.pop %v1682
        %v1691 = vrsqrt.pop %v1683
        %v1692 = vrsqrt.pop %v1684
        %v1693 = vrsqrt.pop %v1685
        %v1694 = vrsqrt.pop %v1686
        %v1695 = vrsqrt.pop %v1687
        %v1696 = vmul.f32 %v1632, %v1688
        %v1697 = vmul.f32 %v1633, %v1689
        %v1698 = vmul.f32 %v1634, %v1690
        %v1699 = vmul.f32 %v1635, %v1691
        %v1700 = vmul.f32 %v1636, %v1692
        %v1701 = vmul.f32 %v1637, %v1693
        %v1702 = vmul.f32 %v1638, %v1694
        %v1703 = vmul.f32 %v1639, %v1695
        %v1705 = vlaneseq
        %v1706 = vshrl.u32 %v1705, 7
        %v1707 = vsub.s32 0, %v1706
        %v1708 = vrot.slane %v1597, %v1707
        %v1710 = vmul.f32 %v1696, %v1708
        %v1711 = vmul.f32 %v1697, %v1708
        %v1712 = vmul.f32 %v1698, %v1708
        %v1713 = vmul.f32 %v1699, %v1708
        %v1714 = vmul.f32 %v1700, %v1708
        %v1715 = vmul.f32 %v1701, %v1708
        %v1716 = vmul.f32 %v1702, %v1708
        %v1717 = vmul.f32 %v1703, %v1708
        %v1719 = vlaneseq
        %v1720 = vshrl.u32 %v1719, 7
        %v1721 = vsub.s32 0, %v1720
        %v1722 = vrot.slane %v1598, %v1721
        %v1724 = vadd.f32 %v1710, %v1722
        %v1725 = vadd.f32 %v1711, %v1722
        %v1726 = vadd.f32 %v1712, %v1722
        %v1727 = vadd.f32 %v1713, %v1722
        %v1728 = vadd.f32 %v1714, %v1722
        %v1729 = vadd.f32 %v1715, %v1722
        %v1730 = vadd.f32 %v1716, %v1722
        %v1731 = vadd.f32 %v1717, %v1722
        %v1732 = vpack.c.bf16 %v1725, %v1724
        %v1733 = vpack.c.bf16 %v1727, %v1726
        %v1734 = vpack.c.bf16 %v1729, %v1728
        %v1735 = vpack.c.bf16 %v1731, %v1730
        %1736 = vst.msk [vmem:[#allocation4] sm:$0xff] %vm1068, %v1732
        %1737 = vst.msk [vmem:[#allocation4 + $0x8] sm:$0xff] %vm1068, %v1733
        %1738 = vst.msk [vmem:[#allocation4 + $0x10] sm:$0xff] %vm1068, %v1734
        %1739 = vst.msk [vmem:[#allocation4 + $0x18] sm:$0xff] %vm1068, %v1735
        %v1740 = vld [vmem:[%s1016] sm:$0xff]
        %v1741 = vpack.c.bf16 %v1740, %v1740
        %v1742 = vld [vmem:[%s23] sm:$0xf]
        %v1743 = vld [vmem:[%s23 + $0x4] sm:$0xf]
        %v1744 = vld [vmem:[%s23 + $0x8] sm:$0xf]
        %v1745 = vld [vmem:[%s23 + $0xc] sm:$0xf]
        %v1746 = vld [vmem:[%s23 + $0x10] sm:$0xf]
        %v1747 = vld [vmem:[%s23 + $0x14] sm:$0xf]
        %v1748 = vld [vmem:[%s23 + $0x18] sm:$0xf]
        %v1749 = vld [vmem:[%s23 + $0x1c] sm:$0xf]
        %v1750 = vld [vmem:[%s23 + $0x20] sm:$0xf]
        %v1751 = vld [vmem:[%s23 + $0x24] sm:$0xf]
        %v1752 = vld [vmem:[%s23 + $0x28] sm:$0xf]
        %v1753 = vld [vmem:[%s23 + $0x2c] sm:$0xf]
        %v1754 = vld [vmem:[%s23 + $0x30] sm:$0xf]
        %v1755 = vld [vmem:[%s23 + $0x34] sm:$0xf]
        %v1756 = vld [vmem:[%s23 + $0x38] sm:$0xf]
        %v1757 = vld [vmem:[%s23 + $0x3c] sm:$0xf]
        %v1758 = vld [vmem:[%s25] sm:$0xf]
        %v1759 = vld [vmem:[%s25 + $0x4] sm:$0xf]
        %v1760 = vld [vmem:[%s25 + $0x8] sm:$0xf]
        %v1761 = vld [vmem:[%s25 + $0xc] sm:$0xf]
        %v1762 = vld [vmem:[%s25 + $0x10] sm:$0xf]
        %v1763 = vld [vmem:[%s25 + $0x14] sm:$0xf]
        %v1764 = vld [vmem:[%s25 + $0x18] sm:$0xf]
        %v1765 = vld [vmem:[%s25 + $0x1c] sm:$0xf]
        %v1766 = vld [vmem:[%s25 + $0x20] sm:$0xf]
        %v1767 = vld [vmem:[%s25 + $0x24] sm:$0xf]
        %v1768 = vld [vmem:[%s25 + $0x28] sm:$0xf]
        %v1769 = vld [vmem:[%s25 + $0x2c] sm:$0xf]
        %v1770 = vld [vmem:[%s25 + $0x30] sm:$0xf]
        %v1771 = vld [vmem:[%s25 + $0x34] sm:$0xf]
        %v1772 = vld [vmem:[%s25 + $0x38] sm:$0xf]
        %v1773 = vld [vmem:[%s25 + $0x3c] sm:$0xf]
        %v1774 = vld [vmem:[%s37] sm:$0xf]
        %v1775 = vld [vmem:[%s37 + $0x4] sm:$0xf]
        %v1776 = vld [vmem:[%s37 + $0x8] sm:$0xf]
        %v1777 = vld [vmem:[%s37 + $0xc] sm:$0xf]
        %v1778 = vld [vmem:[%s37 + $0x10] sm:$0xf]
        %v1779 = vld [vmem:[%s37 + $0x14] sm:$0xf]
        %v1780 = vld [vmem:[%s37 + $0x18] sm:$0xf]
        %v1781 = vld [vmem:[%s37 + $0x1c] sm:$0xf]
        %v1782 = vld [vmem:[%s37 + $0x20] sm:$0xf]
        %v1783 = vld [vmem:[%s37 + $0x24] sm:$0xf]
        %v1784 = vld [vmem:[%s37 + $0x28] sm:$0xf]
        %v1785 = vld [vmem:[%s37 + $0x2c] sm:$0xf]
        %v1786 = vld [vmem:[%s37 + $0x30] sm:$0xf]
        %v1787 = vld [vmem:[%s37 + $0x34] sm:$0xf]
        %v1788 = vld [vmem:[%s37 + $0x38] sm:$0xf]
        %v1789 = vld [vmem:[%s37 + $0x3c] sm:$0xf]
        %v1790 = vld [vmem:[%s37 + $0x40] sm:$0xf]
        %v1791 = vld [vmem:[%s37 + $0x44] sm:$0xf]
        %v1792 = vld [vmem:[%s37 + $0x48] sm:$0xf]
        %v1793 = vld [vmem:[%s37 + $0x4c] sm:$0xf]
        %v1794 = vld [vmem:[%s37 + $0x50] sm:$0xf]
        %v1795 = vld [vmem:[%s37 + $0x54] sm:$0xf]
        %v1796 = vld [vmem:[%s37 + $0x58] sm:$0xf]
        %v1797 = vld [vmem:[%s37 + $0x5c] sm:$0xf]
        %v1798 = vld [vmem:[%s37 + $0x60] sm:$0xf]
        %v1799 = vld [vmem:[%s37 + $0x64] sm:$0xf]
        %v1800 = vld [vmem:[%s37 + $0x68] sm:$0xf]
        %v1801 = vld [vmem:[%s37 + $0x6c] sm:$0xf]
        %v1802 = vld [vmem:[%s37 + $0x70] sm:$0xf]
        %v1803 = vld [vmem:[%s37 + $0x74] sm:$0xf]
        %v1804 = vld [vmem:[%s37 + $0x78] sm:$0xf]
        %v1805 = vld [vmem:[%s37 + $0x7c] sm:$0xf]
        %v1806 = vld [vmem:[%s39] sm:$0xf]
        %v1807 = vld [vmem:[%s39 + $0x4] sm:$0xf]
        %v1808 = vld [vmem:[%s39 + $0x8] sm:$0xf]
        %v1809 = vld [vmem:[%s39 + $0xc] sm:$0xf]
        %v1810 = vld [vmem:[%s39 + $0x10] sm:$0xf]
        %v1811 = vld [vmem:[%s39 + $0x14] sm:$0xf]
        %v1812 = vld [vmem:[%s39 + $0x18] sm:$0xf]
        %v1813 = vld [vmem:[%s39 + $0x1c] sm:$0xf]
        %v1814 = vld [vmem:[%s39 + $0x20] sm:$0xf]
        %v1815 = vld [vmem:[%s39 + $0x24] sm:$0xf]
        %v1816 = vld [vmem:[%s39 + $0x28] sm:$0xf]
        %v1817 = vld [vmem:[%s39 + $0x2c] sm:$0xf]
        %v1818 = vld [vmem:[%s39 + $0x30] sm:$0xf]
        %v1819 = vld [vmem:[%s39 + $0x34] sm:$0xf]
        %v1820 = vld [vmem:[%s39 + $0x38] sm:$0xf]
        %v1821 = vld [vmem:[%s39 + $0x3c] sm:$0xf]
        %v1822 = vld [vmem:[%s39 + $0x40] sm:$0xf]
        %v1823 = vld [vmem:[%s39 + $0x44] sm:$0xf]
        %v1824 = vld [vmem:[%s39 + $0x48] sm:$0xf]
        %v1825 = vld [vmem:[%s39 + $0x4c] sm:$0xf]
        %v1826 = vld [vmem:[%s39 + $0x50] sm:$0xf]
        %v1827 = vld [vmem:[%s39 + $0x54] sm:$0xf]
        %v1828 = vld [vmem:[%s39 + $0x58] sm:$0xf]
        %v1829 = vld [vmem:[%s39 + $0x5c] sm:$0xf]
        %v1830 = vld [vmem:[%s39 + $0x60] sm:$0xf]
        %v1831 = vld [vmem:[%s39 + $0x64] sm:$0xf]
        %v1832 = vld [vmem:[%s39 + $0x68] sm:$0xf]
        %v1833 = vld [vmem:[%s39 + $0x6c] sm:$0xf]
        %v1834 = vld [vmem:[%s39 + $0x70] sm:$0xf]
        %v1835 = vld [vmem:[%s39 + $0x74] sm:$0xf]
        %v1836 = vld [vmem:[%s39 + $0x78] sm:$0xf]
        %v1837 = vld [vmem:[%s39 + $0x7c] sm:$0xf]
        %v1842 = vunpack.c.l.b16 %v1742
        %v1843 = vunpack.c.l.b16 %v1743
        %v1844 = vunpack.c.l.b16 %v1744
        %v1845 = vunpack.c.l.b16 %v1745
        %v1846 = vpack.c.b16 %v1843, %v1842
        %v1847 = vpack.c.b16 %v1845, %v1844
        %v1851 = vsel %vm1068, %v1732, 0
        %v1854 = vsel %vm1068, %v1733, 0
        %v1857 = vsel %vm1068, %v1734, 0
        %v1860 = vsel %vm1068, %v1735, 0
        %1862 = vmatprep.subr.bf16.mxu0 0
        %1863 = vmatpush1.bf16.msra.mxu0 %v1846
        %1864 = vmatprep.subr.bf16.mxu0 0
        %1865 = vmatpush1.bf16.msra.mxu0 %v1847
        %1866 = vmatprep.subr.bf16.mxu0 0
        %1867 = vmatpush1.bf16.msra.mxu0 0
        %1868 = vmatprep.subr.bf16.mxu0 0
        %1869 = vmatpush1.bf16.msra.mxu0 0
        %1870 = vmatprep.subr.bf16.mxu0 0
        %1871 = vmatpush1.bf16.msra.mxu0 0
        %1872 = vmatprep.subr.bf16.mxu0 0
        %1873 = vmatpush1.bf16.msra.mxu0 0
        %1874 = vmatprep.subr.bf16.mxu0 0
        %1875 = vmatpush1.bf16.msra.mxu0 0
        %1876 = vmatprep.subr.bf16.mxu0 0
        %1877 = vmatpush1.bf16.msra.mxu0 0
        %1878 = vmatprep.subr.bf16.mxu0 0
        %1879 = vmatpush1.bf16.msra.mxu0 0
        %1880 = vmatprep.subr.bf16.mxu0 0
        %1881 = vmatpush1.bf16.msra.mxu0 0
        %1882 = vmatprep.subr.bf16.mxu0 0
        %1883 = vmatpush1.bf16.msra.mxu0 0
        %1884 = vmatprep.subr.bf16.mxu0 0
        %1885 = vmatpush1.bf16.msra.mxu0 0
        %1886 = vmatprep.subr.bf16.mxu0 0
        %1887 = vmatpush1.bf16.msra.mxu0 0
        %1888 = vmatprep.subr.bf16.mxu0 0
        %1889 = vmatpush1.bf16.msra.mxu0 0
        %1890 = vmatprep.subr.bf16.mxu0 0
        %1891 = vmatpush1.bf16.msra.mxu0 0
        %1892 = vmatprep.subr.bf16.mxu0 0
        %1893 = vmatpush1.bf16.msra.mxu0 0
        %1894 = vmatprep.mubr.bf16.mxu0 0
        %1895 = vmatmul.mubr.bf16.gmra.mrb[0].mxu0 %v1851
        %v1896 = vpop.f32.mrb[0].mxu0
        %v1897 = vadd.f32 0.0, %v1896
        %v1898 = vpop.f32.mrb[0].mxu0
        %v1899 = vpop.f32.mrb[0].mxu0
        %v1900 = vadd.f32 0.0, %v1899
        %v1901 = vpop.f32.mrb[0].mxu0
        %1902 = vmatprep.mubr.bf16.mxu0 0
        %1903 = vmatmul.mubr.bf16.gmra.mrb[0].mxu0 %v1854
        %v1904 = vpop.f32.mrb[0].mxu0
        %v1905 = vadd.f32 0.0, %v1904
        %v1906 = vpop.f32.mrb[0].mxu0
        %v1907 = vpop.f32.mrb[0].mxu0
        %v1908 = vadd.f32 0.0, %v1907
        %v1909 = vpop.f32.mrb[0].mxu0
        %1910 = vmatprep.mubr.bf16.mxu0 0
        %1911 = vmatmul.mubr.bf16.gmra.mrb[0].mxu0 %v1857
        %v1912 = vpop.f32.mrb[0].mxu0
        %v1913 = vadd.f32 0.0, %v1912
        %v1914 = vpop.f32.mrb[0].mxu0
        %v1915 = vpop.f32.mrb[0].mxu0
        %v1916 = vadd.f32 0.0, %v1915
        %v1917 = vpop.f32.mrb[0].mxu0
        %1918 = vmatprep.mubr.bf16.mxu0 0
        %1919 = vmatmul.mubr.bf16.gmra.mrb[0].mxu0 %v1860
        %v1920 = vpop.f32.mrb[0].mxu0
        %v1921 = vadd.f32 0.0, %v1920
        %v1922 = vpop.f32.mrb[0].mxu0
        %v1923 = vpop.f32.mrb[0].mxu0
        %v1924 = vadd.f32 0.0, %v1923
        %v1925 = vpop.f32.mrb[0].mxu0
        %1926 = vdwg.mxu0
        %v1927 = vpack.c.bf16 %v1900, %v1897
        %v1928 = vpack.c.bf16 %v1908, %v1905
        %v1929 = vpack.c.bf16 %v1916, %v1913
        %v1930 = vpack.c.bf16 %v1924, %v1921
        %vm1931 = vcmask 64512
        %1932 = vst.msk [vmem:[#allocation5] sm:$0xff] %vm1931, %v1927
        %1933 = vst.msk [vmem:[#allocation5 + $0x8] sm:$0xff] %vm1931, %v1928
        %1934 = vst.msk [vmem:[#allocation5 + $0x10] sm:$0xff] %vm1931, %v1929
        %1935 = vst.msk [vmem:[#allocation5 + $0x18] sm:$0xff] %vm1931, %v1930
        %v1940 = vunpack.c.l.b16 %v1758
        %v1941 = vunpack.c.l.b16 %v1759
        %v1942 = vunpack.c.l.b16 %v1760
        %v1943 = vunpack.c.l.b16 %v1761
        %v1944 = vpack.c.b16 %v1941, %v1940
        %v1945 = vpack.c.b16 %v1943, %v1942
        %1948 = vmatprep.subr.bf16.mxu0 0
        %1949 = vmatpush1.bf16.msra.mxu0 %v1944
        %1950 = vmatprep.subr.bf16.mxu0 0
        %1951 = vmatpush1.bf16.msra.mxu0 %v1945
        %1952 = vmatprep.subr.bf16.mxu0 0
        %1953 = vmatpush1.bf16.msra.mxu0 0
        %1954 = vmatprep.subr.bf16.mxu0 0
        %1955 = vmatpush1.bf16.msra.mxu0 0
        %1956 = vmatprep.subr.bf16.mxu0 0
        %1957 = vmatpush1.bf16.msra.mxu0 0
        %1958 = vmatprep.subr.bf16.mxu0 0
        %1959 = vmatpush1.bf16.msra.mxu0 0
        %1960 = vmatprep.subr.bf16.mxu0 0
        %1961 = vmatpush1.bf16.msra.mxu0 0
        %1962 = vmatprep.subr.bf16.mxu0 0
        %1963 = vmatpush1.bf16.msra.mxu0 0
        %1964 = vmatprep.subr.bf16.mxu0 0
        %1965 = vmatpush1.bf16.msra.mxu0 0
        %1966 = vmatprep.subr.bf16.mxu0 0
        %1967 = vmatpush1.bf16.msra.mxu0 0
        %1968 = vmatprep.subr.bf16.mxu0 0
        %1969 = vmatpush1.bf16.msra.mxu0 0
        %1970 = vmatprep.subr.bf16.mxu0 0
        %1971 = vmatpush1.bf16.msra.mxu0 0
        %1972 = vmatprep.subr.bf16.mxu0 0
        %1973 = vmatpush1.bf16.msra.mxu0 0
        %1974 = vmatprep.subr.bf16.mxu0 0
        %1975 = vmatpush1.bf16.msra.mxu0 0
        %1976 = vmatprep.subr.bf16.mxu0 0
        %1977 = vmatpush1.bf16.msra.mxu0 0
        %1978 = vmatprep.subr.bf16.mxu0 0
        %1979 = vmatpush1.bf16.msra.mxu0 0
        %1980 = vmatprep.mubr.bf16.mxu0 0
        %1981 = vmatmul.mubr.bf16.gmra.mrb[0].mxu0 %v1851
        %v1982 = vpop.f32.mrb[0].mxu0
        %v1983 = vadd.f32 0.0, %v1982
        %v1984 = vpop.f32.mrb[0].mxu0
        %v1985 = vpop.f32.mrb[0].mxu0
        %v1986 = vadd.f32 0.0, %v1985
        %v1987 = vpop.f32.mrb[0].mxu0
        %1988 = vmatprep.mubr.bf16.mxu0 0
        %1989 = vmatmul.mubr.bf16.gmra.mrb[0].mxu0 %v1854
        %v1990 = vpop.f32.mrb[0].mxu0
        %v1991 = vadd.f32 0.0, %v1990
        %v1992 = vpop.f32.mrb[0].mxu0
        %v1993 = vpop.f32.mrb[0].mxu0
        %v1994 = vadd.f32 0.0, %v1993
        %v1995 = vpop.f32.mrb[0].mxu0
        %1996 = vmatprep.mubr.bf16.mxu0 0
        %1997 = vmatmul.mubr.bf16.gmra.mrb[0].mxu0 %v1857
        %v1998 = vpop.f32.mrb[0].mxu0
        %v1999 = vadd.f32 0.0, %v1998
        %v2000 = vpop.f32.mrb[0].mxu0
        %v2001 = vpop.f32.mrb[0].mxu0
        %v2002 = vadd.f32 0.0, %v2001
        %v2003 = vpop.f32.mrb[0].mxu0
        %2004 = vmatprep.mubr.bf16.mxu0 0
        %2005 = vmatmul.mubr.bf16.gmra.mrb[0].mxu0 %v1860
        %v2006 = vpop.f32.mrb[0].mxu0
        %v2007 = vadd.f32 0.0, %v2006
        %v2008 = vpop.f32.mrb[0].mxu0
        %v2009 = vpop.f32.mrb[0].mxu0
        %v2010 = vadd.f32 0.0, %v2009
        %v2011 = vpop.f32.mrb[0].mxu0
        %2012 = vdwg.mxu0
        %v2013 = vpack.c.bf16 %v1986, %v1983
        %v2014 = vpack.c.bf16 %v1994, %v1991
        %v2015 = vpack.c.bf16 %v2002, %v1999
        %v2016 = vpack.c.bf16 %v2010, %v2007
        %2017 = vst.msk [vmem:[#allocation6] sm:$0xff] %vm1931, %v2013
        %2018 = vst.msk [vmem:[#allocation6 + $0x8] sm:$0xff] %vm1931, %v2014
        %2019 = vst.msk [vmem:[#allocation6 + $0x10] sm:$0xff] %vm1931, %v2015
        %2020 = vst.msk [vmem:[#allocation6 + $0x18] sm:$0xff] %vm1931, %v2016
        %v2029 = vunpack.c.l.b16 %v1774
        %v2030 = vunpack.c.l.b16 %v1775
        %v2031 = vunpack.c.l.b16 %v1776
        %v2032 = vunpack.c.l.b16 %v1777
        %v2033 = vunpack.c.l.b16 %v1778
        %v2034 = vunpack.c.l.b16 %v1779
        %v2035 = vunpack.c.l.b16 %v1780
        %v2036 = vunpack.c.l.b16 %v1781
        %v2037 = vpack.c.b16 %v2030, %v2029
        %v2038 = vpack.c.b16 %v2032, %v2031
        %v2039 = vpack.c.b16 %v2034, %v2033
        %v2040 = vpack.c.b16 %v2036, %v2035
        %vm2045 = vcmask 523264
        %v2047 = vsel %vm2045, %v1741, 0
        %2049 = vmatprep.subr.bf16.mxu0 0
        %2050 = vmatpush1.bf16.msra.mxu0 %v2037
        %2051 = vmatprep.subr.bf16.mxu0 0
        %2052 = vmatpush1.bf16.msra.mxu0 %v2038
        %2053 = vmatprep.subr.bf16.mxu0 0
        %2054 = vmatpush1.bf16.msra.mxu0 %v2039
        %2055 = vmatprep.subr.bf16.mxu0 0
        %2056 = vmatpush1.bf16.msra.mxu0 %v2040
        %2057 = vmatprep.subr.bf16.mxu0 0
        %2058 = vmatpush1.bf16.msra.mxu0 0
        %2059 = vmatprep.subr.bf16.mxu0 0
        %2060 = vmatpush1.bf16.msra.mxu0 0
        %2061 = vmatprep.subr.bf16.mxu0 0
        %2062 = vmatpush1.bf16.msra.mxu0 0
        %2063 = vmatprep.subr.bf16.mxu0 0
        %2064 = vmatpush1.bf16.msra.mxu0 0
        %2065 = vmatprep.subr.bf16.mxu0 0
        %2066 = vmatpush1.bf16.msra.mxu0 0
        %2067 = vmatprep.subr.bf16.mxu0 0
        %2068 = vmatpush1.bf16.msra.mxu0 0
        %2069 = vmatprep.subr.bf16.mxu0 0
        %2070 = vmatpush1.bf16.msra.mxu0 0
        %2071 = vmatprep.subr.bf16.mxu0 0
        %2072 = vmatpush1.bf16.msra.mxu0 0
        %2073 = vmatprep.subr.bf16.mxu0 0
        %2074 = vmatpush1.bf16.msra.mxu0 0
        %2075 = vmatprep.subr.bf16.mxu0 0
        %2076 = vmatpush1.bf16.msra.mxu0 0
        %2077 = vmatprep.subr.bf16.mxu0 0
        %2078 = vmatpush1.bf16.msra.mxu0 0
        %2079 = vmatprep.subr.bf16.mxu0 0
        %2080 = vmatpush1.bf16.msra.mxu0 0
        %2081 = vmatprep.mubr.bf16.mxu0 0
        %2082 = vmatmul.mubr.bf16.gmra.mrb[0].mxu0 %v2047
        %v2083 = vpop.f32.mrb[0].mxu0
        %v2084 = vadd.f32 0.0, %v2083
        %v2085 = vpop.f32.mrb[0].mxu0
        %v2086 = vpop.f32.mrb[0].mxu0
        %v2087 = vpop.f32.mrb[0].mxu0
        %2088 = vdwg.mxu0
        %v2089 = vpack.c.bf16 %v2084, %v2084
        %vm2090 = vcmask 60416
        %2091 = vst.msk [vmem:[#allocation7] sm:$0xf] %vm2090, %v2089
        %v2100 = vunpack.c.l.b16 %v1806
        %v2101 = vunpack.c.l.b16 %v1807
        %v2102 = vunpack.c.l.b16 %v1808
        %v2103 = vunpack.c.l.b16 %v1809
        %v2104 = vunpack.c.l.b16 %v1810
        %v2105 = vunpack.c.l.b16 %v1811
        %v2106 = vunpack.c.l.b16 %v1812
        %v2107 = vunpack.c.l.b16 %v1813
        %v2108 = vpack.c.b16 %v2101, %v2100
        %v2109 = vpack.c.b16 %v2103, %v2102
        %v2110 = vpack.c.b16 %v2105, %v2104
        %v2111 = vpack.c.b16 %v2107, %v2106
        %2116 = vmatprep.subr.bf16.mxu0 0
        %2117 = vmatpush1.bf16.msra.mxu0 %v2108
        %2118 = vmatprep.subr.bf16.mxu0 0
        %2119 = vmatpush1.bf16.msra.mxu0 %v2109
        %2120 = vmatprep.subr.bf16.mxu0 0
        %2121 = vmatpush1.bf16.msra.mxu0 %v2110
        %2122 = vmatprep.subr.bf16.mxu0 0
        %2123 = vmatpush1.bf16.msra.mxu0 %v2111
        %2124 = vmatprep.subr.bf16.mxu0 0
        %2125 = vmatpush1.bf16.msra.mxu0 0
        %2126 = vmatprep.subr.bf16.mxu0 0
        %2127 = vmatpush1.bf16.msra.mxu0 0
        %2128 = vmatprep.subr.bf16.mxu0 0
        %2129 = vmatpush1.bf16.msra.mxu0 0
        %2130 = vmatprep.subr.bf16.mxu0 0
        %2131 = vmatpush1.bf16.msra.mxu0 0
        %2132 = vmatprep.subr.bf16.mxu0 0
        %2133 = vmatpush1.bf16.msra.mxu0 0
        %2134 = vmatprep.subr.bf16.mxu0 0
        %2135 = vmatpush1.bf16.msra.mxu0 0
        %2136 = vmatprep.subr.bf16.mxu0 0
        %2137 = vmatpush1.bf16.msra.mxu0 0
        %2138 = vmatprep.subr.bf16.mxu0 0
        %2139 = vmatpush1.bf16.msra.mxu0 0
        %2140 = vmatprep.subr.bf16.mxu0 0
        %2141 = vmatpush1.bf16.msra.mxu0 0
        %2142 = vmatprep.subr.bf16.mxu0 0
        %2143 = vmatpush1.bf16.msra.mxu0 0
        %2144 = vmatprep.subr.bf16.mxu0 0
        %2145 = vmatpush1.bf16.msra.mxu0 0
        %2146 = vmatprep.subr.bf16.mxu0 0
        %2147 = vmatpush1.bf16.msra.mxu0 0
        %2148 = vmatprep.mubr.bf16.mxu0 0
        %2149 = vmatmul.mubr.bf16.gmra.mrb[0].mxu0 %v2047
        %v2150 = vpop.f32.mrb[0].mxu0
        %v2151 = vadd.f32 0.0, %v2150
        %v2152 = vpop.f32.mrb[0].mxu0
        %v2153 = vpop.f32.mrb[0].mxu0
        %v2154 = vpop.f32.mrb[0].mxu0
        %2155 = vdwg.mxu0
        %v2156 = vpack.c.bf16 %v2151, %v2151
        %2157 = vst.msk [vmem:[#allocation8] sm:$0xf] %vm2090, %v2156
        %v2162 = vunpack.c.l.b16 %v1746
        %v2163 = vunpack.c.l.b16 %v1747
        %v2164 = vunpack.c.l.b16 %v1748
        %v2165 = vunpack.c.l.b16 %v1749
        %v2166 = vpack.c.b16 %v2163, %v2162
        %v2167 = vpack.c.b16 %v2165, %v2164
        %2170 = vmatprep.subr.bf16.mxu0 0
        %2171 = vmatpush1.bf16.msra.mxu0 %v2166
        %2172 = vmatprep.subr.bf16.mxu0 0
        %2173 = vmatpush1.bf16.msra.mxu0 %v2167
        %2174 = vmatprep.subr.bf16.mxu0 0
        %2175 = vmatpush1.bf16.msra.mxu0 0
        %2176 = vmatprep.subr.bf16.mxu0 0
        %2177 = vmatpush1.bf16.msra.mxu0 0
        %2178 = vmatprep.subr.bf16.mxu0 0
        %2179 = vmatpush1.bf16.msra.mxu0 0
        %2180 = vmatprep.subr.bf16.mxu0 0
        %2181 = vmatpush1.bf16.msra.mxu0 0
        %2182 = vmatprep.subr.bf16.mxu0 0
        %2183 = vmatpush1.bf16.msra.mxu0 0
        %2184 = vmatprep.subr.bf16.mxu0 0
        %2185 = vmatpush1.bf16.msra.mxu0 0
        %2186 = vmatprep.subr.bf16.mxu0 0
        %2187 = vmatpush1.bf16.msra.mxu0 0
        %2188 = vmatprep.subr.bf16.mxu0 0
        %2189 = vmatpush1.bf16.msra.mxu0 0
        %2190 = vmatprep.subr.bf16.mxu0 0
        %2191 = vmatpush1.bf16.msra.mxu0 0
        %2192 = vmatprep.subr.bf16.mxu0 0
        %2193 = vmatpush1.bf16.msra.mxu0 0
        %2194 = vmatprep.subr.bf16.mxu0 0
        %2195 = vmatpush1.bf16.msra.mxu0 0
        %2196 = vmatprep.subr.bf16.mxu0 0
        %2197 = vmatpush1.bf16.msra.mxu0 0
        %2198 = vmatprep.subr.bf16.mxu0 0
        %2199 = vmatpush1.bf16.msra.mxu0 0
        %2200 = vmatprep.subr.bf16.mxu0 0
        %2201 = vmatpush1.bf16.msra.mxu0 0
        %2202 = vmatprep.mubr.bf16.mxu0 0
        %2203 = vmatmul.mubr.bf16.gmra.mrb[0].mxu0 %v1851
        %v2204 = vpop.f32.mrb[0].mxu0
        %v2205 = vadd.f32 0.0, %v2204
        %v2206 = vpop.f32.mrb[0].mxu0
        %v2207 = vpop.f32.mrb[0].mxu0
        %v2208 = vadd.f32 0.0, %v2207
        %v2209 = vpop.f32.mrb[0].mxu0
        %2210 = vmatprep.mubr.bf16.mxu0 0
        %2211 = vmatmul.mubr.bf16.gmra.mrb[0].mxu0 %v1854
        %v2212 = vpop.f32.mrb[0].mxu0
        %v2213 = vadd.f32 0.0, %v2212
        %v2214 = vpop.f32.mrb[0].mxu0
        %v2215 = vpop.f32.mrb[0].mxu0
        %v2216 = vadd.f32 0.0, %v2215
        %v2217 = vpop.f32.mrb[0].mxu0
        %2218 = vmatprep.mubr.bf16.mxu0 0
        %2219 = vmatmul.mubr.bf16.gmra.mrb[0].mxu0 %v1857
        %v2220 = vpop.f32.mrb[0].mxu0
        %v2221 = vadd.f32 0.0, %v2220
        %v2222 = vpop.f32.mrb[0].mxu0
        %v2223 = vpop.f32.mrb[0].mxu0
        %v2224 = vadd.f32 0.0, %v2223
        %v2225 = vpop.f32.mrb[0].mxu0
        %2226 = vmatprep.mubr.bf16.mxu0 0
        %2227 = vmatmul.mubr.bf16.gmra.mrb[0].mxu0 %v1860
        %v2228 = vpop.f32.mrb[0].mxu0
        %v2229 = vadd.f32 0.0, %v2228
        %v2230 = vpop.f32.mrb[0].mxu0
        %v2231 = vpop.f32.mrb[0].mxu0
        %v2232 = vadd.f32 0.0, %v2231
        %v2233 = vpop.f32.mrb[0].mxu0
        %2234 = vdwg.mxu0
        %v2235 = vpack.c.bf16 %v2208, %v2205
        %v2236 = vpack.c.bf16 %v2216, %v2213
        %v2237 = vpack.c.bf16 %v2224, %v2221
        %v2238 = vpack.c.bf16 %v2232, %v2229
        %s2239 = scalar_lea.vmem [#allocation5], 32
        %2240 = vst.msk [vmem:[%s2239] sm:$0xff] %vm1931, %v2235
        %2241 = vst.msk [vmem:[%s2239 + $0x8] sm:$0xff] %vm1931, %v2236
        %2242 = vst.msk [vmem:[%s2239 + $0x10] sm:$0xff] %vm1931, %v2237
        %2243 = vst.msk [vmem:[%s2239 + $0x18] sm:$0xff] %vm1931, %v2238
        %v2248 = vunpack.c.l.b16 %v1762
        %v2249 = vunpack.c.l.b16 %v1763
        %v2250 = vunpack.c.l.b16 %v1764
        %v2251 = vunpack.c.l.b16 %v1765
        %v2252 = vpack.c.b16 %v2249, %v2248
        %v2253 = vpack.c.b16 %v2251, %v2250
        %2256 = vmatprep.subr.bf16.mxu0 0
        %2257 = vmatpush1.bf16.msra.mxu0 %v2252
        %2258 = vmatprep.subr.bf16.mxu0 0
        %2259 = vmatpush1.bf16.msra.mxu0 %v2253
        %2260 = vmatprep.subr.bf16.mxu0 0
        %2261 = vmatpush1.bf16.msra.mxu0 0
        %2262 = vmatprep.subr.bf16.mxu0 0
        %2263 = vmatpush1.bf16.msra.mxu0 0
        %2264 = vmatprep.subr.bf16.mxu0 0
        %2265 = vmatpush1.bf16.msra.mxu0 0
        %2266 = vmatprep.subr.bf16.mxu0 0
        %2267 = vmatpush1.bf16.msra.mxu0 0
        %2268 = vmatprep.subr.bf16.mxu0 0
        %2269 = vmatpush1.bf16.msra.mxu0 0
        %2270 = vmatprep.subr.bf16.mxu0 0
        %2271 = vmatpush1.bf16.msra.mxu0 0
        %2272 = vmatprep.subr.bf16.mxu0 0
        %2273 = vmatpush1.bf16.msra.mxu0 0
        %2274 = vmatprep.subr.bf16.mxu0 0
        %2275 = vmatpush1.bf16.msra.mxu0 0
        %2276 = vmatprep.subr.bf16.mxu0 0
        %2277 = vmatpush1.bf16.msra.mxu0 0
        %2278 = vmatprep.subr.bf16.mxu0 0
        %2279 = vmatpush1.bf16.msra.mxu0 0
        %2280 = vmatprep.subr.bf16.mxu0 0
        %2281 = vmatpush1.bf16.msra.mxu0 0
        %2282 = vmatprep.subr.bf16.mxu0 0
        %2283 = vmatpush1.bf16.msra.mxu0 0
        %2284 = vmatprep.subr.bf16.mxu0 0
        %2285 = vmatpush1.bf16.msra.mxu0 0
        %2286 = vmatprep.subr.bf16.mxu0 0
        %2287 = vmatpush1.bf16.msra.mxu0 0
        %2288 = vmatprep.mubr.bf16.mxu0 0
        %2289 = vmatmul.mubr.bf16.gmra.mrb[0].mxu0 %v1851
        %v2290 = vpop.f32.mrb[0].mxu0
        %v2291 = vadd.f32 0.0, %v2290
        %v2292 = vpop.f32.mrb[0].mxu0
        %v2293 = vpop.f32.mrb[0].mxu0
        %v2294 = vadd.f32 0.0, %v2293
        %v2295 = vpop.f32.mrb[0].mxu0
        %2296 = vmatprep.mubr.bf16.mxu0 0
        %2297 = vmatmul.mubr.bf16.gmra.mrb[0].mxu0 %v1854
        %v2298 = vpop.f32.mrb[0].mxu0
        %v2299 = vadd.f32 0.0, %v2298
        %v2300 = vpop.f32.mrb[0].mxu0
        %v2301 = vpop.f32.mrb[0].mxu0
        %v2302 = vadd.f32 0.0, %v2301
        %v2303 = vpop.f32.mrb[0].mxu0
        %2304 = vmatprep.mubr.bf16.mxu0 0
        %2305 = vmatmul.mubr.bf16.gmra.mrb[0].mxu0 %v1857
        %v2306 = vpop.f32.mrb[0].mxu0
        %v2307 = vadd.f32 0.0, %v2306
        %v2308 = vpop.f32.mrb[0].mxu0
        %v2309 = vpop.f32.mrb[0].mxu0
        %v2310 = vadd.f32 0.0, %v2309
        %v2311 = vpop.f32.mrb[0].mxu0
        %2312 = vmatprep.mubr.bf16.mxu0 0
        %2313 = vmatmul.mubr.bf16.gmra.mrb[0].mxu0 %v1860
        %v2314 = vpop.f32.mrb[0].mxu0
        %v2315 = vadd.f32 0.0, %v2314
        %v2316 = vpop.f32.mrb[0].mxu0
        %v2317 = vpop.f32.mrb[0].mxu0
        %v2318 = vadd.f32 0.0, %v2317
        %v2319 = vpop.f32.mrb[0].mxu0
        %2320 = vdwg.mxu0
        %v2321 = vpack.c.bf16 %v2294, %v2291
        %v2322 = vpack.c.bf16 %v2302, %v2299
        %v2323 = vpack.c.bf16 %v2310, %v2307
        %v2324 = vpack.c.bf16 %v2318, %v2315
        %s2325 = scalar_lea.vmem [#allocation6], 32
        %2326 = vst.msk [vmem:[%s2325] sm:$0xff] %vm1931, %v2321
        %2327 = vst.msk [vmem:[%s2325 + $0x8] sm:$0xff] %vm1931, %v2322
        %2328 = vst.msk [vmem:[%s2325 + $0x10] sm:$0xff] %vm1931, %v2323
        %2329 = vst.msk [vmem:[%s2325 + $0x18] sm:$0xff] %vm1931, %v2324
        %v2338 = vunpack.c.l.b16 %v1782
        %v2339 = vunpack.c.l.b16 %v1783
        %v2340 = vunpack.c.l.b16 %v1784
        %v2341 = vunpack.c.l.b16 %v1785
        %v2342 = vunpack.c.l.b16 %v1786
        %v2343 = vunpack.c.l.b16 %v1787
        %v2344 = vunpack.c.l.b16 %v1788
        %v2345 = vunpack.c.l.b16 %v1789
        %v2346 = vpack.c.b16 %v2339, %v2338
        %v2347 = vpack.c.b16 %v2341, %v2340
        %v2348 = vpack.c.b16 %v2343, %v2342
        %v2349 = vpack.c.b16 %v2345, %v2344
        %2354 = vmatprep.subr.bf16.mxu0 0
        %2355 = vmatpush1.bf16.msra.mxu0 %v2346
        %2356 = vmatprep.subr.bf16.mxu0 0
        %2357 = vmatpush1.bf16.msra.mxu0 %v2347
        %2358 = vmatprep.subr.bf16.mxu0 0
        %2359 = vmatpush1.bf16.msra.mxu0 %v2348
        %2360 = vmatprep.subr.bf16.mxu0 0
        %2361 = vmatpush1.bf16.msra.mxu0 %v2349
        %2362 = vmatprep.subr.bf16.mxu0 0
        %2363 = vmatpush1.bf16.msra.mxu0 0
        %2364 = vmatprep.subr.bf16.mxu0 0
        %2365 = vmatpush1.bf16.msra.mxu0 0
        %2366 = vmatprep.subr.bf16.mxu0 0
        %2367 = vmatpush1.bf16.msra.mxu0 0
        %2368 = vmatprep.subr.bf16.mxu0 0
        %2369 = vmatpush1.bf16.msra.mxu0 0
        %2370 = vmatprep.subr.bf16.mxu0 0
        %2371 = vmatpush1.bf16.msra.mxu0 0
        %2372 = vmatprep.subr.bf16.mxu0 0
        %2373 = vmatpush1.bf16.msra.mxu0 0
        %2374 = vmatprep.subr.bf16.mxu0 0
        %2375 = vmatpush1.bf16.msra.mxu0 0
        %2376 = vmatprep.subr.bf16.mxu0 0
        %2377 = vmatpush1.bf16.msra.mxu0 0
        %2378 = vmatprep.subr.bf16.mxu0 0
        %2379 = vmatpush1.bf16.msra.mxu0 0
        %2380 = vmatprep.subr.bf16.mxu0 0
        %2381 = vmatpush1.bf16.msra.mxu0 0
        %2382 = vmatprep.subr.bf16.mxu0 0
        %2383 = vmatpush1.bf16.msra.mxu0 0
        %2384 = vmatprep.subr.bf16.mxu0 0
        %2385 = vmatpush1.bf16.msra.mxu0 0
        %2386 = vmatprep.mubr.bf16.mxu0 0
        %2387 = vmatmul.mubr.bf16.gmra.mrb[0].mxu0 %v2047
        %v2388 = vpop.f32.mrb[0].mxu0
        %v2389 = vadd.f32 0.0, %v2388
        %v2390 = vpop.f32.mrb[0].mxu0
        %v2391 = vpop.f32.mrb[0].mxu0
        %v2392 = vpop.f32.mrb[0].mxu0
        %2393 = vdwg.mxu0
        %v2394 = vpack.c.bf16 %v2389, %v2389
        %s2395 = scalar_lea.vmem [#allocation7], 4
        %2396 = vst.msk [vmem:[%s2395] sm:$0xf] %vm2090, %v2394
        %v2405 = vunpack.c.l.b16 %v1814
        %v2406 = vunpack.c.l.b16 %v1815
        %v2407 = vunpack.c.l.b16 %v1816
        %v2408 = vunpack.c.l.b16 %v1817
        %v2409 = vunpack.c.l.b16 %v1818
        %v2410 = vunpack.c.l.b16 %v1819
        %v2411 = vunpack.c.l.b16 %v1820
        %v2412 = vunpack.c.l.b16 %v1821
        %v2413 = vpack.c.b16 %v2406, %v2405
        %v2414 = vpack.c.b16 %v2408, %v2407
        %v2415 = vpack.c.b16 %v2410, %v2409
        %v2416 = vpack.c.b16 %v2412, %v2411
        %2421 = vmatprep.subr.bf16.mxu0 0
        %2422 = vmatpush1.bf16.msra.mxu0 %v2413
        %2423 = vmatprep.subr.bf16.mxu0 0
        %2424 = vmatpush1.bf16.msra.mxu0 %v2414
        %2425 = vmatprep.subr.bf16.mxu0 0
        %2426 = vmatpush1.bf16.msra.mxu0 %v2415
        %2427 = vmatprep.subr.bf16.mxu0 0
        %2428 = vmatpush1.bf16.msra.mxu0 %v2416
        %2429 = vmatprep.subr.bf16.mxu0 0
        %2430 = vmatpush1.bf16.msra.mxu0 0
        %2431 = vmatprep.subr.bf16.mxu0 0
        %2432 = vmatpush1.bf16.msra.mxu0 0
        %2433 = vmatprep.subr.bf16.mxu0 0
        %2434 = vmatpush1.bf16.msra.mxu0 0
        %2435 = vmatprep.subr.bf16.mxu0 0
        %2436 = vmatpush1.bf16.msra.mxu0 0
        %2437 = vmatprep.subr.bf16.mxu0 0
        %2438 = vmatpush1.bf16.msra.mxu0 0
        %2439 = vmatprep.subr.bf16.mxu0 0
        %2440 = vmatpush1.bf16.msra.mxu0 0
        %2441 = vmatprep.subr.bf16.mxu0 0
        %2442 = vmatpush1.bf16.msra.mxu0 0
        %2443 = vmatprep.subr.bf16.mxu0 0
        %2444 = vmatpush1.bf16.msra.mxu0 0
        %2445 = vmatprep.subr.bf16.mxu0 0
        %2446 = vmatpush1.bf16.msra.mxu0 0
        %2447 = vmatprep.subr.bf16.mxu0 0
        %2448 = vmatpush1.bf16.msra.mxu0 0
        %2449 = vmatprep.subr.bf16.mxu0 0
        %2450 = vmatpush1.bf16.msra.mxu0 0
        %2451 = vmatprep.subr.bf16.mxu0 0
        %2452 = vmatpush1.bf16.msra.mxu0 0
        %2453 = vmatprep.mubr.bf16.mxu0 0
        %2454 = vmatmul.mubr.bf16.gmra.mrb[0].mxu0 %v2047
        %v2455 = vpop.f32.mrb[0].mxu0
        %v2456 = vadd.f32 0.0, %v2455
        %v2457 = vpop.f32.mrb[0].mxu0
        %v2458 = vpop.f32.mrb[0].mxu0
        %v2459 = vpop.f32.mrb[0].mxu0
        %2460 = vdwg.mxu0
        %v2461 = vpack.c.bf16 %v2456, %v2456
        %s2462 = scalar_lea.vmem [#allocation8], 4
        %2463 = vst.msk [vmem:[%s2462] sm:$0xf] %vm2090, %v2461
        %v2468 = vunpack.c.l.b16 %v1750
        %v2469 = vunpack.c.l.b16 %v1751
        %v2470 = vunpack.c.l.b16 %v1752
        %v2471 = vunpack.c.l.b16 %v1753
        %v2472 = vpack.c.b16 %v2469, %v2468
        %v2473 = vpack.c.b16 %v2471, %v2470
        %2476 = vmatprep.subr.bf16.mxu0 0
        %2477 = vmatpush1.bf16.msra.mxu0 %v2472
        %2478 = vmatprep.subr.bf16.mxu0 0
        %2479 = vmatpush1.bf16.msra.mxu0 %v2473
        %2480 = vmatprep.subr.bf16.mxu0 0
        %2481 = vmatpush1.bf16.msra.mxu0 0
        %2482 = vmatprep.subr.bf16.mxu0 0
        %2483 = vmatpush1.bf16.msra.mxu0 0
        %2484 = vmatprep.subr.bf16.mxu0 0
        %2485 = vmatpush1.bf16.msra.mxu0 0
        %2486 = vmatprep.subr.bf16.mxu0 0
        %2487 = vmatpush1.bf16.msra.mxu0 0
        %2488 = vmatprep.subr.bf16.mxu0 0
        %2489 = vmatpush1.bf16.msra.mxu0 0
        %2490 = vmatprep.subr.bf16.mxu0 0
        %2491 = vmatpush1.bf16.msra.mxu0 0
        %2492 = vmatprep.subr.bf16.mxu0 0
        %2493 = vmatpush1.bf16.msra.mxu0 0
        %2494 = vmatprep.subr.bf16.mxu0 0
        %2495 = vmatpush1.bf16.msra.mxu0 0
        %2496 = vmatprep.subr.bf16.mxu0 0
        %2497 = vmatpush1.bf16.msra.mxu0 0
        %2498 = vmatprep.subr.bf16.mxu0 0
        %2499 = vmatpush1.bf16.msra.mxu0 0
        %2500 = vmatprep.subr.bf16.mxu0 0
        %2501 = vmatpush1.bf16.msra.mxu0 0
        %2502 = vmatprep.subr.bf16.mxu0 0
        %2503 = vmatpush1.bf16.msra.mxu0 0
        %2504 = vmatprep.subr.bf16.mxu0 0
        %2505 = vmatpush1.bf16.msra.mxu0 0
        %2506 = vmatprep.subr.bf16.mxu0 0
        %2507 = vmatpush1.bf16.msra.mxu0 0
        %2508 = vmatprep.mubr.bf16.mxu0 0
        %2509 = vmatmul.mubr.bf16.gmra.mrb[0].mxu0 %v1851
        %v2510 = vpop.f32.mrb[0].mxu0
        %v2511 = vadd.f32 0.0, %v2510
        %v2512 = vpop.f32.mrb[0].mxu0
        %v2513 = vpop.f32.mrb[0].mxu0
        %v2514 = vadd.f32 0.0, %v2513
        %v2515 = vpop.f32.mrb[0].mxu0
        %2516 = vmatprep.mubr.bf16.mxu0 0
        %2517 = vmatmul.mubr.bf16.gmra.mrb[0].mxu0 %v1854
        %v2518 = vpop.f32.mrb[0].mxu0
        %v2519 = vadd.f32 0.0, %v2518
        %v2520 = vpop.f32.mrb[0].mxu0
        %v2521 = vpop.f32.mrb[0].mxu0
        %v2522 = vadd.f32 0.0, %v2521
        %v2523 = vpop.f32.mrb[0].mxu0
        %2524 = vmatprep.mubr.bf16.mxu0 0
        %2525 = vmatmul.mubr.bf16.gmra.mrb[0].mxu0 %v1857
        %v2526 = vpop.f32.mrb[0].mxu0
        %v2527 = vadd.f32 0.0, %v2526
        %v2528 = vpop.f32.mrb[0].mxu0
        %v2529 = vpop.f32.mrb[0].mxu0
        %v2530 = vadd.f32 0.0, %v2529
        %v2531 = vpop.f32.mrb[0].mxu0
        %2532 = vmatprep.mubr.bf16.mxu0 0
        %2533 = vmatmul.mubr.bf16.gmra.mrb[0].mxu0 %v1860
        %v2534 = vpop.f32.mrb[0].mxu0
        %v2535 = vadd.f32 0.0, %v2534
        %v2536 = vpop.f32.mrb[0].mxu0
        %v2537 = vpop.f32.mrb[0].mxu0
        %v2538 = vadd.f32 0.0, %v2537
        %v2539 = vpop.f32.mrb[0].mxu0
        %2540 = vdwg.mxu0
        %v2541 = vpack.c.bf16 %v2514, %v2511
        %v2542 = vpack.c.bf16 %v2522, %v2519
        %v2543 = vpack.c.bf16 %v2530, %v2527
        %v2544 = vpack.c.bf16 %v2538, %v2535
        %s2545 = scalar_lea.vmem [#allocation5], 64
        %2546 = vst.msk [vmem:[%s2545] sm:$0xff] %vm1931, %v2541
        %2547 = vst.msk [vmem:[%s2545 + $0x8] sm:$0xff] %vm1931, %v2542
        %2548 = vst.msk [vmem:[%s2545 + $0x10] sm:$0xff] %vm1931, %v2543
        %2549 = vst.msk [vmem:[%s2545 + $0x18] sm:$0xff] %vm1931, %v2544
        %v2554 = vunpack.c.l.b16 %v1766
        %v2555 = vunpack.c.l.b16 %v1767
        %v2556 = vunpack.c.l.b16 %v1768
        %v2557 = vunpack.c.l.b16 %v1769
        %v2558 = vpack.c.b16 %v2555, %v2554
        %v2559 = vpack.c.b16 %v2557, %v2556
        %2562 = vmatprep.subr.bf16.mxu0 0
        %2563 = vmatpush1.bf16.msra.mxu0 %v2558
        %2564 = vmatprep.subr.bf16.mxu0 0
        %2565 = vmatpush1.bf16.msra.mxu0 %v2559
        %2566 = vmatprep.subr.bf16.mxu0 0
        %2567 = vmatpush1.bf16.msra.mxu0 0
        %2568 = vmatprep.subr.bf16.mxu0 0
        %2569 = vmatpush1.bf16.msra.mxu0 0
        %2570 = vmatprep.subr.bf16.mxu0 0
        %2571 = vmatpush1.bf16.msra.mxu0 0
        %2572 = vmatprep.subr.bf16.mxu0 0
        %2573 = vmatpush1.bf16.msra.mxu0 0
        %2574 = vmatprep.subr.bf16.mxu0 0
        %2575 = vmatpush1.bf16.msra.mxu0 0
        %2576 = vmatprep.subr.bf16.mxu0 0
        %2577 = vmatpush1.bf16.msra.mxu0 0
        %2578 = vmatprep.subr.bf16.mxu0 0
        %2579 = vmatpush1.bf16.msra.mxu0 0
        %2580 = vmatprep.subr.bf16.mxu0 0
        %2581 = vmatpush1.bf16.msra.mxu0 0
        %2582 = vmatprep.subr.bf16.mxu0 0
        %2583 = vmatpush1.bf16.msra.mxu0 0
        %2584 = vmatprep.subr.bf16.mxu0 0
        %2585 = vmatpush1.bf16.msra.mxu0 0
        %2586 = vmatprep.subr.bf16.mxu0 0
        %2587 = vmatpush1.bf16.msra.mxu0 0
        %2588 = vmatprep.subr.bf16.mxu0 0
        %2589 = vmatpush1.bf16.msra.mxu0 0
        %2590 = vmatprep.subr.bf16.mxu0 0
        %2591 = vmatpush1.bf16.msra.mxu0 0
        %2592 = vmatprep.subr.bf16.mxu0 0
        %2593 = vmatpush1.bf16.msra.mxu0 0
        %2594 = vmatprep.mubr.bf16.mxu0 0
        %2595 = vmatmul.mubr.bf16.gmra.mrb[0].mxu0 %v1851
        %v2596 = vpop.f32.mrb[0].mxu0
        %v2597 = vadd.f32 0.0, %v2596
        %v2598 = vpop.f32.mrb[0].mxu0
        %v2599 = vpop.f32.mrb[0].mxu0
        %v2600 = vadd.f32 0.0, %v2599
        %v2601 = vpop.f32.mrb[0].mxu0
        %2602 = vmatprep.mubr.bf16.mxu0 0
        %2603 = vmatmul.mubr.bf16.gmra.mrb[0].mxu0 %v1854
        %v2604 = vpop.f32.mrb[0].mxu0
        %v2605 = vadd.f32 0.0, %v2604
        %v2606 = vpop.f32.mrb[0].mxu0
        %v2607 = vpop.f32.mrb[0].mxu0
        %v2608 = vadd.f32 0.0, %v2607
        %v2609 = vpop.f32.mrb[0].mxu0
        %2610 = vmatprep.mubr.bf16.mxu0 0
        %2611 = vmatmul.mubr.bf16.gmra.mrb[0].mxu0 %v1857
        %v2612 = vpop.f32.mrb[0].mxu0
        %v2613 = vadd.f32 0.0, %v2612
        %v2614 = vpop.f32.mrb[0].mxu0
        %v2615 = vpop.f32.mrb[0].mxu0
        %v2616 = vadd.f32 0.0, %v2615
        %v2617 = vpop.f32.mrb[0].mxu0
        %2618 = vmatprep.mubr.bf16.mxu0 0
        %2619 = vmatmul.mubr.bf16.gmra.mrb[0].mxu0 %v1860
        %v2620 = vpop.f32.mrb[0].mxu0
        %v2621 = vadd.f32 0.0, %v2620
        %v2622 = vpop.f32.mrb[0].mxu0
        %v2623 = vpop.f32.mrb[0].mxu0
        %v2624 = vadd.f32 0.0, %v2623
        %v2625 = vpop.f32.mrb[0].mxu0
        %2626 = vdwg.mxu0
        %v2627 = vpack.c.bf16 %v2600, %v2597
        %v2628 = vpack.c.bf16 %v2608, %v2605
        %v2629 = vpack.c.bf16 %v2616, %v2613
        %v2630 = vpack.c.bf16 %v2624, %v2621
        %s2631 = scalar_lea.vmem [#allocation6], 64
        %2632 = vst.msk [vmem:[%s2631] sm:$0xff] %vm1931, %v2627
        %2633 = vst.msk [vmem:[%s2631 + $0x8] sm:$0xff] %vm1931, %v2628
        %2634 = vst.msk [vmem:[%s2631 + $0x10] sm:$0xff] %vm1931, %v2629
        %2635 = vst.msk [vmem:[%s2631 + $0x18] sm:$0xff] %vm1931, %v2630
        %v2644 = vunpack.c.l.b16 %v1790
        %v2645 = vunpack.c.l.b16 %v1791
        %v2646 = vunpack.c.l.b16 %v1792
        %v2647 = vunpack.c.l.b16 %v1793
        %v2648 = vunpack.c.l.b16 %v1794
        %v2649 = vunpack.c.l.b16 %v1795
        %v2650 = vunpack.c.l.b16 %v1796
        %v2651 = vunpack.c.l.b16 %v1797
        %v2652 = vpack.c.b16 %v2645, %v2644
        %v2653 = vpack.c.b16 %v2647, %v2646
        %v2654 = vpack.c.b16 %v2649, %v2648
        %v2655 = vpack.c.b16 %v2651, %v2650
        %2660 = vmatprep.subr.bf16.mxu0 0
        %2661 = vmatpush1.bf16.msra.mxu0 %v2652
        %2662 = vmatprep.subr.bf16.mxu0 0
        %2663 = vmatpush1.bf16.msra.mxu0 %v2653
        %2664 = vmatprep.subr.bf16.mxu0 0
        %2665 = vmatpush1.bf16.msra.mxu0 %v2654
        %2666 = vmatprep.subr.bf16.mxu0 0
        %2667 = vmatpush1.bf16.msra.mxu0 %v2655
        %2668 = vmatprep.subr.bf16.mxu0 0
        %2669 = vmatpush1.bf16.msra.mxu0 0
        %2670 = vmatprep.subr.bf16.mxu0 0
        %2671 = vmatpush1.bf16.msra.mxu0 0
        %2672 = vmatprep.subr.bf16.mxu0 0
        %2673 = vmatpush1.bf16.msra.mxu0 0
        %2674 = vmatprep.subr.bf16.mxu0 0
        %2675 = vmatpush1.bf16.msra.mxu0 0
        %2676 = vmatprep.subr.bf16.mxu0 0
        %2677 = vmatpush1.bf16.msra.mxu0 0
        %2678 = vmatprep.subr.bf16.mxu0 0
        %2679 = vmatpush1.bf16.msra.mxu0 0
        %2680 = vmatprep.subr.bf16.mxu0 0
        %2681 = vmatpush1.bf16.msra.mxu0 0
        %2682 = vmatprep.subr.bf16.mxu0 0
        %2683 = vmatpush1.bf16.msra.mxu0 0
        %2684 = vmatprep.subr.bf16.mxu0 0
        %2685 = vmatpush1.bf16.msra.mxu0 0
        %2686 = vmatprep.subr.bf16.mxu0 0
        %2687 = vmatpush1.bf16.msra.mxu0 0
        %2688 = vmatprep.subr.bf16.mxu0 0
        %2689 = vmatpush1.bf16.msra.mxu0 0
        %2690 = vmatprep.subr.bf16.mxu0 0
        %2691 = vmatpush1.bf16.msra.mxu0 0
        %2692 = vmatprep.mubr.bf16.mxu0 0
        %2693 = vmatmul.mubr.bf16.gmra.mrb[0].mxu0 %v2047
        %v2694 = vpop.f32.mrb[0].mxu0
        %v2695 = vadd.f32 0.0, %v2694
        %v2696 = vpop.f32.mrb[0].mxu0
        %v2697 = vpop.f32.mrb[0].mxu0
        %v2698 = vpop.f32.mrb[0].mxu0
        %2699 = vdwg.mxu0
        %v2700 = vpack.c.bf16 %v2695, %v2695
        %s2701 = scalar_lea.vmem [#allocation7], 8
        %2702 = vst.msk [vmem:[%s2701] sm:$0xf] %vm2090, %v2700
        %v2711 = vunpack.c.l.b16 %v1822
        %v2712 = vunpack.c.l.b16 %v1823
        %v2713 = vunpack.c.l.b16 %v1824
        %v2714 = vunpack.c.l.b16 %v1825
        %v2715 = vunpack.c.l.b16 %v1826
        %v2716 = vunpack.c.l.b16 %v1827
        %v2717 = vunpack.c.l.b16 %v1828
        %v2718 = vunpack.c.l.b16 %v1829
        %v2719 = vpack.c.b16 %v2712, %v2711
        %v2720 = vpack.c.b16 %v2714, %v2713
        %v2721 = vpack.c.b16 %v2716, %v2715
        %v2722 = vpack.c.b16 %v2718, %v2717
        %2727 = vmatprep.subr.bf16.mxu0 0
        %2728 = vmatpush1.bf16.msra.mxu0 %v2719
        %2729 = vmatprep.subr.bf16.mxu0 0
        %2730 = vmatpush1.bf16.msra.mxu0 %v2720
        %2731 = vmatprep.subr.bf16.mxu0 0
        %2732 = vmatpush1.bf16.msra.mxu0 %v2721
        %2733 = vmatprep.subr.bf16.mxu0 0
        %2734 = vmatpush1.bf16.msra.mxu0 %v2722
        %2735 = vmatprep.subr.bf16.mxu0 0
        %2736 = vmatpush1.bf16.msra.mxu0 0
        %2737 = vmatprep.subr.bf16.mxu0 0
        %2738 = vmatpush1.bf16.msra.mxu0 0
        %2739 = vmatprep.subr.bf16.mxu0 0
        %2740 = vmatpush1.bf16.msra.mxu0 0
        %2741 = vmatprep.subr.bf16.mxu0 0
        %2742 = vmatpush1.bf16.msra.mxu0 0
        %2743 = vmatprep.subr.bf16.mxu0 0
        %2744 = vmatpush1.bf16.msra.mxu0 0
        %2745 = vmatprep.subr.bf16.mxu0 0
        %2746 = vmatpush1.bf16.msra.mxu0 0
        %2747 = vmatprep.subr.bf16.mxu0 0
        %2748 = vmatpush1.bf16.msra.mxu0 0
        %2749 = vmatprep.subr.bf16.mxu0 0
        %2750 = vmatpush1.bf16.msra.mxu0 0
        %2751 = vmatprep.subr.bf16.mxu0 0
        %2752 = vmatpush1.bf16.msra.mxu0 0
        %2753 = vmatprep.subr.bf16.mxu0 0
        %2754 = vmatpush1.bf16.msra.mxu0 0
        %2755 = vmatprep.subr.bf16.mxu0 0
        %2756 = vmatpush1.bf16.msra.mxu0 0
        %2757 = vmatprep.subr.bf16.mxu0 0
        %2758 = vmatpush1.bf16.msra.mxu0 0
        %2759 = vmatprep.mubr.bf16.mxu0 0
        %2760 = vmatmul.mubr.bf16.gmra.mrb[0].mxu0 %v2047
        %v2761 = vpop.f32.mrb[0].mxu0
        %v2762 = vadd.f32 0.0, %v2761
        %v2763 = vpop.f32.mrb[0].mxu0
        %v2764 = vpop.f32.mrb[0].mxu0
        %v2765 = vpop.f32.mrb[0].mxu0
        %2766 = vdwg.mxu0
        %v2767 = vpack.c.bf16 %v2762, %v2762
        %s2768 = scalar_lea.vmem [#allocation8], 8
        %2769 = vst.msk [vmem:[%s2768] sm:$0xf] %vm2090, %v2767
        %v2774 = vunpack.c.l.b16 %v1754
        %v2775 = vunpack.c.l.b16 %v1755
        %v2776 = vunpack.c.l.b16 %v1756
        %v2777 = vunpack.c.l.b16 %v1757
        %v2778 = vpack.c.b16 %v2775, %v2774
        %v2779 = vpack.c.b16 %v2777, %v2776
        %2782 = vmatprep.subr.bf16.mxu0 0
        %2783 = vmatpush1.bf16.msra.mxu0 %v2778
        %2784 = vmatprep.subr.bf16.mxu0 0
        %2785 = vmatpush1.bf16.msra.mxu0 %v2779
        %2786 = vmatprep.subr.bf16.mxu0 0
        %2787 = vmatpush1.bf16.msra.mxu0 0
        %2788 = vmatprep.subr.bf16.mxu0 0
        %2789 = vmatpush1.bf16.msra.mxu0 0
        %2790 = vmatprep.subr.bf16.mxu0 0
        %2791 = vmatpush1.bf16.msra.mxu0 0
        %2792 = vmatprep.subr.bf16.mxu0 0
        %2793 = vmatpush1.bf16.msra.mxu0 0
        %2794 = vmatprep.subr.bf16.mxu0 0
        %2795 = vmatpush1.bf16.msra.mxu0 0
        %2796 = vmatprep.subr.bf16.mxu0 0
        %2797 = vmatpush1.bf16.msra.mxu0 0
        %2798 = vmatprep.subr.bf16.mxu0 0
        %2799 = vmatpush1.bf16.msra.mxu0 0
        %2800 = vmatprep.subr.bf16.mxu0 0
        %2801 = vmatpush1.bf16.msra.mxu0 0
        %2802 = vmatprep.subr.bf16.mxu0 0
        %2803 = vmatpush1.bf16.msra.mxu0 0
        %2804 = vmatprep.subr.bf16.mxu0 0
        %2805 = vmatpush1.bf16.msra.mxu0 0
        %2806 = vmatprep.subr.bf16.mxu0 0
        %2807 = vmatpush1.bf16.msra.mxu0 0
        %2808 = vmatprep.subr.bf16.mxu0 0
        %2809 = vmatpush1.bf16.msra.mxu0 0
        %2810 = vmatprep.subr.bf16.mxu0 0
        %2811 = vmatpush1.bf16.msra.mxu0 0
        %2812 = vmatprep.subr.bf16.mxu0 0
        %2813 = vmatpush1.bf16.msra.mxu0 0
        %2814 = vmatprep.mubr.bf16.mxu0 0
        %2815 = vmatmul.mubr.bf16.gmra.mrb[0].mxu0 %v1851
        %v2816 = vpop.f32.mrb[0].mxu0
        %v2817 = vadd.f32 0.0, %v2816
        %v2818 = vpop.f32.mrb[0].mxu0
        %v2819 = vpop.f32.mrb[0].mxu0
        %v2820 = vadd.f32 0.0, %v2819
        %v2821 = vpop.f32.mrb[0].mxu0
        %2822 = vmatprep.mubr.bf16.mxu0 0
        %2823 = vmatmul.mubr.bf16.gmra.mrb[0].mxu0 %v1854
        %v2824 = vpop.f32.mrb[0].mxu0
        %v2825 = vadd.f32 0.0, %v2824
        %v2826 = vpop.f32.mrb[0].mxu0
        %v2827 = vpop.f32.mrb[0].mxu0
        %v2828 = vadd.f32 0.0, %v2827
        %v2829 = vpop.f32.mrb[0].mxu0
        %2830 = vmatprep.mubr.bf16.mxu0 0
        %2831 = vmatmul.mubr.bf16.gmra.mrb[0].mxu0 %v1857
        %v2832 = vpop.f32.mrb[0].mxu0
        %v2833 = vadd.f32 0.0, %v2832
        %v2834 = vpop.f32.mrb[0].mxu0
        %v2835 = vpop.f32.mrb[0].mxu0
        %v2836 = vadd.f32 0.0, %v2835
        %v2837 = vpop.f32.mrb[0].mxu0
        %2838 = vmatprep.mubr.bf16.mxu0 0
        %2839 = vmatmul.mubr.bf16.gmra.mrb[0].mxu0 %v1860
        %v2840 = vpop.f32.mrb[0].mxu0
        %v2841 = vadd.f32 0.0, %v2840
        %v2842 = vpop.f32.mrb[0].mxu0
        %v2843 = vpop.f32.mrb[0].mxu0
        %v2844 = vadd.f32 0.0, %v2843
        %v2845 = vpop.f32.mrb[0].mxu0
        %2846 = vdwg.mxu0
        %v2847 = vpack.c.bf16 %v2820, %v2817
        %v2848 = vpack.c.bf16 %v2828, %v2825
        %v2849 = vpack.c.bf16 %v2836, %v2833
        %v2850 = vpack.c.bf16 %v2844, %v2841
        %s2851 = scalar_lea.vmem [#allocation5], 96
        %2852 = vst.msk [vmem:[%s2851] sm:$0xff] %vm1931, %v2847
        %2853 = vst.msk [vmem:[%s2851 + $0x8] sm:$0xff] %vm1931, %v2848
        %2854 = vst.msk [vmem:[%s2851 + $0x10] sm:$0xff] %vm1931, %v2849
        %2855 = vst.msk [vmem:[%s2851 + $0x18] sm:$0xff] %vm1931, %v2850
        %v2860 = vunpack.c.l.b16 %v1770
        %v2861 = vunpack.c.l.b16 %v1771
        %v2862 = vunpack.c.l.b16 %v1772
        %v2863 = vunpack.c.l.b16 %v1773
        %v2864 = vpack.c.b16 %v2861, %v2860
        %v2865 = vpack.c.b16 %v2863, %v2862
        %2868 = vmatprep.subr.bf16.mxu0 0
        %2869 = vmatpush1.bf16.msra.mxu0 %v2864
        %2870 = vmatprep.subr.bf16.mxu0 0
        %2871 = vmatpush1.bf16.msra.mxu0 %v2865
        %2872 = vmatprep.subr.bf16.mxu0 0
        %2873 = vmatpush1.bf16.msra.mxu0 0
        %2874 = vmatprep.subr.bf16.mxu0 0
        %2875 = vmatpush1.bf16.msra.mxu0 0
        %2876 = vmatprep.subr.bf16.mxu0 0
        %2877 = vmatpush1.bf16.msra.mxu0 0
        %2878 = vmatprep.subr.bf16.mxu0 0
        %2879 = vmatpush1.bf16.msra.mxu0 0
        %2880 = vmatprep.subr.bf16.mxu0 0
        %2881 = vmatpush1.bf16.msra.mxu0 0
        %2882 = vmatprep.subr.bf16.mxu0 0
        %2883 = vmatpush1.bf16.msra.mxu0 0
        %2884 = vmatprep.subr.bf16.mxu0 0
        %2885 = vmatpush1.bf16.msra.mxu0 0
        %2886 = vmatprep.subr.bf16.mxu0 0
        %2887 = vmatpush1.bf16.msra.mxu0 0
        %2888 = vmatprep.subr.bf16.mxu0 0
        %2889 = vmatpush1.bf16.msra.mxu0 0
        %2890 = vmatprep.subr.bf16.mxu0 0
        %2891 = vmatpush1.bf16.msra.mxu0 0
        %2892 = vmatprep.subr.bf16.mxu0 0
        %2893 = vmatpush1.bf16.msra.mxu0 0
        %2894 = vmatprep.subr.bf16.mxu0 0
        %2895 = vmatpush1.bf16.msra.mxu0 0
        %2896 = vmatprep.subr.bf16.mxu0 0
        %2897 = vmatpush1.bf16.msra.mxu0 0
        %2898 = vmatprep.subr.bf16.mxu0 0
        %2899 = vmatpush1.bf16.msra.mxu0 0
        %2900 = vmatprep.mubr.bf16.mxu0 0
        %2901 = vmatmul.mubr.bf16.gmra.mrb[0].mxu0 %v1851
        %v2902 = vpop.f32.mrb[0].mxu0
        %v2903 = vadd.f32 0.0, %v2902
        %v2904 = vpop.f32.mrb[0].mxu0
        %v2905 = vpop.f32.mrb[0].mxu0
        %v2906 = vadd.f32 0.0, %v2905
        %v2907 = vpop.f32.mrb[0].mxu0
        %2908 = vmatprep.mubr.bf16.mxu0 0
        %2909 = vmatmul.mubr.bf16.gmra.mrb[0].mxu0 %v1854
        %v2910 = vpop.f32.mrb[0].mxu0
        %v2911 = vadd.f32 0.0, %v2910
        %v2912 = vpop.f32.mrb[0].mxu0
        %v2913 = vpop.f32.mrb[0].mxu0
        %v2914 = vadd.f32 0.0, %v2913
        %v2915 = vpop.f32.mrb[0].mxu0
        %2916 = vmatprep.mubr.bf16.mxu0 0
        %2917 = vmatmul.mubr.bf16.gmra.mrb[0].mxu0 %v1857
        %v2918 = vpop.f32.mrb[0].mxu0
        %v2919 = vadd.f32 0.0, %v2918
        %v2920 = vpop.f32.mrb[0].mxu0
        %v2921 = vpop.f32.mrb[0].mxu0
        %v2922 = vadd.f32 0.0, %v2921
        %v2923 = vpop.f32.mrb[0].mxu0
        %2924 = vmatprep.mubr.bf16.mxu0 0
        %2925 = vmatmul.mubr.bf16.gmra.mrb[0].mxu0 %v1860
        %v2926 = vpop.f32.mrb[0].mxu0
        %v2927 = vadd.f32 0.0, %v2926
        %v2928 = vpop.f32.mrb[0].mxu0
        %v2929 = vpop.f32.mrb[0].mxu0
        %v2930 = vadd.f32 0.0, %v2929
        %v2931 = vpop.f32.mrb[0].mxu0
        %2932 = vdwg.mxu0
        %v2933 = vpack.c.bf16 %v2906, %v2903
        %v2934 = vpack.c.bf16 %v2914, %v2911
        %v2935 = vpack.c.bf16 %v2922, %v2919
        %v2936 = vpack.c.bf16 %v2930, %v2927
        %s2937 = scalar_lea.vmem [#allocation6], 96
        %2938 = vst.msk [vmem:[%s2937] sm:$0xff] %vm1931, %v2933
        %2939 = vst.msk [vmem:[%s2937 + $0x8] sm:$0xff] %vm1931, %v2934
        %2940 = vst.msk [vmem:[%s2937 + $0x10] sm:$0xff] %vm1931, %v2935
        %2941 = vst.msk [vmem:[%s2937 + $0x18] sm:$0xff] %vm1931, %v2936
        %v2950 = vunpack.c.l.b16 %v1798
        %v2951 = vunpack.c.l.b16 %v1799
        %v2952 = vunpack.c.l.b16 %v1800
        %v2953 = vunpack.c.l.b16 %v1801
        %v2954 = vunpack.c.l.b16 %v1802
        %v2955 = vunpack.c.l.b16 %v1803
        %v2956 = vunpack.c.l.b16 %v1804
        %v2957 = vunpack.c.l.b16 %v1805
        %v2958 = vpack.c.b16 %v2951, %v2950
        %v2959 = vpack.c.b16 %v2953, %v2952
        %v2960 = vpack.c.b16 %v2955, %v2954
        %v2961 = vpack.c.b16 %v2957, %v2956
        %2966 = vmatprep.subr.bf16.mxu0 0
        %2967 = vmatpush1.bf16.msra.mxu0 %v2958
        %2968 = vmatprep.subr.bf16.mxu0 0
        %2969 = vmatpush1.bf16.msra.mxu0 %v2959
        %2970 = vmatprep.subr.bf16.mxu0 0
        %2971 = vmatpush1.bf16.msra.mxu0 %v2960
        %2972 = vmatprep.subr.bf16.mxu0 0
        %2973 = vmatpush1.bf16.msra.mxu0 %v2961
        %2974 = vmatprep.subr.bf16.mxu0 0
        %2975 = vmatpush1.bf16.msra.mxu0 0
        %2976 = vmatprep.subr.bf16.mxu0 0
        %2977 = vmatpush1.bf16.msra.mxu0 0
        %2978 = vmatprep.subr.bf16.mxu0 0
        %2979 = vmatpush1.bf16.msra.mxu0 0
        %2980 = vmatprep.subr.bf16.mxu0 0
        %2981 = vmatpush1.bf16.msra.mxu0 0
        %2982 = vmatprep.subr.bf16.mxu0 0
        %2983 = vmatpush1.bf16.msra.mxu0 0
        %2984 = vmatprep.subr.bf16.mxu0 0
        %2985 = vmatpush1.bf16.msra.mxu0 0
        %2986 = vmatprep.subr.bf16.mxu0 0
        %2987 = vmatpush1.bf16.msra.mxu0 0
        %2988 = vmatprep.subr.bf16.mxu0 0
        %2989 = vmatpush1.bf16.msra.mxu0 0
        %2990 = vmatprep.subr.bf16.mxu0 0
        %2991 = vmatpush1.bf16.msra.mxu0 0
        %2992 = vmatprep.subr.bf16.mxu0 0
        %2993 = vmatpush1.bf16.msra.mxu0 0
        %2994 = vmatprep.subr.bf16.mxu0 0
        %2995 = vmatpush1.bf16.msra.mxu0 0
        %2996 = vmatprep.subr.bf16.mxu0 0
        %2997 = vmatpush1.bf16.msra.mxu0 0
        %2998 = vmatprep.mubr.bf16.mxu0 0
        %2999 = vmatmul.mubr.bf16.gmra.mrb[0].mxu0 %v2047
        %v3000 = vpop.f32.mrb[0].mxu0
        %v3001 = vadd.f32 0.0, %v3000
        %v3002 = vpop.f32.mrb[0].mxu0
        %v3003 = vpop.f32.mrb[0].mxu0
        %v3004 = vpop.f32.mrb[0].mxu0
        %3005 = vdwg.mxu0
        %v3006 = vpack.c.bf16 %v3001, %v3001
        %s3007 = scalar_lea.vmem [#allocation7], 12
        %3008 = vst.msk [vmem:[%s3007] sm:$0xf] %vm2090, %v3006
        %v3017 = vunpack.c.l.b16 %v1830
        %v3018 = vunpack.c.l.b16 %v1831
        %v3019 = vunpack.c.l.b16 %v1832
        %v3020 = vunpack.c.l.b16 %v1833
        %v3021 = vunpack.c.l.b16 %v1834
        %v3022 = vunpack.c.l.b16 %v1835
        %v3023 = vunpack.c.l.b16 %v1836
        %v3024 = vunpack.c.l.b16 %v1837
        %v3025 = vpack.c.b16 %v3018, %v3017
        %v3026 = vpack.c.b16 %v3020, %v3019
        %v3027 = vpack.c.b16 %v3022, %v3021
        %v3028 = vpack.c.b16 %v3024, %v3023
        %3033 = vmatprep.subr.bf16.mxu0 0
        %3034 = vmatpush1.bf16.msra.mxu0 %v3025
        %3035 = vmatprep.subr.bf16.mxu0 0
        %3036 = vmatpush1.bf16.msra.mxu0 %v3026
        %3037 = vmatprep.subr.bf16.mxu0 0
        %3038 = vmatpush1.bf16.msra.mxu0 %v3027
        %3039 = vmatprep.subr.bf16.mxu0 0
        %3040 = vmatpush1.bf16.msra.mxu0 %v3028
        %3041 = vmatprep.subr.bf16.mxu0 0
        %3042 = vmatpush1.bf16.msra.mxu0 0
        %3043 = vmatprep.subr.bf16.mxu0 0
        %3044 = vmatpush1.bf16.msra.mxu0 0
        %3045 = vmatprep.subr.bf16.mxu0 0
        %3046 = vmatpush1.bf16.msra.mxu0 0
        %3047 = vmatprep.subr.bf16.mxu0 0
        %3048 = vmatpush1.bf16.msra.mxu0 0
        %3049 = vmatprep.subr.bf16.mxu0 0
        %3050 = vmatpush1.bf16.msra.mxu0 0
        %3051 = vmatprep.subr.bf16.mxu0 0
        %3052 = vmatpush1.bf16.msra.mxu0 0
        %3053 = vmatprep.subr.bf16.mxu0 0
        %3054 = vmatpush1.bf16.msra.mxu0 0
        %3055 = vmatprep.subr.bf16.mxu0 0
        %3056 = vmatpush1.bf16.msra.mxu0 0
        %3057 = vmatprep.subr.bf16.mxu0 0
        %3058 = vmatpush1.bf16.msra.mxu0 0
        %3059 = vmatprep.subr.bf16.mxu0 0
        %3060 = vmatpush1.bf16.msra.mxu0 0
        %3061 = vmatprep.subr.bf16.mxu0 0
        %3062 = vmatpush1.bf16.msra.mxu0 0
        %3063 = vmatprep.subr.bf16.mxu0 0
        %3064 = vmatpush1.bf16.msra.mxu0 0
        %3065 = vmatprep.mubr.bf16.mxu0 0
        %3066 = vmatmul.mubr.bf16.gmra.mrb[0].mxu0 %v2047
        %v3067 = vpop.f32.mrb[0].mxu0
        %v3068 = vadd.f32 0.0, %v3067
        %v3069 = vpop.f32.mrb[0].mxu0
        %v3070 = vpop.f32.mrb[0].mxu0
        %v3071 = vpop.f32.mrb[0].mxu0
        %3072 = vdwg.mxu0
        %v3073 = vpack.c.bf16 %v3068, %v3068
        %s3074 = scalar_lea.vmem [#allocation8], 12
        %3075 = vst.msk [vmem:[%s3074] sm:$0xf] %vm2090, %v3073
      $region152: #{tpu_custom_call.1} parent=147 // pred_fallthru
        _
      %s3076 = smul.u32 %s81, 32
      %s3077 = scalar_lea.vmem [#allocation3], %s3076
      %v3078 = vld [vmem:[%s3077] sm:$0xff]
      %v3079 = vld [vmem:[%s3077 + $0x8] sm:$0xff]
      %v3080 = vld [vmem:[%s3077 + $0x10] sm:$0xff]
      %v3081 = vld [vmem:[%s3077 + $0x18] sm:$0xff]
      %s3082 = sshra.s32 %s3076, 4
      %s3083 = sand.u32 %s3076, 15
      %s3084 = smul.addr %s3082, 8
      %s3085 = scalar_lea.vmem [#allocation4], %s3084
      %v3086 = vld [vmem:[%s3085] sm:$0xff]
      %v3087 = vld [vmem:[%s3085 + $0x8] sm:$0xff]
      %v3088 = vld [vmem:[%s21] sm:$0xf]
      %v3089 = vld [vmem:[%s21 + $0x4] sm:$0xf]
      %v3090 = vld [vmem:[%s21 + $0x8] sm:$0xf]
      %v3091 = vld [vmem:[%s21 + $0xc] sm:$0xf]
      %v3092 = vld [vmem:[%s21 + $0x10] sm:$0xf]
      %v3093 = vld [vmem:[%s21 + $0x14] sm:$0xf]
      %v3094 = vld [vmem:[%s21 + $0x18] sm:$0xf]
      %v3095 = vld [vmem:[%s21 + $0x1c] sm:$0xf]
      %v3096 = vld [vmem:[%s21 + $0x20] sm:$0xf]
      %v3097 = vld [vmem:[%s21 + $0x24] sm:$0xf]
      %v3098 = vld [vmem:[%s21 + $0x28] sm:$0xf]
      %v3099 = vld [vmem:[%s21 + $0x2c] sm:$0xf]
      %v3100 = vld [vmem:[%s21 + $0x30] sm:$0xf]
      %v3101 = vld [vmem:[%s21 + $0x34] sm:$0xf]
      %v3102 = vld [vmem:[%s21 + $0x38] sm:$0xf]
      %v3103 = vld [vmem:[%s21 + $0x3c] sm:$0xf]
      %v3108 = vunpack.c.l.b16 %v3088
      %v3109 = vunpack.c.l.b16 %v3089
      %v3110 = vunpack.c.l.b16 %v3090
      %v3111 = vunpack.c.l.b16 %v3091
      %v3112 = vpack.c.b16 %v3109, %v3108
      %v3113 = vpack.c.b16 %v3111, %v3110
      %vm3116 = vcmask 261120
      %v3118 = vsel %vm3116, %v3086, 0
      %v3121 = vsel %vm3116, %v3087, 0
      %3123 = vmatprep.subr.bf16.mxu0 0
      %3124 = vmatpush1.bf16.msra.mxu0 %v3112
      %3125 = vmatprep.subr.bf16.mxu0 0
      %3126 = vmatpush1.bf16.msra.mxu0 %v3113
      %3127 = vmatprep.subr.bf16.mxu0 0
      %3128 = vmatpush1.bf16.msra.mxu0 0
      %3129 = vmatprep.subr.bf16.mxu0 0
      %3130 = vmatpush1.bf16.msra.mxu0 0
      %3131 = vmatprep.subr.bf16.mxu0 0
      %3132 = vmatpush1.bf16.msra.mxu0 0
      %3133 = vmatprep.subr.bf16.mxu0 0
      %3134 = vmatpush1.bf16.msra.mxu0 0
      %3135 = vmatprep.subr.bf16.mxu0 0
      %3136 = vmatpush1.bf16.msra.mxu0 0
      %3137 = vmatprep.subr.bf16.mxu0 0
      %3138 = vmatpush1.bf16.msra.mxu0 0
      %3139 = vmatprep.subr.bf16.mxu0 0
      %3140 = vmatpush1.bf16.msra.mxu0 0
      %3141 = vmatprep.subr.bf16.mxu0 0
      %3142 = vmatpush1.bf16.msra.mxu0 0
      %3143 = vmatprep.subr.bf16.mxu0 0
      %3144 = vmatpush1.bf16.msra.mxu0 0
      %3145 = vmatprep.subr.bf16.mxu0 0
      %3146 = vmatpush1.bf16.msra.mxu0 0
      %3147 = vmatprep.subr.bf16.mxu0 0
      %3148 = vmatpush1.bf16.msra.mxu0 0
      %3149 = vmatprep.subr.bf16.mxu0 0
      %3150 = vmatpush1.bf16.msra.mxu0 0
      %3151 = vmatprep.subr.bf16.mxu0 0
      %3152 = vmatpush1.bf16.msra.mxu0 0
      %3153 = vmatprep.subr.bf16.mxu0 0
      %3154 = vmatpush1.bf16.msra.mxu0 0
      %3155 = vmatprep.mubr.bf16.mxu0 0
      %3156 = vmatmul.mubr.bf16.gmra.mrb[0].mxu0 %v3118
      %v3157 = vpop.f32.mrb[0].mxu0
      %v3158 = vadd.f32 0.0, %v3157
      %v3159 = vpop.f32.mrb[0].mxu0
      %v3160 = vpop.f32.mrb[0].mxu0
      %v3161 = vadd.f32 0.0, %v3160
      %v3162 = vpop.f32.mrb[0].mxu0
      %3163 = vmatprep.mubr.bf16.mxu0 0
      %3164 = vmatmul.mubr.bf16.gmra.mrb[0].mxu0 %v3121
      %v3165 = vpop.f32.mrb[0].mxu0
      %v3166 = vadd.f32 0.0, %v3165
      %v3167 = vpop.f32.mrb[0].mxu0
      %v3168 = vpop.f32.mrb[0].mxu0
      %v3169 = vadd.f32 0.0, %v3168
      %v3170 = vpop.f32.mrb[0].mxu0
      %3171 = vdwg.mxu0
      %v3176 = vunpack.c.l.b16 %v3092
      %v3177 = vunpack.c.l.b16 %v3093
      %v3178 = vunpack.c.l.b16 %v3094
      %v3179 = vunpack.c.l.b16 %v3095
      %v3180 = vpack.c.b16 %v3177, %v3176
      %v3181 = vpack.c.b16 %v3179, %v3178
      %3184 = vmatprep.subr.bf16.mxu0 0
      %3185 = vmatpush1.bf16.msra.mxu0 %v3180
      %3186 = vmatprep.subr.bf16.mxu0 0
      %3187 = vmatpush1.bf16.msra.mxu0 %v3181
      %3188 = vmatprep.subr.bf16.mxu0 0
      %3189 = vmatpush1.bf16.msra.mxu0 0
      %3190 = vmatprep.subr.bf16.mxu0 0
      %3191 = vmatpush1.bf16.msra.mxu0 0
      %3192 = vmatprep.subr.bf16.mxu0 0
      %3193 = vmatpush1.bf16.msra.mxu0 0
      %3194 = vmatprep.subr.bf16.mxu0 0
      %3195 = vmatpush1.bf16.msra.mxu0 0
      %3196 = vmatprep.subr.bf16.mxu0 0
      %3197 = vmatpush1.bf16.msra.mxu0 0
      %3198 = vmatprep.subr.bf16.mxu0 0
      %3199 = vmatpush1.bf16.msra.mxu0 0
      %3200 = vmatprep.subr.bf16.mxu0 0
      %3201 = vmatpush1.bf16.msra.mxu0 0
      %3202 = vmatprep.subr.bf16.mxu0 0
      %3203 = vmatpush1.bf16.msra.mxu0 0
      %3204 = vmatprep.subr.bf16.mxu0 0
      %3205 = vmatpush1.bf16.msra.mxu0 0
      %3206 = vmatprep.subr.bf16.mxu0 0
      %3207 = vmatpush1.bf16.msra.mxu0 0
      %3208 = vmatprep.subr.bf16.mxu0 0
      %3209 = vmatpush1.bf16.msra.mxu0 0
      %3210 = vmatprep.subr.bf16.mxu0 0
      %3211 = vmatpush1.bf16.msra.mxu0 0
      %3212 = vmatprep.subr.bf16.mxu0 0
      %3213 = vmatpush1.bf16.msra.mxu0 0
      %3214 = vmatprep.subr.bf16.mxu0 0
      %3215 = vmatpush1.bf16.msra.mxu0 0
      %3216 = vmatprep.mubr.bf16.mxu0 0
      %3217 = vmatmul.mubr.bf16.gmra.mrb[0].mxu0 %v3118
      %v3218 = vpop.f32.mrb[0].mxu0
      %v3219 = vadd.f32 0.0, %v3218
      %v3220 = vpop.f32.mrb[0].mxu0
      %v3221 = vpop.f32.mrb[0].mxu0
      %v3222 = vadd.f32 0.0, %v3221
      %v3223 = vpop.f32.mrb[0].mxu0
      %3224 = vmatprep.mubr.bf16.mxu0 0
      %3225 = vmatmul.mubr.bf16.gmra.mrb[0].mxu0 %v3121
      %v3226 = vpop.f32.mrb[0].mxu0
      %v3227 = vadd.f32 0.0, %v3226
      %v3228 = vpop.f32.mrb[0].mxu0
      %v3229 = vpop.f32.mrb[0].mxu0
      %v3230 = vadd.f32 0.0, %v3229
      %v3231 = vpop.f32.mrb[0].mxu0
      %3232 = vdwg.mxu0
      %v3237 = vunpack.c.l.b16 %v3096
      %v3238 = vunpack.c.l.b16 %v3097
      %v3239 = vunpack.c.l.b16 %v3098
      %v3240 = vunpack.c.l.b16 %v3099
      %v3241 = vpack.c.b16 %v3238, %v3237
      %v3242 = vpack.c.b16 %v3240, %v3239
      %3245 = vmatprep.subr.bf16.mxu0 0
      %3246 = vmatpush1.bf16.msra.mxu0 %v3241
      %3247 = vmatprep.subr.bf16.mxu0 0
      %3248 = vmatpush1.bf16.msra.mxu0 %v3242
      %3249 = vmatprep.subr.bf16.mxu0 0
      %3250 = vmatpush1.bf16.msra.mxu0 0
      %3251 = vmatprep.subr.bf16.mxu0 0
      %3252 = vmatpush1.bf16.msra.mxu0 0
      %3253 = vmatprep.subr.bf16.mxu0 0
      %3254 = vmatpush1.bf16.msra.mxu0 0
      %3255 = vmatprep.subr.bf16.mxu0 0
      %3256 = vmatpush1.bf16.msra.mxu0 0
      %3257 = vmatprep.subr.bf16.mxu0 0
      %3258 = vmatpush1.bf16.msra.mxu0 0
      %3259 = vmatprep.subr.bf16.mxu0 0
      %3260 = vmatpush1.bf16.msra.mxu0 0
      %3261 = vmatprep.subr.bf16.mxu0 0
      %3262 = vmatpush1.bf16.msra.mxu0 0
      %3263 = vmatprep.subr.bf16.mxu0 0
      %3264 = vmatpush1.bf16.msra.mxu0 0
      %3265 = vmatprep.subr.bf16.mxu0 0
      %3266 = vmatpush1.bf16.msra.mxu0 0
      %3267 = vmatprep.subr.bf16.mxu0 0
      %3268 = vmatpush1.bf16.msra.mxu0 0
      %3269 = vmatprep.subr.bf16.mxu0 0
      %3270 = vmatpush1.bf16.msra.mxu0 0
      %3271 = vmatprep.subr.bf16.mxu0 0
      %3272 = vmatpush1.bf16.msra.mxu0 0
      %3273 = vmatprep.subr.bf16.mxu0 0
      %3274 = vmatpush1.bf16.msra.mxu0 0
      %3275 = vmatprep.subr.bf16.mxu0 0
      %3276 = vmatpush1.bf16.msra.mxu0 0
      %3277 = vmatprep.mubr.bf16.mxu0 0
      %3278 = vmatmul.mubr.bf16.gmra.mrb[0].mxu0 %v3118
      %v3279 = vpop.f32.mrb[0].mxu0
      %v3280 = vadd.f32 0.0, %v3279
      %v3281 = vpop.f32.mrb[0].mxu0
      %v3282 = vpop.f32.mrb[0].mxu0
      %v3283 = vadd.f32 0.0, %v3282
      %v3284 = vpop.f32.mrb[0].mxu0
      %3285 = vmatprep.mubr.bf16.mxu0 0
      %3286 = vmatmul.mubr.bf16.gmra.mrb[0].mxu0 %v3121
      %v3287 = vpop.f32.mrb[0].mxu0
      %v3288 = vadd.f32 0.0, %v3287
      %v3289 = vpop.f32.mrb[0].mxu0
      %v3290 = vpop.f32.mrb[0].mxu0
      %v3291 = vadd.f32 0.0, %v3290
      %v3292 = vpop.f32.mrb[0].mxu0
      %3293 = vdwg.mxu0
      %v3298 = vunpack.c.l.b16 %v3100
      %v3299 = vunpack.c.l.b16 %v3101
      %v3300 = vunpack.c.l.b16 %v3102
      %v3301 = vunpack.c.l.b16 %v3103
      %v3302 = vpack.c.b16 %v3299, %v3298
      %v3303 = vpack.c.b16 %v3301, %v3300
      %3306 = vmatprep.subr.bf16.mxu0 0
      %3307 = vmatpush1.bf16.msra.mxu0 %v3302
      %3308 = vmatprep.subr.bf16.mxu0 0
      %3309 = vmatpush1.bf16.msra.mxu0 %v3303
      %3310 = vmatprep.subr.bf16.mxu0 0
      %3311 = vmatpush1.bf16.msra.mxu0 0
      %3312 = vmatprep.subr.bf16.mxu0 0
      %3313 = vmatpush1.bf16.msra.mxu0 0
      %3314 = vmatprep.subr.bf16.mxu0 0
      %3315 = vmatpush1.bf16.msra.mxu0 0
      %3316 = vmatprep.subr.bf16.mxu0 0
      %3317 = vmatpush1.bf16.msra.mxu0 0
      %3318 = vmatprep.subr.bf16.mxu0 0
      %3319 = vmatpush1.bf16.msra.mxu0 0
      %3320 = vmatprep.subr.bf16.mxu0 0
      %3321 = vmatpush1.bf16.msra.mxu0 0
      %3322 = vmatprep.subr.bf16.mxu0 0
      %3323 = vmatpush1.bf16.msra.mxu0 0
      %3324 = vmatprep.subr.bf16.mxu0 0
      %3325 = vmatpush1.bf16.msra.mxu0 0
      %3326 = vmatprep.subr.bf16.mxu0 0
      %3327 = vmatpush1.bf16.msra.mxu0 0
      %3328 = vmatprep.subr.bf16.mxu0 0
      %3329 = vmatpush1.bf16.msra.mxu0 0
      %3330 = vmatprep.subr.bf16.mxu0 0
      %3331 = vmatpush1.bf16.msra.mxu0 0
      %3332 = vmatprep.subr.bf16.mxu0 0
      %3333 = vmatpush1.bf16.msra.mxu0 0
      %3334 = vmatprep.subr.bf16.mxu0 0
      %3335 = vmatpush1.bf16.msra.mxu0 0
      %3336 = vmatprep.subr.bf16.mxu0 0
      %3337 = vmatpush1.bf16.msra.mxu0 0
      %3338 = vmatprep.mubr.bf16.mxu0 0
      %3339 = vmatmul.mubr.bf16.gmra.mrb[0].mxu0 %v3118
      %v3340 = vpop.f32.mrb[0].mxu0
      %v3341 = vadd.f32 0.0, %v3340
      %v3342 = vpop.f32.mrb[0].mxu0
      %v3343 = vpop.f32.mrb[0].mxu0
      %v3344 = vadd.f32 0.0, %v3343
      %v3345 = vpop.f32.mrb[0].mxu0
      %3346 = vmatprep.mubr.bf16.mxu0 0
      %3347 = vmatmul.mubr.bf16.gmra.mrb[0].mxu0 %v3121
      %v3348 = vpop.f32.mrb[0].mxu0
      %v3349 = vadd.f32 0.0, %v3348
      %v3350 = vpop.f32.mrb[0].mxu0
      %v3351 = vpop.f32.mrb[0].mxu0
      %v3352 = vadd.f32 0.0, %v3351
      %v3353 = vpop.f32.mrb[0].mxu0
      %3354 = vdwg.mxu0
      %v3355 = vld [vmem:[#allocation5] sm:$0xff]
      %v3356 = vld [vmem:[#allocation5 + $0x8] sm:$0xff]
      %v3357 = vld [vmem:[#allocation5 + $0x10] sm:$0xff]
      %v3358 = vld [vmem:[#allocation5 + $0x18] sm:$0xff]
      %v3359 = vld [vmem:[#allocation5 + $0x20] sm:$0xff]
      %v3360 = vld [vmem:[#allocation5 + $0x28] sm:$0xff]
      %v3361 = vld [vmem:[#allocation5 + $0x30] sm:$0xff]
      %v3362 = vld [vmem:[#allocation5 + $0x38] sm:$0xff]
      %v3363 = vld [vmem:[#allocation5 + $0x40] sm:$0xff]
      %v3364 = vld [vmem:[#allocation5 + $0x48] sm:$0xff]
      %v3365 = vld [vmem:[#allocation5 + $0x50] sm:$0xff]
      %v3366 = vld [vmem:[#allocation5 + $0x58] sm:$0xff]
      %v3367 = vld [vmem:[#allocation5 + $0x60] sm:$0xff]
      %v3368 = vld [vmem:[#allocation5 + $0x68] sm:$0xff]
      %v3369 = vld [vmem:[#allocation5 + $0x70] sm:$0xff]
      %v3370 = vld [vmem:[#allocation5 + $0x78] sm:$0xff]
      %v3371 = vld [vmem:[#allocation6] sm:$0xff]
      %v3372 = vld [vmem:[#allocation6 + $0x8] sm:$0xff]
      %v3373 = vld [vmem:[#allocation6 + $0x10] sm:$0xff]
      %v3374 = vld [vmem:[#allocation6 + $0x18] sm:$0xff]
      %v3375 = vld [vmem:[#allocation6 + $0x20] sm:$0xff]
      %v3376 = vld [vmem:[#allocation6 + $0x28] sm:$0xff]
      %v3377 = vld [vmem:[#allocation6 + $0x30] sm:$0xff]
      %v3378 = vld [vmem:[#allocation6 + $0x38] sm:$0xff]
      %v3379 = vld [vmem:[#allocation6 + $0x40] sm:$0xff]
      %v3380 = vld [vmem:[#allocation6 + $0x48] sm:$0xff]
      %v3381 = vld [vmem:[#allocation6 + $0x50] sm:$0xff]
      %v3382 = vld [vmem:[#allocation6 + $0x58] sm:$0xff]
      %v3383 = vld [vmem:[#allocation6 + $0x60] sm:$0xff]
      %v3384 = vld [vmem:[#allocation6 + $0x68] sm:$0xff]
      %v3385 = vld [vmem:[#allocation6 + $0x70] sm:$0xff]
      %v3386 = vld [vmem:[#allocation6 + $0x78] sm:$0xff]
      %v3387 = vpack.c.bf16 %v3161, %v3158
      %v3388 = vpack.c.bf16 %v3169, %v3166
      %v3389 = vpack.c.bf16 %v3222, %v3219
      %v3390 = vpack.c.bf16 %v3230, %v3227
      %v3391 = vpack.c.bf16 %v3283, %v3280
      %v3392 = vpack.c.bf16 %v3291, %v3288
      %v3393 = vpack.c.bf16 %v3344, %v3341
      %v3394 = vpack.c.bf16 %v3352, %v3349
      %vm3395 = vcmask 64512
      %v3397 = vsel %vm3395, %v3387, 0
      %v3400 = vsel %vm3395, %v3388, 0
      %v3403 = vsel %vm3395, %v3355, 0
      %v3406 = vsel %vm3395, %v3356, 0
      %v3409 = vsel %vm3395, %v3357, 0
      %v3412 = vsel %vm3395, %v3358, 0
      %3414 = vmatprep.subr.bf16.mxu0 0
      %3415 = vmatpush1.bf16.xpose.msra.mxu0 %v3403
      %3416 = vmatprep.subr.bf16.mxu0 0
      %3417 = vmatpush1.bf16.xpose.msra.mxu0 %v3406
      %3418 = vmatprep.subr.bf16.mxu0 0
      %3419 = vmatpush1.bf16.xpose.msra.mxu0 %v3409
      %3420 = vmatprep.subr.bf16.mxu0 0
      %3421 = vmatpush1.bf16.xpose.msra.mxu0 %v3412
      %3422 = vmatprep.subr.bf16.mxu0 0
      %3423 = vmatpush1.bf16.xpose.msra.mxu0 0
      %3424 = vmatprep.subr.bf16.mxu0 0
      %3425 = vmatpush1.bf16.xpose.msra.mxu0 0
      %3426 = vmatprep.subr.bf16.mxu0 0
      %3427 = vmatpush1.bf16.xpose.msra.mxu0 0
      %3428 = vmatprep.subr.bf16.mxu0 0
      %3429 = vmatpush1.bf16.xpose.msra.mxu0 0
      %3430 = vmatprep.subr.bf16.mxu0 0
      %3431 = vmatpush1.bf16.xpose.msra.mxu0 0
      %3432 = vmatprep.subr.bf16.mxu0 0
      %3433 = vmatpush1.bf16.xpose.msra.mxu0 0
      %3434 = vmatprep.subr.bf16.mxu0 0
      %3435 = vmatpush1.bf16.xpose.msra.mxu0 0
      %3436 = vmatprep.subr.bf16.mxu0 0
      %3437 = vmatpush1.bf16.xpose.msra.mxu0 0
      %3438 = vmatprep.subr.bf16.mxu0 0
      %3439 = vmatpush1.bf16.xpose.msra.mxu0 0
      %3440 = vmatprep.subr.bf16.mxu0 0
      %3441 = vmatpush1.bf16.xpose.msra.mxu0 0
      %3442 = vmatprep.subr.bf16.mxu0 0
      %3443 = vmatpush1.bf16.xpose.msra.mxu0 0
      %3444 = vmatprep.subr.bf16.mxu0 0
      %3445 = vmatpush1.bf16.xpose.msra.mxu0 0
      %3446 = vmatprep.mubr.bf16.mxu0 0
      %3447 = vmatmul.mubr.bf16.gmra.mrb[0].mxu0 %v3397
      %v3448 = vpop.f32.mrb[0].mxu0
      %v3449 = vadd.f32 0.0, %v3448
      %v3450 = vpop.f32.mrb[0].mxu0
      %v3451 = vpop.f32.mrb[0].mxu0
      %v3452 = vadd.f32 0.0, %v3451
      %v3453 = vpop.f32.mrb[0].mxu0
      %3454 = vmatprep.mubr.bf16.mxu0 0
      %3455 = vmatmul.mubr.bf16.gmra.mrb[0].mxu0 %v3400
      %v3456 = vpop.f32.mrb[0].mxu0
      %v3457 = vadd.f32 0.0, %v3456
      %v3458 = vpop.f32.mrb[0].mxu0
      %v3459 = vpop.f32.mrb[0].mxu0
      %v3460 = vadd.f32 0.0, %v3459
      %v3461 = vpop.f32.mrb[0].mxu0
      %3462 = vdwg.mxu0
      %v3464 = vsel %vm3395, %v3389, 0
      %v3467 = vsel %vm3395, %v3390, 0
      %v3470 = vsel %vm3395, %v3359, 0
      %v3473 = vsel %vm3395, %v3360, 0
      %v3476 = vsel %vm3395, %v3361, 0
      %v3479 = vsel %vm3395, %v3362, 0
      %3481 = vmatprep.subr.bf16.mxu0 0
      %3482 = vmatpush1.bf16.xpose.msra.mxu0 %v3470
      %3483 = vmatprep.subr.bf16.mxu0 0
      %3484 = vmatpush1.bf16.xpose.msra.mxu0 %v3473
      %3485 = vmatprep.subr.bf16.mxu0 0
      %3486 = vmatpush1.bf16.xpose.msra.mxu0 %v3476
      %3487 = vmatprep.subr.bf16.mxu0 0
      %3488 = vmatpush1.bf16.xpose.msra.mxu0 %v3479
      %3489 = vmatprep.subr.bf16.mxu0 0
      %3490 = vmatpush1.bf16.xpose.msra.mxu0 0
      %3491 = vmatprep.subr.bf16.mxu0 0
      %3492 = vmatpush1.bf16.xpose.msra.mxu0 0
      %3493 = vmatprep.subr.bf16.mxu0 0
      %3494 = vmatpush1.bf16.xpose.msra.mxu0 0
      %3495 = vmatprep.subr.bf16.mxu0 0
      %3496 = vmatpush1.bf16.xpose.msra.mxu0 0
      %3497 = vmatprep.subr.bf16.mxu0 0
      %3498 = vmatpush1.bf16.xpose.msra.mxu0 0
      %3499 = vmatprep.subr.bf16.mxu0 0
      %3500 = vmatpush1.bf16.xpose.msra.mxu0 0
      %3501 = vmatprep.subr.bf16.mxu0 0
      %3502 = vmatpush1.bf16.xpose.msra.mxu0 0
      %3503 = vmatprep.subr.bf16.mxu0 0
      %3504 = vmatpush1.bf16.xpose.msra.mxu0 0
      %3505 = vmatprep.subr.bf16.mxu0 0
      %3506 = vmatpush1.bf16.xpose.msra.mxu0 0
      %3507 = vmatprep.subr.bf16.mxu0 0
      %3508 = vmatpush1.bf16.xpose.msra.mxu0 0
      %3509 = vmatprep.subr.bf16.mxu0 0
      %3510 = vmatpush1.bf16.xpose.msra.mxu0 0
      %3511 = vmatprep.subr.bf16.mxu0 0
      %3512 = vmatpush1.bf16.xpose.msra.mxu0 0
      %3513 = vmatprep.mubr.bf16.mxu0 0
      %3514 = vmatmul.mubr.bf16.gmra.mrb[0].mxu0 %v3464
      %v3515 = vpop.f32.mrb[0].mxu0
      %v3516 = vadd.f32 0.0, %v3515
      %v3517 = vpop.f32.mrb[0].mxu0
      %v3518 = vpop.f32.mrb[0].mxu0
      %v3519 = vadd.f32 0.0, %v3518
      %v3520 = vpop.f32.mrb[0].mxu0
      %3521 = vmatprep.mubr.bf16.mxu0 0
      %3522 = vmatmul.mubr.bf16.gmra.mrb[0].mxu0 %v3467
      %v3523 = vpop.f32.mrb[0].mxu0
      %v3524 = vadd.f32 0.0, %v3523
      %v3525 = vpop.f32.mrb[0].mxu0
      %v3526 = vpop.f32.mrb[0].mxu0
      %v3527 = vadd.f32 0.0, %v3526
      %v3528 = vpop.f32.mrb[0].mxu0
      %3529 = vdwg.mxu0
      %v3531 = vsel %vm3395, %v3391, 0
      %v3534 = vsel %vm3395, %v3392, 0
      %v3537 = vsel %vm3395, %v3363, 0
      %v3540 = vsel %vm3395, %v3364, 0
      %v3543 = vsel %vm3395, %v3365, 0
      %v3546 = vsel %vm3395, %v3366, 0
      %3548 = vmatprep.subr.bf16.mxu0 0
      %3549 = vmatpush1.bf16.xpose.msra.mxu0 %v3537
      %3550 = vmatprep.subr.bf16.mxu0 0
      %3551 = vmatpush1.bf16.xpose.msra.mxu0 %v3540
      %3552 = vmatprep.subr.bf16.mxu0 0
      %3553 = vmatpush1.bf16.xpose.msra.mxu0 %v3543
      %3554 = vmatprep.subr.bf16.mxu0 0
      %3555 = vmatpush1.bf16.xpose.msra.mxu0 %v3546
      %3556 = vmatprep.subr.bf16.mxu0 0
      %3557 = vmatpush1.bf16.xpose.msra.mxu0 0
      %3558 = vmatprep.subr.bf16.mxu0 0
      %3559 = vmatpush1.bf16.xpose.msra.mxu0 0
      %3560 = vmatprep.subr.bf16.mxu0 0
      %3561 = vmatpush1.bf16.xpose.msra.mxu0 0
      %3562 = vmatprep.subr.bf16.mxu0 0
      %3563 = vmatpush1.bf16.xpose.msra.mxu0 0
      %3564 = vmatprep.subr.bf16.mxu0 0
      %3565 = vmatpush1.bf16.xpose.msra.mxu0 0
      %3566 = vmatprep.subr.bf16.mxu0 0
      %3567 = vmatpush1.bf16.xpose.msra.mxu0 0
      %3568 = vmatprep.subr.bf16.mxu0 0
      %3569 = vmatpush1.bf16.xpose.msra.mxu0 0
      %3570 = vmatprep.subr.bf16.mxu0 0
      %3571 = vmatpush1.bf16.xpose.msra.mxu0 0
      %3572 = vmatprep.subr.bf16.mxu0 0
      %3573 = vmatpush1.bf16.xpose.msra.mxu0 0
      %3574 = vmatprep.subr.bf16.mxu0 0
      %3575 = vmatpush1.bf16.xpose.msra.mxu0 0
      %3576 = vmatprep.subr.bf16.mxu0 0
      %3577 = vmatpush1.bf16.xpose.msra.mxu0 0
      %3578 = vmatprep.subr.bf16.mxu0 0
      %3579 = vmatpush1.bf16.xpose.msra.mxu0 0
      %3580 = vmatprep.mubr.bf16.mxu0 0
      %3581 = vmatmul.mubr.bf16.gmra.mrb[0].mxu0 %v3531
      %v3582 = vpop.f32.mrb[0].mxu0
      %v3583 = vadd.f32 0.0, %v3582
      %v3584 = vpop.f32.mrb[0].mxu0
      %v3585 = vpop.f32.mrb[0].mxu0
      %v3586 = vadd.f32 0.0, %v3585
      %v3587 = vpop.f32.mrb[0].mxu0
      %3588 = vmatprep.mubr.bf16.mxu0 0
      %3589 = vmatmul.mubr.bf16.gmra.mrb[0].mxu0 %v3534
      %v3590 = vpop.f32.mrb[0].mxu0
      %v3591 = vadd.f32 0.0, %v3590
      %v3592 = vpop.f32.mrb[0].mxu0
      %v3593 = vpop.f32.mrb[0].mxu0
      %v3594 = vadd.f32 0.0, %v3593
      %v3595 = vpop.f32.mrb[0].mxu0
      %3596 = vdwg.mxu0
      %v3598 = vsel %vm3395, %v3393, 0
      %v3601 = vsel %vm3395, %v3394, 0
      %v3604 = vsel %vm3395, %v3367, 0
      %v3607 = vsel %vm3395, %v3368, 0
      %v3610 = vsel %vm3395, %v3369, 0
      %v3613 = vsel %vm3395, %v3370, 0
      %3615 = vmatprep.subr.bf16.mxu0 0
      %3616 = vmatpush1.bf16.xpose.msra.mxu0 %v3604
      %3617 = vmatprep.subr.bf16.mxu0 0
      %3618 = vmatpush1.bf16.xpose.msra.mxu0 %v3607
      %3619 = vmatprep.subr.bf16.mxu0 0
      %3620 = vmatpush1.bf16.xpose.msra.mxu0 %v3610
      %3621 = vmatprep.subr.bf16.mxu0 0
      %3622 = vmatpush1.bf16.xpose.msra.mxu0 %v3613
      %3623 = vmatprep.subr.bf16.mxu0 0
      %3624 = vmatpush1.bf16.xpose.msra.mxu0 0
      %3625 = vmatprep.subr.bf16.mxu0 0
      %3626 = vmatpush1.bf16.xpose.msra.mxu0 0
      %3627 = vmatprep.subr.bf16.mxu0 0
      %3628 = vmatpush1.bf16.xpose.msra.mxu0 0
      %3629 = vmatprep.subr.bf16.mxu0 0
      %3630 = vmatpush1.bf16.xpose.msra.mxu0 0
      %3631 = vmatprep.subr.bf16.mxu0 0
      %3632 = vmatpush1.bf16.xpose.msra.mxu0 0
      %3633 = vmatprep.subr.bf16.mxu0 0
      %3634 = vmatpush1.bf16.xpose.msra.mxu0 0
      %3635 = vmatprep.subr.bf16.mxu0 0
      %3636 = vmatpush1.bf16.xpose.msra.mxu0 0
      %3637 = vmatprep.subr.bf16.mxu0 0
      %3638 = vmatpush1.bf16.xpose.msra.mxu0 0
      %3639 = vmatprep.subr.bf16.mxu0 0
      %3640 = vmatpush1.bf16.xpose.msra.mxu0 0
      %3641 = vmatprep.subr.bf16.mxu0 0
      %3642 = vmatpush1.bf16.xpose.msra.mxu0 0
      %3643 = vmatprep.subr.bf16.mxu0 0
      %3644 = vmatpush1.bf16.xpose.msra.mxu0 0
      %3645 = vmatprep.subr.bf16.mxu0 0
      %3646 = vmatpush1.bf16.xpose.msra.mxu0 0
      %3647 = vmatprep.mubr.bf16.mxu0 0
      %3648 = vmatmul.mubr.bf16.gmra.mrb[0].mxu0 %v3598
      %v3649 = vpop.f32.mrb[0].mxu0
      %v3650 = vadd.f32 0.0, %v3649
      %v3651 = vpop.f32.mrb[0].mxu0
      %v3652 = vpop.f32.mrb[0].mxu0
      %v3653 = vadd.f32 0.0, %v3652
      %v3654 = vpop.f32.mrb[0].mxu0
      %3655 = vmatprep.mubr.bf16.mxu0 0
      %3656 = vmatmul.mubr.bf16.gmra.mrb[0].mxu0 %v3601
      %v3657 = vpop.f32.mrb[0].mxu0
      %v3658 = vadd.f32 0.0, %v3657
      %v3659 = vpop.f32.mrb[0].mxu0
      %v3660 = vpop.f32.mrb[0].mxu0
      %v3661 = vadd.f32 0.0, %v3660
      %v3662 = vpop.f32.mrb[0].mxu0
      %3663 = vdwg.mxu0
      %vm3664 = vcmask 523264
      %v3665 = vsel %vm3664, %v3449, -inf
      %3666 = vmax.xlane.f32.xlu0 %v3665
      %v3667 = vpop.xlane.xlu0 %3666
      %v3668 = vsel %vm3664, %v3452, -inf
      %3669 = vmax.xlane.f32.xlu0 %v3668
      %v3670 = vpop.xlane.xlu0 %3669
      %v3671 = vsel %vm3664, %v3457, -inf
      %3672 = vmax.xlane.f32.xlu0 %v3671
      %v3673 = vpop.xlane.xlu0 %3672
      %v3674 = vsel %vm3664, %v3460, -inf
      %3675 = vmax.xlane.f32.xlu0 %v3674
      %v3676 = vpop.xlane.xlu0 %3675
      %v3677 = vsel %vm3664, %v3516, -inf
      %3678 = vmax.xlane.f32.xlu0 %v3677
      %v3679 = vpop.xlane.xlu0 %3678
      %v3680 = vsel %vm3664, %v3519, -inf
      %3681 = vmax.xlane.f32.xlu0 %v3680
      %v3682 = vpop.xlane.xlu0 %3681
      %v3683 = vsel %vm3664, %v3524, -inf
      %3684 = vmax.xlane.f32.xlu0 %v3683
      %v3685 = vpop.xlane.xlu0 %3684
      %v3686 = vsel %vm3664, %v3527, -inf
      %3687 = vmax.xlane.f32.xlu0 %v3686
      %v3688 = vpop.xlane.xlu0 %3687
      %v3689 = vsel %vm3664, %v3583, -inf
      %3690 = vmax.xlane.f32.xlu0 %v3689
      %v3691 = vpop.xlane.xlu0 %3690
      %v3692 = vsel %vm3664, %v3586, -inf
      %3693 = vmax.xlane.f32.xlu0 %v3692
      %v3694 = vpop.xlane.xlu0 %3693
      %v3695 = vsel %vm3664, %v3591, -inf
      %3696 = vmax.xlane.f32.xlu0 %v3695
      %v3697 = vpop.xlane.xlu0 %3696
      %v3698 = vsel %vm3664, %v3594, -inf
      %3699 = vmax.xlane.f32.xlu0 %v3698
      %v3700 = vpop.xlane.xlu0 %3699
      %v3701 = vsel %vm3664, %v3650, -inf
      %3702 = vmax.xlane.f32.xlu0 %v3701
      %v3703 = vpop.xlane.xlu0 %3702
      %v3704 = vsel %vm3664, %v3653, -inf
      %3705 = vmax.xlane.f32.xlu0 %v3704
      %v3706 = vpop.xlane.xlu0 %3705
      %v3707 = vsel %vm3664, %v3658, -inf
      %3708 = vmax.xlane.f32.xlu0 %v3707
      %v3709 = vpop.xlane.xlu0 %3708
      %v3710 = vsel %vm3664, %v3661, -inf
      %3711 = vmax.xlane.f32.xlu0 %v3710
      %v3712 = vpop.xlane.xlu0 %3711
      %v3713 = vsub.f32 %v3449, %v3667
      %v3714 = vsub.f32 %v3452, %v3670
      %v3715 = vsub.f32 %v3457, %v3673
      %v3716 = vsub.f32 %v3460, %v3676
      %v3717 = vsub.f32 %v3516, %v3679
      %v3718 = vsub.f32 %v3519, %v3682
      %v3719 = vsub.f32 %v3524, %v3685
      %v3720 = vsub.f32 %v3527, %v3688
      %v3721 = vsub.f32 %v3583, %v3691
      %v3722 = vsub.f32 %v3586, %v3694
      %v3723 = vsub.f32 %v3591, %v3697
      %v3724 = vsub.f32 %v3594, %v3700
      %v3725 = vsub.f32 %v3650, %v3703
      %v3726 = vsub.f32 %v3653, %v3706
      %v3727 = vsub.f32 %v3658, %v3709
      %v3728 = vsub.f32 %v3661, %v3712
      %v3729 = vmul.f32 %v3713, 1.442695
      %v3730 = vpow.pop %v3729
      %v3731 = vmul.f32 %v3714, 1.442695
      %v3732 = vpow.pop %v3731
      %v3733 = vmul.f32 %v3715, 1.442695
      %v3734 = vpow.pop %v3733
      %v3735 = vmul.f32 %v3716, 1.442695
      %v3736 = vpow.pop %v3735
      %v3737 = vmul.f32 %v3717, 1.442695
      %v3738 = vpow.pop %v3737
      %v3739 = vmul.f32 %v3718, 1.442695
      %v3740 = vpow.pop %v3739
      %v3741 = vmul.f32 %v3719, 1.442695
      %v3742 = vpow.pop %v3741
      %v3743 = vmul.f32 %v3720, 1.442695
      %v3744 = vpow.pop %v3743
      %v3745 = vmul.f32 %v3721, 1.442695
      %v3746 = vpow.pop %v3745
      %v3747 = vmul.f32 %v3722, 1.442695
      %v3748 = vpow.pop %v3747
      %v3749 = vmul.f32 %v3723, 1.442695
      %v3750 = vpow.pop %v3749
      %v3751 = vmul.f32 %v3724, 1.442695
      %v3752 = vpow.pop %v3751
      %v3753 = vmul.f32 %v3725, 1.442695
      %v3754 = vpow.pop %v3753
      %v3755 = vmul.f32 %v3726, 1.442695
      %v3756 = vpow.pop %v3755
      %v3757 = vmul.f32 %v3727, 1.442695
      %v3758 = vpow.pop %v3757
      %v3759 = vmul.f32 %v3728, 1.442695
      %v3760 = vpow.pop %v3759
      %v3761 = vsel %vm3664, %v3730, 0.0
      %3762 = vadd.xlane.f32.xlu0 %v3761
      %v3763 = vpop.xlane.xlu0 %3762
      %v3764 = vsel %vm3664, %v3732, 0.0
      %3765 = vadd.xlane.f32.xlu0 %v3764
      %v3766 = vpop.xlane.xlu0 %3765
      %v3767 = vsel %vm3664, %v3734, 0.0
      %3768 = vadd.xlane.f32.xlu0 %v3767
      %v3769 = vpop.xlane.xlu0 %3768
      %v3770 = vsel %vm3664, %v3736, 0.0
      %3771 = vadd.xlane.f32.xlu0 %v3770
      %v3772 = vpop.xlane.xlu0 %3771
      %v3773 = vsel %vm3664, %v3738, 0.0
      %3774 = vadd.xlane.f32.xlu0 %v3773
      %v3775 = vpop.xlane.xlu0 %3774
      %v3776 = vsel %vm3664, %v3740, 0.0
      %3777 = vadd.xlane.f32.xlu0 %v3776
      %v3778 = vpop.xlane.xlu0 %3777
      %v3779 = vsel %vm3664, %v3742, 0.0
      %3780 = vadd.xlane.f32.xlu0 %v3779
      %v3781 = vpop.xlane.xlu0 %3780
      %v3782 = vsel %vm3664, %v3744, 0.0
      %3783 = vadd.xlane.f32.xlu0 %v3782
      %v3784 = vpop.xlane.xlu0 %3783
      %v3785 = vsel %vm3664, %v3746, 0.0
      %3786 = vadd.xlane.f32.xlu0 %v3785
      %v3787 = vpop.xlane.xlu0 %3786
      %v3788 = vsel %vm3664, %v3748, 0.0
      %3789 = vadd.xlane.f32.xlu0 %v3788
      %v3790 = vpop.xlane.xlu0 %3789
      %v3791 = vsel %vm3664, %v3750, 0.0
      %3792 = vadd.xlane.f32.xlu0 %v3791
      %v3793 = vpop.xlane.xlu0 %3792
      %v3794 = vsel %vm3664, %v3752, 0.0
      %3795 = vadd.xlane.f32.xlu0 %v3794
      %v3796 = vpop.xlane.xlu0 %3795
      %v3797 = vsel %vm3664, %v3754, 0.0
      %3798 = vadd.xlane.f32.xlu0 %v3797
      %v3799 = vpop.xlane.xlu0 %3798
      %v3800 = vsel %vm3664, %v3756, 0.0
      %3801 = vadd.xlane.f32.xlu0 %v3800
      %v3802 = vpop.xlane.xlu0 %3801
      %v3803 = vsel %vm3664, %v3758, 0.0
      %3804 = vadd.xlane.f32.xlu0 %v3803
      %v3805 = vpop.xlane.xlu0 %3804
      %v3806 = vsel %vm3664, %v3760, 0.0
      %3807 = vadd.xlane.f32.xlu0 %v3806
      %v3808 = vpop.xlane.xlu0 %3807
      %v3809 = vrcp.pop %v3763
      %v3810 = vrcp.pop %v3766
      %v3811 = vrcp.pop %v3769
      %v3812 = vrcp.pop %v3772
      %v3813 = vrcp.pop %v3775
      %v3814 = vrcp.pop %v3778
      %v3815 = vrcp.pop %v3781
      %v3816 = vrcp.pop %v3784
      %v3817 = vrcp.pop %v3787
      %v3818 = vrcp.pop %v3790
      %v3819 = vrcp.pop %v3793
      %v3820 = vrcp.pop %v3796
      %v3821 = vrcp.pop %v3799
      %v3822 = vrcp.pop %v3802
      %v3823 = vrcp.pop %v3805
      %v3824 = vrcp.pop %v3808
      %v3825 = vmul.f32 %v3730, %v3809
      %v3826 = vmul.f32 %v3732, %v3810
      %v3827 = vmul.f32 %v3734, %v3811
      %v3828 = vmul.f32 %v3736, %v3812
      %v3829 = vmul.f32 %v3738, %v3813
      %v3830 = vmul.f32 %v3740, %v3814
      %v3831 = vmul.f32 %v3742, %v3815
      %v3832 = vmul.f32 %v3744, %v3816
      %v3833 = vmul.f32 %v3746, %v3817
      %v3834 = vmul.f32 %v3748, %v3818
      %v3835 = vmul.f32 %v3750, %v3819
      %v3836 = vmul.f32 %v3752, %v3820
      %v3837 = vmul.f32 %v3754, %v3821
      %v3838 = vmul.f32 %v3756, %v3822
      %v3839 = vmul.f32 %v3758, %v3823
      %v3840 = vmul.f32 %v3760, %v3824
      %v3841 = vpack.c.bf16 %v3826, %v3825
      %v3842 = vpack.c.bf16 %v3828, %v3827
      %v3843 = vpack.c.bf16 %v3830, %v3829
      %v3844 = vpack.c.bf16 %v3832, %v3831
      %v3845 = vpack.c.bf16 %v3834, %v3833
      %v3846 = vpack.c.bf16 %v3836, %v3835
      %v3847 = vpack.c.bf16 %v3838, %v3837
      %v3848 = vpack.c.bf16 %v3840, %v3839
      %v3850 = vsel %vm3664, %v3841, 0
      %v3853 = vsel %vm3664, %v3842, 0
      %3855 = vmatprep.subr.bf16.mxu0 0
      %3856 = vmatpush1.bf16.msra.mxu0 %v3371
      %3857 = vmatprep.subr.bf16.mxu0 0
      %3858 = vmatpush1.bf16.msra.mxu0 %v3372
      %3859 = vmatprep.subr.bf16.mxu0 0
      %3860 = vmatpush1.bf16.msra.mxu0 %v3373
      %3861 = vmatprep.subr.bf16.mxu0 0
      %3862 = vmatpush1.bf16.msra.mxu0 %v3374
      %3863 = vmatprep.subr.bf16.mxu0 0
      %3864 = vmatpush1.bf16.msra.mxu0 0
      %3865 = vmatprep.subr.bf16.mxu0 0
      %3866 = vmatpush1.bf16.msra.mxu0 0
      %3867 = vmatprep.subr.bf16.mxu0 0
      %3868 = vmatpush1.bf16.msra.mxu0 0
      %3869 = vmatprep.subr.bf16.mxu0 0
      %3870 = vmatpush1.bf16.msra.mxu0 0
      %3871 = vmatprep.subr.bf16.mxu0 0
      %3872 = vmatpush1.bf16.msra.mxu0 0
      %3873 = vmatprep.subr.bf16.mxu0 0
      %3874 = vmatpush1.bf16.msra.mxu0 0
      %3875 = vmatprep.subr.bf16.mxu0 0
      %3876 = vmatpush1.bf16.msra.mxu0 0
      %3877 = vmatprep.subr.bf16.mxu0 0
      %3878 = vmatpush1.bf16.msra.mxu0 0
      %3879 = vmatprep.subr.bf16.mxu0 0
      %3880 = vmatpush1.bf16.msra.mxu0 0
      %3881 = vmatprep.subr.bf16.mxu0 0
      %3882 = vmatpush1.bf16.msra.mxu0 0
      %3883 = vmatprep.subr.bf16.mxu0 0
      %3884 = vmatpush1.bf16.msra.mxu0 0
      %3885 = vmatprep.subr.bf16.mxu0 0
      %3886 = vmatpush1.bf16.msra.mxu0 0
      %3887 = vmatprep.mubr.bf16.mxu0 0
      %3888 = vmatmul.mubr.bf16.gmra.mrb[0].mxu0 %v3850
      %v3889 = vpop.f32.mrb[0].mxu0
      %v3890 = vadd.f32 0.0, %v3889
      %v3891 = vpop.f32.mrb[0].mxu0
      %v3892 = vpop.f32.mrb[0].mxu0
      %v3893 = vadd.f32 0.0, %v3892
      %v3894 = vpop.f32.mrb[0].mxu0
      %3895 = vmatprep.mubr.bf16.mxu0 0
      %3896 = vmatmul.mubr.bf16.gmra.mrb[0].mxu0 %v3853
      %v3897 = vpop.f32.mrb[0].mxu0
      %v3898 = vadd.f32 0.0, %v3897
      %v3899 = vpop.f32.mrb[0].mxu0
      %v3900 = vpop.f32.mrb[0].mxu0
      %v3901 = vadd.f32 0.0, %v3900
      %v3902 = vpop.f32.mrb[0].mxu0
      %3903 = vdwg.mxu0
      %v3905 = vsel %vm3664, %v3843, 0
      %v3908 = vsel %vm3664, %v3844, 0
      %3910 = vmatprep.subr.bf16.mxu0 0
      %3911 = vmatpush1.bf16.msra.mxu0 %v3375
      %3912 = vmatprep.subr.bf16.mxu0 0
      %3913 = vmatpush1.bf16.msra.mxu0 %v3376
      %3914 = vmatprep.subr.bf16.mxu0 0
      %3915 = vmatpush1.bf16.msra.mxu0 %v3377
      %3916 = vmatprep.subr.bf16.mxu0 0
      %3917 = vmatpush1.bf16.msra.mxu0 %v3378
      %3918 = vmatprep.subr.bf16.mxu0 0
      %3919 = vmatpush1.bf16.msra.mxu0 0
      %3920 = vmatprep.subr.bf16.mxu0 0
      %3921 = vmatpush1.bf16.msra.mxu0 0
      %3922 = vmatprep.subr.bf16.mxu0 0
      %3923 = vmatpush1.bf16.msra.mxu0 0
      %3924 = vmatprep.subr.bf16.mxu0 0
      %3925 = vmatpush1.bf16.msra.mxu0 0
      %3926 = vmatprep.subr.bf16.mxu0 0
      %3927 = vmatpush1.bf16.msra.mxu0 0
      %3928 = vmatprep.subr.bf16.mxu0 0
      %3929 = vmatpush1.bf16.msra.mxu0 0
      %3930 = vmatprep.subr.bf16.mxu0 0
      %3931 = vmatpush1.bf16.msra.mxu0 0
      %3932 = vmatprep.subr.bf16.mxu0 0
      %3933 = vmatpush1.bf16.msra.mxu0 0
      %3934 = vmatprep.subr.bf16.mxu0 0
      %3935 = vmatpush1.bf16.msra.mxu0 0
      %3936 = vmatprep.subr.bf16.mxu0 0
      %3937 = vmatpush1.bf16.msra.mxu0 0
      %3938 = vmatprep.subr.bf16.mxu0 0
      %3939 = vmatpush1.bf16.msra.mxu0 0
      %3940 = vmatprep.subr.bf16.mxu0 0
      %3941 = vmatpush1.bf16.msra.mxu0 0
      %3942 = vmatprep.mubr.bf16.mxu0 0
      %3943 = vmatmul.mubr.bf16.gmra.mrb[0].mxu0 %v3905
      %v3944 = vpop.f32.mrb[0].mxu0
      %v3945 = vadd.f32 0.0, %v3944
      %v3946 = vpop.f32.mrb[0].mxu0
      %v3947 = vpop.f32.mrb[0].mxu0
      %v3948 = vadd.f32 0.0, %v3947
      %v3949 = vpop.f32.mrb[0].mxu0
      %3950 = vmatprep.mubr.bf16.mxu0 0
      %3951 = vmatmul.mubr.bf16.gmra.mrb[0].mxu0 %v3908
      %v3952 = vpop.f32.mrb[0].mxu0
      %v3953 = vadd.f32 0.0, %v3952
      %v3954 = vpop.f32.mrb[0].mxu0
      %v3955 = vpop.f32.mrb[0].mxu0
      %v3956 = vadd.f32 0.0, %v3955
      %v3957 = vpop.f32.mrb[0].mxu0
      %3958 = vdwg.mxu0
      %v3960 = vsel %vm3664, %v3845, 0
      %v3963 = vsel %vm3664, %v3846, 0
      %3965 = vmatprep.subr.bf16.mxu0 0
      %3966 = vmatpush1.bf16.msra.mxu0 %v3379
      %3967 = vmatprep.subr.bf16.mxu0 0
      %3968 = vmatpush1.bf16.msra.mxu0 %v3380
      %3969 = vmatprep.subr.bf16.mxu0 0
      %3970 = vmatpush1.bf16.msra.mxu0 %v3381
      %3971 = vmatprep.subr.bf16.mxu0 0
      %3972 = vmatpush1.bf16.msra.mxu0 %v3382
      %3973 = vmatprep.subr.bf16.mxu0 0
      %3974 = vmatpush1.bf16.msra.mxu0 0
      %3975 = vmatprep.subr.bf16.mxu0 0
      %3976 = vmatpush1.bf16.msra.mxu0 0
      %3977 = vmatprep.subr.bf16.mxu0 0
      %3978 = vmatpush1.bf16.msra.mxu0 0
      %3979 = vmatprep.subr.bf16.mxu0 0
      %3980 = vmatpush1.bf16.msra.mxu0 0
      %3981 = vmatprep.subr.bf16.mxu0 0
      %3982 = vmatpush1.bf16.msra.mxu0 0
      %3983 = vmatprep.subr.bf16.mxu0 0
      %3984 = vmatpush1.bf16.msra.mxu0 0
      %3985 = vmatprep.subr.bf16.mxu0 0
      %3986 = vmatpush1.bf16.msra.mxu0 0
      %3987 = vmatprep.subr.bf16.mxu0 0
      %3988 = vmatpush1.bf16.msra.mxu0 0
      %3989 = vmatprep.subr.bf16.mxu0 0
      %3990 = vmatpush1.bf16.msra.mxu0 0
      %3991 = vmatprep.subr.bf16.mxu0 0
      %3992 = vmatpush1.bf16.msra.mxu0 0
      %3993 = vmatprep.subr.bf16.mxu0 0
      %3994 = vmatpush1.bf16.msra.mxu0 0
      %3995 = vmatprep.subr.bf16.mxu0 0
      %3996 = vmatpush1.bf16.msra.mxu0 0
      %3997 = vmatprep.mubr.bf16.mxu0 0
      %3998 = vmatmul.mubr.bf16.gmra.mrb[0].mxu0 %v3960
      %v3999 = vpop.f32.mrb[0].mxu0
      %v4000 = vadd.f32 0.0, %v3999
      %v4001 = vpop.f32.mrb[0].mxu0
      %v4002 = vpop.f32.mrb[0].mxu0
      %v4003 = vadd.f32 0.0, %v4002
      %v4004 = vpop.f32.mrb[0].mxu0
      %4005 = vmatprep.mubr.bf16.mxu0 0
      %4006 = vmatmul.mubr.bf16.gmra.mrb[0].mxu0 %v3963
      %v4007 = vpop.f32.mrb[0].mxu0
      %v4008 = vadd.f32 0.0, %v4007
      %v4009 = vpop.f32.mrb[0].mxu0
      %v4010 = vpop.f32.mrb[0].mxu0
      %v4011 = vadd.f32 0.0, %v4010
      %v4012 = vpop.f32.mrb[0].mxu0
      %4013 = vdwg.mxu0
      %v4015 = vsel %vm3664, %v3847, 0
      %v4018 = vsel %vm3664, %v3848, 0
      %4020 = vmatprep.subr.bf16.mxu0 0
      %4021 = vmatpush1.bf16.msra.mxu0 %v3383
      %4022 = vmatprep.subr.bf16.mxu0 0
      %4023 = vmatpush1.bf16.msra.mxu0 %v3384
      %4024 = vmatprep.subr.bf16.mxu0 0
      %4025 = vmatpush1.bf16.msra.mxu0 %v3385
      %4026 = vmatprep.subr.bf16.mxu0 0
      %4027 = vmatpush1.bf16.msra.mxu0 %v3386
      %4028 = vmatprep.subr.bf16.mxu0 0
      %4029 = vmatpush1.bf16.msra.mxu0 0
      %4030 = vmatprep.subr.bf16.mxu0 0
      %4031 = vmatpush1.bf16.msra.mxu0 0
      %4032 = vmatprep.subr.bf16.mxu0 0
      %4033 = vmatpush1.bf16.msra.mxu0 0
      %4034 = vmatprep.subr.bf16.mxu0 0
      %4035 = vmatpush1.bf16.msra.mxu0 0
      %4036 = vmatprep.subr.bf16.mxu0 0
      %4037 = vmatpush1.bf16.msra.mxu0 0
      %4038 = vmatprep.subr.bf16.mxu0 0
      %4039 = vmatpush1.bf16.msra.mxu0 0
      %4040 = vmatprep.subr.bf16.mxu0 0
      %4041 = vmatpush1.bf16.msra.mxu0 0
      %4042 = vmatprep.subr.bf16.mxu0 0
      %4043 = vmatpush1.bf16.msra.mxu0 0
      %4044 = vmatprep.subr.bf16.mxu0 0
      %4045 = vmatpush1.bf16.msra.mxu0 0
      %4046 = vmatprep.subr.bf16.mxu0 0
      %4047 = vmatpush1.bf16.msra.mxu0 0
      %4048 = vmatprep.subr.bf16.mxu0 0
      %4049 = vmatpush1.bf16.msra.mxu0 0
      %4050 = vmatprep.subr.bf16.mxu0 0
      %4051 = vmatpush1.bf16.msra.mxu0 0
      %4052 = vmatprep.mubr.bf16.mxu0 0
      %4053 = vmatmul.mubr.bf16.gmra.mrb[0].mxu0 %v4015
      %v4054 = vpop.f32.mrb[0].mxu0
      %v4055 = vadd.f32 0.0, %v4054
      %v4056 = vpop.f32.mrb[0].mxu0
      %v4057 = vpop.f32.mrb[0].mxu0
      %v4058 = vadd.f32 0.0, %v4057
      %v4059 = vpop.f32.mrb[0].mxu0
      %4060 = vmatprep.mubr.bf16.mxu0 0
      %4061 = vmatmul.mubr.bf16.gmra.mrb[0].mxu0 %v4018
      %v4062 = vpop.f32.mrb[0].mxu0
      %v4063 = vadd.f32 0.0, %v4062
      %v4064 = vpop.f32.mrb[0].mxu0
      %v4065 = vpop.f32.mrb[0].mxu0
      %v4066 = vadd.f32 0.0, %v4065
      %v4067 = vpop.f32.mrb[0].mxu0
      %4068 = vdwg.mxu0
      %v4069 = vpack.c.bf16 %v3893, %v3890
      %v4070 = vpack.c.bf16 %v3901, %v3898
      %v4071 = vpack.c.bf16 %v3948, %v3945
      %v4072 = vpack.c.bf16 %v3956, %v3953
      %v4073 = vpack.c.bf16 %v4003, %v4000
      %v4074 = vpack.c.bf16 %v4011, %v4008
      %v4075 = vpack.c.bf16 %v4058, %v4055
      %v4076 = vpack.c.bf16 %v4066, %v4063
      %v4077 = vld [vmem:[%s27] sm:$0xf]
      %v4078 = vld [vmem:[%s27 + $0x4] sm:$0xf]
      %v4079 = vld [vmem:[%s27 + $0x8] sm:$0xf]
      %v4080 = vld [vmem:[%s27 + $0xc] sm:$0xf]
      %v4082 = vsel %vm3395, %v4069, 0
      %v4085 = vsel %vm3395, %v4070, 0
      %vm4087 = vcmask 1043456
      %v4089 = vsel %vm4087, %v4077, 0
      %4091 = vmatprep.subr.bf16.mxu0 0
      %4092 = vmatpush1.bf16.msra.mxu0 %v4089
      %4093 = vmatprep.subr.bf16.mxu0 0
      %4094 = vmatpush1.bf16.msra.mxu0 0
      %4095 = vmatprep.subr.bf16.mxu0 0
      %4096 = vmatpush1.bf16.msra.mxu0 0
      %4097 = vmatprep.subr.bf16.mxu0 0
      %4098 = vmatpush1.bf16.msra.mxu0 0
      %4099 = vmatprep.subr.bf16.mxu0 0
      %4100 = vmatpush1.bf16.msra.mxu0 0
      %4101 = vmatprep.subr.bf16.mxu0 0
      %4102 = vmatpush1.bf16.msra.mxu0 0
      %4103 = vmatprep.subr.bf16.mxu0 0
      %4104 = vmatpush1.bf16.msra.mxu0 0
      %4105 = vmatprep.subr.bf16.mxu0 0
      %4106 = vmatpush1.bf16.msra.mxu0 0
      %4107 = vmatprep.subr.bf16.mxu0 0
      %4108 = vmatpush1.bf16.msra.mxu0 0
      %4109 = vmatprep.subr.bf16.mxu0 0
      %4110 = vmatpush1.bf16.msra.mxu0 0
      %4111 = vmatprep.subr.bf16.mxu0 0
      %4112 = vmatpush1.bf16.msra.mxu0 0
      %4113 = vmatprep.subr.bf16.mxu0 0
      %4114 = vmatpush1.bf16.msra.mxu0 0
      %4115 = vmatprep.subr.bf16.mxu0 0
      %4116 = vmatpush1.bf16.msra.mxu0 0
      %4117 = vmatprep.subr.bf16.mxu0 0
      %4118 = vmatpush1.bf16.msra.mxu0 0
      %4119 = vmatprep.subr.bf16.mxu0 0
      %4120 = vmatpush1.bf16.msra.mxu0 0
      %4121 = vmatprep.subr.bf16.mxu0 0
      %4122 = vmatpush1.bf16.msra.mxu0 0
      %4123 = vmatprep.mubr.bf16.mxu0 0
      %4124 = vmatmul.mubr.bf16.gmra.mrb[0].mxu0 %v4082
      %v4125 = vpop.f32.mrb[0].mxu0
      %v4126 = vadd.f32 0.0, %v4125
      %v4127 = vpop.f32.mrb[0].mxu0
      %v4128 = vpop.f32.mrb[0].mxu0
      %v4129 = vadd.f32 0.0, %v4128
      %v4130 = vpop.f32.mrb[0].mxu0
      %4131 = vmatprep.mubr.bf16.mxu0 0
      %4132 = vmatmul.mubr.bf16.gmra.mrb[0].mxu0 %v4085
      %v4133 = vpop.f32.mrb[0].mxu0
      %v4134 = vadd.f32 0.0, %v4133
      %v4135 = vpop.f32.mrb[0].mxu0
      %v4136 = vpop.f32.mrb[0].mxu0
      %v4137 = vadd.f32 0.0, %v4136
      %v4138 = vpop.f32.mrb[0].mxu0
      %4139 = vdwg.mxu0
      %v4141 = vsel %vm3395, %v4071, 0
      %v4144 = vsel %vm3395, %v4072, 0
      %v4147 = vsel %vm4087, %v4078, 0
      %4149 = vmatprep.subr.bf16.mxu0 0
      %4150 = vmatpush1.bf16.msra.mxu0 %v4147
      %4151 = vmatprep.subr.bf16.mxu0 0
      %4152 = vmatpush1.bf16.msra.mxu0 0
      %4153 = vmatprep.subr.bf16.mxu0 0
      %4154 = vmatpush1.bf16.msra.mxu0 0
      %4155 = vmatprep.subr.bf16.mxu0 0
      %4156 = vmatpush1.bf16.msra.mxu0 0
      %4157 = vmatprep.subr.bf16.mxu0 0
      %4158 = vmatpush1.bf16.msra.mxu0 0
      %4159 = vmatprep.subr.bf16.mxu0 0
      %4160 = vmatpush1.bf16.msra.mxu0 0
      %4161 = vmatprep.subr.bf16.mxu0 0
      %4162 = vmatpush1.bf16.msra.mxu0 0
      %4163 = vmatprep.subr.bf16.mxu0 0
      %4164 = vmatpush1.bf16.msra.mxu0 0
      %4165 = vmatprep.subr.bf16.mxu0 0
      %4166 = vmatpush1.bf16.msra.mxu0 0
      %4167 = vmatprep.subr.bf16.mxu0 0
      %4168 = vmatpush1.bf16.msra.mxu0 0
      %4169 = vmatprep.subr.bf16.mxu0 0
      %4170 = vmatpush1.bf16.msra.mxu0 0
      %4171 = vmatprep.subr.bf16.mxu0 0
      %4172 = vmatpush1.bf16.msra.mxu0 0
      %4173 = vmatprep.subr.bf16.mxu0 0
      %4174 = vmatpush1.bf16.msra.mxu0 0
      %4175 = vmatprep.subr.bf16.mxu0 0
      %4176 = vmatpush1.bf16.msra.mxu0 0
      %4177 = vmatprep.subr.bf16.mxu0 0
      %4178 = vmatpush1.bf16.msra.mxu0 0
      %4179 = vmatprep.subr.bf16.mxu0 0
      %4180 = vmatpush1.bf16.msra.mxu0 0
      %4181 = vmatprep.mubr.bf16.mxu0 0
      %4182 = vmatmul.mubr.bf16.gmra.mrb[0].mxu0 %v4141
      %v4183 = vpop.f32.mrb[0].mxu0
      %v4184 = vadd.f32 0.0, %v4183
      %v4185 = vpop.f32.mrb[0].mxu0
      %v4186 = vpop.f32.mrb[0].mxu0
      %v4187 = vadd.f32 0.0, %v4186
      %v4188 = vpop.f32.mrb[0].mxu0
      %4189 = vmatprep.mubr.bf16.mxu0 0
      %4190 = vmatmul.mubr.bf16.gmra.mrb[0].mxu0 %v4144
      %v4191 = vpop.f32.mrb[0].mxu0
      %v4192 = vadd.f32 0.0, %v4191
      %v4193 = vpop.f32.mrb[0].mxu0
      %v4194 = vpop.f32.mrb[0].mxu0
      %v4195 = vadd.f32 0.0, %v4194
      %v4196 = vpop.f32.mrb[0].mxu0
      %4197 = vdwg.mxu0
      %v4199 = vsel %vm3395, %v4073, 0
      %v4202 = vsel %vm3395, %v4074, 0
      %v4205 = vsel %vm4087, %v4079, 0
      %4207 = vmatprep.subr.bf16.mxu0 0
      %4208 = vmatpush1.bf16.msra.mxu0 %v4205
      %4209 = vmatprep.subr.bf16.mxu0 0
      %4210 = vmatpush1.bf16.msra.mxu0 0
      %4211 = vmatprep.subr.bf16.mxu0 0
      %4212 = vmatpush1.bf16.msra.mxu0 0
      %4213 = vmatprep.subr.bf16.mxu0 0
      %4214 = vmatpush1.bf16.msra.mxu0 0
      %4215 = vmatprep.subr.bf16.mxu0 0
      %4216 = vmatpush1.bf16.msra.mxu0 0
      %4217 = vmatprep.subr.bf16.mxu0 0
      %4218 = vmatpush1.bf16.msra.mxu0 0
      %4219 = vmatprep.subr.bf16.mxu0 0
      %4220 = vmatpush1.bf16.msra.mxu0 0
      %4221 = vmatprep.subr.bf16.mxu0 0
      %4222 = vmatpush1.bf16.msra.mxu0 0
      %4223 = vmatprep.subr.bf16.mxu0 0
      %4224 = vmatpush1.bf16.msra.mxu0 0
      %4225 = vmatprep.subr.bf16.mxu0 0
      %4226 = vmatpush1.bf16.msra.mxu0 0
      %4227 = vmatprep.subr.bf16.mxu0 0
      %4228 = vmatpush1.bf16.msra.mxu0 0
      %4229 = vmatprep.subr.bf16.mxu0 0
      %4230 = vmatpush1.bf16.msra.mxu0 0
      %4231 = vmatprep.subr.bf16.mxu0 0
      %4232 = vmatpush1.bf16.msra.mxu0 0
      %4233 = vmatprep.subr.bf16.mxu0 0
      %4234 = vmatpush1.bf16.msra.mxu0 0
      %4235 = vmatprep.subr.bf16.mxu0 0
      %4236 = vmatpush1.bf16.msra.mxu0 0
      %4237 = vmatprep.subr.bf16.mxu0 0
      %4238 = vmatpush1.bf16.msra.mxu0 0
      %4239 = vmatprep.mubr.bf16.mxu0 0
      %4240 = vmatmul.mubr.bf16.gmra.mrb[0].mxu0 %v4199
      %v4241 = vpop.f32.mrb[0].mxu0
      %v4242 = vadd.f32 0.0, %v4241
      %v4243 = vpop.f32.mrb[0].mxu0
      %v4244 = vpop.f32.mrb[0].mxu0
      %v4245 = vadd.f32 0.0, %v4244
      %v4246 = vpop.f32.mrb[0].mxu0
      %4247 = vmatprep.mubr.bf16.mxu0 0
      %4248 = vmatmul.mubr.bf16.gmra.mrb[0].mxu0 %v4202
      %v4249 = vpop.f32.mrb[0].mxu0
      %v4250 = vadd.f32 0.0, %v4249
      %v4251 = vpop.f32.mrb[0].mxu0
      %v4252 = vpop.f32.mrb[0].mxu0
      %v4253 = vadd.f32 0.0, %v4252
      %v4254 = vpop.f32.mrb[0].mxu0
      %4255 = vdwg.mxu0
      %v4257 = vsel %vm3395, %v4075, 0
      %v4260 = vsel %vm3395, %v4076, 0
      %v4263 = vsel %vm4087, %v4080, 0
      %4265 = vmatprep.subr.bf16.mxu0 0
      %4266 = vmatpush1.bf16.msra.mxu0 %v4263
      %4267 = vmatprep.subr.bf16.mxu0 0
      %4268 = vmatpush1.bf16.msra.mxu0 0
      %4269 = vmatprep.subr.bf16.mxu0 0
      %4270 = vmatpush1.bf16.msra.mxu0 0
      %4271 = vmatprep.subr.bf16.mxu0 0
      %4272 = vmatpush1.bf16.msra.mxu0 0
      %4273 = vmatprep.subr.bf16.mxu0 0
      %4274 = vmatpush1.bf16.msra.mxu0 0
      %4275 = vmatprep.subr.bf16.mxu0 0
      %4276 = vmatpush1.bf16.msra.mxu0 0
      %4277 = vmatprep.subr.bf16.mxu0 0
      %4278 = vmatpush1.bf16.msra.mxu0 0
      %4279 = vmatprep.subr.bf16.mxu0 0
      %4280 = vmatpush1.bf16.msra.mxu0 0
      %4281 = vmatprep.subr.bf16.mxu0 0
      %4282 = vmatpush1.bf16.msra.mxu0 0
      %4283 = vmatprep.subr.bf16.mxu0 0
      %4284 = vmatpush1.bf16.msra.mxu0 0
      %4285 = vmatprep.subr.bf16.mxu0 0
      %4286 = vmatpush1.bf16.msra.mxu0 0
      %4287 = vmatprep.subr.bf16.mxu0 0
      %4288 = vmatpush1.bf16.msra.mxu0 0
      %4289 = vmatprep.subr.bf16.mxu0 0
      %4290 = vmatpush1.bf16.msra.mxu0 0
      %4291 = vmatprep.subr.bf16.mxu0 0
      %4292 = vmatpush1.bf16.msra.mxu0 0
      %4293 = vmatprep.subr.bf16.mxu0 0
      %4294 = vmatpush1.bf16.msra.mxu0 0
      %4295 = vmatprep.subr.bf16.mxu0 0
      %4296 = vmatpush1.bf16.msra.mxu0 0
      %4297 = vmatprep.mubr.bf16.mxu0 0
      %4298 = vmatmul.mubr.bf16.gmra.mrb[0].mxu0 %v4257
      %v4299 = vpop.f32.mrb[0].mxu0
      %v4300 = vadd.f32 0.0, %v4299
      %v4301 = vpop.f32.mrb[0].mxu0
      %v4302 = vpop.f32.mrb[0].mxu0
      %v4303 = vadd.f32 0.0, %v4302
      %v4304 = vpop.f32.mrb[0].mxu0
      %4305 = vmatprep.mubr.bf16.mxu0 0
      %4306 = vmatmul.mubr.bf16.gmra.mrb[0].mxu0 %v4260
      %v4307 = vpop.f32.mrb[0].mxu0
      %v4308 = vadd.f32 0.0, %v4307
      %v4309 = vpop.f32.mrb[0].mxu0
      %v4310 = vpop.f32.mrb[0].mxu0
      %v4311 = vadd.f32 0.0, %v4310
      %v4312 = vpop.f32.mrb[0].mxu0
      %4313 = vdwg.mxu0
      %v4314 = vsel %vm3116, %v4126, 0.0
      %v4315 = vsel %vm3116, %v4184, 0.0
      %v4316 = vadd.f32 %v4314, %v4315
      %v4317 = vsel %vm3116, %v4242, 0.0
      %v4318 = vadd.f32 %v4316, %v4317
      %v4319 = vsel %vm3116, %v4300, 0.0
      %v4320 = vadd.f32 %v4318, %v4319
      %v4321 = vsel %vm3116, %v4129, 0.0
      %v4322 = vsel %vm3116, %v4187, 0.0
      %v4323 = vadd.f32 %v4321, %v4322
      %v4324 = vsel %vm3116, %v4245, 0.0
      %v4325 = vadd.f32 %v4323, %v4324
      %v4326 = vsel %vm3116, %v4303, 0.0
      %v4327 = vadd.f32 %v4325, %v4326
      %v4328 = vsel %vm3116, %v4134, 0.0
      %v4329 = vsel %vm3116, %v4192, 0.0
      %v4330 = vadd.f32 %v4328, %v4329
      %v4331 = vsel %vm3116, %v4250, 0.0
      %v4332 = vadd.f32 %v4330, %v4331
      %v4333 = vsel %vm3116, %v4308, 0.0
      %v4334 = vadd.f32 %v4332, %v4333
      %v4335 = vsel %vm3116, %v4137, 0.0
      %v4336 = vsel %vm3116, %v4195, 0.0
      %v4337 = vadd.f32 %v4335, %v4336
      %v4338 = vsel %vm3116, %v4253, 0.0
      %v4339 = vadd.f32 %v4337, %v4338
      %v4340 = vsel %vm3116, %v4311, 0.0
      %v4341 = vadd.f32 %v4339, %v4340
      %v4342 = vld [vmem:[%s29] sm:$0x1]
      %v4344 = vlaneseq
      %v4345 = vshrl.u32 %v4344, 7
      %v4346 = vsub.s32 0, %v4345
      %v4347 = vrot.slane %v4342, %v4346
      %v4349 = vadd.f32 %v4320, %v4347
      %v4350 = vadd.f32 %v4327, %v4347
      %v4351 = vadd.f32 %v4334, %v4347
      %v4352 = vadd.f32 %v4341, %v4347
      %v4353 = vadd.f32 %v3078, %v4349
      %v4354 = vadd.f32 %v3079, %v4350
      %v4355 = vadd.f32 %v3080, %v4351
      %v4356 = vadd.f32 %v3081, %v4352
      %v4357 = vld [vmem:[%s31] sm:$0x1]
      %v4358 = vld [vmem:[%s33] sm:$0x1]
      %v4359 = vsel %vm3116, %v4353, 0.0
      %4360 = vadd.xlane.f32.xlu0 %v4359
      %v4361 = vpop.xlane.xlu0 %4360
      %v4362 = vsel %vm3116, %v4354, 0.0
      %4363 = vadd.xlane.f32.xlu0 %v4362
      %v4364 = vpop.xlane.xlu0 %4363
      %v4365 = vsel %vm3116, %v4355, 0.0
      %4366 = vadd.xlane.f32.xlu0 %v4365
      %v4367 = vpop.xlane.xlu0 %4366
      %v4368 = vsel %vm3116, %v4356, 0.0
      %4369 = vadd.xlane.f32.xlu0 %v4368
      %v4370 = vpop.xlane.xlu0 %4369
      %v4371 = vrcp.pop 32.0
      %v4372 = vmul.f32 %v4361, %v4371
      %v4373 = vmul.f32 %v4364, %v4371
      %v4374 = vmul.f32 %v4367, %v4371
      %v4375 = vmul.f32 %v4370, %v4371
      %v4376 = vsub.f32 %v4353, %v4372
      %v4377 = vsub.f32 %v4354, %v4373
      %v4378 = vsub.f32 %v4355, %v4374
      %v4379 = vsub.f32 %v4356, %v4375
      %v4380 = vmul.f32 %v4376, %v4376
      %v4381 = vmul.f32 %v4377, %v4377
      %v4382 = vmul.f32 %v4378, %v4378
      %v4383 = vmul.f32 %v4379, %v4379
      %v4384 = vsel %vm3116, %v4380, 0.0
      %4385 = vadd.xlane.f32.xlu0 %v4384
      %v4386 = vpop.xlane.xlu0 %4385
      %v4387 = vsel %vm3116, %v4381, 0.0
      %4388 = vadd.xlane.f32.xlu0 %v4387
      %v4389 = vpop.xlane.xlu0 %4388
      %v4390 = vsel %vm3116, %v4382, 0.0
      %4391 = vadd.xlane.f32.xlu0 %v4390
      %v4392 = vpop.xlane.xlu0 %4391
      %v4393 = vsel %vm3116, %v4383, 0.0
      %4394 = vadd.xlane.f32.xlu0 %v4393
      %v4395 = vpop.xlane.xlu0 %4394
      %v4396 = vmul.f32 %v4386, %v4371
      %v4397 = vmul.f32 %v4389, %v4371
      %v4398 = vmul.f32 %v4392, %v4371
      %v4399 = vmul.f32 %v4395, %v4371
      %v4400 = vadd.f32 %v4396, 1e-05
      %v4401 = vadd.f32 %v4397, 1e-05
      %v4402 = vadd.f32 %v4398, 1e-05
      %v4403 = vadd.f32 %v4399, 1e-05
      %v4404 = vrsqrt.pop %v4400
      %v4405 = vrsqrt.pop %v4401
      %v4406 = vrsqrt.pop %v4402
      %v4407 = vrsqrt.pop %v4403
      %v4408 = vmul.f32 %v4376, %v4404
      %v4409 = vmul.f32 %v4377, %v4405
      %v4410 = vmul.f32 %v4378, %v4406
      %v4411 = vmul.f32 %v4379, %v4407
      %v4413 = vlaneseq
      %v4414 = vshrl.u32 %v4413, 7
      %v4415 = vsub.s32 0, %v4414
      %v4416 = vrot.slane %v4357, %v4415
      %v4418 = vmul.f32 %v4408, %v4416
      %v4419 = vmul.f32 %v4409, %v4416
      %v4420 = vmul.f32 %v4410, %v4416
      %v4421 = vmul.f32 %v4411, %v4416
      %v4423 = vlaneseq
      %v4424 = vshrl.u32 %v4423, 7
      %v4425 = vsub.s32 0, %v4424
      %v4426 = vrot.slane %v4358, %v4425
      %v4428 = vadd.f32 %v4418, %v4426
      %v4429 = vadd.f32 %v4419, %v4426
      %v4430 = vadd.f32 %v4420, %v4426
      %v4431 = vadd.f32 %v4421, %v4426
      %v4432 = vpack.c.bf16 %v4429, %v4428
      %v4433 = vpack.c.bf16 %v4431, %v4430
      %v4434 = vld [vmem:[%s35] sm:$0xf]
      %v4435 = vld [vmem:[%s35 + $0x4] sm:$0xf]
      %v4436 = vld [vmem:[%s35 + $0x8] sm:$0xf]
      %v4437 = vld [vmem:[%s35 + $0xc] sm:$0xf]
      %v4438 = vld [vmem:[%s35 + $0x10] sm:$0xf]
      %v4439 = vld [vmem:[%s35 + $0x14] sm:$0xf]
      %v4440 = vld [vmem:[%s35 + $0x18] sm:$0xf]
      %v4441 = vld [vmem:[%s35 + $0x1c] sm:$0xf]
      %v4442 = vld [vmem:[%s35 + $0x20] sm:$0xf]
      %v4443 = vld [vmem:[%s35 + $0x24] sm:$0xf]
      %v4444 = vld [vmem:[%s35 + $0x28] sm:$0xf]
      %v4445 = vld [vmem:[%s35 + $0x2c] sm:$0xf]
      %v4446 = vld [vmem:[%s35 + $0x30] sm:$0xf]
      %v4447 = vld [vmem:[%s35 + $0x34] sm:$0xf]
      %v4448 = vld [vmem:[%s35 + $0x38] sm:$0xf]
      %v4449 = vld [vmem:[%s35 + $0x3c] sm:$0xf]
      %v4454 = vunpack.c.l.b16 %v4434
      %v4455 = vunpack.c.l.b16 %v4435
      %v4456 = vunpack.c.l.b16 %v4436
      %v4457 = vunpack.c.l.b16 %v4437
      %v4458 = vpack.c.b16 %v4455, %v4454
      %v4459 = vpack.c.b16 %v4457, %v4456
      %v4463 = vsel %vm3116, %v4432, 0
      %v4466 = vsel %vm3116, %v4433, 0
      %4468 = vmatprep.subr.bf16.mxu0 0
      %4469 = vmatpush1.bf16.msra.mxu0 %v4458
      %4470 = vmatprep.subr.bf16.mxu0 0
      %4471 = vmatpush1.bf16.msra.mxu0 %v4459
      %4472 = vmatprep.subr.bf16.mxu0 0
      %4473 = vmatpush1.bf16.msra.mxu0 0
      %4474 = vmatprep.subr.bf16.mxu0 0
      %4475 = vmatpush1.bf16.msra.mxu0 0
      %4476 = vmatprep.subr.bf16.mxu0 0
      %4477 = vmatpush1.bf16.msra.mxu0 0
      %4478 = vmatprep.subr.bf16.mxu0 0
      %4479 = vmatpush1.bf16.msra.mxu0 0
      %4480 = vmatprep.subr.bf16.mxu0 0
      %4481 = vmatpush1.bf16.msra.mxu0 0
      %4482 = vmatprep.subr.bf16.mxu0 0
      %4483 = vmatpush1.bf16.msra.mxu0 0
      %4484 = vmatprep.subr.bf16.mxu0 0
      %4485 = vmatpush1.bf16.msra.mxu0 0
      %4486 = vmatprep.subr.bf16.mxu0 0
      %4487 = vmatpush1.bf16.msra.mxu0 0
      %4488 = vmatprep.subr.bf16.mxu0 0
      %4489 = vmatpush1.bf16.msra.mxu0 0
      %4490 = vmatprep.subr.bf16.mxu0 0
      %4491 = vmatpush1.bf16.msra.mxu0 0
      %4492 = vmatprep.subr.bf16.mxu0 0
      %4493 = vmatpush1.bf16.msra.mxu0 0
      %4494 = vmatprep.subr.bf16.mxu0 0
      %4495 = vmatpush1.bf16.msra.mxu0 0
      %4496 = vmatprep.subr.bf16.mxu0 0
      %4497 = vmatpush1.bf16.msra.mxu0 0
      %4498 = vmatprep.subr.bf16.mxu0 0
      %4499 = vmatpush1.bf16.msra.mxu0 0
      %4500 = vmatprep.mubr.bf16.mxu0 0
      %4501 = vmatmul.mubr.bf16.gmra.mrb[0].mxu0 %v4463
      %v4502 = vpop.f32.mrb[0].mxu0
      %v4503 = vadd.f32 0.0, %v4502
      %v4504 = vpop.f32.mrb[0].mxu0
      %v4505 = vpop.f32.mrb[0].mxu0
      %v4506 = vadd.f32 0.0, %v4505
      %v4507 = vpop.f32.mrb[0].mxu0
      %4508 = vmatprep.mubr.bf16.mxu0 0
      %4509 = vmatmul.mubr.bf16.gmra.mrb[0].mxu0 %v4466
      %v4510 = vpop.f32.mrb[0].mxu0
      %v4511 = vadd.f32 0.0, %v4510
      %v4512 = vpop.f32.mrb[0].mxu0
      %v4513 = vpop.f32.mrb[0].mxu0
      %v4514 = vadd.f32 0.0, %v4513
      %v4515 = vpop.f32.mrb[0].mxu0
      %4516 = vdwg.mxu0
      %v4521 = vunpack.c.l.b16 %v4438
      %v4522 = vunpack.c.l.b16 %v4439
      %v4523 = vunpack.c.l.b16 %v4440
      %v4524 = vunpack.c.l.b16 %v4441
      %v4525 = vpack.c.b16 %v4522, %v4521
      %v4526 = vpack.c.b16 %v4524, %v4523
      %4529 = vmatprep.subr.bf16.mxu0 0
      %4530 = vmatpush1.bf16.msra.mxu0 %v4525
      %4531 = vmatprep.subr.bf16.mxu0 0
      %4532 = vmatpush1.bf16.msra.mxu0 %v4526
      %4533 = vmatprep.subr.bf16.mxu0 0
      %4534 = vmatpush1.bf16.msra.mxu0 0
      %4535 = vmatprep.subr.bf16.mxu0 0
      %4536 = vmatpush1.bf16.msra.mxu0 0
      %4537 = vmatprep.subr.bf16.mxu0 0
      %4538 = vmatpush1.bf16.msra.mxu0 0
      %4539 = vmatprep.subr.bf16.mxu0 0
      %4540 = vmatpush1.bf16.msra.mxu0 0
      %4541 = vmatprep.subr.bf16.mxu0 0
      %4542 = vmatpush1.bf16.msra.mxu0 0
      %4543 = vmatprep.subr.bf16.mxu0 0
      %4544 = vmatpush1.bf16.msra.mxu0 0
      %4545 = vmatprep.subr.bf16.mxu0 0
      %4546 = vmatpush1.bf16.msra.mxu0 0
      %4547 = vmatprep.subr.bf16.mxu0 0
      %4548 = vmatpush1.bf16.msra.mxu0 0
      %4549 = vmatprep.subr.bf16.mxu0 0
      %4550 = vmatpush1.bf16.msra.mxu0 0
      %4551 = vmatprep.subr.bf16.mxu0 0
      %4552 = vmatpush1.bf16.msra.mxu0 0
      %4553 = vmatprep.subr.bf16.mxu0 0
      %4554 = vmatpush1.bf16.msra.mxu0 0
      %4555 = vmatprep.subr.bf16.mxu0 0
      %4556 = vmatpush1.bf16.msra.mxu0 0
      %4557 = vmatprep.subr.bf16.mxu0 0
      %4558 = vmatpush1.bf16.msra.mxu0 0
      %4559 = vmatprep.subr.bf16.mxu0 0
      %4560 = vmatpush1.bf16.msra.mxu0 0
      %4561 = vmatprep.mubr.bf16.mxu0 0
      %4562 = vmatmul.mubr.bf16.gmra.mrb[0].mxu0 %v4463
      %v4563 = vpop.f32.mrb[0].mxu0
      %v4564 = vadd.f32 0.0, %v4563
      %v4565 = vpop.f32.mrb[0].mxu0
      %v4566 = vpop.f32.mrb[0].mxu0
      %v4567 = vadd.f32 0.0, %v4566
      %v4568 = vpop.f32.mrb[0].mxu0
      %4569 = vmatprep.mubr.bf16.mxu0 0
      %4570 = vmatmul.mubr.bf16.gmra.mrb[0].mxu0 %v4466
      %v4571 = vpop.f32.mrb[0].mxu0
      %v4572 = vadd.f32 0.0, %v4571
      %v4573 = vpop.f32.mrb[0].mxu0
      %v4574 = vpop.f32.mrb[0].mxu0
      %v4575 = vadd.f32 0.0, %v4574
      %v4576 = vpop.f32.mrb[0].mxu0
      %4577 = vdwg.mxu0
      %v4582 = vunpack.c.l.b16 %v4442
      %v4583 = vunpack.c.l.b16 %v4443
      %v4584 = vunpack.c.l.b16 %v4444
      %v4585 = vunpack.c.l.b16 %v4445
      %v4586 = vpack.c.b16 %v4583, %v4582
      %v4587 = vpack.c.b16 %v4585, %v4584
      %4590 = vmatprep.subr.bf16.mxu0 0
      %4591 = vmatpush1.bf16.msra.mxu0 %v4586
      %4592 = vmatprep.subr.bf16.mxu0 0
      %4593 = vmatpush1.bf16.msra.mxu0 %v4587
      %4594 = vmatprep.subr.bf16.mxu0 0
      %4595 = vmatpush1.bf16.msra.mxu0 0
      %4596 = vmatprep.subr.bf16.mxu0 0
      %4597 = vmatpush1.bf16.msra.mxu0 0
      %4598 = vmatprep.subr.bf16.mxu0 0
      %4599 = vmatpush1.bf16.msra.mxu0 0
      %4600 = vmatprep.subr.bf16.mxu0 0
      %4601 = vmatpush1.bf16.msra.mxu0 0
      %4602 = vmatprep.subr.bf16.mxu0 0
      %4603 = vmatpush1.bf16.msra.mxu0 0
      %4604 = vmatprep.subr.bf16.mxu0 0
      %4605 = vmatpush1.bf16.msra.mxu0 0
      %4606 = vmatprep.subr.bf16.mxu0 0
      %4607 = vmatpush1.bf16.msra.mxu0 0
      %4608 = vmatprep.subr.bf16.mxu0 0
      %4609 = vmatpush1.bf16.msra.mxu0 0
      %4610 = vmatprep.subr.bf16.mxu0 0
      %4611 = vmatpush1.bf16.msra.mxu0 0
      %4612 = vmatprep.subr.bf16.mxu0 0
      %4613 = vmatpush1.bf16.msra.mxu0 0
      %4614 = vmatprep.subr.bf16.mxu0 0
      %4615 = vmatpush1.bf16.msra.mxu0 0
      %4616 = vmatprep.subr.bf16.mxu0 0
      %4617 = vmatpush1.bf16.msra.mxu0 0
      %4618 = vmatprep.subr.bf16.mxu0 0
      %4619 = vmatpush1.bf16.msra.mxu0 0
      %4620 = vmatprep.subr.bf16.mxu0 0
      %4621 = vmatpush1.bf16.msra.mxu0 0
      %4622 = vmatprep.mubr.bf16.mxu0 0
      %4623 = vmatmul.mubr.bf16.gmra.mrb[0].mxu0 %v4463
      %v4624 = vpop.f32.mrb[0].mxu0
      %v4625 = vadd.f32 0.0, %v4624
      %v4626 = vpop.f32.mrb[0].mxu0
      %v4627 = vpop.f32.mrb[0].mxu0
      %v4628 = vadd.f32 0.0, %v4627
      %v4629 = vpop.f32.mrb[0].mxu0
      %4630 = vmatprep.mubr.bf16.mxu0 0
      %4631 = vmatmul.mubr.bf16.gmra.mrb[0].mxu0 %v4466
      %v4632 = vpop.f32.mrb[0].mxu0
      %v4633 = vadd.f32 0.0, %v4632
      %v4634 = vpop.f32.mrb[0].mxu0
      %v4635 = vpop.f32.mrb[0].mxu0
      %v4636 = vadd.f32 0.0, %v4635
      %v4637 = vpop.f32.mrb[0].mxu0
      %4638 = vdwg.mxu0
      %v4643 = vunpack.c.l.b16 %v4446
      %v4644 = vunpack.c.l.b16 %v4447
      %v4645 = vunpack.c.l.b16 %v4448
      %v4646 = vunpack.c.l.b16 %v4449
      %v4647 = vpack.c.b16 %v4644, %v4643
      %v4648 = vpack.c.b16 %v4646, %v4645
      %4651 = vmatprep.subr.bf16.mxu0 0
      %4652 = vmatpush1.bf16.msra.mxu0 %v4647
      %4653 = vmatprep.subr.bf16.mxu0 0
      %4654 = vmatpush1.bf16.msra.mxu0 %v4648
      %4655 = vmatprep.subr.bf16.mxu0 0
      %4656 = vmatpush1.bf16.msra.mxu0 0
      %4657 = vmatprep.subr.bf16.mxu0 0
      %4658 = vmatpush1.bf16.msra.mxu0 0
      %4659 = vmatprep.subr.bf16.mxu0 0
      %4660 = vmatpush1.bf16.msra.mxu0 0
      %4661 = vmatprep.subr.bf16.mxu0 0
      %4662 = vmatpush1.bf16.msra.mxu0 0
      %4663 = vmatprep.subr.bf16.mxu0 0
      %4664 = vmatpush1.bf16.msra.mxu0 0
      %4665 = vmatprep.subr.bf16.mxu0 0
      %4666 = vmatpush1.bf16.msra.mxu0 0
      %4667 = vmatprep.subr.bf16.mxu0 0
      %4668 = vmatpush1.bf16.msra.mxu0 0
      %4669 = vmatprep.subr.bf16.mxu0 0
      %4670 = vmatpush1.bf16.msra.mxu0 0
      %4671 = vmatprep.subr.bf16.mxu0 0
      %4672 = vmatpush1.bf16.msra.mxu0 0
      %4673 = vmatprep.subr.bf16.mxu0 0
      %4674 = vmatpush1.bf16.msra.mxu0 0
      %4675 = vmatprep.subr.bf16.mxu0 0
      %4676 = vmatpush1.bf16.msra.mxu0 0
      %4677 = vmatprep.subr.bf16.mxu0 0
      %4678 = vmatpush1.bf16.msra.mxu0 0
      %4679 = vmatprep.subr.bf16.mxu0 0
      %4680 = vmatpush1.bf16.msra.mxu0 0
      %4681 = vmatprep.subr.bf16.mxu0 0
      %4682 = vmatpush1.bf16.msra.mxu0 0
      %4683 = vmatprep.mubr.bf16.mxu0 0
      %4684 = vmatmul.mubr.bf16.gmra.mrb[0].mxu0 %v4463
      %v4685 = vpop.f32.mrb[0].mxu0
      %v4686 = vadd.f32 0.0, %v4685
      %v4687 = vpop.f32.mrb[0].mxu0
      %v4688 = vpop.f32.mrb[0].mxu0
      %v4689 = vadd.f32 0.0, %v4688
      %v4690 = vpop.f32.mrb[0].mxu0
      %4691 = vmatprep.mubr.bf16.mxu0 0
      %4692 = vmatmul.mubr.bf16.gmra.mrb[0].mxu0 %v4466
      %v4693 = vpop.f32.mrb[0].mxu0
      %v4694 = vadd.f32 0.0, %v4693
      %v4695 = vpop.f32.mrb[0].mxu0
      %v4696 = vpop.f32.mrb[0].mxu0
      %v4697 = vadd.f32 0.0, %v4696
      %v4698 = vpop.f32.mrb[0].mxu0
      %4699 = vdwg.mxu0
      %v4700 = vld [vmem:[#allocation7] sm:$0xf]
      %v4701 = vld [vmem:[#allocation7 + $0x4] sm:$0xf]
      %v4702 = vld [vmem:[#allocation7 + $0x8] sm:$0xf]
      %v4703 = vld [vmem:[#allocation7 + $0xc] sm:$0xf]
      %v4704 = vld [vmem:[#allocation8] sm:$0xf]
      %v4705 = vld [vmem:[#allocation8 + $0x4] sm:$0xf]
      %v4706 = vld [vmem:[#allocation8 + $0x8] sm:$0xf]
      %v4707 = vld [vmem:[#allocation8 + $0xc] sm:$0xf]
      %v4708 = vpack.c.bf16 %v4506, %v4503
      %v4709 = vpack.c.bf16 %v4514, %v4511
      %v4710 = vpack.c.bf16 %v4567, %v4564
      %v4711 = vpack.c.bf16 %v4575, %v4572
      %v4712 = vpack.c.bf16 %v4628, %v4625
      %v4713 = vpack.c.bf16 %v4636, %v4633
      %v4714 = vpack.c.bf16 %v4689, %v4686
      %v4715 = vpack.c.bf16 %v4697, %v4694
      %v4717 = vsel %vm3395, %v4708, 0
      %v4720 = vsel %vm3395, %v4709, 0
      %v4723 = vsel %vm3395, %v4700, 0
      %4725 = vmatprep.subr.bf16.mxu0 0
      %4726 = vmatpush1.bf16.xpose.msra.mxu0 %v4723
      %4727 = vmatprep.subr.bf16.mxu0 0
      %4728 = vmatpush1.bf16.xpose.msra.mxu0 0
      %4729 = vmatprep.subr.bf16.mxu0 0
      %4730 = vmatpush1.bf16.xpose.msra.mxu0 0
      %4731 = vmatprep.subr.bf16.mxu0 0
      %4732 = vmatpush1.bf16.xpose.msra.mxu0 0
      %4733 = vmatprep.subr.bf16.mxu0 0
      %4734 = vmatpush1.bf16.xpose.msra.mxu0 0
      %4735 = vmatprep.subr.bf16.mxu0 0
      %4736 = vmatpush1.bf16.xpose.msra.mxu0 0
      %4737 = vmatprep.subr.bf16.mxu0 0
      %4738 = vmatpush1.bf16.xpose.msra.mxu0 0
      %4739 = vmatprep.subr.bf16.mxu0 0
      %4740 = vmatpush1.bf16.xpose.msra.mxu0 0
      %4741 = vmatprep.subr.bf16.mxu0 0
      %4742 = vmatpush1.bf16.xpose.msra.mxu0 0
      %4743 = vmatprep.subr.bf16.mxu0 0
      %4744 = vmatpush1.bf16.xpose.msra.mxu0 0
      %4745 = vmatprep.subr.bf16.mxu0 0
      %4746 = vmatpush1.bf16.xpose.msra.mxu0 0
      %4747 = vmatprep.subr.bf16.mxu0 0
      %4748 = vmatpush1.bf16.xpose.msra.mxu0 0
      %4749 = vmatprep.subr.bf16.mxu0 0
      %4750 = vmatpush1.bf16.xpose.msra.mxu0 0
      %4751 = vmatprep.subr.bf16.mxu0 0
      %4752 = vmatpush1.bf16.xpose.msra.mxu0 0
      %4753 = vmatprep.subr.bf16.mxu0 0
      %4754 = vmatpush1.bf16.xpose.msra.mxu0 0
      %4755 = vmatprep.subr.bf16.mxu0 0
      %4756 = vmatpush1.bf16.xpose.msra.mxu0 0
      %4757 = vmatprep.mubr.bf16.mxu0 0
      %4758 = vmatmul.mubr.bf16.gmra.mrb[0].mxu0 %v4717
      %v4759 = vpop.f32.mrb[0].mxu0
      %v4760 = vadd.f32 0.0, %v4759
      %v4761 = vpop.f32.mrb[0].mxu0
      %v4762 = vpop.f32.mrb[0].mxu0
      %v4763 = vadd.f32 0.0, %v4762
      %v4764 = vpop.f32.mrb[0].mxu0
      %4765 = vmatprep.mubr.bf16.mxu0 0
      %4766 = vmatmul.mubr.bf16.gmra.mrb[0].mxu0 %v4720
      %v4767 = vpop.f32.mrb[0].mxu0
      %v4768 = vadd.f32 0.0, %v4767
      %v4769 = vpop.f32.mrb[0].mxu0
      %v4770 = vpop.f32.mrb[0].mxu0
      %v4771 = vadd.f32 0.0, %v4770
      %v4772 = vpop.f32.mrb[0].mxu0
      %4773 = vdwg.mxu0
      %v4775 = vsel %vm3395, %v4710, 0
      %v4778 = vsel %vm3395, %v4711, 0
      %v4781 = vsel %vm3395, %v4701, 0
      %4783 = vmatprep.subr.bf16.mxu0 0
      %4784 = vmatpush1.bf16.xpose.msra.mxu0 %v4781
      %4785 = vmatprep.subr.bf16.mxu0 0
      %4786 = vmatpush1.bf16.xpose.msra.mxu0 0
      %4787 = vmatprep.subr.bf16.mxu0 0
      %4788 = vmatpush1.bf16.xpose.msra.mxu0 0
      %4789 = vmatprep.subr.bf16.mxu0 0
      %4790 = vmatpush1.bf16.xpose.msra.mxu0 0
      %4791 = vmatprep.subr.bf16.mxu0 0
      %4792 = vmatpush1.bf16.xpose.msra.mxu0 0
      %4793 = vmatprep.subr.bf16.mxu0 0
      %4794 = vmatpush1.bf16.xpose.msra.mxu0 0
      %4795 = vmatprep.subr.bf16.mxu0 0
      %4796 = vmatpush1.bf16.xpose.msra.mxu0 0
      %4797 = vmatprep.subr.bf16.mxu0 0
      %4798 = vmatpush1.bf16.xpose.msra.mxu0 0
      %4799 = vmatprep.subr.bf16.mxu0 0
      %4800 = vmatpush1.bf16.xpose.msra.mxu0 0
      %4801 = vmatprep.subr.bf16.mxu0 0
      %4802 = vmatpush1.bf16.xpose.msra.mxu0 0
      %4803 = vmatprep.subr.bf16.mxu0 0
      %4804 = vmatpush1.bf16.xpose.msra.mxu0 0
      %4805 = vmatprep.subr.bf16.mxu0 0
      %4806 = vmatpush1.bf16.xpose.msra.mxu0 0
      %4807 = vmatprep.subr.bf16.mxu0 0
      %4808 = vmatpush1.bf16.xpose.msra.mxu0 0
      %4809 = vmatprep.subr.bf16.mxu0 0
      %4810 = vmatpush1.bf16.xpose.msra.mxu0 0
      %4811 = vmatprep.subr.bf16.mxu0 0
      %4812 = vmatpush1.bf16.xpose.msra.mxu0 0
      %4813 = vmatprep.subr.bf16.mxu0 0
      %4814 = vmatpush1.bf16.xpose.msra.mxu0 0
      %4815 = vmatprep.mubr.bf16.mxu0 0
      %4816 = vmatmul.mubr.bf16.gmra.mrb[0].mxu0 %v4775
      %v4817 = vpop.f32.mrb[0].mxu0
      %v4818 = vadd.f32 0.0, %v4817
      %v4819 = vpop.f32.mrb[0].mxu0
      %v4820 = vpop.f32.mrb[0].mxu0
      %v4821 = vadd.f32 0.0, %v4820
      %v4822 = vpop.f32.mrb[0].mxu0
      %4823 = vmatprep.mubr.bf16.mxu0 0
      %4824 = vmatmul.mubr.bf16.gmra.mrb[0].mxu0 %v4778
      %v4825 = vpop.f32.mrb[0].mxu0
      %v4826 = vadd.f32 0.0, %v4825
      %v4827 = vpop.f32.mrb[0].mxu0
      %v4828 = vpop.f32.mrb[0].mxu0
      %v4829 = vadd.f32 0.0, %v4828
      %v4830 = vpop.f32.mrb[0].mxu0
      %4831 = vdwg.mxu0
      %v4833 = vsel %vm3395, %v4712, 0
      %v4836 = vsel %vm3395, %v4713, 0
      %v4839 = vsel %vm3395, %v4702, 0
      %4841 = vmatprep.subr.bf16.mxu0 0
      %4842 = vmatpush1.bf16.xpose.msra.mxu0 %v4839
      %4843 = vmatprep.subr.bf16.mxu0 0
      %4844 = vmatpush1.bf16.xpose.msra.mxu0 0
      %4845 = vmatprep.subr.bf16.mxu0 0
      %4846 = vmatpush1.bf16.xpose.msra.mxu0 0
      %4847 = vmatprep.subr.bf16.mxu0 0
      %4848 = vmatpush1.bf16.xpose.msra.mxu0 0
      %4849 = vmatprep.subr.bf16.mxu0 0
      %4850 = vmatpush1.bf16.xpose.msra.mxu0 0
      %4851 = vmatprep.subr.bf16.mxu0 0
      %4852 = vmatpush1.bf16.xpose.msra.mxu0 0
      %4853 = vmatprep.subr.bf16.mxu0 0
      %4854 = vmatpush1.bf16.xpose.msra.mxu0 0
      %4855 = vmatprep.subr.bf16.mxu0 0
      %4856 = vmatpush1.bf16.xpose.msra.mxu0 0
      %4857 = vmatprep.subr.bf16.mxu0 0
      %4858 = vmatpush1.bf16.xpose.msra.mxu0 0
      %4859 = vmatprep.subr.bf16.mxu0 0
      %4860 = vmatpush1.bf16.xpose.msra.mxu0 0
      %4861 = vmatprep.subr.bf16.mxu0 0
      %4862 = vmatpush1.bf16.xpose.msra.mxu0 0
      %4863 = vmatprep.subr.bf16.mxu0 0
      %4864 = vmatpush1.bf16.xpose.msra.mxu0 0
      %4865 = vmatprep.subr.bf16.mxu0 0
      %4866 = vmatpush1.bf16.xpose.msra.mxu0 0
      %4867 = vmatprep.subr.bf16.mxu0 0
      %4868 = vmatpush1.bf16.xpose.msra.mxu0 0
      %4869 = vmatprep.subr.bf16.mxu0 0
      %4870 = vmatpush1.bf16.xpose.msra.mxu0 0
      %4871 = vmatprep.subr.bf16.mxu0 0
      %4872 = vmatpush1.bf16.xpose.msra.mxu0 0
      %4873 = vmatprep.mubr.bf16.mxu0 0
      %4874 = vmatmul.mubr.bf16.gmra.mrb[0].mxu0 %v4833
      %v4875 = vpop.f32.mrb[0].mxu0
      %v4876 = vadd.f32 0.0, %v4875
      %v4877 = vpop.f32.mrb[0].mxu0
      %v4878 = vpop.f32.mrb[0].mxu0
      %v4879 = vadd.f32 0.0, %v4878
      %v4880 = vpop.f32.mrb[0].mxu0
      %4881 = vmatprep.mubr.bf16.mxu0 0
      %4882 = vmatmul.mubr.bf16.gmra.mrb[0].mxu0 %v4836
      %v4883 = vpop.f32.mrb[0].mxu0
      %v4884 = vadd.f32 0.0, %v4883
      %v4885 = vpop.f32.mrb[0].mxu0
      %v4886 = vpop.f32.mrb[0].mxu0
      %v4887 = vadd.f32 0.0, %v4886
      %v4888 = vpop.f32.mrb[0].mxu0
      %4889 = vdwg.mxu0
      %v4891 = vsel %vm3395, %v4714, 0
      %v4894 = vsel %vm3395, %v4715, 0
      %v4897 = vsel %vm3395, %v4703, 0
      %4899 = vmatprep.subr.bf16.mxu0 0
      %4900 = vmatpush1.bf16.xpose.msra.mxu0 %v4897
      %4901 = vmatprep.subr.bf16.mxu0 0
      %4902 = vmatpush1.bf16.xpose.msra.mxu0 0
      %4903 = vmatprep.subr.bf16.mxu0 0
      %4904 = vmatpush1.bf16.xpose.msra.mxu0 0
      %4905 = vmatprep.subr.bf16.mxu0 0
      %4906 = vmatpush1.bf16.xpose.msra.mxu0 0
      %4907 = vmatprep.subr.bf16.mxu0 0
      %4908 = vmatpush1.bf16.xpose.msra.mxu0 0
      %4909 = vmatprep.subr.bf16.mxu0 0
      %4910 = vmatpush1.bf16.xpose.msra.mxu0 0
      %4911 = vmatprep.subr.bf16.mxu0 0
      %4912 = vmatpush1.bf16.xpose.msra.mxu0 0
      %4913 = vmatprep.subr.bf16.mxu0 0
      %4914 = vmatpush1.bf16.xpose.msra.mxu0 0
      %4915 = vmatprep.subr.bf16.mxu0 0
      %4916 = vmatpush1.bf16.xpose.msra.mxu0 0
      %4917 = vmatprep.subr.bf16.mxu0 0
      %4918 = vmatpush1.bf16.xpose.msra.mxu0 0
      %4919 = vmatprep.subr.bf16.mxu0 0
      %4920 = vmatpush1.bf16.xpose.msra.mxu0 0
      %4921 = vmatprep.subr.bf16.mxu0 0
      %4922 = vmatpush1.bf16.xpose.msra.mxu0 0
      %4923 = vmatprep.subr.bf16.mxu0 0
      %4924 = vmatpush1.bf16.xpose.msra.mxu0 0
      %4925 = vmatprep.subr.bf16.mxu0 0
      %4926 = vmatpush1.bf16.xpose.msra.mxu0 0
      %4927 = vmatprep.subr.bf16.mxu0 0
      %4928 = vmatpush1.bf16.xpose.msra.mxu0 0
      %4929 = vmatprep.subr.bf16.mxu0 0
      %4930 = vmatpush1.bf16.xpose.msra.mxu0 0
      %4931 = vmatprep.mubr.bf16.mxu0 0
      %4932 = vmatmul.mubr.bf16.gmra.mrb[0].mxu0 %v4891
      %v4933 = vpop.f32.mrb[0].mxu0
      %v4934 = vadd.f32 0.0, %v4933
      %v4935 = vpop.f32.mrb[0].mxu0
      %v4936 = vpop.f32.mrb[0].mxu0
      %v4937 = vadd.f32 0.0, %v4936
      %v4938 = vpop.f32.mrb[0].mxu0
      %4939 = vmatprep.mubr.bf16.mxu0 0
      %4940 = vmatmul.mubr.bf16.gmra.mrb[0].mxu0 %v4894
      %v4941 = vpop.f32.mrb[0].mxu0
      %v4942 = vadd.f32 0.0, %v4941
      %v4943 = vpop.f32.mrb[0].mxu0
      %v4944 = vpop.f32.mrb[0].mxu0
      %v4945 = vadd.f32 0.0, %v4944
      %v4946 = vpop.f32.mrb[0].mxu0
      %4947 = vdwg.mxu0
      %v4948 = vsel %vm3395, %v4760, -inf
      %4949 = vmax.xlane.f32.xlu0 %v4948
      %v4950 = vpop.xlane.xlu0 %4949
      %v4951 = vsel %vm3395, %v4763, -inf
      %4952 = vmax.xlane.f32.xlu0 %v4951
      %v4953 = vpop.xlane.xlu0 %4952
      %v4954 = vsel %vm3395, %v4768, -inf
      %4955 = vmax.xlane.f32.xlu0 %v4954
      %v4956 = vpop.xlane.xlu0 %4955
      %v4957 = vsel %vm3395, %v4771, -inf
      %4958 = vmax.xlane.f32.xlu0 %v4957
      %v4959 = vpop.xlane.xlu0 %4958
      %v4960 = vsel %vm3395, %v4818, -inf
      %4961 = vmax.xlane.f32.xlu0 %v4960
      %v4962 = vpop.xlane.xlu0 %4961
      %v4963 = vsel %vm3395, %v4821, -inf
      %4964 = vmax.xlane.f32.xlu0 %v4963
      %v4965 = vpop.xlane.xlu0 %4964
      %v4966 = vsel %vm3395, %v4826, -inf
      %4967 = vmax.xlane.f32.xlu0 %v4966
      %v4968 = vpop.xlane.xlu0 %4967
      %v4969 = vsel %vm3395, %v4829, -inf
      %4970 = vmax.xlane.f32.xlu0 %v4969
      %v4971 = vpop.xlane.xlu0 %4970
      %v4972 = vsel %vm3395, %v4876, -inf
      %4973 = vmax.xlane.f32.xlu0 %v4972
      %v4974 = vpop.xlane.xlu0 %4973
      %v4975 = vsel %vm3395, %v4879, -inf
      %4976 = vmax.xlane.f32.xlu0 %v4975
      %v4977 = vpop.xlane.xlu0 %4976
      %v4978 = vsel %vm3395, %v4884, -inf
      %4979 = vmax.xlane.f32.xlu0 %v4978
      %v4980 = vpop.xlane.xlu0 %4979
      %v4981 = vsel %vm3395, %v4887, -inf
      %4982 = vmax.xlane.f32.xlu0 %v4981
      %v4983 = vpop.xlane.xlu0 %4982
      %v4984 = vsel %vm3395, %v4934, -inf
      %4985 = vmax.xlane.f32.xlu0 %v4984
      %v4986 = vpop.xlane.xlu0 %4985
      %v4987 = vsel %vm3395, %v4937, -inf
      %4988 = vmax.xlane.f32.xlu0 %v4987
      %v4989 = vpop.xlane.xlu0 %4988
      %v4990 = vsel %vm3395, %v4942, -inf
      %4991 = vmax.xlane.f32.xlu0 %v4990
      %v4992 = vpop.xlane.xlu0 %4991
      %v4993 = vsel %vm3395, %v4945, -inf
      %4994 = vmax.xlane.f32.xlu0 %v4993
      %v4995 = vpop.xlane.xlu0 %4994
      %v4996 = vsub.f32 %v4760, %v4950
      %v4997 = vsub.f32 %v4763, %v4953
      %v4998 = vsub.f32 %v4768, %v4956
      %v4999 = vsub.f32 %v4771, %v4959
      %v5000 = vsub.f32 %v4818, %v4962
      %v5001 = vsub.f32 %v4821, %v4965
      %v5002 = vsub.f32 %v4826, %v4968
      %v5003 = vsub.f32 %v4829, %v4971
      %v5004 = vsub.f32 %v4876, %v4974
      %v5005 = vsub.f32 %v4879, %v4977
      %v5006 = vsub.f32 %v4884, %v4980
      %v5007 = vsub.f32 %v4887, %v4983
      %v5008 = vsub.f32 %v4934, %v4986
      %v5009 = vsub.f32 %v4937, %v4989
      %v5010 = vsub.f32 %v4942, %v4992
      %v5011 = vsub.f32 %v4945, %v4995
      %v5012 = vmul.f32 %v4996, 1.442695
      %v5013 = vpow.pop %v5012
      %v5014 = vmul.f32 %v4997, 1.442695
      %v5015 = vpow.pop %v5014
      %v5016 = vmul.f32 %v4998, 1.442695
      %v5017 = vpow.pop %v5016
      %v5018 = vmul.f32 %v4999, 1.442695
      %v5019 = vpow.pop %v5018
      %v5020 = vmul.f32 %v5000, 1.442695
      %v5021 = vpow.pop %v5020
      %v5022 = vmul.f32 %v5001, 1.442695
      %v5023 = vpow.pop %v5022
      %v5024 = vmul.f32 %v5002, 1.442695
      %v5025 = vpow.pop %v5024
      %v5026 = vmul.f32 %v5003, 1.442695
      %v5027 = vpow.pop %v5026
      %v5028 = vmul.f32 %v5004, 1.442695
      %v5029 = vpow.pop %v5028
      %v5030 = vmul.f32 %v5005, 1.442695
      %v5031 = vpow.pop %v5030
      %v5032 = vmul.f32 %v5006, 1.442695
      %v5033 = vpow.pop %v5032
      %v5034 = vmul.f32 %v5007, 1.442695
      %v5035 = vpow.pop %v5034
      %v5036 = vmul.f32 %v5008, 1.442695
      %v5037 = vpow.pop %v5036
      %v5038 = vmul.f32 %v5009, 1.442695
      %v5039 = vpow.pop %v5038
      %v5040 = vmul.f32 %v5010, 1.442695
      %v5041 = vpow.pop %v5040
      %v5042 = vmul.f32 %v5011, 1.442695
      %v5043 = vpow.pop %v5042
      %v5044 = vsel %vm3395, %v5013, 0.0
      %5045 = vadd.xlane.f32.xlu0 %v5044
      %v5046 = vpop.xlane.xlu0 %5045
      %v5047 = vsel %vm3395, %v5015, 0.0
      %5048 = vadd.xlane.f32.xlu0 %v5047
      %v5049 = vpop.xlane.xlu0 %5048
      %v5050 = vsel %vm3395, %v5017, 0.0
      %5051 = vadd.xlane.f32.xlu0 %v5050
      %v5052 = vpop.xlane.xlu0 %5051
      %v5053 = vsel %vm3395, %v5019, 0.0
      %5054 = vadd.xlane.f32.xlu0 %v5053
      %v5055 = vpop.xlane.xlu0 %5054
      %v5056 = vsel %vm3395, %v5021, 0.0
      %5057 = vadd.xlane.f32.xlu0 %v5056
      %v5058 = vpop.xlane.xlu0 %5057
      %v5059 = vsel %vm3395, %v5023, 0.0
      %5060 = vadd.xlane.f32.xlu0 %v5059
      %v5061 = vpop.xlane.xlu0 %5060
      %v5062 = vsel %vm3395, %v5025, 0.0
      %5063 = vadd.xlane.f32.xlu0 %v5062
      %v5064 = vpop.xlane.xlu0 %5063
      %v5065 = vsel %vm3395, %v5027, 0.0
      %5066 = vadd.xlane.f32.xlu0 %v5065
      %v5067 = vpop.xlane.xlu0 %5066
      %v5068 = vsel %vm3395, %v5029, 0.0
      %5069 = vadd.xlane.f32.xlu0 %v5068
      %v5070 = vpop.xlane.xlu0 %5069
      %v5071 = vsel %vm3395, %v5031, 0.0
      %5072 = vadd.xlane.f32.xlu0 %v5071
      %v5073 = vpop.xlane.xlu0 %5072
      %v5074 = vsel %vm3395, %v5033, 0.0
      %5075 = vadd.xlane.f32.xlu0 %v5074
      %v5076 = vpop.xlane.xlu0 %5075
      %v5077 = vsel %vm3395, %v5035, 0.0
      %5078 = vadd.xlane.f32.xlu0 %v5077
      %v5079 = vpop.xlane.xlu0 %5078
      %v5080 = vsel %vm3395, %v5037, 0.0
      %5081 = vadd.xlane.f32.xlu0 %v5080
      %v5082 = vpop.xlane.xlu0 %5081
      %v5083 = vsel %vm3395, %v5039, 0.0
      %5084 = vadd.xlane.f32.xlu0 %v5083
      %v5085 = vpop.xlane.xlu0 %5084
      %v5086 = vsel %vm3395, %v5041, 0.0
      %5087 = vadd.xlane.f32.xlu0 %v5086
      %v5088 = vpop.xlane.xlu0 %5087
      %v5089 = vsel %vm3395, %v5043, 0.0
      %5090 = vadd.xlane.f32.xlu0 %v5089
      %v5091 = vpop.xlane.xlu0 %5090
      %v5092 = vrcp.pop %v5046
      %v5093 = vrcp.pop %v5049
      %v5094 = vrcp.pop %v5052
      %v5095 = vrcp.pop %v5055
      %v5096 = vrcp.pop %v5058
      %v5097 = vrcp.pop %v5061
      %v5098 = vrcp.pop %v5064
      %v5099 = vrcp.pop %v5067
      %v5100 = vrcp.pop %v5070
      %v5101 = vrcp.pop %v5073
      %v5102 = vrcp.pop %v5076
      %v5103 = vrcp.pop %v5079
      %v5104 = vrcp.pop %v5082
      %v5105 = vrcp.pop %v5085
      %v5106 = vrcp.pop %v5088
      %v5107 = vrcp.pop %v5091
      %v5108 = vmul.f32 %v5013, %v5092
      %v5109 = vmul.f32 %v5015, %v5093
      %v5110 = vmul.f32 %v5017, %v5094
      %v5111 = vmul.f32 %v5019, %v5095
      %v5112 = vmul.f32 %v5021, %v5096
      %v5113 = vmul.f32 %v5023, %v5097
      %v5114 = vmul.f32 %v5025, %v5098
      %v5115 = vmul.f32 %v5027, %v5099
      %v5116 = vmul.f32 %v5029, %v5100
      %v5117 = vmul.f32 %v5031, %v5101
      %v5118 = vmul.f32 %v5033, %v5102
      %v5119 = vmul.f32 %v5035, %v5103
      %v5120 = vmul.f32 %v5037, %v5104
      %v5121 = vmul.f32 %v5039, %v5105
      %v5122 = vmul.f32 %v5041, %v5106
      %v5123 = vmul.f32 %v5043, %v5107
      %v5124 = vpack.c.bf16 %v5109, %v5108
      %v5125 = vpack.c.bf16 %v5111, %v5110
      %v5126 = vpack.c.bf16 %v5113, %v5112
      %v5127 = vpack.c.bf16 %v5115, %v5114
      %v5128 = vpack.c.bf16 %v5117, %v5116
      %v5129 = vpack.c.bf16 %v5119, %v5118
      %v5130 = vpack.c.bf16 %v5121, %v5120
      %v5131 = vpack.c.bf16 %v5123, %v5122
      %v5133 = vsel %vm3395, %v5124, 0
      %v5136 = vsel %vm3395, %v5125, 0
      %v5139 = vsel %vm4087, %v4704, 0
      %5141 = vmatprep.subr.bf16.mxu0 0
      %5142 = vmatpush1.bf16.msra.mxu0 %v5139
      %5143 = vmatprep.subr.bf16.mxu0 0
      %5144 = vmatpush1.bf16.msra.mxu0 0
      %5145 = vmatprep.subr.bf16.mxu0 0
      %5146 = vmatpush1.bf16.msra.mxu0 0
      %5147 = vmatprep.subr.bf16.mxu0 0
      %5148 = vmatpush1.bf16.msra.mxu0 0
      %5149 = vmatprep.subr.bf16.mxu0 0
      %5150 = vmatpush1.bf16.msra.mxu0 0
      %5151 = vmatprep.subr.bf16.mxu0 0
      %5152 = vmatpush1.bf16.msra.mxu0 0
      %5153 = vmatprep.subr.bf16.mxu0 0
      %5154 = vmatpush1.bf16.msra.mxu0 0
      %5155 = vmatprep.subr.bf16.mxu0 0
      %5156 = vmatpush1.bf16.msra.mxu0 0
      %5157 = vmatprep.subr.bf16.mxu0 0
      %5158 = vmatpush1.bf16.msra.mxu0 0
      %5159 = vmatprep.subr.bf16.mxu0 0
      %5160 = vmatpush1.bf16.msra.mxu0 0
      %5161 = vmatprep.subr.bf16.mxu0 0
      %5162 = vmatpush1.bf16.msra.mxu0 0
      %5163 = vmatprep.subr.bf16.mxu0 0
      %5164 = vmatpush1.bf16.msra.mxu0 0
      %5165 = vmatprep.subr.bf16.mxu0 0
      %5166 = vmatpush1.bf16.msra.mxu0 0
      %5167 = vmatprep.subr.bf16.mxu0 0
      %5168 = vmatpush1.bf16.msra.mxu0 0
      %5169 = vmatprep.subr.bf16.mxu0 0
      %5170 = vmatpush1.bf16.msra.mxu0 0
      %5171 = vmatprep.subr.bf16.mxu0 0
      %5172 = vmatpush1.bf16.msra.mxu0 0
      %5173 = vmatprep.mubr.bf16.mxu0 0
      %5174 = vmatmul.mubr.bf16.gmra.mrb[0].mxu0 %v5133
      %v5175 = vpop.f32.mrb[0].mxu0
      %v5176 = vadd.f32 0.0, %v5175
      %v5177 = vpop.f32.mrb[0].mxu0
      %v5178 = vpop.f32.mrb[0].mxu0
      %v5179 = vadd.f32 0.0, %v5178
      %v5180 = vpop.f32.mrb[0].mxu0
      %5181 = vmatprep.mubr.bf16.mxu0 0
      %5182 = vmatmul.mubr.bf16.gmra.mrb[0].mxu0 %v5136
      %v5183 = vpop.f32.mrb[0].mxu0
      %v5184 = vadd.f32 0.0, %v5183
      %v5185 = vpop.f32.mrb[0].mxu0
      %v5186 = vpop.f32.mrb[0].mxu0
      %v5187 = vadd.f32 0.0, %v5186
      %v5188 = vpop.f32.mrb[0].mxu0
      %5189 = vdwg.mxu0
      %v5191 = vsel %vm3395, %v5126, 0
      %v5194 = vsel %vm3395, %v5127, 0
      %v5197 = vsel %vm4087, %v4705, 0
      %5199 = vmatprep.subr.bf16.mxu0 0
      %5200 = vmatpush1.bf16.msra.mxu0 %v5197
      %5201 = vmatprep.subr.bf16.mxu0 0
      %5202 = vmatpush1.bf16.msra.mxu0 0
      %5203 = vmatprep.subr.bf16.mxu0 0
      %5204 = vmatpush1.bf16.msra.mxu0 0
      %5205 = vmatprep.subr.bf16.mxu0 0
      %5206 = vmatpush1.bf16.msra.mxu0 0
      %5207 = vmatprep.subr.bf16.mxu0 0
      %5208 = vmatpush1.bf16.msra.mxu0 0
      %5209 = vmatprep.subr.bf16.mxu0 0
      %5210 = vmatpush1.bf16.msra.mxu0 0
      %5211 = vmatprep.subr.bf16.mxu0 0
      %5212 = vmatpush1.bf16.msra.mxu0 0
      %5213 = vmatprep.subr.bf16.mxu0 0
      %5214 = vmatpush1.bf16.msra.mxu0 0
      %5215 = vmatprep.subr.bf16.mxu0 0
      %5216 = vmatpush1.bf16.msra.mxu0 0
      %5217 = vmatprep.subr.bf16.mxu0 0
      %5218 = vmatpush1.bf16.msra.mxu0 0
      %5219 = vmatprep.subr.bf16.mxu0 0
      %5220 = vmatpush1.bf16.msra.mxu0 0
      %5221 = vmatprep.subr.bf16.mxu0 0
      %5222 = vmatpush1.bf16.msra.mxu0 0
      %5223 = vmatprep.subr.bf16.mxu0 0
      %5224 = vmatpush1.bf16.msra.mxu0 0
      %5225 = vmatprep.subr.bf16.mxu0 0
      %5226 = vmatpush1.bf16.msra.mxu0 0
      %5227 = vmatprep.subr.bf16.mxu0 0
      %5228 = vmatpush1.bf16.msra.mxu0 0
      %5229 = vmatprep.subr.bf16.mxu0 0
      %5230 = vmatpush1.bf16.msra.mxu0 0
      %5231 = vmatprep.mubr.bf16.mxu0 0
      %5232 = vmatmul.mubr.bf16.gmra.mrb[0].mxu0 %v5191
      %v5233 = vpop.f32.mrb[0].mxu0
      %v5234 = vadd.f32 0.0, %v5233
      %v5235 = vpop.f32.mrb[0].mxu0
      %v5236 = vpop.f32.mrb[0].mxu0
      %v5237 = vadd.f32 0.0, %v5236
      %v5238 = vpop.f32.mrb[0].mxu0
      %5239 = vmatprep.mubr.bf16.mxu0 0
      %5240 = vmatmul.mubr.bf16.gmra.mrb[0].mxu0 %v5194
      %v5241 = vpop.f32.mrb[0].mxu0
      %v5242 = vadd.f32 0.0, %v5241
      %v5243 = vpop.f32.mrb[0].mxu0
      %v5244 = vpop.f32.mrb[0].mxu0
      %v5245 = vadd.f32 0.0, %v5244
      %v5246 = vpop.f32.mrb[0].mxu0
      %5247 = vdwg.mxu0
      %v5249 = vsel %vm3395, %v5128, 0
      %v5252 = vsel %vm3395, %v5129, 0
      %v5255 = vsel %vm4087, %v4706, 0
      %5257 = vmatprep.subr.bf16.mxu0 0
      %5258 = vmatpush1.bf16.msra.mxu0 %v5255
      %5259 = vmatprep.subr.bf16.mxu0 0
      %5260 = vmatpush1.bf16.msra.mxu0 0
      %5261 = vmatprep.subr.bf16.mxu0 0
      %5262 = vmatpush1.bf16.msra.mxu0 0
      %5263 = vmatprep.subr.bf16.mxu0 0
      %5264 = vmatpush1.bf16.msra.mxu0 0
      %5265 = vmatprep.subr.bf16.mxu0 0
      %5266 = vmatpush1.bf16.msra.mxu0 0
      %5267 = vmatprep.subr.bf16.mxu0 0
      %5268 = vmatpush1.bf16.msra.mxu0 0
      %5269 = vmatprep.subr.bf16.mxu0 0
      %5270 = vmatpush1.bf16.msra.mxu0 0
      %5271 = vmatprep.subr.bf16.mxu0 0
      %5272 = vmatpush1.bf16.msra.mxu0 0
      %5273 = vmatprep.subr.bf16.mxu0 0
      %5274 = vmatpush1.bf16.msra.mxu0 0
      %5275 = vmatprep.subr.bf16.mxu0 0
      %5276 = vmatpush1.bf16.msra.mxu0 0
      %5277 = vmatprep.subr.bf16.mxu0 0
      %5278 = vmatpush1.bf16.msra.mxu0 0
      %5279 = vmatprep.subr.bf16.mxu0 0
      %5280 = vmatpush1.bf16.msra.mxu0 0
      %5281 = vmatprep.subr.bf16.mxu0 0
      %5282 = vmatpush1.bf16.msra.mxu0 0
      %5283 = vmatprep.subr.bf16.mxu0 0
      %5284 = vmatpush1.bf16.msra.mxu0 0
      %5285 = vmatprep.subr.bf16.mxu0 0
      %5286 = vmatpush1.bf16.msra.mxu0 0
      %5287 = vmatprep.subr.bf16.mxu0 0
      %5288 = vmatpush1.bf16.msra.mxu0 0
      %5289 = vmatprep.mubr.bf16.mxu0 0
      %5290 = vmatmul.mubr.bf16.gmra.mrb[0].mxu0 %v5249
      %v5291 = vpop.f32.mrb[0].mxu0
      %v5292 = vadd.f32 0.0, %v5291
      %v5293 = vpop.f32.mrb[0].mxu0
      %v5294 = vpop.f32.mrb[0].mxu0
      %v5295 = vadd.f32 0.0, %v5294
      %v5296 = vpop.f32.mrb[0].mxu0
      %5297 = vmatprep.mubr.bf16.mxu0 0
      %5298 = vmatmul.mubr.bf16.gmra.mrb[0].mxu0 %v5252
      %v5299 = vpop.f32.mrb[0].mxu0
      %v5300 = vadd.f32 0.0, %v5299
      %v5301 = vpop.f32.mrb[0].mxu0
      %v5302 = vpop.f32.mrb[0].mxu0
      %v5303 = vadd.f32 0.0, %v5302
      %v5304 = vpop.f32.mrb[0].mxu0
      %5305 = vdwg.mxu0
      %v5307 = vsel %vm3395, %v5130, 0
      %v5310 = vsel %vm3395, %v5131, 0
      %v5313 = vsel %vm4087, %v4707, 0
      %5315 = vmatprep.subr.bf16.mxu0 0
      %5316 = vmatpush1.bf16.msra.mxu0 %v5313
      %5317 = vmatprep.subr.bf16.mxu0 0
      %5318 = vmatpush1.bf16.msra.mxu0 0
      %5319 = vmatprep.subr.bf16.mxu0 0
      %5320 = vmatpush1.bf16.msra.mxu0 0
      %5321 = vmatprep.subr.bf16.mxu0 0
      %5322 = vmatpush1.bf16.msra.mxu0 0
      %5323 = vmatprep.subr.bf16.mxu0 0
      %5324 = vmatpush1.bf16.msra.mxu0 0
      %5325 = vmatprep.subr.bf16.mxu0 0
      %5326 = vmatpush1.bf16.msra.mxu0 0
      %5327 = vmatprep.subr.bf16.mxu0 0
      %5328 = vmatpush1.bf16.msra.mxu0 0
      %5329 = vmatprep.subr.bf16.mxu0 0
      %5330 = vmatpush1.bf16.msra.mxu0 0
      %5331 = vmatprep.subr.bf16.mxu0 0
      %5332 = vmatpush1.bf16.msra.mxu0 0
      %5333 = vmatprep.subr.bf16.mxu0 0
      %5334 = vmatpush1.bf16.msra.mxu0 0
      %5335 = vmatprep.subr.bf16.mxu0 0
      %5336 = vmatpush1.bf16.msra.mxu0 0
      %5337 = vmatprep.subr.bf16.mxu0 0
      %5338 = vmatpush1.bf16.msra.mxu0 0
      %5339 = vmatprep.subr.bf16.mxu0 0
      %5340 = vmatpush1.bf16.msra.mxu0 0
      %5341 = vmatprep.subr.bf16.mxu0 0
      %5342 = vmatpush1.bf16.msra.mxu0 0
      %5343 = vmatprep.subr.bf16.mxu0 0
      %5344 = vmatpush1.bf16.msra.mxu0 0
      %5345 = vmatprep.subr.bf16.mxu0 0
      %5346 = vmatpush1.bf16.msra.mxu0 0
      %5347 = vmatprep.mubr.bf16.mxu0 0
      %5348 = vmatmul.mubr.bf16.gmra.mrb[0].mxu0 %v5307
      %v5349 = vpop.f32.mrb[0].mxu0
      %v5350 = vadd.f32 0.0, %v5349
      %v5351 = vpop.f32.mrb[0].mxu0
      %v5352 = vpop.f32.mrb[0].mxu0
      %v5353 = vadd.f32 0.0, %v5352
      %v5354 = vpop.f32.mrb[0].mxu0
      %5355 = vmatprep.mubr.bf16.mxu0 0
      %5356 = vmatmul.mubr.bf16.gmra.mrb[0].mxu0 %v5310
      %v5357 = vpop.f32.mrb[0].mxu0
      %v5358 = vadd.f32 0.0, %v5357
      %v5359 = vpop.f32.mrb[0].mxu0
      %v5360 = vpop.f32.mrb[0].mxu0
      %v5361 = vadd.f32 0.0, %v5360
      %v5362 = vpop.f32.mrb[0].mxu0
      %5363 = vdwg.mxu0
      %v5364 = vpack.c.bf16 %v5179, %v5176
      %v5365 = vpack.c.bf16 %v5187, %v5184
      %v5366 = vpack.c.bf16 %v5237, %v5234
      %v5367 = vpack.c.bf16 %v5245, %v5242
      %v5368 = vpack.c.bf16 %v5295, %v5292
      %v5369 = vpack.c.bf16 %v5303, %v5300
      %v5370 = vpack.c.bf16 %v5353, %v5350
      %v5371 = vpack.c.bf16 %v5361, %v5358
      %v5372 = vld [vmem:[%s41] sm:$0xf]
      %v5373 = vld [vmem:[%s41 + $0x4] sm:$0xf]
      %v5374 = vld [vmem:[%s41 + $0x8] sm:$0xf]
      %v5375 = vld [vmem:[%s41 + $0xc] sm:$0xf]
      %v5377 = vsel %vm3395, %v5364, 0
      %v5380 = vsel %vm3395, %v5365, 0
      %v5383 = vsel %vm4087, %v5372, 0
      %5385 = vmatprep.subr.bf16.mxu0 0
      %5386 = vmatpush1.bf16.msra.mxu0 %v5383
      %5387 = vmatprep.subr.bf16.mxu0 0
      %5388 = vmatpush1.bf16.msra.mxu0 0
      %5389 = vmatprep.subr.bf16.mxu0 0
      %5390 = vmatpush1.bf16.msra.mxu0 0
      %5391 = vmatprep.subr.bf16.mxu0 0
      %5392 = vmatpush1.bf16.msra.mxu0 0
      %5393 = vmatprep.subr.bf16.mxu0 0
      %5394 = vmatpush1.bf16.msra.mxu0 0
      %5395 = vmatprep.subr.bf16.mxu0 0
      %5396 = vmatpush1.bf16.msra.mxu0 0
      %5397 = vmatprep.subr.bf16.mxu0 0
      %5398 = vmatpush1.bf16.msra.mxu0 0
      %5399 = vmatprep.subr.bf16.mxu0 0
      %5400 = vmatpush1.bf16.msra.mxu0 0
      %5401 = vmatprep.subr.bf16.mxu0 0
      %5402 = vmatpush1.bf16.msra.mxu0 0
      %5403 = vmatprep.subr.bf16.mxu0 0
      %5404 = vmatpush1.bf16.msra.mxu0 0
      %5405 = vmatprep.subr.bf16.mxu0 0
      %5406 = vmatpush1.bf16.msra.mxu0 0
      %5407 = vmatprep.subr.bf16.mxu0 0
      %5408 = vmatpush1.bf16.msra.mxu0 0
      %5409 = vmatprep.subr.bf16.mxu0 0
      %5410 = vmatpush1.bf16.msra.mxu0 0
      %5411 = vmatprep.subr.bf16.mxu0 0
      %5412 = vmatpush1.bf16.msra.mxu0 0
      %5413 = vmatprep.subr.bf16.mxu0 0
      %5414 = vmatpush1.bf16.msra.mxu0 0
      %5415 = vmatprep.subr.bf16.mxu0 0
      %5416 = vmatpush1.bf16.msra.mxu0 0
      %5417 = vmatprep.mubr.bf16.mxu0 0
      %5418 = vmatmul.mubr.bf16.gmra.mrb[0].mxu0 %v5377
      %v5419 = vpop.f32.mrb[0].mxu0
      %v5420 = vadd.f32 0.0, %v5419
      %v5421 = vpop.f32.mrb[0].mxu0
      %v5422 = vpop.f32.mrb[0].mxu0
      %v5423 = vadd.f32 0.0, %v5422
      %v5424 = vpop.f32.mrb[0].mxu0
      %5425 = vmatprep.mubr.bf16.mxu0 0
      %5426 = vmatmul.mubr.bf16.gmra.mrb[0].mxu0 %v5380
      %v5427 = vpop.f32.mrb[0].mxu0
      %v5428 = vadd.f32 0.0, %v5427
      %v5429 = vpop.f32.mrb[0].mxu0
      %v5430 = vpop.f32.mrb[0].mxu0
      %v5431 = vadd.f32 0.0, %v5430
      %v5432 = vpop.f32.mrb[0].mxu0
      %5433 = vdwg.mxu0
      %v5435 = vsel %vm3395, %v5366, 0
      %v5438 = vsel %vm3395, %v5367, 0
      %v5441 = vsel %vm4087, %v5373, 0
      %5443 = vmatprep.subr.bf16.mxu0 0
      %5444 = vmatpush1.bf16.msra.mxu0 %v5441
      %5445 = vmatprep.subr.bf16.mxu0 0
      %5446 = vmatpush1.bf16.msra.mxu0 0
      %5447 = vmatprep.subr.bf16.mxu0 0
      %5448 = vmatpush1.bf16.msra.mxu0 0
      %5449 = vmatprep.subr.bf16.mxu0 0
      %5450 = vmatpush1.bf16.msra.mxu0 0
      %5451 = vmatprep.subr.bf16.mxu0 0
      %5452 = vmatpush1.bf16.msra.mxu0 0
      %5453 = vmatprep.subr.bf16.mxu0 0
      %5454 = vmatpush1.bf16.msra.mxu0 0
      %5455 = vmatprep.subr.bf16.mxu0 0
      %5456 = vmatpush1.bf16.msra.mxu0 0
      %5457 = vmatprep.subr.bf16.mxu0 0
      %5458 = vmatpush1.bf16.msra.mxu0 0
      %5459 = vmatprep.subr.bf16.mxu0 0
      %5460 = vmatpush1.bf16.msra.mxu0 0
      %5461 = vmatprep.subr.bf16.mxu0 0
      %5462 = vmatpush1.bf16.msra.mxu0 0
      %5463 = vmatprep.subr.bf16.mxu0 0
      %5464 = vmatpush1.bf16.msra.mxu0 0
      %5465 = vmatprep.subr.bf16.mxu0 0
      %5466 = vmatpush1.bf16.msra.mxu0 0
      %5467 = vmatprep.subr.bf16.mxu0 0
      %5468 = vmatpush1.bf16.msra.mxu0 0
      %5469 = vmatprep.subr.bf16.mxu0 0
      %5470 = vmatpush1.bf16.msra.mxu0 0
      %5471 = vmatprep.subr.bf16.mxu0 0
      %5472 = vmatpush1.bf16.msra.mxu0 0
      %5473 = vmatprep.subr.bf16.mxu0 0
      %5474 = vmatpush1.bf16.msra.mxu0 0
      %5475 = vmatprep.mubr.bf16.mxu0 0
      %5476 = vmatmul.mubr.bf16.gmra.mrb[0].mxu0 %v5435
      %v5477 = vpop.f32.mrb[0].mxu0
      %v5478 = vadd.f32 0.0, %v5477
      %v5479 = vpop.f32.mrb[0].mxu0
      %v5480 = vpop.f32.mrb[0].mxu0
      %v5481 = vadd.f32 0.0, %v5480
      %v5482 = vpop.f32.mrb[0].mxu0
      %5483 = vmatprep.mubr.bf16.mxu0 0
      %5484 = vmatmul.mubr.bf16.gmra.mrb[0].mxu0 %v5438
      %v5485 = vpop.f32.mrb[0].mxu0
      %v5486 = vadd.f32 0.0, %v5485
      %v5487 = vpop.f32.mrb[0].mxu0
      %v5488 = vpop.f32.mrb[0].mxu0
      %v5489 = vadd.f32 0.0, %v5488
      %v5490 = vpop.f32.mrb[0].mxu0
      %5491 = vdwg.mxu0
      %v5493 = vsel %vm3395, %v5368, 0
      %v5496 = vsel %vm3395, %v5369, 0
      %v5499 = vsel %vm4087, %v5374, 0
      %5501 = vmatprep.subr.bf16.mxu0 0
      %5502 = vmatpush1.bf16.msra.mxu0 %v5499
      %5503 = vmatprep.subr.bf16.mxu0 0
      %5504 = vmatpush1.bf16.msra.mxu0 0
      %5505 = vmatprep.subr.bf16.mxu0 0
      %5506 = vmatpush1.bf16.msra.mxu0 0
      %5507 = vmatprep.subr.bf16.mxu0 0
      %5508 = vmatpush1.bf16.msra.mxu0 0
      %5509 = vmatprep.subr.bf16.mxu0 0
      %5510 = vmatpush1.bf16.msra.mxu0 0
      %5511 = vmatprep.subr.bf16.mxu0 0
      %5512 = vmatpush1.bf16.msra.mxu0 0
      %5513 = vmatprep.subr.bf16.mxu0 0
      %5514 = vmatpush1.bf16.msra.mxu0 0
      %5515 = vmatprep.subr.bf16.mxu0 0
      %5516 = vmatpush1.bf16.msra.mxu0 0
      %5517 = vmatprep.subr.bf16.mxu0 0
      %5518 = vmatpush1.bf16.msra.mxu0 0
      %5519 = vmatprep.subr.bf16.mxu0 0
      %5520 = vmatpush1.bf16.msra.mxu0 0
      %5521 = vmatprep.subr.bf16.mxu0 0
      %5522 = vmatpush1.bf16.msra.mxu0 0
      %5523 = vmatprep.subr.bf16.mxu0 0
      %5524 = vmatpush1.bf16.msra.mxu0 0
      %5525 = vmatprep.subr.bf16.mxu0 0
      %5526 = vmatpush1.bf16.msra.mxu0 0
      %5527 = vmatprep.subr.bf16.mxu0 0
      %5528 = vmatpush1.bf16.msra.mxu0 0
      %5529 = vmatprep.subr.bf16.mxu0 0
      %5530 = vmatpush1.bf16.msra.mxu0 0
      %5531 = vmatprep.subr.bf16.mxu0 0
      %5532 = vmatpush1.bf16.msra.mxu0 0
      %5533 = vmatprep.mubr.bf16.mxu0 0
      %5534 = vmatmul.mubr.bf16.gmra.mrb[0].mxu0 %v5493
      %v5535 = vpop.f32.mrb[0].mxu0
      %v5536 = vadd.f32 0.0, %v5535
      %v5537 = vpop.f32.mrb[0].mxu0
      %v5538 = vpop.f32.mrb[0].mxu0
      %v5539 = vadd.f32 0.0, %v5538
      %v5540 = vpop.f32.mrb[0].mxu0
      %5541 = vmatprep.mubr.bf16.mxu0 0
      %5542 = vmatmul.mubr.bf16.gmra.mrb[0].mxu0 %v5496
      %v5543 = vpop.f32.mrb[0].mxu0
      %v5544 = vadd.f32 0.0, %v5543
      %v5545 = vpop.f32.mrb[0].mxu0
      %v5546 = vpop.f32.mrb[0].mxu0
      %v5547 = vadd.f32 0.0, %v5546
      %v5548 = vpop.f32.mrb[0].mxu0
      %5549 = vdwg.mxu0
      %v5551 = vsel %vm3395, %v5370, 0
      %v5554 = vsel %vm3395, %v5371, 0
      %v5557 = vsel %vm4087, %v5375, 0
      %5559 = vmatprep.subr.bf16.mxu0 0
      %5560 = vmatpush1.bf16.msra.mxu0 %v5557
      %5561 = vmatprep.subr.bf16.mxu0 0
      %5562 = vmatpush1.bf16.msra.mxu0 0
      %5563 = vmatprep.subr.bf16.mxu0 0
      %5564 = vmatpush1.bf16.msra.mxu0 0
      %5565 = vmatprep.subr.bf16.mxu0 0
      %5566 = vmatpush1.bf16.msra.mxu0 0
      %5567 = vmatprep.subr.bf16.mxu0 0
      %5568 = vmatpush1.bf16.msra.mxu0 0
      %5569 = vmatprep.subr.bf16.mxu0 0
      %5570 = vmatpush1.bf16.msra.mxu0 0
      %5571 = vmatprep.subr.bf16.mxu0 0
      %5572 = vmatpush1.bf16.msra.mxu0 0
      %5573 = vmatprep.subr.bf16.mxu0 0
      %5574 = vmatpush1.bf16.msra.mxu0 0
      %5575 = vmatprep.subr.bf16.mxu0 0
      %5576 = vmatpush1.bf16.msra.mxu0 0
      %5577 = vmatprep.subr.bf16.mxu0 0
      %5578 = vmatpush1.bf16.msra.mxu0 0
      %5579 = vmatprep.subr.bf16.mxu0 0
      %5580 = vmatpush1.bf16.msra.mxu0 0
      %5581 = vmatprep.subr.bf16.mxu0 0
      %5582 = vmatpush1.bf16.msra.mxu0 0
      %5583 = vmatprep.subr.bf16.mxu0 0
      %5584 = vmatpush1.bf16.msra.mxu0 0
      %5585 = vmatprep.subr.bf16.mxu0 0
      %5586 = vmatpush1.bf16.msra.mxu0 0
      %5587 = vmatprep.subr.bf16.mxu0 0
      %5588 = vmatpush1.bf16.msra.mxu0 0
      %5589 = vmatprep.subr.bf16.mxu0 0
      %5590 = vmatpush1.bf16.msra.mxu0 0
      %5591 = vmatprep.mubr.bf16.mxu0 0
      %5592 = vmatmul.mubr.bf16.gmra.mrb[0].mxu0 %v5551
      %v5593 = vpop.f32.mrb[0].mxu0
      %v5594 = vadd.f32 0.0, %v5593
      %v5595 = vpop.f32.mrb[0].mxu0
      %v5596 = vpop.f32.mrb[0].mxu0
      %v5597 = vadd.f32 0.0, %v5596
      %v5598 = vpop.f32.mrb[0].mxu0
      %5599 = vmatprep.mubr.bf16.mxu0 0
      %5600 = vmatmul.mubr.bf16.gmra.mrb[0].mxu0 %v5554
      %v5601 = vpop.f32.mrb[0].mxu0
      %v5602 = vadd.f32 0.0, %v5601
      %v5603 = vpop.f32.mrb[0].mxu0
      %v5604 = vpop.f32.mrb[0].mxu0
      %v5605 = vadd.f32 0.0, %v5604
      %v5606 = vpop.f32.mrb[0].mxu0
      %5607 = vdwg.mxu0
      %v5608 = vsel %vm3116, %v5420, 0.0
      %v5609 = vsel %vm3116, %v5478, 0.0
      %v5610 = vadd.f32 %v5608, %v5609
      %v5611 = vsel %vm3116, %v5536, 0.0
      %v5612 = vadd.f32 %v5610, %v5611
      %v5613 = vsel %vm3116, %v5594, 0.0
      %v5614 = vadd.f32 %v5612, %v5613
      %v5615 = vsel %vm3116, %v5423, 0.0
      %v5616 = vsel %vm3116, %v5481, 0.0
      %v5617 = vadd.f32 %v5615, %v5616
      %v5618 = vsel %vm3116, %v5539, 0.0
      %v5619 = vadd.f32 %v5617, %v5618
      %v5620 = vsel %vm3116, %v5597, 0.0
      %v5621 = vadd.f32 %v5619, %v5620
      %v5622 = vsel %vm3116, %v5428, 0.0
      %v5623 = vsel %vm3116, %v5486, 0.0
      %v5624 = vadd.f32 %v5622, %v5623
      %v5625 = vsel %vm3116, %v5544, 0.0
      %v5626 = vadd.f32 %v5624, %v5625
      %v5627 = vsel %vm3116, %v5602, 0.0
      %v5628 = vadd.f32 %v5626, %v5627
      %v5629 = vsel %vm3116, %v5431, 0.0
      %v5630 = vsel %vm3116, %v5489, 0.0
      %v5631 = vadd.f32 %v5629, %v5630
      %v5632 = vsel %vm3116, %v5547, 0.0
      %v5633 = vadd.f32 %v5631, %v5632
      %v5634 = vsel %vm3116, %v5605, 0.0
      %v5635 = vadd.f32 %v5633, %v5634
      %v5636 = vld [vmem:[%s43] sm:$0x1]
      %v5638 = vlaneseq
      %v5639 = vshrl.u32 %v5638, 7
      %v5640 = vsub.s32 0, %v5639
      %v5641 = vrot.slane %v5636, %v5640
      %v5643 = vadd.f32 %v5614, %v5641
      %v5644 = vadd.f32 %v5621, %v5641
      %v5645 = vadd.f32 %v5628, %v5641
      %v5646 = vadd.f32 %v5635, %v5641
      %v5647 = vadd.f32 %v4353, %v5643
      %v5648 = vadd.f32 %v4354, %v5644
      %v5649 = vadd.f32 %v4355, %v5645
      %v5650 = vadd.f32 %v4356, %v5646
      %v5651 = vld [vmem:[%s45] sm:$0x1]
      %v5652 = vld [vmem:[%s47] sm:$0x1]
      %v5653 = vsel %vm3116, %v5647, 0.0
      %5654 = vadd.xlane.f32.xlu0 %v5653
      %v5655 = vpop.xlane.xlu0 %5654
      %v5656 = vsel %vm3116, %v5648, 0.0
      %5657 = vadd.xlane.f32.xlu0 %v5656
      %v5658 = vpop.xlane.xlu0 %5657
      %v5659 = vsel %vm3116, %v5649, 0.0
      %5660 = vadd.xlane.f32.xlu0 %v5659
      %v5661 = vpop.xlane.xlu0 %5660
      %v5662 = vsel %vm3116, %v5650, 0.0
      %5663 = vadd.xlane.f32.xlu0 %v5662
      %v5664 = vpop.xlane.xlu0 %5663
      %v5665 = vmul.f32 %v5655, %v4371
      %v5666 = vmul.f32 %v5658, %v4371
      %v5667 = vmul.f32 %v5661, %v4371
      %v5668 = vmul.f32 %v5664, %v4371
      %v5669 = vsub.f32 %v5647, %v5665
      %v5670 = vsub.f32 %v5648, %v5666
      %v5671 = vsub.f32 %v5649, %v5667
      %v5672 = vsub.f32 %v5650, %v5668
      %v5673 = vmul.f32 %v5669, %v5669
      %v5674 = vmul.f32 %v5670, %v5670
      %v5675 = vmul.f32 %v5671, %v5671
      %v5676 = vmul.f32 %v5672, %v5672
      %v5677 = vsel %vm3116, %v5673, 0.0
      %5678 = vadd.xlane.f32.xlu0 %v5677
      %v5679 = vpop.xlane.xlu0 %5678
      %v5680 = vsel %vm3116, %v5674, 0.0
      %5681 = vadd.xlane.f32.xlu0 %v5680
      %v5682 = vpop.xlane.xlu0 %5681
      %v5683 = vsel %vm3116, %v5675, 0.0
      %5684 = vadd.xlane.f32.xlu0 %v5683
      %v5685 = vpop.xlane.xlu0 %5684
      %v5686 = vsel %vm3116, %v5676, 0.0
      %5687 = vadd.xlane.f32.xlu0 %v5686
      %v5688 = vpop.xlane.xlu0 %5687
      %v5689 = vmul.f32 %v5679, %v4371
      %v5690 = vmul.f32 %v5682, %v4371
      %v5691 = vmul.f32 %v5685, %v4371
      %v5692 = vmul.f32 %v5688, %v4371
      %v5693 = vadd.f32 %v5689, 1e-05
      %v5694 = vadd.f32 %v5690, 1e-05
      %v5695 = vadd.f32 %v5691, 1e-05
      %v5696 = vadd.f32 %v5692, 1e-05
      %v5697 = vrsqrt.pop %v5693
      %v5698 = vrsqrt.pop %v5694
      %v5699 = vrsqrt.pop %v5695
      %v5700 = vrsqrt.pop %v5696
      %v5701 = vmul.f32 %v5669, %v5697
      %v5702 = vmul.f32 %v5670, %v5698
      %v5703 = vmul.f32 %v5671, %v5699
      %v5704 = vmul.f32 %v5672, %v5700
      %v5706 = vlaneseq
      %v5707 = vshrl.u32 %v5706, 7
      %v5708 = vsub.s32 0, %v5707
      %v5709 = vrot.slane %v5651, %v5708
      %v5711 = vmul.f32 %v5701, %v5709
      %v5712 = vmul.f32 %v5702, %v5709
      %v5713 = vmul.f32 %v5703, %v5709
      %v5714 = vmul.f32 %v5704, %v5709
      %v5716 = vlaneseq
      %v5717 = vshrl.u32 %v5716, 7
      %v5718 = vsub.s32 0, %v5717
      %v5719 = vrot.slane %v5652, %v5718
      %v5721 = vadd.f32 %v5711, %v5719
      %v5722 = vadd.f32 %v5712, %v5719
      %v5723 = vadd.f32 %v5713, %v5719
      %v5724 = vadd.f32 %v5714, %v5719
      %v5725 = vpack.c.bf16 %v5722, %v5721
      %v5726 = vpack.c.bf16 %v5724, %v5723
      %v5727 = vld [vmem:[%s49] sm:$0xf]
      %v5728 = vld [vmem:[%s49 + $0x4] sm:$0xf]
      %v5729 = vld [vmem:[%s49 + $0x8] sm:$0xf]
      %v5730 = vld [vmem:[%s49 + $0xc] sm:$0xf]
      %v5731 = vld [vmem:[%s51] sm:$0x1]
      %v5733 = vlaneseq
      %v5734 = vshrl.u32 %v5733, 7
      %v5735 = vsub.s32 0, %v5734
      %v5736 = vrot.slane %v5731, %v5735
      %v5742 = vunpack.c.l.b16 %v5727
      %v5743 = vunpack.c.l.b16 %v5728
      %v5744 = vunpack.c.l.b16 %v5729
      %v5745 = vunpack.c.l.b16 %v5730
      %v5746 = vpack.c.b16 %v5743, %v5742
      %v5747 = vpack.c.b16 %v5745, %v5744
      %v5751 = vsel %vm3116, %v5725, 0
      %v5754 = vsel %vm3116, %v5726, 0
      %5756 = vmatprep.subr.bf16.mxu0 0
      %5757 = vmatpush1.bf16.msra.mxu0 %v5746
      %5758 = vmatprep.subr.bf16.mxu0 0
      %5759 = vmatpush1.bf16.msra.mxu0 %v5747
      %5760 = vmatprep.subr.bf16.mxu0 0
      %5761 = vmatpush1.bf16.msra.mxu0 0
      %5762 = vmatprep.subr.bf16.mxu0 0
      %5763 = vmatpush1.bf16.msra.mxu0 0
      %5764 = vmatprep.subr.bf16.mxu0 0
      %5765 = vmatpush1.bf16.msra.mxu0 0
      %5766 = vmatprep.subr.bf16.mxu0 0
      %5767 = vmatpush1.bf16.msra.mxu0 0
      %5768 = vmatprep.subr.bf16.mxu0 0
      %5769 = vmatpush1.bf16.msra.mxu0 0
      %5770 = vmatprep.subr.bf16.mxu0 0
      %5771 = vmatpush1.bf16.msra.mxu0 0
      %5772 = vmatprep.subr.bf16.mxu0 0
      %5773 = vmatpush1.bf16.msra.mxu0 0
      %5774 = vmatprep.subr.bf16.mxu0 0
      %5775 = vmatpush1.bf16.msra.mxu0 0
      %5776 = vmatprep.subr.bf16.mxu0 0
      %5777 = vmatpush1.bf16.msra.mxu0 0
      %5778 = vmatprep.subr.bf16.mxu0 0
      %5779 = vmatpush1.bf16.msra.mxu0 0
      %5780 = vmatprep.subr.bf16.mxu0 0
      %5781 = vmatpush1.bf16.msra.mxu0 0
      %5782 = vmatprep.subr.bf16.mxu0 0
      %5783 = vmatpush1.bf16.msra.mxu0 0
      %5784 = vmatprep.subr.bf16.mxu0 0
      %5785 = vmatpush1.bf16.msra.mxu0 0
      %5786 = vmatprep.subr.bf16.mxu0 0
      %5787 = vmatpush1.bf16.msra.mxu0 0
      %5788 = vmatprep.mubr.bf16.mxu0 0
      %5789 = vmatmul.mubr.bf16.gmra.mrb[0].mxu0 %v5751
      %v5790 = vpop.f32.mrb[0].mxu0
      %v5791 = vadd.f32 %v5736, %v5790
      %v5792 = vpop.f32.mrb[0].mxu0
      %v5793 = vpop.f32.mrb[0].mxu0
      %v5794 = vadd.f32 %v5736, %v5793
      %v5795 = vpop.f32.mrb[0].mxu0
      %5796 = vmatprep.mubr.bf16.mxu0 0
      %5797 = vmatmul.mubr.bf16.gmra.mrb[0].mxu0 %v5754
      %v5798 = vpop.f32.mrb[0].mxu0
      %v5799 = vadd.f32 %v5736, %v5798
      %v5800 = vpop.f32.mrb[0].mxu0
      %v5801 = vpop.f32.mrb[0].mxu0
      %v5802 = vadd.f32 %v5736, %v5801
      %v5803 = vpop.f32.mrb[0].mxu0
      %5804 = vdwg.mxu0
      %v5805 = vld [vmem:[%s53] sm:$0xf]
      %v5806 = vld [vmem:[%s53 + $0x4] sm:$0xf]
      %v5807 = vld [vmem:[%s53 + $0x8] sm:$0xf]
      %v5808 = vld [vmem:[%s53 + $0xc] sm:$0xf]
      %v5809 = vld [vmem:[%s55] sm:$0x1]
      %v5811 = vlaneseq
      %v5812 = vshrl.u32 %v5811, 7
      %v5813 = vsub.s32 0, %v5812
      %v5814 = vrot.slane %v5809, %v5813
      %v5820 = vunpack.c.l.b16 %v5805
      %v5821 = vunpack.c.l.b16 %v5806
      %v5822 = vunpack.c.l.b16 %v5807
      %v5823 = vunpack.c.l.b16 %v5808
      %v5824 = vpack.c.b16 %v5821, %v5820
      %v5825 = vpack.c.b16 %v5823, %v5822
      %5828 = vmatprep.subr.bf16.mxu0 0
      %5829 = vmatpush1.bf16.msra.mxu0 %v5824
      %5830 = vmatprep.subr.bf16.mxu0 0
      %5831 = vmatpush1.bf16.msra.mxu0 %v5825
      %5832 = vmatprep.subr.bf16.mxu0 0
      %5833 = vmatpush1.bf16.msra.mxu0 0
      %5834 = vmatprep.subr.bf16.mxu0 0
      %5835 = vmatpush1.bf16.msra.mxu0 0
      %5836 = vmatprep.subr.bf16.mxu0 0
      %5837 = vmatpush1.bf16.msra.mxu0 0
      %5838 = vmatprep.subr.bf16.mxu0 0
      %5839 = vmatpush1.bf16.msra.mxu0 0
      %5840 = vmatprep.subr.bf16.mxu0 0
      %5841 = vmatpush1.bf16.msra.mxu0 0
      %5842 = vmatprep.subr.bf16.mxu0 0
      %5843 = vmatpush1.bf16.msra.mxu0 0
      %5844 = vmatprep.subr.bf16.mxu0 0
      %5845 = vmatpush1.bf16.msra.mxu0 0
      %5846 = vmatprep.subr.bf16.mxu0 0
      %5847 = vmatpush1.bf16.msra.mxu0 0
      %5848 = vmatprep.subr.bf16.mxu0 0
      %5849 = vmatpush1.bf16.msra.mxu0 0
      %5850 = vmatprep.subr.bf16.mxu0 0
      %5851 = vmatpush1.bf16.msra.mxu0 0
      %5852 = vmatprep.subr.bf16.mxu0 0
      %5853 = vmatpush1.bf16.msra.mxu0 0
      %5854 = vmatprep.subr.bf16.mxu0 0
      %5855 = vmatpush1.bf16.msra.mxu0 0
      %5856 = vmatprep.subr.bf16.mxu0 0
      %5857 = vmatpush1.bf16.msra.mxu0 0
      %5858 = vmatprep.subr.bf16.mxu0 0
      %5859 = vmatpush1.bf16.msra.mxu0 0
      %5860 = vmatprep.mubr.bf16.mxu0 0
      %5861 = vmatmul.mubr.bf16.gmra.mrb[0].mxu0 %v5751
      %v5862 = vpop.f32.mrb[0].mxu0
      %v5863 = vadd.f32 %v5814, %v5862
      %v5864 = vpop.f32.mrb[0].mxu0
      %v5865 = vpop.f32.mrb[0].mxu0
      %v5866 = vadd.f32 %v5814, %v5865
      %v5867 = vpop.f32.mrb[0].mxu0
      %5868 = vmatprep.mubr.bf16.mxu0 0
      %5869 = vmatmul.mubr.bf16.gmra.mrb[0].mxu0 %v5754
      %v5870 = vpop.f32.mrb[0].mxu0
      %v5871 = vadd.f32 %v5814, %v5870
      %v5872 = vpop.f32.mrb[0].mxu0
      %v5873 = vpop.f32.mrb[0].mxu0
      %v5874 = vadd.f32 %v5814, %v5873
      %v5875 = vpop.f32.mrb[0].mxu0
      %5876 = vdwg.mxu0
      %v5877 = vmul.f32 %v5863, 0.5
      %v5878 = vmul.f32 %v5866, 0.5
      %v5879 = vmul.f32 %v5871, 0.5
      %v5880 = vmul.f32 %v5874, 0.5
      %v5881 = vmul.f32 %v5863, 0.70710677
      %v5882 = vmul.f32 %v5866, 0.70710677
      %v5883 = vmul.f32 %v5871, 0.70710677
      %v5884 = vmul.f32 %v5874, 0.70710677
      %v5885 = verf.f32.pop %v5881
      %v5886 = verf.f32.pop %v5882
      %v5887 = verf.f32.pop %v5883
      %v5888 = verf.f32.pop %v5884
      %v5889 = vadd.f32 %v5885, 1.0
      %v5890 = vadd.f32 %v5886, 1.0
      %v5891 = vadd.f32 %v5887, 1.0
      %v5892 = vadd.f32 %v5888, 1.0
      %v5893 = vmul.f32 %v5877, %v5889
      %v5894 = vmul.f32 %v5878, %v5890
      %v5895 = vmul.f32 %v5879, %v5891
      %v5896 = vmul.f32 %v5880, %v5892
      %v5897 = vmul.f32 %v5791, %v5893
      %v5898 = vmul.f32 %v5794, %v5894
      %v5899 = vmul.f32 %v5799, %v5895
      %v5900 = vmul.f32 %v5802, %v5896
      %v5901 = vpack.c.bf16 %v5898, %v5897
      %v5902 = vpack.c.bf16 %v5900, %v5899
      %v5903 = vld [vmem:[%s57] sm:$0xf]
      %v5904 = vld [vmem:[%s57 + $0x4] sm:$0xf]
      %v5905 = vld [vmem:[%s57 + $0x8] sm:$0xf]
      %v5906 = vld [vmem:[%s57 + $0xc] sm:$0xf]
      %v5907 = vld [vmem:[%s57 + $0x10] sm:$0xf]
      %v5908 = vld [vmem:[%s57 + $0x14] sm:$0xf]
      %v5909 = vld [vmem:[%s57 + $0x18] sm:$0xf]
      %v5910 = vld [vmem:[%s57 + $0x1c] sm:$0xf]
      %v5911 = vld [vmem:[%s57 + $0x20] sm:$0xf]
      %v5912 = vld [vmem:[%s57 + $0x24] sm:$0xf]
      %v5913 = vld [vmem:[%s57 + $0x28] sm:$0xf]
      %v5914 = vld [vmem:[%s57 + $0x2c] sm:$0xf]
      %v5915 = vld [vmem:[%s57 + $0x30] sm:$0xf]
      %v5916 = vld [vmem:[%s57 + $0x34] sm:$0xf]
      %v5917 = vld [vmem:[%s57 + $0x38] sm:$0xf]
      %v5918 = vld [vmem:[%s57 + $0x3c] sm:$0xf]
      %v5935 = vunpack.c.l.b16 %v5903
      %v5936 = vunpack.c.l.b16 %v5904
      %v5937 = vunpack.c.l.b16 %v5905
      %v5938 = vunpack.c.l.b16 %v5906
      %v5939 = vunpack.c.l.b16 %v5907
      %v5940 = vunpack.c.l.b16 %v5908
      %v5941 = vunpack.c.l.b16 %v5909
      %v5942 = vunpack.c.l.b16 %v5910
      %v5943 = vunpack.c.l.b16 %v5911
      %v5944 = vunpack.c.l.b16 %v5912
      %v5945 = vunpack.c.l.b16 %v5913
      %v5946 = vunpack.c.l.b16 %v5914
      %v5947 = vunpack.c.l.b16 %v5915
      %v5948 = vunpack.c.l.b16 %v5916
      %v5949 = vunpack.c.l.b16 %v5917
      %v5950 = vunpack.c.l.b16 %v5918
      %v5951 = vpack.c.b16 %v5936, %v5935
      %v5952 = vpack.c.b16 %v5938, %v5937
      %v5953 = vpack.c.b16 %v5940, %v5939
      %v5954 = vpack.c.b16 %v5942, %v5941
      %v5955 = vpack.c.b16 %v5944, %v5943
      %v5956 = vpack.c.b16 %v5946, %v5945
      %v5957 = vpack.c.b16 %v5948, %v5947
      %v5958 = vpack.c.b16 %v5950, %v5949
      %5967 = vmatprep.subr.bf16.mxu0 0
      %5968 = vmatpush1.bf16.msra.mxu0 %v5951
      %5969 = vmatprep.subr.bf16.mxu0 0
      %5970 = vmatpush1.bf16.msra.mxu0 %v5952
      %5971 = vmatprep.subr.bf16.mxu0 0
      %5972 = vmatpush1.bf16.msra.mxu0 %v5953
      %5973 = vmatprep.subr.bf16.mxu0 0
      %5974 = vmatpush1.bf16.msra.mxu0 %v5954
      %5975 = vmatprep.subr.bf16.mxu0 0
      %5976 = vmatpush1.bf16.msra.mxu0 %v5955
      %5977 = vmatprep.subr.bf16.mxu0 0
      %5978 = vmatpush1.bf16.msra.mxu0 %v5956
      %5979 = vmatprep.subr.bf16.mxu0 0
      %5980 = vmatpush1.bf16.msra.mxu0 %v5957
      %5981 = vmatprep.subr.bf16.mxu0 0
      %5982 = vmatpush1.bf16.msra.mxu0 %v5958
      %5983 = vmatprep.subr.bf16.mxu0 0
      %5984 = vmatpush1.bf16.msra.mxu0 0
      %5985 = vmatprep.subr.bf16.mxu0 0
      %5986 = vmatpush1.bf16.msra.mxu0 0
      %5987 = vmatprep.subr.bf16.mxu0 0
      %5988 = vmatpush1.bf16.msra.mxu0 0
      %5989 = vmatprep.subr.bf16.mxu0 0
      %5990 = vmatpush1.bf16.msra.mxu0 0
      %5991 = vmatprep.subr.bf16.mxu0 0
      %5992 = vmatpush1.bf16.msra.mxu0 0
      %5993 = vmatprep.subr.bf16.mxu0 0
      %5994 = vmatpush1.bf16.msra.mxu0 0
      %5995 = vmatprep.subr.bf16.mxu0 0
      %5996 = vmatpush1.bf16.msra.mxu0 0
      %5997 = vmatprep.subr.bf16.mxu0 0
      %5998 = vmatpush1.bf16.msra.mxu0 0
      %5999 = vmatprep.mubr.bf16.mxu0 0
      %6000 = vmatmul.mubr.bf16.gmra.mrb[0].mxu0 %v5901
      %v6001 = vpop.f32.mrb[0].mxu0
      %v6002 = vadd.f32 0.0, %v6001
      %v6003 = vpop.f32.mrb[0].mxu0
      %v6004 = vpop.f32.mrb[0].mxu0
      %v6005 = vadd.f32 0.0, %v6004
      %v6006 = vpop.f32.mrb[0].mxu0
      %6007 = vmatprep.mubr.bf16.mxu0 0
      %6008 = vmatmul.mubr.bf16.gmra.mrb[0].mxu0 %v5902
      %v6009 = vpop.f32.mrb[0].mxu0
      %v6010 = vadd.f32 0.0, %v6009
      %v6011 = vpop.f32.mrb[0].mxu0
      %v6012 = vpop.f32.mrb[0].mxu0
      %v6013 = vadd.f32 0.0, %v6012
      %v6014 = vpop.f32.mrb[0].mxu0
      %6015 = vdwg.mxu0
      %v6016 = vadd.f32 %v5647, %v6002
      %v6017 = vadd.f32 %v5648, %v6005
      %v6018 = vadd.f32 %v5649, %v6010
      %v6019 = vadd.f32 %v5650, %v6013
      %v6020 = vld [vmem:[%s59] sm:$0x1]
      %v6022 = vlaneseq
      %v6023 = vshrl.u32 %v6022, 7
      %v6024 = vsub.s32 0, %v6023
      %v6025 = vrot.slane %v6020, %v6024
      %v6027 = vadd.f32 %v6016, %v6025
      %v6028 = vadd.f32 %v6017, %v6025
      %v6029 = vadd.f32 %v6018, %v6025
      %v6030 = vadd.f32 %v6019, %v6025
      %v6031 = vpack.c.bf16 %v6028, %v6027
      %v6032 = vpack.c.bf16 %v6030, %v6029
      %v6033 = vld [vmem:[%s61] sm:$0xf]
      %v6034 = vld [vmem:[%s61 + $0x4] sm:$0xf]
      %v6035 = vld [vmem:[%s61 + $0x8] sm:$0xf]
      %v6036 = vld [vmem:[%s61 + $0xc] sm:$0xf]
      %v6037 = vld [vmem:[%s63] sm:$0x1]
      %v6039 = vlaneseq
      %v6040 = vshrl.u32 %v6039, 7
      %v6041 = vsub.s32 0, %v6040
      %v6042 = vrot.slane %v6037, %v6041
      %v6048 = vunpack.c.l.b16 %v6033
      %v6049 = vunpack.c.l.b16 %v6034
      %v6050 = vunpack.c.l.b16 %v6035
      %v6051 = vunpack.c.l.b16 %v6036
      %v6052 = vpack.c.b16 %v6049, %v6048
      %v6053 = vpack.c.b16 %v6051, %v6050
      %v6057 = vsel %vm3116, %v6031, 0
      %v6060 = vsel %vm3116, %v6032, 0
      %6062 = vmatprep.subr.bf16.mxu0 0
      %6063 = vmatpush1.bf16.msra.mxu0 %v6052
      %6064 = vmatprep.subr.bf16.mxu0 0
      %6065 = vmatpush1.bf16.msra.mxu0 %v6053
      %6066 = vmatprep.subr.bf16.mxu0 0
      %6067 = vmatpush1.bf16.msra.mxu0 0
      %6068 = vmatprep.subr.bf16.mxu0 0
      %6069 = vmatpush1.bf16.msra.mxu0 0
      %6070 = vmatprep.subr.bf16.mxu0 0
      %6071 = vmatpush1.bf16.msra.mxu0 0
      %6072 = vmatprep.subr.bf16.mxu0 0
      %6073 = vmatpush1.bf16.msra.mxu0 0
      %6074 = vmatprep.subr.bf16.mxu0 0
      %6075 = vmatpush1.bf16.msra.mxu0 0
      %6076 = vmatprep.subr.bf16.mxu0 0
      %6077 = vmatpush1.bf16.msra.mxu0 0
      %6078 = vmatprep.subr.bf16.mxu0 0
      %6079 = vmatpush1.bf16.msra.mxu0 0
      %6080 = vmatprep.subr.bf16.mxu0 0
      %6081 = vmatpush1.bf16.msra.mxu0 0
      %6082 = vmatprep.subr.bf16.mxu0 0
      %6083 = vmatpush1.bf16.msra.mxu0 0
      %6084 = vmatprep.subr.bf16.mxu0 0
      %6085 = vmatpush1.bf16.msra.mxu0 0
      %6086 = vmatprep.subr.bf16.mxu0 0
      %6087 = vmatpush1.bf16.msra.mxu0 0
      %6088 = vmatprep.subr.bf16.mxu0 0
      %6089 = vmatpush1.bf16.msra.mxu0 0
      %6090 = vmatprep.subr.bf16.mxu0 0
      %6091 = vmatpush1.bf16.msra.mxu0 0
      %6092 = vmatprep.subr.bf16.mxu0 0
      %6093 = vmatpush1.bf16.msra.mxu0 0
      %6094 = vmatprep.mubr.bf16.mxu0 0
      %6095 = vmatmul.mubr.bf16.gmra.mrb[0].mxu0 %v6057
      %v6096 = vpop.f32.mrb[0].mxu0
      %v6097 = vadd.f32 %v6042, %v6096
      %v6098 = vpop.f32.mrb[0].mxu0
      %v6099 = vpop.f32.mrb[0].mxu0
      %v6100 = vadd.f32 %v6042, %v6099
      %v6101 = vpop.f32.mrb[0].mxu0
      %6102 = vmatprep.mubr.bf16.mxu0 0
      %6103 = vmatmul.mubr.bf16.gmra.mrb[0].mxu0 %v6060
      %v6104 = vpop.f32.mrb[0].mxu0
      %v6105 = vadd.f32 %v6042, %v6104
      %v6106 = vpop.f32.mrb[0].mxu0
      %v6107 = vpop.f32.mrb[0].mxu0
      %v6108 = vadd.f32 %v6042, %v6107
      %v6109 = vpop.f32.mrb[0].mxu0
      %6110 = vdwg.mxu0
      %s6111 = scalar_lea.vmem [#allocation2], %s3076
      %v6112 = vld [vmem:[%s6111] sm:$0xff]
      %v6113 = vld [vmem:[%s6111 + $0x8] sm:$0xff]
      %v6114 = vld [vmem:[%s6111 + $0x10] sm:$0xff]
      %v6115 = vld [vmem:[%s6111 + $0x18] sm:$0xff]
      %v6116 = vadd.f32 %v6097, %v6112
      %v6117 = vadd.f32 %v6100, %v6113
      %v6118 = vadd.f32 %v6105, %v6114
      %v6119 = vadd.f32 %v6108, %v6115
      %6120 = vst.msk [vmem:[%s1025] sm:$0xff] %vm3116, %v6116
      %6121 = vst.msk [vmem:[%s1025 + $0x8] sm:$0xff] %vm3116, %v6117
      %6122 = vst.msk [vmem:[%s1025 + $0x10] sm:$0xff] %vm3116, %v6118
      %6123 = vst.msk [vmem:[%s1025 + $0x18] sm:$0xff] %vm3116, %v6119
      %s6124 = smul.u32 4, %s81
      %p6125 = scmp.lt.s32.totalorder %s80, 1
      %s6126 = scalar_select %p6125, %s80, 1
      %p6127 = scmp.lt.s32.totalorder %s6124, 7
      %s6128 = scalar_select %p6127, %s6124, 7
      %s6129 = smul.addr %s6126, 8
      %s6130 = sadd.s32 %s6128, %s6129
      %s6131 = smul.addr %s6130, 8
      %s6132 = scalar_lea.vmem %s65, %s6131
      // Predicated region
      $region153: #{tpu_custom_call.1} parent=147 // pred_check
        %p6133 = pneg %p790
      $region154: #{tpu_custom_call.1} parent=147 // pred_check_branch
        %6135 = sbr.rel (%p6133) target = $region156
      $region155: #{tpu_custom_call.1} parent=147 // pred_region
        %s6136 = smul.u32 4, %s81
      $region156: #{tpu_custom_call.1} parent=147 // pred_fallthru
        _
    $region148: #{tpu_custom_call.1} parent=5 // pred_fallthru
      _
    %p6137 = scmp.le.s32.totalorder 2, %s71
    // Predicated region
    $region157: #{tpu_custom_call.1} parent=5 // pred_check
      %p6138 = pneg %p6137
    $region158: #{tpu_custom_call.1} parent=5 // pred_check_branch
      %6140 = sbr.rel (%p6138) target = $region160
    $region159: #{tpu_custom_call.1} parent=5 // pred_region
      %s6141 = ssub.s32 %s71, 2
      // Predicated region
      $region161: #{tpu_custom_call.1} parent=159 // pred_check
        %p6142 = pneg %p796
      $region162: #{tpu_custom_call.1} parent=159 // pred_check_branch
        %6144 = sbr.rel (%p6142) target = $region164
      $region163: #{tpu_custom_call.1} parent=159 // pred_region
        %s6145 = smul.u32 4, %s83
        %p6146 = scmp.lt.s32.totalorder %s82, 1
        %s6147 = scalar_select %p6146, %s82, 1
        %p6148 = scmp.lt.s32.totalorder %s6145, 7
        %s6149 = scalar_select %p6148, %s6145, 7
        %s6150 = smul.addr %s6147, 8
        %s6151 = sadd.s32 %s6149, %s6150
        %s6152 = smul.addr %s6151, 8
        %s6153 = scalar_lea.vmem %s65, %s6152
      $region164: #{tpu_custom_call.1} parent=159 // pred_fallthru
        _
    $region160: #{tpu_custom_call.1} parent=5 // pred_fallthru
      _
  $region6: #{tpu_custom_call.1} parent=0 // loop_footer
    %s75 = sadd.s32 1, %s71
  $region7: #{tpu_custom_call.1} parent=0 // loop_footer_branch
    %70 = sbr.rel target = $region3
  $region8: #{tpu_custom_call.1} parent=0 // loop_exit
    _

</llo_original>
